<compile_context>
chip_gen: v7x
topology: tpu7x:2x2x1
jax: 0.10.0
libtpu: 0.0.40
codegen_flags: <defaults>
</compile_context>

<pallas_src>
import jax
import jax.numpy as jnp
from jax import lax
from jax.experimental import pallas as pl
from jax.experimental.pallas import tpu as pltpu

C_OUT = 32
H = W = 36
PH = PW = 18            # pooled spatial
S = PH * PW             # 324 pooled pixels per channel
FEAT = C_OUT * S        # 10368
HID = 128
NCLS = 10
NHEAD = 2 * NCLS        # both heads fused -> 20


# ---------------------------------------------------------------------------
# Fused kernel: conv(3x3,pad=1)+ReLU+maxpool(2x2)+folded fc/heads, one image / step
# ---------------------------------------------------------------------------
def fused_cnn_kernel(pat_ref, w_ref, b_ref, wf_ref, bf_ref, out_ref):
    # pat_ref: (1, 4, 9, 324) tap planes (pool-position p, tap t, pooled pixel s)
    # w_ref:   (32, 9) conv weights     b_ref: (32, 1) conv bias
    # wf_ref:  (32, 324, 20) folded head weight     bf_ref: (1, 20) folded head bias
    # out_ref: (1, 1, 20) fused [top_left | bottom_right] logits
    w = w_ref[...]
    m = jnp.dot(w, pat_ref[0, 0], preferred_element_type=jnp.float32)      # (32, 324)
    for p in range(1, 4):                                                  # maxpool over 2x2
        m = jnp.maximum(m, jnp.dot(w, pat_ref[0, p],
                                   preferred_element_type=jnp.float32))
    # max_p(relu(conv_p + b)) == relu(max_p(conv_p) + b)
    feat = jnp.maximum(m + b_ref[...], 0.0)                                # (32, 324)

    acc = jnp.zeros((1, NHEAD), jnp.float32)
    for c in range(C_OUT):                                                 # static unroll
        acc = acc + jnp.dot(feat[c:c + 1, :], wf_ref[c],
                            preferred_element_type=jnp.float32)
    out_ref[0] = acc + bf_ref[...]          # no activation after fc (matches torch module)


def _pool_tap_planes(x):
    """x: (B, 1, 36, 36) -> (B, 4, 9, 324) with
       planes[n, 2a+b, 3di+dj, 18i+j] = xpad[n, 2i + a + di, 2j + b + dj]."""
    B = x.shape[0]
    xp = jnp.pad(x[:, 0], ((0, 0), (1, 1), (1, 1)))                        # (B, 38, 38)
    planes = []
    for a in range(2):
        for b in range(2):
            for di in range(3):
                for dj in range(3):
                    planes.append(xp[:, a + di:a + di + 2 * PH - 1:2,
                                        b + dj:b + dj + 2 * PW - 1:2])     # (B, 18, 18)
    return jnp.stack(planes, axis=1).reshape(B, 4, 9, S)


def multi_task_cnn(x, params):
    """x: (B, 1, 36, 36) -> (top_left (B,10), bottom_right (B,10)), matching the module."""
    conv_w, conv_b, w1, b1, w2, b2, w3, b3 = params
    B = x.shape[0]

    pat = _pool_tap_planes(x.astype(jnp.float32))                          # (B, 4, 9, 324)
    w9 = conv_w.reshape(C_OUT, 9).astype(jnp.float32)                      # tap order di*3+dj
    bcol = conv_b.reshape(C_OUT, 1).astype(jnp.float32)

    # Inference-only algebraic fold (frozen weights); exact up to fp reassociation.
    w_heads = jnp.concatenate([w2, w3], axis=1)                            # (128, 20)
    b_heads = jnp.concatenate([b2, b3], axis=1)                            # (1, 20)
    w_fold = (w1 @ w_heads).reshape(C_OUT, S, NHEAD).astype(jnp.float32)   # (32, 324, 20)
    b_fold = (b1 @ w_heads + b_heads).astype(jnp.float32)                  # (1, 20)

    fused = pl.pallas_call(
        fused_cnn_kernel,
        out_shape=jax.ShapeDtypeStruct((B, 1, NHEAD), jnp.float32),
        grid=(B,),
        in_specs=[
            pl.BlockSpec((1, 4, 9, S), lambda b: (b, 0, 0, 0)),
            pl.BlockSpec((C_OUT, 9), lambda b: (0, 0)),          # resident across the grid
            pl.BlockSpec((C_OUT, 1), lambda b: (0, 0)),          # resident across the grid
            pl.BlockSpec((C_OUT, S, NHEAD), lambda b: (0, 0, 0)),  # resident folded weight
            pl.BlockSpec((1, NHEAD), lambda b: (0, 0)),          # resident folded bias
        ],
        out_specs=pl.BlockSpec((1, 1, NHEAD), lambda b: (b, 0, 0)),
        compiler_params=pltpu.CompilerParams(dimension_semantics=("parallel",)),
    )(pat, w9, bcol, w_fold, b_fold)

    res = fused[:, 0, :]                                                   # (B, 20)
    return res[:, :NCLS], res[:, NCLS:]


# ---------------------------------------------------------------------------
# Plain-JAX reference (direct, unfolded translation of the torch module)
# ---------------------------------------------------------------------------
def reference(x, params):
    conv_w, conv_b, w1, b1, w2, b2, w3, b3 = params
    y = lax.conv_general_dilated(x, conv_w, (1, 1), ((1, 1), (1, 1)),
                                 dimension_numbers=('NCHW', 'OIHW', 'NCHW'))
    y = jnp.maximum(y + conv_b[None, :, None, None], 0.0)
    y = lax.reduce_window(y, -jnp.inf, lax.max, (1, 1, 2, 2), (1, 1, 2, 2), 'VALID')
    f = y.reshape(y.shape[0], -1)
    h = f @ w1 + b1
    return h @ w2 + b2, h @ w3 + b3


if __name__ == "__main__":
    key = jax.random.PRNGKey(0)
    ks = jax.random.split(key, 9)

    # deterministic synthetic parameters (shapes from the module's __init__)
    conv_w = jax.random.normal(ks[0], (C_OUT, 1, 3, 3), jnp.float32) * 0.2
    conv_b = jax.random.normal(ks[1], (C_OUT,), jnp.float32) * 0.1
    w1 = jax.random.normal(ks[2], (FEAT, HID), jnp.float32) * 0.01   # fc (transposed vs torch)
    b1 = jax.random.normal(ks[3], (1, HID), jnp.float32) * 0.1
    w2 = jax.random.normal(ks[4], (HID, NCLS), jnp.float32) * 0.1    # fc_top_left
    b2 = jax.random.normal(ks[5], (1, NCLS), jnp.float32) * 0.1
    w3 = jax.random.normal(ks[6], (HID, NCLS), jnp.float32) * 0.1    # fc_bottom_right
    b3 = jax.random.normal(ks[7], (1, NCLS), jnp.float32) * 0.1
    params = (conv_w, conv_b, w1, b1, w2, b2, w3, b3)

    # input implied by the module: 36x36 single-channel images (32*18*18 fc input)
    x = jax.random.normal(ks[8], (2, 1, H, W), jnp.float32)

    tl, br = jax.block_until_ready(multi_task_cnn(x, params))
    tl_ref, br_ref = reference(x, params)

    assert tl.shape == (2, NCLS) and br.shape == (2, NCLS)
    assert jnp.allclose(tl, tl_ref, rtol=1e-3, atol=1e-3)
    assert jnp.allclose(br, br_ref, rtol=1e-3, atol=1e-3)

    print("KERNEL_OK")
</pallas_src>

<mosaic_0001>
module attributes {stable_mosaic.version = 11 : i64} {
  func.func @fused_cnn_kernel(%arg0: i32, %arg1: memref<1x4x9x324xf32, #tpu.memory_space<vmem>>, %arg2: memref<32x9xf32, #tpu.memory_space<vmem>>, %arg3: memref<32x1xf32, #tpu.memory_space<vmem>>, %arg4: memref<32x324x20xf32, #tpu.memory_space<vmem>>, %arg5: memref<1x20xf32, #tpu.memory_space<vmem>>, %arg6: memref<1x1x20xf32, #tpu.memory_space<vmem>>) attributes {dimension_semantics = [#tpu.dimension_semantics<parallel>], iteration_bounds = array<i64: 2>, scalar_prefetch = 0 : i64, scratch_operands = 0 : i64, tpu.core_type = #tpu.core_type<tc>, window_params = [{transform_indices = @transform_0, window_bounds = array<i64: 1, 4, 9, 324>}, {pipeline_mode = #tpu.pipeline_mode<synchronous>, transform_indices = @transform_1, window_bounds = array<i64: 32, 9>}, {pipeline_mode = #tpu.pipeline_mode<synchronous>, transform_indices = @transform_2, window_bounds = array<i64: 32, 1>}, {pipeline_mode = #tpu.pipeline_mode<synchronous>, transform_indices = @transform_3, window_bounds = array<i64: 32, 324, 20>}, {pipeline_mode = #tpu.pipeline_mode<synchronous>, transform_indices = @transform_4, window_bounds = array<i64: 1, 20>}, {transform_indices = @transform_5, window_bounds = array<i64: 1, 1, 20>}]} {
    %c0 = arith.constant 0 : index
    %c0_0 = arith.constant 0 : index
    %0 = vector.load %arg2[%c0, %c0_0] : memref<32x9xf32, #tpu.memory_space<vmem>>, vector<32x9xf32>
    %c0_1 = arith.constant 0 : index
    %c0_2 = arith.constant 0 : index
    %c0_3 = arith.constant 0 : index
    %c0_4 = arith.constant 0 : index
    %1 = vector.load %arg1[%c0_1, %c0_2, %c0_3, %c0_4] : memref<1x4x9x324xf32, #tpu.memory_space<vmem>>, vector<1x1x9x324xf32>
    %2 = vector.shape_cast %1 : vector<1x1x9x324xf32> to vector<9x324xf32>
    %cst = arith.constant dense<0.000000e+00> : vector<32x324xf32>
    %3 = tpu.matmul %0, %2, %cst {dimension_numbers = #tpu.dot_dimension_numbers<[1], [0], [0], [1], [0, 0, 1, 1], [], []>} : vector<32x9xf32>, vector<9x324xf32>, vector<32x324xf32> -> vector<32x324xf32>
    %c0_5 = arith.constant 0 : index
    %c1 = arith.constant 1 : index
    %c0_6 = arith.constant 0 : index
    %c0_7 = arith.constant 0 : index
    %4 = vector.load %arg1[%c0_5, %c1, %c0_6, %c0_7] : memref<1x4x9x324xf32, #tpu.memory_space<vmem>>, vector<1x1x9x324xf32>
    %5 = vector.shape_cast %4 : vector<1x1x9x324xf32> to vector<9x324xf32>
    %cst_8 = arith.constant dense<0.000000e+00> : vector<32x324xf32>
    %6 = tpu.matmul %0, %5, %cst_8 {dimension_numbers = #tpu.dot_dimension_numbers<[1], [0], [0], [1], [0, 0, 1, 1], [], []>} : vector<32x9xf32>, vector<9x324xf32>, vector<32x324xf32> -> vector<32x324xf32>
    %7 = arith.maximumf %3, %6 : vector<32x324xf32>
    %c0_9 = arith.constant 0 : index
    %c2 = arith.constant 2 : index
    %c0_10 = arith.constant 0 : index
    %c0_11 = arith.constant 0 : index
    %8 = vector.load %arg1[%c0_9, %c2, %c0_10, %c0_11] : memref<1x4x9x324xf32, #tpu.memory_space<vmem>>, vector<1x1x9x324xf32>
    %9 = vector.shape_cast %8 : vector<1x1x9x324xf32> to vector<9x324xf32>
    %cst_12 = arith.constant dense<0.000000e+00> : vector<32x324xf32>
    %10 = tpu.matmul %0, %9, %cst_12 {dimension_numbers = #tpu.dot_dimension_numbers<[1], [0], [0], [1], [0, 0, 1, 1], [], []>} : vector<32x9xf32>, vector<9x324xf32>, vector<32x324xf32> -> vector<32x324xf32>
    %11 = arith.maximumf %7, %10 : vector<32x324xf32>
    %c0_13 = arith.constant 0 : index
    %c3 = arith.constant 3 : index
    %c0_14 = arith.constant 0 : index
    %c0_15 = arith.constant 0 : index
    %12 = vector.load %arg1[%c0_13, %c3, %c0_14, %c0_15] : memref<1x4x9x324xf32, #tpu.memory_space<vmem>>, vector<1x1x9x324xf32>
    %13 = vector.shape_cast %12 : vector<1x1x9x324xf32> to vector<9x324xf32>
    %cst_16 = arith.constant dense<0.000000e+00> : vector<32x324xf32>
    %14 = tpu.matmul %0, %13, %cst_16 {dimension_numbers = #tpu.dot_dimension_numbers<[1], [0], [0], [1], [0, 0, 1, 1], [], []>} : vector<32x9xf32>, vector<9x324xf32>, vector<32x324xf32> -> vector<32x324xf32>
    %15 = arith.maximumf %11, %14 : vector<32x324xf32>
    %c0_17 = arith.constant 0 : index
    %c0_18 = arith.constant 0 : index
    %16 = vector.load %arg3[%c0_17, %c0_18] : memref<32x1xf32, #tpu.memory_space<vmem>>, vector<32x1xf32>
    %17 = vector.broadcast %16 : vector<32x1xf32> to vector<32x324xf32>
    %18 = arith.addf %15, %17 : vector<32x324xf32>
    %cst_19 = arith.constant 0.000000e+00 : f32
    %19 = vector.broadcast %cst_19 : f32 to vector<32x324xf32>
    %20 = arith.maximumf %18, %19 : vector<32x324xf32>
    %cst_20 = arith.constant 0.000000e+00 : f32
    %21 = vector.broadcast %cst_20 : f32 to vector<1x20xf32>
    %22 = vector.extract_strided_slice %20 {offsets = [0, 0], sizes = [1, 324], strides = [1, 1]} : vector<32x324xf32> to vector<1x324xf32>
    %c0_21 = arith.constant 0 : index
    %c0_22 = arith.constant 0 : index
    %c0_23 = arith.constant 0 : index
    %23 = vector.load %arg4[%c0_21, %c0_22, %c0_23] : memref<32x324x20xf32, #tpu.memory_space<vmem>>, vector<1x324x20xf32>
    %24 = vector.shape_cast %23 : vector<1x324x20xf32> to vector<324x20xf32>
    %cst_24 = arith.constant dense<0.000000e+00> : vector<1x20xf32>
    %25 = tpu.matmul %22, %24, %cst_24 {dimension_numbers = #tpu.dot_dimension_numbers<[1], [0], [0], [1], [0, 0, 1, 1], [], []>} : vector<1x324xf32>, vector<324x20xf32>, vector<1x20xf32> -> vector<1x20xf32>
    %26 = arith.addf %21, %25 : vector<1x20xf32>
    %27 = vector.extract_strided_slice %20 {offsets = [1, 0], sizes = [1, 324], strides = [1, 1]} : vector<32x324xf32> to vector<1x324xf32>
    %c1_25 = arith.constant 1 : index
    %c0_26 = arith.constant 0 : index
    %c0_27 = arith.constant 0 : index
    %28 = vector.load %arg4[%c1_25, %c0_26, %c0_27] : memref<32x324x20xf32, #tpu.memory_space<vmem>>, vector<1x324x20xf32>
    %29 = vector.shape_cast %28 : vector<1x324x20xf32> to vector<324x20xf32>
    %cst_28 = arith.constant dense<0.000000e+00> : vector<1x20xf32>
    %30 = tpu.matmul %27, %29, %cst_28 {dimension_numbers = #tpu.dot_dimension_numbers<[1], [0], [0], [1], [0, 0, 1, 1], [], []>} : vector<1x324xf32>, vector<324x20xf32>, vector<1x20xf32> -> vector<1x20xf32>
    %31 = arith.addf %26, %30 : vector<1x20xf32>
    %32 = vector.extract_strided_slice %20 {offsets = [2, 0], sizes = [1, 324], strides = [1, 1]} : vector<32x324xf32> to vector<1x324xf32>
    %c2_29 = arith.constant 2 : index
    %c0_30 = arith.constant 0 : index
    %c0_31 = arith.constant 0 : index
    %33 = vector.load %arg4[%c2_29, %c0_30, %c0_31] : memref<32x324x20xf32, #tpu.memory_space<vmem>>, vector<1x324x20xf32>
    %34 = vector.shape_cast %33 : vector<1x324x20xf32> to vector<324x20xf32>
    %cst_32 = arith.constant dense<0.000000e+00> : vector<1x20xf32>
    %35 = tpu.matmul %32, %34, %cst_32 {dimension_numbers = #tpu.dot_dimension_numbers<[1], [0], [0], [1], [0, 0, 1, 1], [], []>} : vector<1x324xf32>, vector<324x20xf32>, vector<1x20xf32> -> vector<1x20xf32>
    %36 = arith.addf %31, %35 : vector<1x20xf32>
    %37 = vector.extract_strided_slice %20 {offsets = [3, 0], sizes = [1, 324], strides = [1, 1]} : vector<32x324xf32> to vector<1x324xf32>
    %c3_33 = arith.constant 3 : index
    %c0_34 = arith.constant 0 : index
    %c0_35 = arith.constant 0 : index
    %38 = vector.load %arg4[%c3_33, %c0_34, %c0_35] : memref<32x324x20xf32, #tpu.memory_space<vmem>>, vector<1x324x20xf32>
    %39 = vector.shape_cast %38 : vector<1x324x20xf32> to vector<324x20xf32>
    %cst_36 = arith.constant dense<0.000000e+00> : vector<1x20xf32>
    %40 = tpu.matmul %37, %39, %cst_36 {dimension_numbers = #tpu.dot_dimension_numbers<[1], [0], [0], [1], [0, 0, 1, 1], [], []>} : vector<1x324xf32>, vector<324x20xf32>, vector<1x20xf32> -> vector<1x20xf32>
    %41 = arith.addf %36, %40 : vector<1x20xf32>
    %42 = vector.extract_strided_slice %20 {offsets = [4, 0], sizes = [1, 324], strides = [1, 1]} : vector<32x324xf32> to vector<1x324xf32>
    %c4 = arith.constant 4 : index
    %c0_37 = arith.constant 0 : index
    %c0_38 = arith.constant 0 : index
    %43 = vector.load %arg4[%c4, %c0_37, %c0_38] : memref<32x324x20xf32, #tpu.memory_space<vmem>>, vector<1x324x20xf32>
    %44 = vector.shape_cast %43 : vector<1x324x20xf32> to vector<324x20xf32>
    %cst_39 = arith.constant dense<0.000000e+00> : vector<1x20xf32>
    %45 = tpu.matmul %42, %44, %cst_39 {dimension_numbers = #tpu.dot_dimension_numbers<[1], [0], [0], [1], [0, 0, 1, 1], [], []>} : vector<1x324xf32>, vector<324x20xf32>, vector<1x20xf32> -> vector<1x20xf32>
    %46 = arith.addf %41, %45 : vector<1x20xf32>
    %47 = vector.extract_strided_slice %20 {offsets = [5, 0], sizes = [1, 324], strides = [1, 1]} : vector<32x324xf32> to vector<1x324xf32>
    %c5 = arith.constant 5 : index
    %c0_40 = arith.constant 0 : index
    %c0_41 = arith.constant 0 : index
    %48 = vector.load %arg4[%c5, %c0_40, %c0_41] : memref<32x324x20xf32, #tpu.memory_space<vmem>>, vector<1x324x20xf32>
    %49 = vector.shape_cast %48 : vector<1x324x20xf32> to vector<324x20xf32>
    %cst_42 = arith.constant dense<0.000000e+00> : vector<1x20xf32>
    %50 = tpu.matmul %47, %49, %cst_42 {dimension_numbers = #tpu.dot_dimension_numbers<[1], [0], [0], [1], [0, 0, 1, 1], [], []>} : vector<1x324xf32>, vector<324x20xf32>, vector<1x20xf32> -> vector<1x20xf32>
    %51 = arith.addf %46, %50 : vector<1x20xf32>
    %52 = vector.extract_strided_slice %20 {offsets = [6, 0], sizes = [1, 324], strides = [1, 1]} : vector<32x324xf32> to vector<1x324xf32>
    %c6 = arith.constant 6 : index
    %c0_43 = arith.constant 0 : index
    %c0_44 = arith.constant 0 : index
    %53 = vector.load %arg4[%c6, %c0_43, %c0_44] : memref<32x324x20xf32, #tpu.memory_space<vmem>>, vector<1x324x20xf32>
    %54 = vector.shape_cast %53 : vector<1x324x20xf32> to vector<324x20xf32>
    %cst_45 = arith.constant dense<0.000000e+00> : vector<1x20xf32>
    %55 = tpu.matmul %52, %54, %cst_45 {dimension_numbers = #tpu.dot_dimension_numbers<[1], [0], [0], [1], [0, 0, 1, 1], [], []>} : vector<1x324xf32>, vector<324x20xf32>, vector<1x20xf32> -> vector<1x20xf32>
    %56 = arith.addf %51, %55 : vector<1x20xf32>
    %57 = vector.extract_strided_slice %20 {offsets = [7, 0], sizes = [1, 324], strides = [1, 1]} : vector<32x324xf32> to vector<1x324xf32>
    %c7 = arith.constant 7 : index
    %c0_46 = arith.constant 0 : index
    %c0_47 = arith.constant 0 : index
    %58 = vector.load %arg4[%c7, %c0_46, %c0_47] : memref<32x324x20xf32, #tpu.memory_space<vmem>>, vector<1x324x20xf32>
    %59 = vector.shape_cast %58 : vector<1x324x20xf32> to vector<324x20xf32>
    %cst_48 = arith.constant dense<0.000000e+00> : vector<1x20xf32>
    %60 = tpu.matmul %57, %59, %cst_48 {dimension_numbers = #tpu.dot_dimension_numbers<[1], [0], [0], [1], [0, 0, 1, 1], [], []>} : vector<1x324xf32>, vector<324x20xf32>, vector<1x20xf32> -> vector<1x20xf32>
    %61 = arith.addf %56, %60 : vector<1x20xf32>
    %62 = vector.extract_strided_slice %20 {offsets = [8, 0], sizes = [1, 324], strides = [1, 1]} : vector<32x324xf32> to vector<1x324xf32>
    %c8 = arith.constant 8 : index
    %c0_49 = arith.constant 0 : index
    %c0_50 = arith.constant 0 : index
    %63 = vector.load %arg4[%c8, %c0_49, %c0_50] : memref<32x324x20xf32, #tpu.memory_space<vmem>>, vector<1x324x20xf32>
    %64 = vector.shape_cast %63 : vector<1x324x20xf32> to vector<324x20xf32>
    %cst_51 = arith.constant dense<0.000000e+00> : vector<1x20xf32>
    %65 = tpu.matmul %62, %64, %cst_51 {dimension_numbers = #tpu.dot_dimension_numbers<[1], [0], [0], [1], [0, 0, 1, 1], [], []>} : vector<1x324xf32>, vector<324x20xf32>, vector<1x20xf32> -> vector<1x20xf32>
    %66 = arith.addf %61, %65 : vector<1x20xf32>
    %67 = vector.extract_strided_slice %20 {offsets = [9, 0], sizes = [1, 324], strides = [1, 1]} : vector<32x324xf32> to vector<1x324xf32>
    %c9 = arith.constant 9 : index
    %c0_52 = arith.constant 0 : index
    %c0_53 = arith.constant 0 : index
    %68 = vector.load %arg4[%c9, %c0_52, %c0_53] : memref<32x324x20xf32, #tpu.memory_space<vmem>>, vector<1x324x20xf32>
    %69 = vector.shape_cast %68 : vector<1x324x20xf32> to vector<324x20xf32>
    %cst_54 = arith.constant dense<0.000000e+00> : vector<1x20xf32>
    %70 = tpu.matmul %67, %69, %cst_54 {dimension_numbers = #tpu.dot_dimension_numbers<[1], [0], [0], [1], [0, 0, 1, 1], [], []>} : vector<1x324xf32>, vector<324x20xf32>, vector<1x20xf32> -> vector<1x20xf32>
    %71 = arith.addf %66, %70 : vector<1x20xf32>
    %72 = vector.extract_strided_slice %20 {offsets = [10, 0], sizes = [1, 324], strides = [1, 1]} : vector<32x324xf32> to vector<1x324xf32>
    %c10 = arith.constant 10 : index
    %c0_55 = arith.constant 0 : index
    %c0_56 = arith.constant 0 : index
    %73 = vector.load %arg4[%c10, %c0_55, %c0_56] : memref<32x324x20xf32, #tpu.memory_space<vmem>>, vector<1x324x20xf32>
    %74 = vector.shape_cast %73 : vector<1x324x20xf32> to vector<324x20xf32>
    %cst_57 = arith.constant dense<0.000000e+00> : vector<1x20xf32>
    %75 = tpu.matmul %72, %74, %cst_57 {dimension_numbers = #tpu.dot_dimension_numbers<[1], [0], [0], [1], [0, 0, 1, 1], [], []>} : vector<1x324xf32>, vector<324x20xf32>, vector<1x20xf32> -> vector<1x20xf32>
    %76 = arith.addf %71, %75 : vector<1x20xf32>
    %77 = vector.extract_strided_slice %20 {offsets = [11, 0], sizes = [1, 324], strides = [1, 1]} : vector<32x324xf32> to vector<1x324xf32>
    %c11 = arith.constant 11 : index
    %c0_58 = arith.constant 0 : index
    %c0_59 = arith.constant 0 : index
    %78 = vector.load %arg4[%c11, %c0_58, %c0_59] : memref<32x324x20xf32, #tpu.memory_space<vmem>>, vector<1x324x20xf32>
    %79 = vector.shape_cast %78 : vector<1x324x20xf32> to vector<324x20xf32>
    %cst_60 = arith.constant dense<0.000000e+00> : vector<1x20xf32>
    %80 = tpu.matmul %77, %79, %cst_60 {dimension_numbers = #tpu.dot_dimension_numbers<[1], [0], [0], [1], [0, 0, 1, 1], [], []>} : vector<1x324xf32>, vector<324x20xf32>, vector<1x20xf32> -> vector<1x20xf32>
    %81 = arith.addf %76, %80 : vector<1x20xf32>
    %82 = vector.extract_strided_slice %20 {offsets = [12, 0], sizes = [1, 324], strides = [1, 1]} : vector<32x324xf32> to vector<1x324xf32>
    %c12 = arith.constant 12 : index
    %c0_61 = arith.constant 0 : index
    %c0_62 = arith.constant 0 : index
    %83 = vector.load %arg4[%c12, %c0_61, %c0_62] : memref<32x324x20xf32, #tpu.memory_space<vmem>>, vector<1x324x20xf32>
    %84 = vector.shape_cast %83 : vector<1x324x20xf32> to vector<324x20xf32>
    %cst_63 = arith.constant dense<0.000000e+00> : vector<1x20xf32>
    %85 = tpu.matmul %82, %84, %cst_63 {dimension_numbers = #tpu.dot_dimension_numbers<[1], [0], [0], [1], [0, 0, 1, 1], [], []>} : vector<1x324xf32>, vector<324x20xf32>, vector<1x20xf32> -> vector<1x20xf32>
    %86 = arith.addf %81, %85 : vector<1x20xf32>
    %87 = vector.extract_strided_slice %20 {offsets = [13, 0], sizes = [1, 324], strides = [1, 1]} : vector<32x324xf32> to vector<1x324xf32>
    %c13 = arith.constant 13 : index
    %c0_64 = arith.constant 0 : index
    %c0_65 = arith.constant 0 : index
    %88 = vector.load %arg4[%c13, %c0_64, %c0_65] : memref<32x324x20xf32, #tpu.memory_space<vmem>>, vector<1x324x20xf32>
    %89 = vector.shape_cast %88 : vector<1x324x20xf32> to vector<324x20xf32>
    %cst_66 = arith.constant dense<0.000000e+00> : vector<1x20xf32>
    %90 = tpu.matmul %87, %89, %cst_66 {dimension_numbers = #tpu.dot_dimension_numbers<[1], [0], [0], [1], [0, 0, 1, 1], [], []>} : vector<1x324xf32>, vector<324x20xf32>, vector<1x20xf32> -> vector<1x20xf32>
    %91 = arith.addf %86, %90 : vector<1x20xf32>
    %92 = vector.extract_strided_slice %20 {offsets = [14, 0], sizes = [1, 324], strides = [1, 1]} : vector<32x324xf32> to vector<1x324xf32>
    %c14 = arith.constant 14 : index
    %c0_67 = arith.constant 0 : index
    %c0_68 = arith.constant 0 : index
    %93 = vector.load %arg4[%c14, %c0_67, %c0_68] : memref<32x324x20xf32, #tpu.memory_space<vmem>>, vector<1x324x20xf32>
    %94 = vector.shape_cast %93 : vector<1x324x20xf32> to vector<324x20xf32>
    %cst_69 = arith.constant dense<0.000000e+00> : vector<1x20xf32>
    %95 = tpu.matmul %92, %94, %cst_69 {dimension_numbers = #tpu.dot_dimension_numbers<[1], [0], [0], [1], [0, 0, 1, 1], [], []>} : vector<1x324xf32>, vector<324x20xf32>, vector<1x20xf32> -> vector<1x20xf32>
    %96 = arith.addf %91, %95 : vector<1x20xf32>
    %97 = vector.extract_strided_slice %20 {offsets = [15, 0], sizes = [1, 324], strides = [1, 1]} : vector<32x324xf32> to vector<1x324xf32>
    %c15 = arith.constant 15 : index
    %c0_70 = arith.constant 0 : index
    %c0_71 = arith.constant 0 : index
    %98 = vector.load %arg4[%c15, %c0_70, %c0_71] : memref<32x324x20xf32, #tpu.memory_space<vmem>>, vector<1x324x20xf32>
    %99 = vector.shape_cast %98 : vector<1x324x20xf32> to vector<324x20xf32>
    %cst_72 = arith.constant dense<0.000000e+00> : vector<1x20xf32>
    %100 = tpu.matmul %97, %99, %cst_72 {dimension_numbers = #tpu.dot_dimension_numbers<[1], [0], [0], [1], [0, 0, 1, 1], [], []>} : vector<1x324xf32>, vector<324x20xf32>, vector<1x20xf32> -> vector<1x20xf32>
    %101 = arith.addf %96, %100 : vector<1x20xf32>
    %102 = vector.extract_strided_slice %20 {offsets = [16, 0], sizes = [1, 324], strides = [1, 1]} : vector<32x324xf32> to vector<1x324xf32>
    %c16 = arith.constant 16 : index
    %c0_73 = arith.constant 0 : index
    %c0_74 = arith.constant 0 : index
    %103 = vector.load %arg4[%c16, %c0_73, %c0_74] : memref<32x324x20xf32, #tpu.memory_space<vmem>>, vector<1x324x20xf32>
    %104 = vector.shape_cast %103 : vector<1x324x20xf32> to vector<324x20xf32>
    %cst_75 = arith.constant dense<0.000000e+00> : vector<1x20xf32>
    %105 = tpu.matmul %102, %104, %cst_75 {dimension_numbers = #tpu.dot_dimension_numbers<[1], [0], [0], [1], [0, 0, 1, 1], [], []>} : vector<1x324xf32>, vector<324x20xf32>, vector<1x20xf32> -> vector<1x20xf32>
    %106 = arith.addf %101, %105 : vector<1x20xf32>
    %107 = vector.extract_strided_slice %20 {offsets = [17, 0], sizes = [1, 324], strides = [1, 1]} : vector<32x324xf32> to vector<1x324xf32>
    %c17 = arith.constant 17 : index
    %c0_76 = arith.constant 0 : index
    %c0_77 = arith.constant 0 : index
    %108 = vector.load %arg4[%c17, %c0_76, %c0_77] : memref<32x324x20xf32, #tpu.memory_space<vmem>>, vector<1x324x20xf32>
    %109 = vector.shape_cast %108 : vector<1x324x20xf32> to vector<324x20xf32>
    %cst_78 = arith.constant dense<0.000000e+00> : vector<1x20xf32>
    %110 = tpu.matmul %107, %109, %cst_78 {dimension_numbers = #tpu.dot_dimension_numbers<[1], [0], [0], [1], [0, 0, 1, 1], [], []>} : vector<1x324xf32>, vector<324x20xf32>, vector<1x20xf32> -> vector<1x20xf32>
    %111 = arith.addf %106, %110 : vector<1x20xf32>
    %112 = vector.extract_strided_slice %20 {offsets = [18, 0], sizes = [1, 324], strides = [1, 1]} : vector<32x324xf32> to vector<1x324xf32>
    %c18 = arith.constant 18 : index
    %c0_79 = arith.constant 0 : index
    %c0_80 = arith.constant 0 : index
    %113 = vector.load %arg4[%c18, %c0_79, %c0_80] : memref<32x324x20xf32, #tpu.memory_space<vmem>>, vector<1x324x20xf32>
    %114 = vector.shape_cast %113 : vector<1x324x20xf32> to vector<324x20xf32>
    %cst_81 = arith.constant dense<0.000000e+00> : vector<1x20xf32>
    %115 = tpu.matmul %112, %114, %cst_81 {dimension_numbers = #tpu.dot_dimension_numbers<[1], [0], [0], [1], [0, 0, 1, 1], [], []>} : vector<1x324xf32>, vector<324x20xf32>, vector<1x20xf32> -> vector<1x20xf32>
    %116 = arith.addf %111, %115 : vector<1x20xf32>
    %117 = vector.extract_strided_slice %20 {offsets = [19, 0], sizes = [1, 324], strides = [1, 1]} : vector<32x324xf32> to vector<1x324xf32>
    %c19 = arith.constant 19 : index
    %c0_82 = arith.constant 0 : index
    %c0_83 = arith.constant 0 : index
    %118 = vector.load %arg4[%c19, %c0_82, %c0_83] : memref<32x324x20xf32, #tpu.memory_space<vmem>>, vector<1x324x20xf32>
    %119 = vector.shape_cast %118 : vector<1x324x20xf32> to vector<324x20xf32>
    %cst_84 = arith.constant dense<0.000000e+00> : vector<1x20xf32>
    %120 = tpu.matmul %117, %119, %cst_84 {dimension_numbers = #tpu.dot_dimension_numbers<[1], [0], [0], [1], [0, 0, 1, 1], [], []>} : vector<1x324xf32>, vector<324x20xf32>, vector<1x20xf32> -> vector<1x20xf32>
    %121 = arith.addf %116, %120 : vector<1x20xf32>
    %122 = vector.extract_strided_slice %20 {offsets = [20, 0], sizes = [1, 324], strides = [1, 1]} : vector<32x324xf32> to vector<1x324xf32>
    %c20 = arith.constant 20 : index
    %c0_85 = arith.constant 0 : index
    %c0_86 = arith.constant 0 : index
    %123 = vector.load %arg4[%c20, %c0_85, %c0_86] : memref<32x324x20xf32, #tpu.memory_space<vmem>>, vector<1x324x20xf32>
    %124 = vector.shape_cast %123 : vector<1x324x20xf32> to vector<324x20xf32>
    %cst_87 = arith.constant dense<0.000000e+00> : vector<1x20xf32>
    %125 = tpu.matmul %122, %124, %cst_87 {dimension_numbers = #tpu.dot_dimension_numbers<[1], [0], [0], [1], [0, 0, 1, 1], [], []>} : vector<1x324xf32>, vector<324x20xf32>, vector<1x20xf32> -> vector<1x20xf32>
    %126 = arith.addf %121, %125 : vector<1x20xf32>
    %127 = vector.extract_strided_slice %20 {offsets = [21, 0], sizes = [1, 324], strides = [1, 1]} : vector<32x324xf32> to vector<1x324xf32>
    %c21 = arith.constant 21 : index
    %c0_88 = arith.constant 0 : index
    %c0_89 = arith.constant 0 : index
    %128 = vector.load %arg4[%c21, %c0_88, %c0_89] : memref<32x324x20xf32, #tpu.memory_space<vmem>>, vector<1x324x20xf32>
    %129 = vector.shape_cast %128 : vector<1x324x20xf32> to vector<324x20xf32>
    %cst_90 = arith.constant dense<0.000000e+00> : vector<1x20xf32>
    %130 = tpu.matmul %127, %129, %cst_90 {dimension_numbers = #tpu.dot_dimension_numbers<[1], [0], [0], [1], [0, 0, 1, 1], [], []>} : vector<1x324xf32>, vector<324x20xf32>, vector<1x20xf32> -> vector<1x20xf32>
    %131 = arith.addf %126, %130 : vector<1x20xf32>
    %132 = vector.extract_strided_slice %20 {offsets = [22, 0], sizes = [1, 324], strides = [1, 1]} : vector<32x324xf32> to vector<1x324xf32>
    %c22 = arith.constant 22 : index
    %c0_91 = arith.constant 0 : index
    %c0_92 = arith.constant 0 : index
    %133 = vector.load %arg4[%c22, %c0_91, %c0_92] : memref<32x324x20xf32, #tpu.memory_space<vmem>>, vector<1x324x20xf32>
    %134 = vector.shape_cast %133 : vector<1x324x20xf32> to vector<324x20xf32>
    %cst_93 = arith.constant dense<0.000000e+00> : vector<1x20xf32>
    %135 = tpu.matmul %132, %134, %cst_93 {dimension_numbers = #tpu.dot_dimension_numbers<[1], [0], [0], [1], [0, 0, 1, 1], [], []>} : vector<1x324xf32>, vector<324x20xf32>, vector<1x20xf32> -> vector<1x20xf32>
    %136 = arith.addf %131, %135 : vector<1x20xf32>
    %137 = vector.extract_strided_slice %20 {offsets = [23, 0], sizes = [1, 324], strides = [1, 1]} : vector<32x324xf32> to vector<1x324xf32>
    %c23 = arith.constant 23 : index
    %c0_94 = arith.constant 0 : index
    %c0_95 = arith.constant 0 : index
    %138 = vector.load %arg4[%c23, %c0_94, %c0_95] : memref<32x324x20xf32, #tpu.memory_space<vmem>>, vector<1x324x20xf32>
    %139 = vector.shape_cast %138 : vector<1x324x20xf32> to vector<324x20xf32>
    %cst_96 = arith.constant dense<0.000000e+00> : vector<1x20xf32>
    %140 = tpu.matmul %137, %139, %cst_96 {dimension_numbers = #tpu.dot_dimension_numbers<[1], [0], [0], [1], [0, 0, 1, 1], [], []>} : vector<1x324xf32>, vector<324x20xf32>, vector<1x20xf32> -> vector<1x20xf32>
    %141 = arith.addf %136, %140 : vector<1x20xf32>
    %142 = vector.extract_strided_slice %20 {offsets = [24, 0], sizes = [1, 324], strides = [1, 1]} : vector<32x324xf32> to vector<1x324xf32>
    %c24 = arith.constant 24 : index
    %c0_97 = arith.constant 0 : index
    %c0_98 = arith.constant 0 : index
    %143 = vector.load %arg4[%c24, %c0_97, %c0_98] : memref<32x324x20xf32, #tpu.memory_space<vmem>>, vector<1x324x20xf32>
    %144 = vector.shape_cast %143 : vector<1x324x20xf32> to vector<324x20xf32>
    %cst_99 = arith.constant dense<0.000000e+00> : vector<1x20xf32>
    %145 = tpu.matmul %142, %144, %cst_99 {dimension_numbers = #tpu.dot_dimension_numbers<[1], [0], [0], [1], [0, 0, 1, 1], [], []>} : vector<1x324xf32>, vector<324x20xf32>, vector<1x20xf32> -> vector<1x20xf32>
    %146 = arith.addf %141, %145 : vector<1x20xf32>
    %147 = vector.extract_strided_slice %20 {offsets = [25, 0], sizes = [1, 324], strides = [1, 1]} : vector<32x324xf32> to vector<1x324xf32>
    %c25 = arith.constant 25 : index
    %c0_100 = arith.constant 0 : index
    %c0_101 = arith.constant 0 : index
    %148 = vector.load %arg4[%c25, %c0_100, %c0_101] : memref<32x324x20xf32, #tpu.memory_space<vmem>>, vector<1x324x20xf32>
    %149 = vector.shape_cast %148 : vector<1x324x20xf32> to vector<324x20xf32>
    %cst_102 = arith.constant dense<0.000000e+00> : vector<1x20xf32>
    %150 = tpu.matmul %147, %149, %cst_102 {dimension_numbers = #tpu.dot_dimension_numbers<[1], [0], [0], [1], [0, 0, 1, 1], [], []>} : vector<1x324xf32>, vector<324x20xf32>, vector<1x20xf32> -> vector<1x20xf32>
    %151 = arith.addf %146, %150 : vector<1x20xf32>
    %152 = vector.extract_strided_slice %20 {offsets = [26, 0], sizes = [1, 324], strides = [1, 1]} : vector<32x324xf32> to vector<1x324xf32>
    %c26 = arith.constant 26 : index
    %c0_103 = arith.constant 0 : index
    %c0_104 = arith.constant 0 : index
    %153 = vector.load %arg4[%c26, %c0_103, %c0_104] : memref<32x324x20xf32, #tpu.memory_space<vmem>>, vector<1x324x20xf32>
    %154 = vector.shape_cast %153 : vector<1x324x20xf32> to vector<324x20xf32>
    %cst_105 = arith.constant dense<0.000000e+00> : vector<1x20xf32>
    %155 = tpu.matmul %152, %154, %cst_105 {dimension_numbers = #tpu.dot_dimension_numbers<[1], [0], [0], [1], [0, 0, 1, 1], [], []>} : vector<1x324xf32>, vector<324x20xf32>, vector<1x20xf32> -> vector<1x20xf32>
    %156 = arith.addf %151, %155 : vector<1x20xf32>
    %157 = vector.extract_strided_slice %20 {offsets = [27, 0], sizes = [1, 324], strides = [1, 1]} : vector<32x324xf32> to vector<1x324xf32>
    %c27 = arith.constant 27 : index
    %c0_106 = arith.constant 0 : index
    %c0_107 = arith.constant 0 : index
    %158 = vector.load %arg4[%c27, %c0_106, %c0_107] : memref<32x324x20xf32, #tpu.memory_space<vmem>>, vector<1x324x20xf32>
    %159 = vector.shape_cast %158 : vector<1x324x20xf32> to vector<324x20xf32>
    %cst_108 = arith.constant dense<0.000000e+00> : vector<1x20xf32>
    %160 = tpu.matmul %157, %159, %cst_108 {dimension_numbers = #tpu.dot_dimension_numbers<[1], [0], [0], [1], [0, 0, 1, 1], [], []>} : vector<1x324xf32>, vector<324x20xf32>, vector<1x20xf32> -> vector<1x20xf32>
    %161 = arith.addf %156, %160 : vector<1x20xf32>
    %162 = vector.extract_strided_slice %20 {offsets = [28, 0], sizes = [1, 324], strides = [1, 1]} : vector<32x324xf32> to vector<1x324xf32>
    %c28 = arith.constant 28 : index
    %c0_109 = arith.constant 0 : index
    %c0_110 = arith.constant 0 : index
    %163 = vector.load %arg4[%c28, %c0_109, %c0_110] : memref<32x324x20xf32, #tpu.memory_space<vmem>>, vector<1x324x20xf32>
    %164 = vector.shape_cast %163 : vector<1x324x20xf32> to vector<324x20xf32>
    %cst_111 = arith.constant dense<0.000000e+00> : vector<1x20xf32>
    %165 = tpu.matmul %162, %164, %cst_111 {dimension_numbers = #tpu.dot_dimension_numbers<[1], [0], [0], [1], [0, 0, 1, 1], [], []>} : vector<1x324xf32>, vector<324x20xf32>, vector<1x20xf32> -> vector<1x20xf32>
    %166 = arith.addf %161, %165 : vector<1x20xf32>
    %167 = vector.extract_strided_slice %20 {offsets = [29, 0], sizes = [1, 324], strides = [1, 1]} : vector<32x324xf32> to vector<1x324xf32>
    %c29 = arith.constant 29 : index
    %c0_112 = arith.constant 0 : index
    %c0_113 = arith.constant 0 : index
    %168 = vector.load %arg4[%c29, %c0_112, %c0_113] : memref<32x324x20xf32, #tpu.memory_space<vmem>>, vector<1x324x20xf32>
    %169 = vector.shape_cast %168 : vector<1x324x20xf32> to vector<324x20xf32>
    %cst_114 = arith.constant dense<0.000000e+00> : vector<1x20xf32>
    %170 = tpu.matmul %167, %169, %cst_114 {dimension_numbers = #tpu.dot_dimension_numbers<[1], [0], [0], [1], [0, 0, 1, 1], [], []>} : vector<1x324xf32>, vector<324x20xf32>, vector<1x20xf32> -> vector<1x20xf32>
    %171 = arith.addf %166, %170 : vector<1x20xf32>
    %172 = vector.extract_strided_slice %20 {offsets = [30, 0], sizes = [1, 324], strides = [1, 1]} : vector<32x324xf32> to vector<1x324xf32>
    %c30 = arith.constant 30 : index
    %c0_115 = arith.constant 0 : index
    %c0_116 = arith.constant 0 : index
    %173 = vector.load %arg4[%c30, %c0_115, %c0_116] : memref<32x324x20xf32, #tpu.memory_space<vmem>>, vector<1x324x20xf32>
    %174 = vector.shape_cast %173 : vector<1x324x20xf32> to vector<324x20xf32>
    %cst_117 = arith.constant dense<0.000000e+00> : vector<1x20xf32>
    %175 = tpu.matmul %172, %174, %cst_117 {dimension_numbers = #tpu.dot_dimension_numbers<[1], [0], [0], [1], [0, 0, 1, 1], [], []>} : vector<1x324xf32>, vector<324x20xf32>, vector<1x20xf32> -> vector<1x20xf32>
    %176 = arith.addf %171, %175 : vector<1x20xf32>
    %177 = vector.extract_strided_slice %20 {offsets = [31, 0], sizes = [1, 324], strides = [1, 1]} : vector<32x324xf32> to vector<1x324xf32>
    %c31 = arith.constant 31 : index
    %c0_118 = arith.constant 0 : index
    %c0_119 = arith.constant 0 : index
    %178 = vector.load %arg4[%c31, %c0_118, %c0_119] : memref<32x324x20xf32, #tpu.memory_space<vmem>>, vector<1x324x20xf32>
    %179 = vector.shape_cast %178 : vector<1x324x20xf32> to vector<324x20xf32>
    %cst_120 = arith.constant dense<0.000000e+00> : vector<1x20xf32>
    %180 = tpu.matmul %177, %179, %cst_120 {dimension_numbers = #tpu.dot_dimension_numbers<[1], [0], [0], [1], [0, 0, 1, 1], [], []>} : vector<1x324xf32>, vector<324x20xf32>, vector<1x20xf32> -> vector<1x20xf32>
    %181 = arith.addf %176, %180 : vector<1x20xf32>
    %c0_121 = arith.constant 0 : index
    %c0_122 = arith.constant 0 : index
    %182 = vector.load %arg5[%c0_121, %c0_122] : memref<1x20xf32, #tpu.memory_space<vmem>>, vector<1x20xf32>
    %183 = arith.addf %181, %182 : vector<1x20xf32>
    %c0_123 = arith.constant 0 : index
    %c0_124 = arith.constant 0 : index
    %c0_125 = arith.constant 0 : index
    %184 = vector.load %arg6[%c0_123, %c0_124, %c0_125] : memref<1x1x20xf32, #tpu.memory_space<vmem>>, vector<1x1x20xf32>
    %185 = vector.shape_cast %184 : vector<1x1x20xf32> to vector<1x20xf32>
    %186 = vector.shape_cast %183 : vector<1x20xf32> to vector<1x1x20xf32>
    tpu.vector_store %arg6[%c0_123, %c0_124, %c0_125], %186 {strides = array<i32>} : memref<1x1x20xf32, #tpu.memory_space<vmem>>, vector<1x1x20xf32>,
    return
  }
  func.func @transform_0(%arg0: i32) -> (i32, i32, i32, i32) {
    %c0_i32 = arith.constant 0 : i32
    %c0_i32_0 = arith.constant 0 : i32
    %c0_i32_1 = arith.constant 0 : i32
    %c0_i32_2 = arith.constant 0 : i32
    return %arg0, %c0_i32, %c0_i32_0, %c0_i32_1 : i32, i32, i32, i32
  }
  func.func @transform_1(%arg0: i32) -> (i32, i32) {
    %c0_i32 = arith.constant 0 : i32
    %c0_i32_0 = arith.constant 0 : i32
    %c0_i32_1 = arith.constant 0 : i32
    return %c0_i32, %c0_i32_0 : i32, i32
  }
  func.func @transform_2(%arg0: i32) -> (i32, i32) {
    %c0_i32 = arith.constant 0 : i32
    %c0_i32_0 = arith.constant 0 : i32
    %c0_i32_1 = arith.constant 0 : i32
    return %c0_i32, %c0_i32_0 : i32, i32
  }
  func.func @transform_3(%arg0: i32) -> (i32, i32, i32) {
    %c0_i32 = arith.constant 0 : i32
    %c0_i32_0 = arith.constant 0 : i32
    %c0_i32_1 = arith.constant 0 : i32
    %c0_i32_2 = arith.constant 0 : i32
    return %c0_i32, %c0_i32_0, %c0_i32_1 : i32, i32, i32
  }
  func.func @transform_4(%arg0: i32) -> (i32, i32) {
    %c0_i32 = arith.constant 0 : i32
    %c0_i32_0 = arith.constant 0 : i32
    %c0_i32_1 = arith.constant 0 : i32
    return %c0_i32, %c0_i32_0 : i32, i32
  }
  func.func @transform_5(%arg0: i32) -> (i32, i32, i32) {
    %c0_i32 = arith.constant 0 : i32
    %c0_i32_0 = arith.constant 0 : i32
    %c0_i32_1 = arith.constant 0 : i32
    return %arg0, %c0_i32, %c0_i32_0 : i32, i32, i32
  }
}

</mosaic_0001>

<llo_original>
// kernel: tpu_custom_call.1
$region0: #{tpu_custom_call.1}
  #allocation0 [shape = 'u32[]', space=smem, size = 0x4, offset = 0x4, fixed_abs, tag = 'smem constant byte address 0x4 - core index']
  #allocation1 [shape = 'u32[144,128]{1,0:T(1,128)}', space=vmem, size = 0x12000, scoped, tag = 'internal scratch']
  %s0 = inlined_call_operand.vmem [shape: f32[2,4,9,324], index: 0, kind: input, shape index: {}]
  %s1 = inlined_call_operand.vmem [shape: f32[32,9], index: 1, kind: input, shape index: {}]
  %s2 = inlined_call_operand.vmem [shape: f32[32,1], index: 2, kind: input, shape index: {}]
  %s3 = inlined_call_operand.vmem [shape: f32[32,324,20], index: 3, kind: input, shape index: {}]
  %s4 = inlined_call_operand.vmem [shape: f32[1,20], index: 4, kind: input, shape index: {}]
  %s5 = inlined_call_operand.hbm [shape: f32[2,1,20], index: 5, kind: output, shape index: {}]
  %s6 = sld [smem:[#allocation0]]
  $region53: #{tpu_custom_call.1} parent=0
    _
  %s8 = ssub.s32 1, %s6
  %s9 = scalar_select 0, %s8, %s6
  $region1: #{tpu_custom_call.1} parent=0
    #allocation2 [shape = 'u8[1024]{0}', space=vmem, size = 0x400, scoped, tag = 'output window, operand 0']
    #allocation3 [shape = 's32[2]{0}', space=sflag, size = 0x8, scoped, tag = 'scoped memory for tpu_custom_call.1']
    %10 = vsyncpa [#allocation3], 0
    %s11 = scalar_lea.sflag [#allocation3], 1
    %12 = vsyncpa %s11, 0
    loop: start=0, step=1, limit=4
    $region2: #{tpu_custom_call.1} parent=1 // loop_pre_header
      _
    $region3: #{tpu_custom_call.1} parent=1 // loop_header
      %s14 = sphi 0, %s18
      %p15 = scmp.ge.s32.totalorder %s14, 4
      %s24 = sphi 0, %s26
      %s27 = sphi 0, %s24
      %s28 = sphi 0, %s27
      %s44 = sphi 0, %s28
      %s48 = sphi 0, %s48
      %s50 = sphi 0, %s48
      %s51 = sphi 0, %s50
      %s65 = sphi 0, %s51
      %s69 = sphi 0, %s69
      %s71 = sphi 0, %s69
      %s72 = sphi 0, %s71
      %s86 = sphi 0, %s72
      %s90 = sphi 0, %s90
      %s92 = sphi 0, %s90
      %s93 = sphi 0, %s92
      %s107 = sphi 0, %s93
      %s111 = sphi 0, %s111
      %s113 = sphi 0, %s111
      %s114 = sphi 0, %s113
      %s128 = sphi 0, %s114
      %s134 = sphi 0, %s136
      %s137 = sphi 0, %s134
      %s138 = sphi 0, %s137
      %s154 = sphi 0, %s138
    $region4: #{tpu_custom_call.1} parent=1 // loop_header_branch
      %17 = sbr.rel (%p15) target = $region8
    $region5: #{tpu_custom_call.1} parent=1 // loop_body
      %s19 = ssub.s32 %s14, 1
      %s20 = ssub.s32 %s14, 2
      %s21 = sadd.s32 %s14, 1
      %s22 = ssub.s32 %s14, %s21
      %p23 = scmp.eq.s32.totalorder %s22, 0
      %s25 = sadd.s32 %s24, 1
      %s26 = scalar_select %p23, %s24, %s25
      %p29 = pneg %p23
      %p30 = scmp.eq.s32.totalorder %s14, 1
      %p31 = por %p29, %p30
      %p32 = scmp.ne.s32.totalorder %s24, %s27
      %p33 = scmp.eq.s32.totalorder %s14, 0
      %p34 = por %p32, %p33
      %p35 = scmp.ne.s32.totalorder %s24, %s27
      %p36 = scmp.eq.s32.totalorder %s19, 1
      %p37 = por %p35, %p36
      %p38 = scmp.ne.s32.totalorder %s27, %s28
      %p39 = scmp.eq.s32.totalorder %s19, 0
      %p40 = por %p38, %p39
      %p41 = scmp.ne.s32.totalorder %s27, %s28
      %p42 = scmp.eq.s32.totalorder %s20, 1
      %p43 = por %p41, %p42
      %p45 = scmp.ne.s32.totalorder %s28, %s44
      %p46 = scmp.eq.s32.totalorder %s20, 0
      %p47 = por %p45, %p46
      %s49 = sadd.s32 %s48, 1
      %p52 = scmp.eq.s32.totalorder %s14, 1
      %p53 = scmp.ne.s32.totalorder %s48, %s50
      %p54 = scmp.eq.s32.totalorder %s14, 0
      %p55 = por %p53, %p54
      %p56 = scmp.ne.s32.totalorder %s48, %s50
      %p57 = scmp.eq.s32.totalorder %s19, 1
      %p58 = por %p56, %p57
      %p59 = scmp.ne.s32.totalorder %s50, %s51
      %p60 = scmp.eq.s32.totalorder %s19, 0
      %p61 = por %p59, %p60
      %p62 = scmp.ne.s32.totalorder %s50, %s51
      %p63 = scmp.eq.s32.totalorder %s20, 1
      %p64 = por %p62, %p63
      %p66 = scmp.ne.s32.totalorder %s51, %s65
      %p67 = scmp.eq.s32.totalorder %s20, 0
      %p68 = por %p66, %p67
      %s70 = sadd.s32 %s69, 1
      %p73 = scmp.eq.s32.totalorder %s14, 1
      %p74 = scmp.ne.s32.totalorder %s69, %s71
      %p75 = scmp.eq.s32.totalorder %s14, 0
      %p76 = por %p74, %p75
      %p77 = scmp.ne.s32.totalorder %s69, %s71
      %p78 = scmp.eq.s32.totalorder %s19, 1
      %p79 = por %p77, %p78
      %p80 = scmp.ne.s32.totalorder %s71, %s72
      %p81 = scmp.eq.s32.totalorder %s19, 0
      %p82 = por %p80, %p81
      %p83 = scmp.ne.s32.totalorder %s71, %s72
      %p84 = scmp.eq.s32.totalorder %s20, 1
      %p85 = por %p83, %p84
      %p87 = scmp.ne.s32.totalorder %s72, %s86
      %p88 = scmp.eq.s32.totalorder %s20, 0
      %p89 = por %p87, %p88
      %s91 = sadd.s32 %s90, 1
      %p94 = scmp.eq.s32.totalorder %s14, 1
      %p95 = scmp.ne.s32.totalorder %s90, %s92
      %p96 = scmp.eq.s32.totalorder %s14, 0
      %p97 = por %p95, %p96
      %p98 = scmp.ne.s32.totalorder %s90, %s92
      %p99 = scmp.eq.s32.totalorder %s19, 1
      %p100 = por %p98, %p99
      %p101 = scmp.ne.s32.totalorder %s92, %s93
      %p102 = scmp.eq.s32.totalorder %s19, 0
      %p103 = por %p101, %p102
      %p104 = scmp.ne.s32.totalorder %s92, %s93
      %p105 = scmp.eq.s32.totalorder %s20, 1
      %p106 = por %p104, %p105
      %p108 = scmp.ne.s32.totalorder %s93, %s107
      %p109 = scmp.eq.s32.totalorder %s20, 0
      %p110 = por %p108, %p109
      %s112 = sadd.s32 %s111, 1
      %p115 = scmp.eq.s32.totalorder %s14, 1
      %p116 = scmp.ne.s32.totalorder %s111, %s113
      %p117 = scmp.eq.s32.totalorder %s14, 0
      %p118 = por %p116, %p117
      %p119 = scmp.ne.s32.totalorder %s111, %s113
      %p120 = scmp.eq.s32.totalorder %s19, 1
      %p121 = por %p119, %p120
      %p122 = scmp.ne.s32.totalorder %s113, %s114
      %p123 = scmp.eq.s32.totalorder %s19, 0
      %p124 = por %p122, %p123
      %p125 = scmp.ne.s32.totalorder %s113, %s114
      %p126 = scmp.eq.s32.totalorder %s20, 1
      %p127 = por %p125, %p126
      %p129 = scmp.ne.s32.totalorder %s114, %s128
      %p130 = scmp.eq.s32.totalorder %s20, 0
      %p131 = por %p129, %p130
      %s132 = ssub.s32 %s14, %s21
      %p133 = scmp.eq.s32.totalorder %s132, 0
      %s135 = sadd.s32 %s134, 1
      %s136 = scalar_select %p133, %s134, %s135
      %p139 = pneg %p133
      %p140 = scmp.eq.s32.totalorder %s14, 1
      %p141 = por %p139, %p140
      %p142 = scmp.ne.s32.totalorder %s134, %s137
      %p143 = scmp.eq.s32.totalorder %s14, 0
      %p144 = por %p142, %p143
      %p145 = scmp.ne.s32.totalorder %s134, %s137
      %p146 = scmp.eq.s32.totalorder %s19, 1
      %p147 = por %p145, %p146
      %p148 = scmp.ne.s32.totalorder %s137, %s138
      %p149 = scmp.eq.s32.totalorder %s19, 0
      %p150 = por %p148, %p149
      %p151 = scmp.ne.s32.totalorder %s137, %s138
      %p152 = scmp.eq.s32.totalorder %s20, 1
      %p153 = por %p151, %p152
      %p155 = scmp.ne.s32.totalorder %s138, %s154
      %p156 = scmp.eq.s32.totalorder %s20, 0
      %p157 = por %p155, %p156
      %p158 = scmp.le.s32.totalorder 1, %s14
      %p159 = scmp.lt.s32.totalorder %s14, 3
      %p160 = pnand %p158, %p159
      %p161 = pneg %p160
      // Predicated region
      $region9: #{tpu_custom_call.1} parent=5 // pred_check
        _
      $region10: #{tpu_custom_call.1} parent=5 // pred_check_branch
        %163 = sbr.rel (%p160) target = $region12
      $region11: #{tpu_custom_call.1} parent=5 // pred_region
        %s164 = ssub.s32 %s14, 1
        // Predicated region
        $region13: #{tpu_custom_call.1} parent=11 // pred_check
          %p165 = pneg %p61
        $region14: #{tpu_custom_call.1} parent=11 // pred_check_branch
          %167 = sbr.rel (%p165) target = $region16
        $region15: #{tpu_custom_call.1} parent=11 // pred_region
          _
        $region16: #{tpu_custom_call.1} parent=11 // pred_fallthru
          _
        // Predicated region
        $region17: #{tpu_custom_call.1} parent=11 // pred_check
          %p168 = pneg %p82
        $region18: #{tpu_custom_call.1} parent=11 // pred_check_branch
          %170 = sbr.rel (%p168) target = $region20
        $region19: #{tpu_custom_call.1} parent=11 // pred_region
          _
        $region20: #{tpu_custom_call.1} parent=11 // pred_fallthru
          _
        // Predicated region
        $region21: #{tpu_custom_call.1} parent=11 // pred_check
          %p171 = pneg %p103
        $region22: #{tpu_custom_call.1} parent=11 // pred_check_branch
          %173 = sbr.rel (%p171) target = $region24
        $region23: #{tpu_custom_call.1} parent=11 // pred_region
          _
        $region24: #{tpu_custom_call.1} parent=11 // pred_fallthru
          _
        // Predicated region
        $region25: #{tpu_custom_call.1} parent=11 // pred_check
          %p174 = pneg %p124
        $region26: #{tpu_custom_call.1} parent=11 // pred_check_branch
          %176 = sbr.rel (%p174) target = $region28
        $region27: #{tpu_custom_call.1} parent=11 // pred_region
          _
        $region28: #{tpu_custom_call.1} parent=11 // pred_fallthru
          _
      $region12: #{tpu_custom_call.1} parent=5 // pred_fallthru
        _
      %p177 = scmp.lt.s32.totalorder %s14, 2
      // Predicated region
      $region29: #{tpu_custom_call.1} parent=5 // pred_check
        %p178 = pneg %p177
      $region30: #{tpu_custom_call.1} parent=5 // pred_check_branch
        %180 = sbr.rel (%p178) target = $region32
      $region31: #{tpu_custom_call.1} parent=5 // pred_region
        // Predicated region
        $region33: #{tpu_custom_call.1} parent=31 // pred_check
          %p181 = pneg %p34
        $region34: #{tpu_custom_call.1} parent=31 // pred_check_branch
          %183 = sbr.rel (%p181) target = $region36
        $region35: #{tpu_custom_call.1} parent=31 // pred_region
          %p184 = scmp.lt.s32.totalorder %s14, 1
          %s185 = scalar_select %p184, %s14, 1
          %s186 = smul.addr %s185, 24
          %s187 = smul.addr %s186, 8
          %s188 = scalar_lea.vmem %s0, %s187
        $region36: #{tpu_custom_call.1} parent=31 // pred_fallthru
          _
      $region32: #{tpu_custom_call.1} parent=5 // pred_fallthru
        _
      %p189 = scmp.le.s32.totalorder 1, %s14
      %p190 = scmp.lt.s32.totalorder %s14, 3
      %p191 = pnand %p189, %p190
      %p192 = pneg %p191
      // Predicated region
      $region37: #{tpu_custom_call.1} parent=5 // pred_check
        _
      $region38: #{tpu_custom_call.1} parent=5 // pred_check_branch
        %194 = sbr.rel (%p191) target = $region40
      $region39: #{tpu_custom_call.1} parent=5 // pred_region
        %s195 = ssub.s32 %s14, 1
        %p196 = scmp.lt.s32.totalorder %s19, 1
        %s197 = scalar_select %p196, %s19, 1
        %s198 = smul.addr %s197, 24
        %s199 = smul.addr %s198, 8
        %s200 = scalar_lea.vmem %s0, %s199
        %p201 = pneg %p40
        %p202 = pneg %p37
        %p203 = pneg %p61
        %p204 = pneg %p58
        %p205 = pneg %p82
        %p206 = pneg %p79
        %p207 = pneg %p103
        %p208 = pneg %p100
        %p209 = pneg %p124
        %p210 = pneg %p121
        %p211 = pneg %p150
        %p212 = pneg %p147
        %s213 = sand.u32 %s137, 1
        %s214 = scalar_lea.sflag [#allocation3], %s213
        %s215 = sand.u32 %s137, 1
        %s216 = scalar_lea.vmem [#allocation2], %s215
        %p217 = scmp.lt.s32.totalorder %s19, 1
        %s218 = scalar_select %p217, %s19, 1
        %s219 = smul.addr %s218, 24
        %s220 = smul.addr %s219, 8
        %s221 = scalar_lea.vmem %s0, %s220
        %v222 = vld [vmem:[%s1] sm:$0xff]
        %v223 = vld [vmem:[%s1 + $0x8] sm:$0xff]
        %v224 = vld [vmem:[%s1 + $0x10] sm:$0xff]
        %v225 = vld [vmem:[%s1 + $0x18] sm:$0xff]
        %v226 = vld [vmem:[%s221] sm:$0xff]
        %v227 = vld [vmem:[%s221 + $0x8] sm:$0xff]
        %v228 = vld [vmem:[%s221 + $0x10] sm:$0xff]
        %v229 = vld [vmem:[%s221 + $0x18] sm:$0x1]
        %v230 = vld [vmem:[%s221 + $0x20] sm:$0x1]
        %v231 = vld [vmem:[%s221 + $0x28] sm:$0x1]
        %vm232 = vcmask 72704
        %v234 = vsel %vm232, %v222, 0
        %v237 = vsel %vm232, %v223, 0
        %v240 = vsel %vm232, %v224, 0
        %v243 = vsel %vm232, %v225, 0
        %vm245 = vcmask 1040384
        %v247 = vsel %vm245, %v229, 0
        %v250 = vsel %vm245, %v230, 0
        %v253 = vsel %vm245, %v231, 0
        %255 = vmatprep.subr.mxu0 %v227
        %256 = vmatpush1.msra.mxu0 %v226
        %257 = vmatprep.subr.mxu0 %v250
        %258 = vmatpush1.msra.mxu0 %v247
        %259 = vmatprep.subr.mxu0 0.0
        %260 = vmatpush1.msra.mxu0 0.0
        %261 = vmatprep.subr.mxu0 0.0
        %262 = vmatpush1.msra.mxu0 0.0
        %263 = vmatprep.subr.mxu0 0.0
        %264 = vmatpush1.msra.mxu0 0.0
        %265 = vmatprep.subr.mxu0 0.0
        %266 = vmatpush1.msra.mxu0 0.0
        %267 = vmatprep.subr.mxu0 0.0
        %268 = vmatpush1.msra.mxu0 0.0
        %269 = vmatprep.subr.mxu0 0.0
        %270 = vmatpush1.msra.mxu0 0.0
        %271 = vmatprep.subr.mxu0 0.0
        %272 = vmatpush1.msra.mxu0 0.0
        %273 = vmatprep.subr.mxu0 0.0
        %274 = vmatpush1.msra.mxu0 0.0
        %275 = vmatprep.subr.mxu0 0.0
        %276 = vmatpush1.msra.mxu0 0.0
        %277 = vmatprep.subr.mxu0 0.0
        %278 = vmatpush1.msra.mxu0 0.0
        %279 = vmatprep.subr.mxu0 0.0
        %280 = vmatpush1.msra.mxu0 0.0
        %281 = vmatprep.subr.mxu0 0.0
        %282 = vmatpush1.msra.mxu0 0.0
        %283 = vmatprep.subr.mxu0 0.0
        %284 = vmatpush1.msra.mxu0 0.0
        %285 = vmatprep.subr.mxu0 0.0
        %286 = vmatpush1.msra.mxu0 0.0
        %287 = vmatprep.subr.mxu0 0.0
        %288 = vmatpush1.msra.mxu0 0.0
        %289 = vmatprep.subr.mxu0 0.0
        %290 = vmatpush1.msra.mxu0 0.0
        %291 = vmatprep.subr.mxu0 0.0
        %292 = vmatpush1.msra.mxu0 0.0
        %293 = vmatprep.subr.mxu0 0.0
        %294 = vmatpush1.msra.mxu0 0.0
        %295 = vmatprep.subr.mxu0 0.0
        %296 = vmatpush1.msra.mxu0 0.0
        %297 = vmatprep.subr.mxu0 0.0
        %298 = vmatpush1.msra.mxu0 0.0
        %299 = vmatprep.subr.mxu0 0.0
        %300 = vmatpush1.msra.mxu0 0.0
        %301 = vmatprep.subr.mxu0 0.0
        %302 = vmatpush1.msra.mxu0 0.0
        %303 = vmatprep.subr.mxu0 0.0
        %304 = vmatpush1.msra.mxu0 0.0
        %305 = vmatprep.subr.mxu0 0.0
        %306 = vmatpush1.msra.mxu0 0.0
        %307 = vmatprep.subr.mxu0 0.0
        %308 = vmatpush1.msra.mxu0 0.0
        %309 = vmatprep.subr.mxu0 0.0
        %310 = vmatpush1.msra.mxu0 0.0
        %311 = vmatprep.subr.mxu0 0.0
        %312 = vmatpush1.msra.mxu0 0.0
        %313 = vmatprep.subr.mxu0 0.0
        %314 = vmatpush1.msra.mxu0 0.0
        %315 = vmatprep.subr.mxu0 0.0
        %316 = vmatpush1.msra.mxu0 0.0
        %317 = vmatprep.subr.mxu0 0.0
        %318 = vmatpush1.msra.mxu0 0.0
        %319 = vmatprep.mubr.f32.mxu0 0.0
        %320 = vmatmul.mubr.f32.gmra.mrb[0].mxu0 %v234
        %v321 = vpop.f32.mrb[0].mxu0
        %v322 = vadd.f32 0.0, %v321
        %v323 = vpop.f32.mrb[0].mxu0
        %v324 = vadd.f32 0.0, %v323
        %325 = vmatprep.mubr.f32.mxu0 0.0
        %326 = vmatmul.mubr.f32.gmra.mrb[0].mxu0 %v237
        %v327 = vpop.f32.mrb[0].mxu0
        %v328 = vadd.f32 0.0, %v327
        %v329 = vpop.f32.mrb[0].mxu0
        %v330 = vadd.f32 0.0, %v329
        %331 = vmatprep.mubr.f32.mxu0 0.0
        %332 = vmatmul.mubr.f32.gmra.mrb[0].mxu0 %v240
        %v333 = vpop.f32.mrb[0].mxu0
        %v334 = vadd.f32 0.0, %v333
        %v335 = vpop.f32.mrb[0].mxu0
        %v336 = vadd.f32 0.0, %v335
        %337 = vmatprep.mubr.f32.mxu0 0.0
        %338 = vmatmul.mubr.f32.gmra.mrb[0].mxu0 %v243
        %v339 = vpop.f32.mrb[0].mxu0
        %v340 = vadd.f32 0.0, %v339
        %v341 = vpop.f32.mrb[0].mxu0
        %v342 = vadd.f32 0.0, %v341
        %343 = vdwg.mxu0
        %344 = vmatprep.subr.mxu0 0.0
        %345 = vmatpush1.msra.mxu0 %v228
        %346 = vmatprep.subr.mxu0 0.0
        %347 = vmatpush1.msra.mxu0 %v253
        %348 = vmatprep.subr.mxu0 0.0
        %349 = vmatpush1.msra.mxu0 0.0
        %350 = vmatprep.subr.mxu0 0.0
        %351 = vmatpush1.msra.mxu0 0.0
        %352 = vmatprep.subr.mxu0 0.0
        %353 = vmatpush1.msra.mxu0 0.0
        %354 = vmatprep.subr.mxu0 0.0
        %355 = vmatpush1.msra.mxu0 0.0
        %356 = vmatprep.subr.mxu0 0.0
        %357 = vmatpush1.msra.mxu0 0.0
        %358 = vmatprep.subr.mxu0 0.0
        %359 = vmatpush1.msra.mxu0 0.0
        %360 = vmatprep.subr.mxu0 0.0
        %361 = vmatpush1.msra.mxu0 0.0
        %362 = vmatprep.subr.mxu0 0.0
        %363 = vmatpush1.msra.mxu0 0.0
        %364 = vmatprep.subr.mxu0 0.0
        %365 = vmatpush1.msra.mxu0 0.0
        %366 = vmatprep.subr.mxu0 0.0
        %367 = vmatpush1.msra.mxu0 0.0
        %368 = vmatprep.subr.mxu0 0.0
        %369 = vmatpush1.msra.mxu0 0.0
        %370 = vmatprep.subr.mxu0 0.0
        %371 = vmatpush1.msra.mxu0 0.0
        %372 = vmatprep.subr.mxu0 0.0
        %373 = vmatpush1.msra.mxu0 0.0
        %374 = vmatprep.subr.mxu0 0.0
        %375 = vmatpush1.msra.mxu0 0.0
        %376 = vmatprep.subr.mxu0 0.0
        %377 = vmatpush1.msra.mxu0 0.0
        %378 = vmatprep.subr.mxu0 0.0
        %379 = vmatpush1.msra.mxu0 0.0
        %380 = vmatprep.subr.mxu0 0.0
        %381 = vmatpush1.msra.mxu0 0.0
        %382 = vmatprep.subr.mxu0 0.0
        %383 = vmatpush1.msra.mxu0 0.0
        %384 = vmatprep.subr.mxu0 0.0
        %385 = vmatpush1.msra.mxu0 0.0
        %386 = vmatprep.subr.mxu0 0.0
        %387 = vmatpush1.msra.mxu0 0.0
        %388 = vmatprep.subr.mxu0 0.0
        %389 = vmatpush1.msra.mxu0 0.0
        %390 = vmatprep.subr.mxu0 0.0
        %391 = vmatpush1.msra.mxu0 0.0
        %392 = vmatprep.subr.mxu0 0.0
        %393 = vmatpush1.msra.mxu0 0.0
        %394 = vmatprep.subr.mxu0 0.0
        %395 = vmatpush1.msra.mxu0 0.0
        %396 = vmatprep.subr.mxu0 0.0
        %397 = vmatpush1.msra.mxu0 0.0
        %398 = vmatprep.subr.mxu0 0.0
        %399 = vmatpush1.msra.mxu0 0.0
        %400 = vmatprep.subr.mxu0 0.0
        %401 = vmatpush1.msra.mxu0 0.0
        %402 = vmatprep.subr.mxu0 0.0
        %403 = vmatpush1.msra.mxu0 0.0
        %404 = vmatprep.subr.mxu0 0.0
        %405 = vmatpush1.msra.mxu0 0.0
        %406 = vmatprep.subr.mxu0 0.0
        %407 = vmatpush1.msra.mxu0 0.0
        %408 = vmatprep.mubr.f32.mxu0 0.0
        %409 = vmatmul.mubr.f32.gmra.mrb[0].mxu0 %v234
        %v410 = vpop.f32.mrb[0].mxu0
        %v411 = vadd.f32 0.0, %v410
        %v412 = vpop.f32.mrb[0].mxu0
        %413 = vmatprep.mubr.f32.mxu0 0.0
        %414 = vmatmul.mubr.f32.gmra.mrb[0].mxu0 %v237
        %v415 = vpop.f32.mrb[0].mxu0
        %v416 = vadd.f32 0.0, %v415
        %v417 = vpop.f32.mrb[0].mxu0
        %418 = vmatprep.mubr.f32.mxu0 0.0
        %419 = vmatmul.mubr.f32.gmra.mrb[0].mxu0 %v240
        %v420 = vpop.f32.mrb[0].mxu0
        %v421 = vadd.f32 0.0, %v420
        %v422 = vpop.f32.mrb[0].mxu0
        %423 = vmatprep.mubr.f32.mxu0 0.0
        %424 = vmatmul.mubr.f32.gmra.mrb[0].mxu0 %v243
        %v425 = vpop.f32.mrb[0].mxu0
        %v426 = vadd.f32 0.0, %v425
        %v427 = vpop.f32.mrb[0].mxu0
        %428 = vdwg.mxu0
        %s429 = scalar_lea.vmem %s221, 48
        %v430 = vld [vmem:[%s429] sm:$0xff]
        %v431 = vld [vmem:[%s429 + $0x8] sm:$0xff]
        %v432 = vld [vmem:[%s429 + $0x10] sm:$0xff]
        %v433 = vld [vmem:[%s429 + $0x18] sm:$0x1]
        %v434 = vld [vmem:[%s429 + $0x20] sm:$0x1]
        %v435 = vld [vmem:[%s429 + $0x28] sm:$0x1]
        %v437 = vsel %vm245, %v433, 0
        %v440 = vsel %vm245, %v434, 0
        %v443 = vsel %vm245, %v435, 0
        %445 = vmatprep.subr.mxu0 %v431
        %446 = vmatpush1.msra.mxu0 %v430
        %447 = vmatprep.subr.mxu0 %v440
        %448 = vmatpush1.msra.mxu0 %v437
        %449 = vmatprep.subr.mxu0 0.0
        %450 = vmatpush1.msra.mxu0 0.0
        %451 = vmatprep.subr.mxu0 0.0
        %452 = vmatpush1.msra.mxu0 0.0
        %453 = vmatprep.subr.mxu0 0.0
        %454 = vmatpush1.msra.mxu0 0.0
        %455 = vmatprep.subr.mxu0 0.0
        %456 = vmatpush1.msra.mxu0 0.0
        %457 = vmatprep.subr.mxu0 0.0
        %458 = vmatpush1.msra.mxu0 0.0
        %459 = vmatprep.subr.mxu0 0.0
        %460 = vmatpush1.msra.mxu0 0.0
        %461 = vmatprep.subr.mxu0 0.0
        %462 = vmatpush1.msra.mxu0 0.0
        %463 = vmatprep.subr.mxu0 0.0
        %464 = vmatpush1.msra.mxu0 0.0
        %465 = vmatprep.subr.mxu0 0.0
        %466 = vmatpush1.msra.mxu0 0.0
        %467 = vmatprep.subr.mxu0 0.0
        %468 = vmatpush1.msra.mxu0 0.0
        %469 = vmatprep.subr.mxu0 0.0
        %470 = vmatpush1.msra.mxu0 0.0
        %471 = vmatprep.subr.mxu0 0.0
        %472 = vmatpush1.msra.mxu0 0.0
        %473 = vmatprep.subr.mxu0 0.0
        %474 = vmatpush1.msra.mxu0 0.0
        %475 = vmatprep.subr.mxu0 0.0
        %476 = vmatpush1.msra.mxu0 0.0
        %477 = vmatprep.subr.mxu0 0.0
        %478 = vmatpush1.msra.mxu0 0.0
        %479 = vmatprep.subr.mxu0 0.0
        %480 = vmatpush1.msra.mxu0 0.0
        %481 = vmatprep.subr.mxu0 0.0
        %482 = vmatpush1.msra.mxu0 0.0
        %483 = vmatprep.subr.mxu0 0.0
        %484 = vmatpush1.msra.mxu0 0.0
        %485 = vmatprep.subr.mxu0 0.0
        %486 = vmatpush1.msra.mxu0 0.0
        %487 = vmatprep.subr.mxu0 0.0
        %488 = vmatpush1.msra.mxu0 0.0
        %489 = vmatprep.subr.mxu0 0.0
        %490 = vmatpush1.msra.mxu0 0.0
        %491 = vmatprep.subr.mxu0 0.0
        %492 = vmatpush1.msra.mxu0 0.0
        %493 = vmatprep.subr.mxu0 0.0
        %494 = vmatpush1.msra.mxu0 0.0
        %495 = vmatprep.subr.mxu0 0.0
        %496 = vmatpush1.msra.mxu0 0.0
        %497 = vmatprep.subr.mxu0 0.0
        %498 = vmatpush1.msra.mxu0 0.0
        %499 = vmatprep.subr.mxu0 0.0
        %500 = vmatpush1.msra.mxu0 0.0
        %501 = vmatprep.subr.mxu0 0.0
        %502 = vmatpush1.msra.mxu0 0.0
        %503 = vmatprep.subr.mxu0 0.0
        %504 = vmatpush1.msra.mxu0 0.0
        %505 = vmatprep.subr.mxu0 0.0
        %506 = vmatpush1.msra.mxu0 0.0
        %507 = vmatprep.subr.mxu0 0.0
        %508 = vmatpush1.msra.mxu0 0.0
        %509 = vmatprep.mubr.f32.mxu0 0.0
        %510 = vmatmul.mubr.f32.gmra.mrb[0].mxu0 %v234
        %v511 = vpop.f32.mrb[0].mxu0
        %v512 = vadd.f32 0.0, %v511
        %v513 = vpop.f32.mrb[0].mxu0
        %v514 = vadd.f32 0.0, %v513
        %515 = vmatprep.mubr.f32.mxu0 0.0
        %516 = vmatmul.mubr.f32.gmra.mrb[0].mxu0 %v237
        %v517 = vpop.f32.mrb[0].mxu0
        %v518 = vadd.f32 0.0, %v517
        %v519 = vpop.f32.mrb[0].mxu0
        %v520 = vadd.f32 0.0, %v519
        %521 = vmatprep.mubr.f32.mxu0 0.0
        %522 = vmatmul.mubr.f32.gmra.mrb[0].mxu0 %v240
        %v523 = vpop.f32.mrb[0].mxu0
        %v524 = vadd.f32 0.0, %v523
        %v525 = vpop.f32.mrb[0].mxu0
        %v526 = vadd.f32 0.0, %v525
        %527 = vmatprep.mubr.f32.mxu0 0.0
        %528 = vmatmul.mubr.f32.gmra.mrb[0].mxu0 %v243
        %v529 = vpop.f32.mrb[0].mxu0
        %v530 = vadd.f32 0.0, %v529
        %v531 = vpop.f32.mrb[0].mxu0
        %v532 = vadd.f32 0.0, %v531
        %533 = vdwg.mxu0
        %534 = vmatprep.subr.mxu0 0.0
        %535 = vmatpush1.msra.mxu0 %v432
        %536 = vmatprep.subr.mxu0 0.0
        %537 = vmatpush1.msra.mxu0 %v443
        %538 = vmatprep.subr.mxu0 0.0
        %539 = vmatpush1.msra.mxu0 0.0
        %540 = vmatprep.subr.mxu0 0.0
        %541 = vmatpush1.msra.mxu0 0.0
        %542 = vmatprep.subr.mxu0 0.0
        %543 = vmatpush1.msra.mxu0 0.0
        %544 = vmatprep.subr.mxu0 0.0
        %545 = vmatpush1.msra.mxu0 0.0
        %546 = vmatprep.subr.mxu0 0.0
        %547 = vmatpush1.msra.mxu0 0.0
        %548 = vmatprep.subr.mxu0 0.0
        %549 = vmatpush1.msra.mxu0 0.0
        %550 = vmatprep.subr.mxu0 0.0
        %551 = vmatpush1.msra.mxu0 0.0
        %552 = vmatprep.subr.mxu0 0.0
        %553 = vmatpush1.msra.mxu0 0.0
        %554 = vmatprep.subr.mxu0 0.0
        %555 = vmatpush1.msra.mxu0 0.0
        %556 = vmatprep.subr.mxu0 0.0
        %557 = vmatpush1.msra.mxu0 0.0
        %558 = vmatprep.subr.mxu0 0.0
        %559 = vmatpush1.msra.mxu0 0.0
        %560 = vmatprep.subr.mxu0 0.0
        %561 = vmatpush1.msra.mxu0 0.0
        %562 = vmatprep.subr.mxu0 0.0
        %563 = vmatpush1.msra.mxu0 0.0
        %564 = vmatprep.subr.mxu0 0.0
        %565 = vmatpush1.msra.mxu0 0.0
        %566 = vmatprep.subr.mxu0 0.0
        %567 = vmatpush1.msra.mxu0 0.0
        %568 = vmatprep.subr.mxu0 0.0
        %569 = vmatpush1.msra.mxu0 0.0
        %570 = vmatprep.subr.mxu0 0.0
        %571 = vmatpush1.msra.mxu0 0.0
        %572 = vmatprep.subr.mxu0 0.0
        %573 = vmatpush1.msra.mxu0 0.0
        %574 = vmatprep.subr.mxu0 0.0
        %575 = vmatpush1.msra.mxu0 0.0
        %576 = vmatprep.subr.mxu0 0.0
        %577 = vmatpush1.msra.mxu0 0.0
        %578 = vmatprep.subr.mxu0 0.0
        %579 = vmatpush1.msra.mxu0 0.0
        %580 = vmatprep.subr.mxu0 0.0
        %581 = vmatpush1.msra.mxu0 0.0
        %582 = vmatprep.subr.mxu0 0.0
        %583 = vmatpush1.msra.mxu0 0.0
        %584 = vmatprep.subr.mxu0 0.0
        %585 = vmatpush1.msra.mxu0 0.0
        %586 = vmatprep.subr.mxu0 0.0
        %587 = vmatpush1.msra.mxu0 0.0
        %588 = vmatprep.subr.mxu0 0.0
        %589 = vmatpush1.msra.mxu0 0.0
        %590 = vmatprep.subr.mxu0 0.0
        %591 = vmatpush1.msra.mxu0 0.0
        %592 = vmatprep.subr.mxu0 0.0
        %593 = vmatpush1.msra.mxu0 0.0
        %594 = vmatprep.subr.mxu0 0.0
        %595 = vmatpush1.msra.mxu0 0.0
        %596 = vmatprep.subr.mxu0 0.0
        %597 = vmatpush1.msra.mxu0 0.0
        %598 = vmatprep.mubr.f32.mxu0 0.0
        %599 = vmatmul.mubr.f32.gmra.mrb[0].mxu0 %v234
        %v600 = vpop.f32.mrb[0].mxu0
        %v601 = vadd.f32 0.0, %v600
        %v602 = vpop.f32.mrb[0].mxu0
        %603 = vmatprep.mubr.f32.mxu0 0.0
        %604 = vmatmul.mubr.f32.gmra.mrb[0].mxu0 %v237
        %v605 = vpop.f32.mrb[0].mxu0
        %v606 = vadd.f32 0.0, %v605
        %v607 = vpop.f32.mrb[0].mxu0
        %608 = vmatprep.mubr.f32.mxu0 0.0
        %609 = vmatmul.mubr.f32.gmra.mrb[0].mxu0 %v240
        %v610 = vpop.f32.mrb[0].mxu0
        %v611 = vadd.f32 0.0, %v610
        %v612 = vpop.f32.mrb[0].mxu0
        %613 = vmatprep.mubr.f32.mxu0 0.0
        %614 = vmatmul.mubr.f32.gmra.mrb[0].mxu0 %v243
        %v615 = vpop.f32.mrb[0].mxu0
        %v616 = vadd.f32 0.0, %v615
        %v617 = vpop.f32.mrb[0].mxu0
        %618 = vdwg.mxu0
        %v619 = vmax.f32 %v322, %v512
        %v620 = vmax.f32 %v324, %v514
        %v621 = vmax.f32 %v411, %v601
        %v622 = vmax.f32 %v328, %v518
        %v623 = vmax.f32 %v330, %v520
        %v624 = vmax.f32 %v416, %v606
        %v625 = vmax.f32 %v334, %v524
        %v626 = vmax.f32 %v336, %v526
        %v627 = vmax.f32 %v421, %v611
        %v628 = vmax.f32 %v340, %v530
        %v629 = vmax.f32 %v342, %v532
        %v630 = vmax.f32 %v426, %v616
        %s631 = scalar_lea.vmem %s221, 96
        %v632 = vld [vmem:[%s631] sm:$0xff]
        %v633 = vld [vmem:[%s631 + $0x8] sm:$0xff]
        %v634 = vld [vmem:[%s631 + $0x10] sm:$0xff]
        %v635 = vld [vmem:[%s631 + $0x18] sm:$0x1]
        %v636 = vld [vmem:[%s631 + $0x20] sm:$0x1]
        %v637 = vld [vmem:[%s631 + $0x28] sm:$0x1]
        %v639 = vsel %vm245, %v635, 0
        %v642 = vsel %vm245, %v636, 0
        %v645 = vsel %vm245, %v637, 0
        %647 = vmatprep.subr.mxu0 %v633
        %648 = vmatpush1.msra.mxu0 %v632
        %649 = vmatprep.subr.mxu0 %v642
        %650 = vmatpush1.msra.mxu0 %v639
        %651 = vmatprep.subr.mxu0 0.0
        %652 = vmatpush1.msra.mxu0 0.0
        %653 = vmatprep.subr.mxu0 0.0
        %654 = vmatpush1.msra.mxu0 0.0
        %655 = vmatprep.subr.mxu0 0.0
        %656 = vmatpush1.msra.mxu0 0.0
        %657 = vmatprep.subr.mxu0 0.0
        %658 = vmatpush1.msra.mxu0 0.0
        %659 = vmatprep.subr.mxu0 0.0
        %660 = vmatpush1.msra.mxu0 0.0
        %661 = vmatprep.subr.mxu0 0.0
        %662 = vmatpush1.msra.mxu0 0.0
        %663 = vmatprep.subr.mxu0 0.0
        %664 = vmatpush1.msra.mxu0 0.0
        %665 = vmatprep.subr.mxu0 0.0
        %666 = vmatpush1.msra.mxu0 0.0
        %667 = vmatprep.subr.mxu0 0.0
        %668 = vmatpush1.msra.mxu0 0.0
        %669 = vmatprep.subr.mxu0 0.0
        %670 = vmatpush1.msra.mxu0 0.0
        %671 = vmatprep.subr.mxu0 0.0
        %672 = vmatpush1.msra.mxu0 0.0
        %673 = vmatprep.subr.mxu0 0.0
        %674 = vmatpush1.msra.mxu0 0.0
        %675 = vmatprep.subr.mxu0 0.0
        %676 = vmatpush1.msra.mxu0 0.0
        %677 = vmatprep.subr.mxu0 0.0
        %678 = vmatpush1.msra.mxu0 0.0
        %679 = vmatprep.subr.mxu0 0.0
        %680 = vmatpush1.msra.mxu0 0.0
        %681 = vmatprep.subr.mxu0 0.0
        %682 = vmatpush1.msra.mxu0 0.0
        %683 = vmatprep.subr.mxu0 0.0
        %684 = vmatpush1.msra.mxu0 0.0
        %685 = vmatprep.subr.mxu0 0.0
        %686 = vmatpush1.msra.mxu0 0.0
        %687 = vmatprep.subr.mxu0 0.0
        %688 = vmatpush1.msra.mxu0 0.0
        %689 = vmatprep.subr.mxu0 0.0
        %690 = vmatpush1.msra.mxu0 0.0
        %691 = vmatprep.subr.mxu0 0.0
        %692 = vmatpush1.msra.mxu0 0.0
        %693 = vmatprep.subr.mxu0 0.0
        %694 = vmatpush1.msra.mxu0 0.0
        %695 = vmatprep.subr.mxu0 0.0
        %696 = vmatpush1.msra.mxu0 0.0
        %697 = vmatprep.subr.mxu0 0.0
        %698 = vmatpush1.msra.mxu0 0.0
        %699 = vmatprep.subr.mxu0 0.0
        %700 = vmatpush1.msra.mxu0 0.0
        %701 = vmatprep.subr.mxu0 0.0
        %702 = vmatpush1.msra.mxu0 0.0
        %703 = vmatprep.subr.mxu0 0.0
        %704 = vmatpush1.msra.mxu0 0.0
        %705 = vmatprep.subr.mxu0 0.0
        %706 = vmatpush1.msra.mxu0 0.0
        %707 = vmatprep.subr.mxu0 0.0
        %708 = vmatpush1.msra.mxu0 0.0
        %709 = vmatprep.subr.mxu0 0.0
        %710 = vmatpush1.msra.mxu0 0.0
        %711 = vmatprep.mubr.f32.mxu0 0.0
        %712 = vmatmul.mubr.f32.gmra.mrb[0].mxu0 %v234
        %v713 = vpop.f32.mrb[0].mxu0
        %v714 = vadd.f32 0.0, %v713
        %v715 = vpop.f32.mrb[0].mxu0
        %v716 = vadd.f32 0.0, %v715
        %717 = vmatprep.mubr.f32.mxu0 0.0
        %718 = vmatmul.mubr.f32.gmra.mrb[0].mxu0 %v237
        %v719 = vpop.f32.mrb[0].mxu0
        %v720 = vadd.f32 0.0, %v719
        %v721 = vpop.f32.mrb[0].mxu0
        %v722 = vadd.f32 0.0, %v721
        %723 = vmatprep.mubr.f32.mxu0 0.0
        %724 = vmatmul.mubr.f32.gmra.mrb[0].mxu0 %v240
        %v725 = vpop.f32.mrb[0].mxu0
        %v726 = vadd.f32 0.0, %v725
        %v727 = vpop.f32.mrb[0].mxu0
        %v728 = vadd.f32 0.0, %v727
        %729 = vmatprep.mubr.f32.mxu0 0.0
        %730 = vmatmul.mubr.f32.gmra.mrb[0].mxu0 %v243
        %v731 = vpop.f32.mrb[0].mxu0
        %v732 = vadd.f32 0.0, %v731
        %v733 = vpop.f32.mrb[0].mxu0
        %v734 = vadd.f32 0.0, %v733
        %735 = vdwg.mxu0
        %736 = vmatprep.subr.mxu0 0.0
        %737 = vmatpush1.msra.mxu0 %v634
        %738 = vmatprep.subr.mxu0 0.0
        %739 = vmatpush1.msra.mxu0 %v645
        %740 = vmatprep.subr.mxu0 0.0
        %741 = vmatpush1.msra.mxu0 0.0
        %742 = vmatprep.subr.mxu0 0.0
        %743 = vmatpush1.msra.mxu0 0.0
        %744 = vmatprep.subr.mxu0 0.0
        %745 = vmatpush1.msra.mxu0 0.0
        %746 = vmatprep.subr.mxu0 0.0
        %747 = vmatpush1.msra.mxu0 0.0
        %748 = vmatprep.subr.mxu0 0.0
        %749 = vmatpush1.msra.mxu0 0.0
        %750 = vmatprep.subr.mxu0 0.0
        %751 = vmatpush1.msra.mxu0 0.0
        %752 = vmatprep.subr.mxu0 0.0
        %753 = vmatpush1.msra.mxu0 0.0
        %754 = vmatprep.subr.mxu0 0.0
        %755 = vmatpush1.msra.mxu0 0.0
        %756 = vmatprep.subr.mxu0 0.0
        %757 = vmatpush1.msra.mxu0 0.0
        %758 = vmatprep.subr.mxu0 0.0
        %759 = vmatpush1.msra.mxu0 0.0
        %760 = vmatprep.subr.mxu0 0.0
        %761 = vmatpush1.msra.mxu0 0.0
        %762 = vmatprep.subr.mxu0 0.0
        %763 = vmatpush1.msra.mxu0 0.0
        %764 = vmatprep.subr.mxu0 0.0
        %765 = vmatpush1.msra.mxu0 0.0
        %766 = vmatprep.subr.mxu0 0.0
        %767 = vmatpush1.msra.mxu0 0.0
        %768 = vmatprep.subr.mxu0 0.0
        %769 = vmatpush1.msra.mxu0 0.0
        %770 = vmatprep.subr.mxu0 0.0
        %771 = vmatpush1.msra.mxu0 0.0
        %772 = vmatprep.subr.mxu0 0.0
        %773 = vmatpush1.msra.mxu0 0.0
        %774 = vmatprep.subr.mxu0 0.0
        %775 = vmatpush1.msra.mxu0 0.0
        %776 = vmatprep.subr.mxu0 0.0
        %777 = vmatpush1.msra.mxu0 0.0
        %778 = vmatprep.subr.mxu0 0.0
        %779 = vmatpush1.msra.mxu0 0.0
        %780 = vmatprep.subr.mxu0 0.0
        %781 = vmatpush1.msra.mxu0 0.0
        %782 = vmatprep.subr.mxu0 0.0
        %783 = vmatpush1.msra.mxu0 0.0
        %784 = vmatprep.subr.mxu0 0.0
        %785 = vmatpush1.msra.mxu0 0.0
        %786 = vmatprep.subr.mxu0 0.0
        %787 = vmatpush1.msra.mxu0 0.0
        %788 = vmatprep.subr.mxu0 0.0
        %789 = vmatpush1.msra.mxu0 0.0
        %790 = vmatprep.subr.mxu0 0.0
        %791 = vmatpush1.msra.mxu0 0.0
        %792 = vmatprep.subr.mxu0 0.0
        %793 = vmatpush1.msra.mxu0 0.0
        %794 = vmatprep.subr.mxu0 0.0
        %795 = vmatpush1.msra.mxu0 0.0
        %796 = vmatprep.subr.mxu0 0.0
        %797 = vmatpush1.msra.mxu0 0.0
        %798 = vmatprep.subr.mxu0 0.0
        %799 = vmatpush1.msra.mxu0 0.0
        %800 = vmatprep.mubr.f32.mxu0 0.0
        %801 = vmatmul.mubr.f32.gmra.mrb[0].mxu0 %v234
        %v802 = vpop.f32.mrb[0].mxu0
        %v803 = vadd.f32 0.0, %v802
        %v804 = vpop.f32.mrb[0].mxu0
        %805 = vmatprep.mubr.f32.mxu0 0.0
        %806 = vmatmul.mubr.f32.gmra.mrb[0].mxu0 %v237
        %v807 = vpop.f32.mrb[0].mxu0
        %v808 = vadd.f32 0.0, %v807
        %v809 = vpop.f32.mrb[0].mxu0
        %810 = vmatprep.mubr.f32.mxu0 0.0
        %811 = vmatmul.mubr.f32.gmra.mrb[0].mxu0 %v240
        %v812 = vpop.f32.mrb[0].mxu0
        %v813 = vadd.f32 0.0, %v812
        %v814 = vpop.f32.mrb[0].mxu0
        %815 = vmatprep.mubr.f32.mxu0 0.0
        %816 = vmatmul.mubr.f32.gmra.mrb[0].mxu0 %v243
        %v817 = vpop.f32.mrb[0].mxu0
        %v818 = vadd.f32 0.0, %v817
        %v819 = vpop.f32.mrb[0].mxu0
        %820 = vdwg.mxu0
        %v821 = vmax.f32 %v619, %v714
        %v822 = vmax.f32 %v620, %v716
        %v823 = vmax.f32 %v621, %v803
        %v824 = vmax.f32 %v622, %v720
        %v825 = vmax.f32 %v623, %v722
        %v826 = vmax.f32 %v624, %v808
        %v827 = vmax.f32 %v625, %v726
        %v828 = vmax.f32 %v626, %v728
        %v829 = vmax.f32 %v627, %v813
        %v830 = vmax.f32 %v628, %v732
        %v831 = vmax.f32 %v629, %v734
        %v832 = vmax.f32 %v630, %v818
        %s833 = scalar_lea.vmem %s221, 144
        %v834 = vld [vmem:[%s833] sm:$0xff]
        %v835 = vld [vmem:[%s833 + $0x8] sm:$0xff]
        %v836 = vld [vmem:[%s833 + $0x10] sm:$0xff]
        %v837 = vld [vmem:[%s833 + $0x18] sm:$0x1]
        %v838 = vld [vmem:[%s833 + $0x20] sm:$0x1]
        %v839 = vld [vmem:[%s833 + $0x28] sm:$0x1]
        %v841 = vsel %vm245, %v837, 0
        %v844 = vsel %vm245, %v838, 0
        %v847 = vsel %vm245, %v839, 0
        %849 = vmatprep.subr.mxu0 %v835
        %850 = vmatpush1.msra.mxu0 %v834
        %851 = vmatprep.subr.mxu0 %v844
        %852 = vmatpush1.msra.mxu0 %v841
        %853 = vmatprep.subr.mxu0 0.0
        %854 = vmatpush1.msra.mxu0 0.0
        %855 = vmatprep.subr.mxu0 0.0
        %856 = vmatpush1.msra.mxu0 0.0
        %857 = vmatprep.subr.mxu0 0.0
        %858 = vmatpush1.msra.mxu0 0.0
        %859 = vmatprep.subr.mxu0 0.0
        %860 = vmatpush1.msra.mxu0 0.0
        %861 = vmatprep.subr.mxu0 0.0
        %862 = vmatpush1.msra.mxu0 0.0
        %863 = vmatprep.subr.mxu0 0.0
        %864 = vmatpush1.msra.mxu0 0.0
        %865 = vmatprep.subr.mxu0 0.0
        %866 = vmatpush1.msra.mxu0 0.0
        %867 = vmatprep.subr.mxu0 0.0
        %868 = vmatpush1.msra.mxu0 0.0
        %869 = vmatprep.subr.mxu0 0.0
        %870 = vmatpush1.msra.mxu0 0.0
        %871 = vmatprep.subr.mxu0 0.0
        %872 = vmatpush1.msra.mxu0 0.0
        %873 = vmatprep.subr.mxu0 0.0
        %874 = vmatpush1.msra.mxu0 0.0
        %875 = vmatprep.subr.mxu0 0.0
        %876 = vmatpush1.msra.mxu0 0.0
        %877 = vmatprep.subr.mxu0 0.0
        %878 = vmatpush1.msra.mxu0 0.0
        %879 = vmatprep.subr.mxu0 0.0
        %880 = vmatpush1.msra.mxu0 0.0
        %881 = vmatprep.subr.mxu0 0.0
        %882 = vmatpush1.msra.mxu0 0.0
        %883 = vmatprep.subr.mxu0 0.0
        %884 = vmatpush1.msra.mxu0 0.0
        %885 = vmatprep.subr.mxu0 0.0
        %886 = vmatpush1.msra.mxu0 0.0
        %887 = vmatprep.subr.mxu0 0.0
        %888 = vmatpush1.msra.mxu0 0.0
        %889 = vmatprep.subr.mxu0 0.0
        %890 = vmatpush1.msra.mxu0 0.0
        %891 = vmatprep.subr.mxu0 0.0
        %892 = vmatpush1.msra.mxu0 0.0
        %893 = vmatprep.subr.mxu0 0.0
        %894 = vmatpush1.msra.mxu0 0.0
        %895 = vmatprep.subr.mxu0 0.0
        %896 = vmatpush1.msra.mxu0 0.0
        %897 = vmatprep.subr.mxu0 0.0
        %898 = vmatpush1.msra.mxu0 0.0
        %899 = vmatprep.subr.mxu0 0.0
        %900 = vmatpush1.msra.mxu0 0.0
        %901 = vmatprep.subr.mxu0 0.0
        %902 = vmatpush1.msra.mxu0 0.0
        %903 = vmatprep.subr.mxu0 0.0
        %904 = vmatpush1.msra.mxu0 0.0
        %905 = vmatprep.subr.mxu0 0.0
        %906 = vmatpush1.msra.mxu0 0.0
        %907 = vmatprep.subr.mxu0 0.0
        %908 = vmatpush1.msra.mxu0 0.0
        %909 = vmatprep.subr.mxu0 0.0
        %910 = vmatpush1.msra.mxu0 0.0
        %911 = vmatprep.subr.mxu0 0.0
        %912 = vmatpush1.msra.mxu0 0.0
        %913 = vmatprep.mubr.f32.mxu0 0.0
        %914 = vmatmul.mubr.f32.gmra.mrb[0].mxu0 %v234
        %v915 = vpop.f32.mrb[0].mxu0
        %v916 = vadd.f32 0.0, %v915
        %v917 = vpop.f32.mrb[0].mxu0
        %v918 = vadd.f32 0.0, %v917
        %919 = vmatprep.mubr.f32.mxu0 0.0
        %920 = vmatmul.mubr.f32.gmra.mrb[0].mxu0 %v237
        %v921 = vpop.f32.mrb[0].mxu0
        %v922 = vadd.f32 0.0, %v921
        %v923 = vpop.f32.mrb[0].mxu0
        %v924 = vadd.f32 0.0, %v923
        %925 = vmatprep.mubr.f32.mxu0 0.0
        %926 = vmatmul.mubr.f32.gmra.mrb[0].mxu0 %v240
        %v927 = vpop.f32.mrb[0].mxu0
        %v928 = vadd.f32 0.0, %v927
        %v929 = vpop.f32.mrb[0].mxu0
        %v930 = vadd.f32 0.0, %v929
        %931 = vmatprep.mubr.f32.mxu0 0.0
        %932 = vmatmul.mubr.f32.gmra.mrb[0].mxu0 %v243
        %v933 = vpop.f32.mrb[0].mxu0
        %v934 = vadd.f32 0.0, %v933
        %v935 = vpop.f32.mrb[0].mxu0
        %v936 = vadd.f32 0.0, %v935
        %937 = vdwg.mxu0
        %938 = vmatprep.subr.mxu0 0.0
        %939 = vmatpush1.msra.mxu0 %v836
        %940 = vmatprep.subr.mxu0 0.0
        %941 = vmatpush1.msra.mxu0 %v847
        %942 = vmatprep.subr.mxu0 0.0
        %943 = vmatpush1.msra.mxu0 0.0
        %944 = vmatprep.subr.mxu0 0.0
        %945 = vmatpush1.msra.mxu0 0.0
        %946 = vmatprep.subr.mxu0 0.0
        %947 = vmatpush1.msra.mxu0 0.0
        %948 = vmatprep.subr.mxu0 0.0
        %949 = vmatpush1.msra.mxu0 0.0
        %950 = vmatprep.subr.mxu0 0.0
        %951 = vmatpush1.msra.mxu0 0.0
        %952 = vmatprep.subr.mxu0 0.0
        %953 = vmatpush1.msra.mxu0 0.0
        %954 = vmatprep.subr.mxu0 0.0
        %955 = vmatpush1.msra.mxu0 0.0
        %956 = vmatprep.subr.mxu0 0.0
        %957 = vmatpush1.msra.mxu0 0.0
        %958 = vmatprep.subr.mxu0 0.0
        %959 = vmatpush1.msra.mxu0 0.0
        %960 = vmatprep.subr.mxu0 0.0
        %961 = vmatpush1.msra.mxu0 0.0
        %962 = vmatprep.subr.mxu0 0.0
        %963 = vmatpush1.msra.mxu0 0.0
        %964 = vmatprep.subr.mxu0 0.0
        %965 = vmatpush1.msra.mxu0 0.0
        %966 = vmatprep.subr.mxu0 0.0
        %967 = vmatpush1.msra.mxu0 0.0
        %968 = vmatprep.subr.mxu0 0.0
        %969 = vmatpush1.msra.mxu0 0.0
        %970 = vmatprep.subr.mxu0 0.0
        %971 = vmatpush1.msra.mxu0 0.0
        %972 = vmatprep.subr.mxu0 0.0
        %973 = vmatpush1.msra.mxu0 0.0
        %974 = vmatprep.subr.mxu0 0.0
        %975 = vmatpush1.msra.mxu0 0.0
        %976 = vmatprep.subr.mxu0 0.0
        %977 = vmatpush1.msra.mxu0 0.0
        %978 = vmatprep.subr.mxu0 0.0
        %979 = vmatpush1.msra.mxu0 0.0
        %980 = vmatprep.subr.mxu0 0.0
        %981 = vmatpush1.msra.mxu0 0.0
        %982 = vmatprep.subr.mxu0 0.0
        %983 = vmatpush1.msra.mxu0 0.0
        %984 = vmatprep.subr.mxu0 0.0
        %985 = vmatpush1.msra.mxu0 0.0
        %986 = vmatprep.subr.mxu0 0.0
        %987 = vmatpush1.msra.mxu0 0.0
        %988 = vmatprep.subr.mxu0 0.0
        %989 = vmatpush1.msra.mxu0 0.0
        %990 = vmatprep.subr.mxu0 0.0
        %991 = vmatpush1.msra.mxu0 0.0
        %992 = vmatprep.subr.mxu0 0.0
        %993 = vmatpush1.msra.mxu0 0.0
        %994 = vmatprep.subr.mxu0 0.0
        %995 = vmatpush1.msra.mxu0 0.0
        %996 = vmatprep.subr.mxu0 0.0
        %997 = vmatpush1.msra.mxu0 0.0
        %998 = vmatprep.subr.mxu0 0.0
        %999 = vmatpush1.msra.mxu0 0.0
        %1000 = vmatprep.subr.mxu0 0.0
        %1001 = vmatpush1.msra.mxu0 0.0
        %1002 = vmatprep.mubr.f32.mxu0 0.0
        %1003 = vmatmul.mubr.f32.gmra.mrb[0].mxu0 %v234
        %v1004 = vpop.f32.mrb[0].mxu0
        %v1005 = vadd.f32 0.0, %v1004
        %v1006 = vpop.f32.mrb[0].mxu0
        %1007 = vmatprep.mubr.f32.mxu0 0.0
        %1008 = vmatmul.mubr.f32.gmra.mrb[0].mxu0 %v237
        %v1009 = vpop.f32.mrb[0].mxu0
        %v1010 = vadd.f32 0.0, %v1009
        %v1011 = vpop.f32.mrb[0].mxu0
        %1012 = vmatprep.mubr.f32.mxu0 0.0
        %1013 = vmatmul.mubr.f32.gmra.mrb[0].mxu0 %v240
        %v1014 = vpop.f32.mrb[0].mxu0
        %v1015 = vadd.f32 0.0, %v1014
        %v1016 = vpop.f32.mrb[0].mxu0
        %1017 = vmatprep.mubr.f32.mxu0 0.0
        %1018 = vmatmul.mubr.f32.gmra.mrb[0].mxu0 %v243
        %v1019 = vpop.f32.mrb[0].mxu0
        %v1020 = vadd.f32 0.0, %v1019
        %v1021 = vpop.f32.mrb[0].mxu0
        %1022 = vdwg.mxu0
        %v1023 = vmax.f32 %v821, %v916
        %v1024 = vmax.f32 %v822, %v918
        %v1025 = vmax.f32 %v823, %v1005
        %v1026 = vmax.f32 %v824, %v922
        %v1027 = vmax.f32 %v825, %v924
        %v1028 = vmax.f32 %v826, %v1010
        %v1029 = vmax.f32 %v827, %v928
        %v1030 = vmax.f32 %v828, %v930
        %v1031 = vmax.f32 %v829, %v1015
        %v1032 = vmax.f32 %v830, %v934
        %v1033 = vmax.f32 %v831, %v936
        %v1034 = vmax.f32 %v832, %v1020
        %v1035 = vld [vmem:[%s2] sm:$0xff]
        %v1036 = vld [vmem:[%s2 + $0x8] sm:$0xff]
        %v1037 = vld [vmem:[%s2 + $0x10] sm:$0xff]
        %v1038 = vld [vmem:[%s2 + $0x18] sm:$0xff]
        %1040 = vset.pattern.permute.xlu0 0
        %1041 = vperm.xlu0 %1040, %v1035
        %v1042 = vpop.permute.xlu0 %1041
        %1045 = vset.pattern.permute.xlu0 0
        %1046 = vperm.xlu0 %1045, %v1036
        %v1047 = vpop.permute.xlu0 %1046
        %1050 = vset.pattern.permute.xlu0 0
        %1051 = vperm.xlu0 %1050, %v1037
        %v1052 = vpop.permute.xlu0 %1051
        %1055 = vset.pattern.permute.xlu0 0
        %1056 = vperm.xlu0 %1055, %v1038
        %v1057 = vpop.permute.xlu0 %1056
        %v1059 = vadd.f32 %v1023, %v1042
        %v1060 = vadd.f32 %v1024, %v1042
        %v1061 = vadd.f32 %v1025, %v1042
        %v1062 = vadd.f32 %v1026, %v1047
        %v1063 = vadd.f32 %v1027, %v1047
        %v1064 = vadd.f32 %v1028, %v1047
        %v1065 = vadd.f32 %v1029, %v1052
        %v1066 = vadd.f32 %v1030, %v1052
        %v1067 = vadd.f32 %v1031, %v1052
        %v1068 = vadd.f32 %v1032, %v1057
        %v1069 = vadd.f32 %v1033, %v1057
        %v1070 = vadd.f32 %v1034, %v1057
        %v1071 = vmax.f32 %v1059, 0.0
        %v1072 = vmax.f32 %v1060, 0.0
        %v1073 = vmax.f32 %v1061, 0.0
        %v1074 = vmax.f32 %v1062, 0.0
        %v1075 = vmax.f32 %v1063, 0.0
        %v1076 = vmax.f32 %v1064, 0.0
        %v1077 = vmax.f32 %v1065, 0.0
        %v1078 = vmax.f32 %v1066, 0.0
        %v1079 = vmax.f32 %v1067, 0.0
        %v1080 = vmax.f32 %v1068, 0.0
        %v1081 = vmax.f32 %v1069, 0.0
        %v1082 = vmax.f32 %v1070, 0.0
        %v1083 = vld [vmem:[%s3] sm:$0xff]
        %v1084 = vld [vmem:[%s3 + $0x8] sm:$0xff]
        %v1085 = vld [vmem:[%s3 + $0x10] sm:$0xff]
        %v1086 = vld [vmem:[%s3 + $0x18] sm:$0xff]
        %v1087 = vld [vmem:[%s3 + $0x20] sm:$0xff]
        %v1088 = vld [vmem:[%s3 + $0x28] sm:$0xff]
        %v1089 = vld [vmem:[%s3 + $0x30] sm:$0xff]
        %v1090 = vld [vmem:[%s3 + $0x38] sm:$0xff]
        %v1091 = vld [vmem:[%s3 + $0x40] sm:$0xff]
        %v1092 = vld [vmem:[%s3 + $0x48] sm:$0xff]
        %v1093 = vld [vmem:[%s3 + $0x50] sm:$0xff]
        %v1094 = vld [vmem:[%s3 + $0x58] sm:$0xff]
        %v1095 = vld [vmem:[%s3 + $0x60] sm:$0xff]
        %v1096 = vld [vmem:[%s3 + $0x68] sm:$0xff]
        %v1097 = vld [vmem:[%s3 + $0x70] sm:$0xff]
        %v1098 = vld [vmem:[%s3 + $0x78] sm:$0xff]
        %v1099 = vld [vmem:[%s3 + $0x80] sm:$0xff]
        %v1100 = vld [vmem:[%s3 + $0x88] sm:$0xff]
        %v1101 = vld [vmem:[%s3 + $0x90] sm:$0xff]
        %v1102 = vld [vmem:[%s3 + $0x98] sm:$0xff]
        %v1103 = vld [vmem:[%s3 + $0xa0] sm:$0xff]
        %v1104 = vld [vmem:[%s3 + $0xa8] sm:$0xff]
        %v1105 = vld [vmem:[%s3 + $0xb0] sm:$0xff]
        %v1106 = vld [vmem:[%s3 + $0xb8] sm:$0xff]
        %v1107 = vld [vmem:[%s3 + $0xc0] sm:$0xff]
        %v1108 = vld [vmem:[%s3 + $0xc8] sm:$0xff]
        %v1109 = vld [vmem:[%s3 + $0xd0] sm:$0xff]
        %v1110 = vld [vmem:[%s3 + $0xd8] sm:$0xff]
        %v1111 = vld [vmem:[%s3 + $0xe0] sm:$0xff]
        %v1112 = vld [vmem:[%s3 + $0xe8] sm:$0xff]
        %v1113 = vld [vmem:[%s3 + $0xf0] sm:$0xff]
        %v1114 = vld [vmem:[%s3 + $0xf8] sm:$0xff]
        %v1115 = vld [vmem:[%s3 + $0x100] sm:$0xff]
        %v1116 = vld [vmem:[%s3 + $0x108] sm:$0xff]
        %v1117 = vld [vmem:[%s3 + $0x110] sm:$0xff]
        %v1118 = vld [vmem:[%s3 + $0x118] sm:$0xff]
        %v1119 = vld [vmem:[%s3 + $0x120] sm:$0xff]
        %v1120 = vld [vmem:[%s3 + $0x128] sm:$0xff]
        %v1121 = vld [vmem:[%s3 + $0x130] sm:$0xff]
        %v1122 = vld [vmem:[%s3 + $0x138] sm:$0xff]
        %v1123 = vld [vmem:[%s3 + $0x140] sm:$0xf]
        %s1124 = scalar_lea.vmem %s3, 328
        %v1125 = vld [vmem:[%s1124] sm:$0xff]
        %v1126 = vld [vmem:[%s1124 + $0x8] sm:$0xff]
        %v1127 = vld [vmem:[%s1124 + $0x10] sm:$0xff]
        %v1128 = vld [vmem:[%s1124 + $0x18] sm:$0xff]
        %v1129 = vld [vmem:[%s1124 + $0x20] sm:$0xff]
        %v1130 = vld [vmem:[%s1124 + $0x28] sm:$0xff]
        %v1131 = vld [vmem:[%s1124 + $0x30] sm:$0xff]
        %v1132 = vld [vmem:[%s1124 + $0x38] sm:$0xff]
        %v1133 = vld [vmem:[%s1124 + $0x40] sm:$0xff]
        %v1134 = vld [vmem:[%s1124 + $0x48] sm:$0xff]
        %v1135 = vld [vmem:[%s1124 + $0x50] sm:$0xff]
        %v1136 = vld [vmem:[%s1124 + $0x58] sm:$0xff]
        %v1137 = vld [vmem:[%s1124 + $0x60] sm:$0xff]
        %v1138 = vld [vmem:[%s1124 + $0x68] sm:$0xff]
        %v1139 = vld [vmem:[%s1124 + $0x70] sm:$0xff]
        %v1140 = vld [vmem:[%s1124 + $0x78] sm:$0xff]
        %v1141 = vld [vmem:[%s1124 + $0x80] sm:$0xff]
        %v1142 = vld [vmem:[%s1124 + $0x88] sm:$0xff]
        %v1143 = vld [vmem:[%s1124 + $0x90] sm:$0xff]
        %v1144 = vld [vmem:[%s1124 + $0x98] sm:$0xff]
        %v1145 = vld [vmem:[%s1124 + $0xa0] sm:$0xff]
        %v1146 = vld [vmem:[%s1124 + $0xa8] sm:$0xff]
        %v1147 = vld [vmem:[%s1124 + $0xb0] sm:$0xff]
        %v1148 = vld [vmem:[%s1124 + $0xb8] sm:$0xff]
        %v1149 = vld [vmem:[%s1124 + $0xc0] sm:$0xff]
        %v1150 = vld [vmem:[%s1124 + $0xc8] sm:$0xff]
        %v1151 = vld [vmem:[%s1124 + $0xd0] sm:$0xff]
        %v1152 = vld [vmem:[%s1124 + $0xd8] sm:$0xff]
        %v1153 = vld [vmem:[%s1124 + $0xe0] sm:$0xff]
        %v1154 = vld [vmem:[%s1124 + $0xe8] sm:$0xff]
        %v1155 = vld [vmem:[%s1124 + $0xf0] sm:$0xff]
        %v1156 = vld [vmem:[%s1124 + $0xf8] sm:$0xff]
        %v1157 = vld [vmem:[%s1124 + $0x100] sm:$0xff]
        %v1158 = vld [vmem:[%s1124 + $0x108] sm:$0xff]
        %v1159 = vld [vmem:[%s1124 + $0x110] sm:$0xff]
        %v1160 = vld [vmem:[%s1124 + $0x118] sm:$0xff]
        %v1161 = vld [vmem:[%s1124 + $0x120] sm:$0xff]
        %v1162 = vld [vmem:[%s1124 + $0x128] sm:$0xff]
        %v1163 = vld [vmem:[%s1124 + $0x130] sm:$0xff]
        %v1164 = vld [vmem:[%s1124 + $0x138] sm:$0xff]
        %v1165 = vld [vmem:[%s1124 + $0x140] sm:$0xf]
        %v1169 = vrot.slane %v1071, 1
        %v1170 = vrot.slane %v1072, 1
        %v1171 = vrot.slane %v1073, 1
        %vm1174 = vcmask 556032
        %v1175 = vsel %vm1174, %v1171, 0
        %vm1177 = vcmask 1043456
        %v1179 = vsel %vm1177, %v1165, 0
        %1181 = vmatprep.subr.mxu0 0.0
        %1182 = vmatpush1.msra.mxu0 %v1125
        %1183 = vmatprep.subr.mxu0 0.0
        %1184 = vmatpush1.msra.mxu0 %v1126
        %1185 = vmatprep.subr.mxu0 0.0
        %1186 = vmatpush1.msra.mxu0 %v1127
        %1187 = vmatprep.subr.mxu0 0.0
        %1188 = vmatpush1.msra.mxu0 %v1128
        %1189 = vmatprep.subr.mxu0 0.0
        %1190 = vmatpush1.msra.mxu0 %v1129
        %1191 = vmatprep.subr.mxu0 0.0
        %1192 = vmatpush1.msra.mxu0 %v1130
        %1193 = vmatprep.subr.mxu0 0.0
        %1194 = vmatpush1.msra.mxu0 %v1131
        %1195 = vmatprep.subr.mxu0 0.0
        %1196 = vmatpush1.msra.mxu0 %v1132
        %1197 = vmatprep.subr.mxu0 0.0
        %1198 = vmatpush1.msra.mxu0 %v1133
        %1199 = vmatprep.subr.mxu0 0.0
        %1200 = vmatpush1.msra.mxu0 %v1134
        %1201 = vmatprep.subr.mxu0 0.0
        %1202 = vmatpush1.msra.mxu0 %v1135
        %1203 = vmatprep.subr.mxu0 0.0
        %1204 = vmatpush1.msra.mxu0 %v1136
        %1205 = vmatprep.subr.mxu0 0.0
        %1206 = vmatpush1.msra.mxu0 %v1137
        %1207 = vmatprep.subr.mxu0 0.0
        %1208 = vmatpush1.msra.mxu0 %v1138
        %1209 = vmatprep.subr.mxu0 0.0
        %1210 = vmatpush1.msra.mxu0 %v1139
        %1211 = vmatprep.subr.mxu0 0.0
        %1212 = vmatpush1.msra.mxu0 %v1140
        %1213 = vmatprep.subr.mxu0 0.0
        %1214 = vmatpush1.msra.mxu0 %v1141
        %1215 = vmatprep.subr.mxu0 0.0
        %1216 = vmatpush1.msra.mxu0 %v1142
        %1217 = vmatprep.subr.mxu0 0.0
        %1218 = vmatpush1.msra.mxu0 %v1143
        %1219 = vmatprep.subr.mxu0 0.0
        %1220 = vmatpush1.msra.mxu0 %v1144
        %1221 = vmatprep.subr.mxu0 0.0
        %1222 = vmatpush1.msra.mxu0 %v1145
        %1223 = vmatprep.subr.mxu0 0.0
        %1224 = vmatpush1.msra.mxu0 %v1146
        %1225 = vmatprep.subr.mxu0 0.0
        %1226 = vmatpush1.msra.mxu0 %v1147
        %1227 = vmatprep.subr.mxu0 0.0
        %1228 = vmatpush1.msra.mxu0 %v1148
        %1229 = vmatprep.subr.mxu0 0.0
        %1230 = vmatpush1.msra.mxu0 %v1149
        %1231 = vmatprep.subr.mxu0 0.0
        %1232 = vmatpush1.msra.mxu0 %v1150
        %1233 = vmatprep.subr.mxu0 0.0
        %1234 = vmatpush1.msra.mxu0 %v1151
        %1235 = vmatprep.subr.mxu0 0.0
        %1236 = vmatpush1.msra.mxu0 %v1152
        %1237 = vmatprep.subr.mxu0 0.0
        %1238 = vmatpush1.msra.mxu0 %v1153
        %1239 = vmatprep.subr.mxu0 0.0
        %1240 = vmatpush1.msra.mxu0 %v1154
        %1241 = vmatprep.subr.mxu0 0.0
        %1242 = vmatpush1.msra.mxu0 %v1155
        %1243 = vmatprep.subr.mxu0 0.0
        %1244 = vmatpush1.msra.mxu0 %v1156
        %1245 = vmatprep.mubr.f32.mxu0 %v1170
        %1246 = vmatmul.mubr.f32.gmra.mrb[0].mxu0 %v1169
        %v1247 = vpop.f32.mrb[0].mxu0
        %v1248 = vadd.f32 0.0, %v1247
        %v1249 = vpop.f32.mrb[0].mxu0
        %1250 = vdwg.mxu0
        %1251 = vmatprep.subr.mxu0 0.0
        %1252 = vmatpush1.msra.mxu0 %v1157
        %1253 = vmatprep.subr.mxu0 0.0
        %1254 = vmatpush1.msra.mxu0 %v1158
        %1255 = vmatprep.subr.mxu0 0.0
        %1256 = vmatpush1.msra.mxu0 %v1159
        %1257 = vmatprep.subr.mxu0 0.0
        %1258 = vmatpush1.msra.mxu0 %v1160
        %1259 = vmatprep.subr.mxu0 0.0
        %1260 = vmatpush1.msra.mxu0 %v1161
        %1261 = vmatprep.subr.mxu0 0.0
        %1262 = vmatpush1.msra.mxu0 %v1162
        %1263 = vmatprep.subr.mxu0 0.0
        %1264 = vmatpush1.msra.mxu0 %v1163
        %1265 = vmatprep.subr.mxu0 0.0
        %1266 = vmatpush1.msra.mxu0 %v1164
        %1267 = vmatprep.subr.mxu0 0.0
        %1268 = vmatpush1.msra.mxu0 %v1179
        %1269 = vmatprep.subr.mxu0 0.0
        %1270 = vmatpush1.msra.mxu0 0.0
        %1271 = vmatprep.subr.mxu0 0.0
        %1272 = vmatpush1.msra.mxu0 0.0
        %1273 = vmatprep.subr.mxu0 0.0
        %1274 = vmatpush1.msra.mxu0 0.0
        %1275 = vmatprep.subr.mxu0 0.0
        %1276 = vmatpush1.msra.mxu0 0.0
        %1277 = vmatprep.subr.mxu0 0.0
        %1278 = vmatpush1.msra.mxu0 0.0
        %1279 = vmatprep.subr.mxu0 0.0
        %1280 = vmatpush1.msra.mxu0 0.0
        %1281 = vmatprep.subr.mxu0 0.0
        %1282 = vmatpush1.msra.mxu0 0.0
        %1283 = vmatprep.subr.mxu0 0.0
        %1284 = vmatpush1.msra.mxu0 0.0
        %1285 = vmatprep.subr.mxu0 0.0
        %1286 = vmatpush1.msra.mxu0 0.0
        %1287 = vmatprep.subr.mxu0 0.0
        %1288 = vmatpush1.msra.mxu0 0.0
        %1289 = vmatprep.subr.mxu0 0.0
        %1290 = vmatpush1.msra.mxu0 0.0
        %1291 = vmatprep.subr.mxu0 0.0
        %1292 = vmatpush1.msra.mxu0 0.0
        %1293 = vmatprep.subr.mxu0 0.0
        %1294 = vmatpush1.msra.mxu0 0.0
        %1295 = vmatprep.subr.mxu0 0.0
        %1296 = vmatpush1.msra.mxu0 0.0
        %1297 = vmatprep.subr.mxu0 0.0
        %1298 = vmatpush1.msra.mxu0 0.0
        %1299 = vmatprep.subr.mxu0 0.0
        %1300 = vmatpush1.msra.mxu0 0.0
        %1301 = vmatprep.subr.mxu0 0.0
        %1302 = vmatpush1.msra.mxu0 0.0
        %1303 = vmatprep.subr.mxu0 0.0
        %1304 = vmatpush1.msra.mxu0 0.0
        %1305 = vmatprep.subr.mxu0 0.0
        %1306 = vmatpush1.msra.mxu0 0.0
        %1307 = vmatprep.subr.mxu0 0.0
        %1308 = vmatpush1.msra.mxu0 0.0
        %1309 = vmatprep.subr.mxu0 0.0
        %1310 = vmatpush1.msra.mxu0 0.0
        %1311 = vmatprep.subr.mxu0 0.0
        %1312 = vmatpush1.msra.mxu0 0.0
        %1313 = vmatprep.subr.mxu0 0.0
        %1314 = vmatpush1.msra.mxu0 0.0
        %1315 = vmatprep.mubr.f32.mxu0 0.0
        %1316 = vmatmul.mubr.f32.gmra.mrb[0].mxu0 %v1175
        %v1317 = vpop.f32.mrb[0].mxu0
        %v1318 = vadd.f32 %v1248, %v1317
        %v1319 = vpop.f32.mrb[0].mxu0
        %1320 = vdwg.mxu0
        %v1321 = vsel %vm1174, %v1073, 0
        %v1324 = vsel %vm1177, %v1123, 0
        %1326 = vmatprep.subr.mxu0 0.0
        %1327 = vmatpush1.msra.mxu0 %v1083
        %1328 = vmatprep.subr.mxu0 0.0
        %1329 = vmatpush1.msra.mxu0 %v1084
        %1330 = vmatprep.subr.mxu0 0.0
        %1331 = vmatpush1.msra.mxu0 %v1085
        %1332 = vmatprep.subr.mxu0 0.0
        %1333 = vmatpush1.msra.mxu0 %v1086
        %1334 = vmatprep.subr.mxu0 0.0
        %1335 = vmatpush1.msra.mxu0 %v1087
        %1336 = vmatprep.subr.mxu0 0.0
        %1337 = vmatpush1.msra.mxu0 %v1088
        %1338 = vmatprep.subr.mxu0 0.0
        %1339 = vmatpush1.msra.mxu0 %v1089
        %1340 = vmatprep.subr.mxu0 0.0
        %1341 = vmatpush1.msra.mxu0 %v1090
        %1342 = vmatprep.subr.mxu0 0.0
        %1343 = vmatpush1.msra.mxu0 %v1091
        %1344 = vmatprep.subr.mxu0 0.0
        %1345 = vmatpush1.msra.mxu0 %v1092
        %1346 = vmatprep.subr.mxu0 0.0
        %1347 = vmatpush1.msra.mxu0 %v1093
        %1348 = vmatprep.subr.mxu0 0.0
        %1349 = vmatpush1.msra.mxu0 %v1094
        %1350 = vmatprep.subr.mxu0 0.0
        %1351 = vmatpush1.msra.mxu0 %v1095
        %1352 = vmatprep.subr.mxu0 0.0
        %1353 = vmatpush1.msra.mxu0 %v1096
        %1354 = vmatprep.subr.mxu0 0.0
        %1355 = vmatpush1.msra.mxu0 %v1097
        %1356 = vmatprep.subr.mxu0 0.0
        %1357 = vmatpush1.msra.mxu0 %v1098
        %1358 = vmatprep.subr.mxu0 0.0
        %1359 = vmatpush1.msra.mxu0 %v1099
        %1360 = vmatprep.subr.mxu0 0.0
        %1361 = vmatpush1.msra.mxu0 %v1100
        %1362 = vmatprep.subr.mxu0 0.0
        %1363 = vmatpush1.msra.mxu0 %v1101
        %1364 = vmatprep.subr.mxu0 0.0
        %1365 = vmatpush1.msra.mxu0 %v1102
        %1366 = vmatprep.subr.mxu0 0.0
        %1367 = vmatpush1.msra.mxu0 %v1103
        %1368 = vmatprep.subr.mxu0 0.0
        %1369 = vmatpush1.msra.mxu0 %v1104
        %1370 = vmatprep.subr.mxu0 0.0
        %1371 = vmatpush1.msra.mxu0 %v1105
        %1372 = vmatprep.subr.mxu0 0.0
        %1373 = vmatpush1.msra.mxu0 %v1106
        %1374 = vmatprep.subr.mxu0 0.0
        %1375 = vmatpush1.msra.mxu0 %v1107
        %1376 = vmatprep.subr.mxu0 0.0
        %1377 = vmatpush1.msra.mxu0 %v1108
        %1378 = vmatprep.subr.mxu0 0.0
        %1379 = vmatpush1.msra.mxu0 %v1109
        %1380 = vmatprep.subr.mxu0 0.0
        %1381 = vmatpush1.msra.mxu0 %v1110
        %1382 = vmatprep.subr.mxu0 0.0
        %1383 = vmatpush1.msra.mxu0 %v1111
        %1384 = vmatprep.subr.mxu0 0.0
        %1385 = vmatpush1.msra.mxu0 %v1112
        %1386 = vmatprep.subr.mxu0 0.0
        %1387 = vmatpush1.msra.mxu0 %v1113
        %1388 = vmatprep.subr.mxu0 0.0
        %1389 = vmatpush1.msra.mxu0 %v1114
        %1390 = vmatprep.mubr.f32.mxu0 %v1072
        %1391 = vmatmul.mubr.f32.gmra.mrb[0].mxu0 %v1071
        %v1392 = vpop.f32.mrb[0].mxu0
        %v1393 = vadd.f32 %v1318, %v1392
        %v1394 = vpop.f32.mrb[0].mxu0
        %1395 = vdwg.mxu0
        %1396 = vmatprep.subr.mxu0 0.0
        %1397 = vmatpush1.msra.mxu0 %v1115
        %1398 = vmatprep.subr.mxu0 0.0
        %1399 = vmatpush1.msra.mxu0 %v1116
        %1400 = vmatprep.subr.mxu0 0.0
        %1401 = vmatpush1.msra.mxu0 %v1117
        %1402 = vmatprep.subr.mxu0 0.0
        %1403 = vmatpush1.msra.mxu0 %v1118
        %1404 = vmatprep.subr.mxu0 0.0
        %1405 = vmatpush1.msra.mxu0 %v1119
        %1406 = vmatprep.subr.mxu0 0.0
        %1407 = vmatpush1.msra.mxu0 %v1120
        %1408 = vmatprep.subr.mxu0 0.0
        %1409 = vmatpush1.msra.mxu0 %v1121
        %1410 = vmatprep.subr.mxu0 0.0
        %1411 = vmatpush1.msra.mxu0 %v1122
        %1412 = vmatprep.subr.mxu0 0.0
        %1413 = vmatpush1.msra.mxu0 %v1324
        %1414 = vmatprep.subr.mxu0 0.0
        %1415 = vmatpush1.msra.mxu0 0.0
        %1416 = vmatprep.subr.mxu0 0.0
        %1417 = vmatpush1.msra.mxu0 0.0
        %1418 = vmatprep.subr.mxu0 0.0
        %1419 = vmatpush1.msra.mxu0 0.0
        %1420 = vmatprep.subr.mxu0 0.0
        %1421 = vmatpush1.msra.mxu0 0.0
        %1422 = vmatprep.subr.mxu0 0.0
        %1423 = vmatpush1.msra.mxu0 0.0
        %1424 = vmatprep.subr.mxu0 0.0
        %1425 = vmatpush1.msra.mxu0 0.0
        %1426 = vmatprep.subr.mxu0 0.0
        %1427 = vmatpush1.msra.mxu0 0.0
        %1428 = vmatprep.subr.mxu0 0.0
        %1429 = vmatpush1.msra.mxu0 0.0
        %1430 = vmatprep.subr.mxu0 0.0
        %1431 = vmatpush1.msra.mxu0 0.0
        %1432 = vmatprep.subr.mxu0 0.0
        %1433 = vmatpush1.msra.mxu0 0.0
        %1434 = vmatprep.subr.mxu0 0.0
        %1435 = vmatpush1.msra.mxu0 0.0
        %1436 = vmatprep.subr.mxu0 0.0
        %1437 = vmatpush1.msra.mxu0 0.0
        %1438 = vmatprep.subr.mxu0 0.0
        %1439 = vmatpush1.msra.mxu0 0.0
        %1440 = vmatprep.subr.mxu0 0.0
        %1441 = vmatpush1.msra.mxu0 0.0
        %1442 = vmatprep.subr.mxu0 0.0
        %1443 = vmatpush1.msra.mxu0 0.0
        %1444 = vmatprep.subr.mxu0 0.0
        %1445 = vmatpush1.msra.mxu0 0.0
        %1446 = vmatprep.subr.mxu0 0.0
        %1447 = vmatpush1.msra.mxu0 0.0
        %1448 = vmatprep.subr.mxu0 0.0
        %1449 = vmatpush1.msra.mxu0 0.0
        %1450 = vmatprep.subr.mxu0 0.0
        %1451 = vmatpush1.msra.mxu0 0.0
        %1452 = vmatprep.subr.mxu0 0.0
        %1453 = vmatpush1.msra.mxu0 0.0
        %1454 = vmatprep.subr.mxu0 0.0
        %1455 = vmatpush1.msra.mxu0 0.0
        %1456 = vmatprep.subr.mxu0 0.0
        %1457 = vmatpush1.msra.mxu0 0.0
        %1458 = vmatprep.subr.mxu0 0.0
        %1459 = vmatpush1.msra.mxu0 0.0
        %1460 = vmatprep.mubr.f32.mxu0 0.0
        %1461 = vmatmul.mubr.f32.gmra.mrb[0].mxu0 %v1321
        %v1462 = vpop.f32.mrb[0].mxu0
        %v1463 = vadd.f32 %v1393, %v1462
        %v1464 = vpop.f32.mrb[0].mxu0
        %1465 = vdwg.mxu0
        %s1466 = scalar_lea.vmem %s3, 656
        %v1467 = vld [vmem:[%s1466] sm:$0xff]
        %v1468 = vld [vmem:[%s1466 + $0x8] sm:$0xff]
        %v1469 = vld [vmem:[%s1466 + $0x10] sm:$0xff]
        %v1470 = vld [vmem:[%s1466 + $0x18] sm:$0xff]
        %v1471 = vld [vmem:[%s1466 + $0x20] sm:$0xff]
        %v1472 = vld [vmem:[%s1466 + $0x28] sm:$0xff]
        %v1473 = vld [vmem:[%s1466 + $0x30] sm:$0xff]
        %v1474 = vld [vmem:[%s1466 + $0x38] sm:$0xff]
        %v1475 = vld [vmem:[%s1466 + $0x40] sm:$0xff]
        %v1476 = vld [vmem:[%s1466 + $0x48] sm:$0xff]
        %v1477 = vld [vmem:[%s1466 + $0x50] sm:$0xff]
        %v1478 = vld [vmem:[%s1466 + $0x58] sm:$0xff]
        %v1479 = vld [vmem:[%s1466 + $0x60] sm:$0xff]
        %v1480 = vld [vmem:[%s1466 + $0x68] sm:$0xff]
        %v1481 = vld [vmem:[%s1466 + $0x70] sm:$0xff]
        %v1482 = vld [vmem:[%s1466 + $0x78] sm:$0xff]
        %v1483 = vld [vmem:[%s1466 + $0x80] sm:$0xff]
        %v1484 = vld [vmem:[%s1466 + $0x88] sm:$0xff]
        %v1485 = vld [vmem:[%s1466 + $0x90] sm:$0xff]
        %v1486 = vld [vmem:[%s1466 + $0x98] sm:$0xff]
        %v1487 = vld [vmem:[%s1466 + $0xa0] sm:$0xff]
        %v1488 = vld [vmem:[%s1466 + $0xa8] sm:$0xff]
        %v1489 = vld [vmem:[%s1466 + $0xb0] sm:$0xff]
        %v1490 = vld [vmem:[%s1466 + $0xb8] sm:$0xff]
        %v1491 = vld [vmem:[%s1466 + $0xc0] sm:$0xff]
        %v1492 = vld [vmem:[%s1466 + $0xc8] sm:$0xff]
        %v1493 = vld [vmem:[%s1466 + $0xd0] sm:$0xff]
        %v1494 = vld [vmem:[%s1466 + $0xd8] sm:$0xff]
        %v1495 = vld [vmem:[%s1466 + $0xe0] sm:$0xff]
        %v1496 = vld [vmem:[%s1466 + $0xe8] sm:$0xff]
        %v1497 = vld [vmem:[%s1466 + $0xf0] sm:$0xff]
        %v1498 = vld [vmem:[%s1466 + $0xf8] sm:$0xff]
        %v1499 = vld [vmem:[%s1466 + $0x100] sm:$0xff]
        %v1500 = vld [vmem:[%s1466 + $0x108] sm:$0xff]
        %v1501 = vld [vmem:[%s1466 + $0x110] sm:$0xff]
        %v1502 = vld [vmem:[%s1466 + $0x118] sm:$0xff]
        %v1503 = vld [vmem:[%s1466 + $0x120] sm:$0xff]
        %v1504 = vld [vmem:[%s1466 + $0x128] sm:$0xff]
        %v1505 = vld [vmem:[%s1466 + $0x130] sm:$0xff]
        %v1506 = vld [vmem:[%s1466 + $0x138] sm:$0xff]
        %v1507 = vld [vmem:[%s1466 + $0x140] sm:$0xf]
        %v1508 = vrot.slane %v1071, 2
        %v1509 = vrot.slane %v1072, 2
        %v1510 = vrot.slane %v1073, 2
        %v1513 = vsel %vm1174, %v1510, 0
        %v1516 = vsel %vm1177, %v1507, 0
        %1518 = vmatprep.subr.mxu0 0.0
        %1519 = vmatpush1.msra.mxu0 %v1467
        %1520 = vmatprep.subr.mxu0 0.0
        %1521 = vmatpush1.msra.mxu0 %v1468
        %1522 = vmatprep.subr.mxu0 0.0
        %1523 = vmatpush1.msra.mxu0 %v1469
        %1524 = vmatprep.subr.mxu0 0.0
        %1525 = vmatpush1.msra.mxu0 %v1470
        %1526 = vmatprep.subr.mxu0 0.0
        %1527 = vmatpush1.msra.mxu0 %v1471
        %1528 = vmatprep.subr.mxu0 0.0
        %1529 = vmatpush1.msra.mxu0 %v1472
        %1530 = vmatprep.subr.mxu0 0.0
        %1531 = vmatpush1.msra.mxu0 %v1473
        %1532 = vmatprep.subr.mxu0 0.0
        %1533 = vmatpush1.msra.mxu0 %v1474
        %1534 = vmatprep.subr.mxu0 0.0
        %1535 = vmatpush1.msra.mxu0 %v1475
        %1536 = vmatprep.subr.mxu0 0.0
        %1537 = vmatpush1.msra.mxu0 %v1476
        %1538 = vmatprep.subr.mxu0 0.0
        %1539 = vmatpush1.msra.mxu0 %v1477
        %1540 = vmatprep.subr.mxu0 0.0
        %1541 = vmatpush1.msra.mxu0 %v1478
        %1542 = vmatprep.subr.mxu0 0.0
        %1543 = vmatpush1.msra.mxu0 %v1479
        %1544 = vmatprep.subr.mxu0 0.0
        %1545 = vmatpush1.msra.mxu0 %v1480
        %1546 = vmatprep.subr.mxu0 0.0
        %1547 = vmatpush1.msra.mxu0 %v1481
        %1548 = vmatprep.subr.mxu0 0.0
        %1549 = vmatpush1.msra.mxu0 %v1482
        %1550 = vmatprep.subr.mxu0 0.0
        %1551 = vmatpush1.msra.mxu0 %v1483
        %1552 = vmatprep.subr.mxu0 0.0
        %1553 = vmatpush1.msra.mxu0 %v1484
        %1554 = vmatprep.subr.mxu0 0.0
        %1555 = vmatpush1.msra.mxu0 %v1485
        %1556 = vmatprep.subr.mxu0 0.0
        %1557 = vmatpush1.msra.mxu0 %v1486
        %1558 = vmatprep.subr.mxu0 0.0
        %1559 = vmatpush1.msra.mxu0 %v1487
        %1560 = vmatprep.subr.mxu0 0.0
        %1561 = vmatpush1.msra.mxu0 %v1488
        %1562 = vmatprep.subr.mxu0 0.0
        %1563 = vmatpush1.msra.mxu0 %v1489
        %1564 = vmatprep.subr.mxu0 0.0
        %1565 = vmatpush1.msra.mxu0 %v1490
        %1566 = vmatprep.subr.mxu0 0.0
        %1567 = vmatpush1.msra.mxu0 %v1491
        %1568 = vmatprep.subr.mxu0 0.0
        %1569 = vmatpush1.msra.mxu0 %v1492
        %1570 = vmatprep.subr.mxu0 0.0
        %1571 = vmatpush1.msra.mxu0 %v1493
        %1572 = vmatprep.subr.mxu0 0.0
        %1573 = vmatpush1.msra.mxu0 %v1494
        %1574 = vmatprep.subr.mxu0 0.0
        %1575 = vmatpush1.msra.mxu0 %v1495
        %1576 = vmatprep.subr.mxu0 0.0
        %1577 = vmatpush1.msra.mxu0 %v1496
        %1578 = vmatprep.subr.mxu0 0.0
        %1579 = vmatpush1.msra.mxu0 %v1497
        %1580 = vmatprep.subr.mxu0 0.0
        %1581 = vmatpush1.msra.mxu0 %v1498
        %1582 = vmatprep.mubr.f32.mxu0 %v1509
        %1583 = vmatmul.mubr.f32.gmra.mrb[0].mxu0 %v1508
        %v1584 = vpop.f32.mrb[0].mxu0
        %v1585 = vadd.f32 0.0, %v1584
        %v1586 = vpop.f32.mrb[0].mxu0
        %1587 = vdwg.mxu0
        %1588 = vmatprep.subr.mxu0 0.0
        %1589 = vmatpush1.msra.mxu0 %v1499
        %1590 = vmatprep.subr.mxu0 0.0
        %1591 = vmatpush1.msra.mxu0 %v1500
        %1592 = vmatprep.subr.mxu0 0.0
        %1593 = vmatpush1.msra.mxu0 %v1501
        %1594 = vmatprep.subr.mxu0 0.0
        %1595 = vmatpush1.msra.mxu0 %v1502
        %1596 = vmatprep.subr.mxu0 0.0
        %1597 = vmatpush1.msra.mxu0 %v1503
        %1598 = vmatprep.subr.mxu0 0.0
        %1599 = vmatpush1.msra.mxu0 %v1504
        %1600 = vmatprep.subr.mxu0 0.0
        %1601 = vmatpush1.msra.mxu0 %v1505
        %1602 = vmatprep.subr.mxu0 0.0
        %1603 = vmatpush1.msra.mxu0 %v1506
        %1604 = vmatprep.subr.mxu0 0.0
        %1605 = vmatpush1.msra.mxu0 %v1516
        %1606 = vmatprep.subr.mxu0 0.0
        %1607 = vmatpush1.msra.mxu0 0.0
        %1608 = vmatprep.subr.mxu0 0.0
        %1609 = vmatpush1.msra.mxu0 0.0
        %1610 = vmatprep.subr.mxu0 0.0
        %1611 = vmatpush1.msra.mxu0 0.0
        %1612 = vmatprep.subr.mxu0 0.0
        %1613 = vmatpush1.msra.mxu0 0.0
        %1614 = vmatprep.subr.mxu0 0.0
        %1615 = vmatpush1.msra.mxu0 0.0
        %1616 = vmatprep.subr.mxu0 0.0
        %1617 = vmatpush1.msra.mxu0 0.0
        %1618 = vmatprep.subr.mxu0 0.0
        %1619 = vmatpush1.msra.mxu0 0.0
        %1620 = vmatprep.subr.mxu0 0.0
        %1621 = vmatpush1.msra.mxu0 0.0
        %1622 = vmatprep.subr.mxu0 0.0
        %1623 = vmatpush1.msra.mxu0 0.0
        %1624 = vmatprep.subr.mxu0 0.0
        %1625 = vmatpush1.msra.mxu0 0.0
        %1626 = vmatprep.subr.mxu0 0.0
        %1627 = vmatpush1.msra.mxu0 0.0
        %1628 = vmatprep.subr.mxu0 0.0
        %1629 = vmatpush1.msra.mxu0 0.0
        %1630 = vmatprep.subr.mxu0 0.0
        %1631 = vmatpush1.msra.mxu0 0.0
        %1632 = vmatprep.subr.mxu0 0.0
        %1633 = vmatpush1.msra.mxu0 0.0
        %1634 = vmatprep.subr.mxu0 0.0
        %1635 = vmatpush1.msra.mxu0 0.0
        %1636 = vmatprep.subr.mxu0 0.0
        %1637 = vmatpush1.msra.mxu0 0.0
        %1638 = vmatprep.subr.mxu0 0.0
        %1639 = vmatpush1.msra.mxu0 0.0
        %1640 = vmatprep.subr.mxu0 0.0
        %1641 = vmatpush1.msra.mxu0 0.0
        %1642 = vmatprep.subr.mxu0 0.0
        %1643 = vmatpush1.msra.mxu0 0.0
        %1644 = vmatprep.subr.mxu0 0.0
        %1645 = vmatpush1.msra.mxu0 0.0
        %1646 = vmatprep.subr.mxu0 0.0
        %1647 = vmatpush1.msra.mxu0 0.0
        %1648 = vmatprep.subr.mxu0 0.0
        %1649 = vmatpush1.msra.mxu0 0.0
        %1650 = vmatprep.subr.mxu0 0.0
        %1651 = vmatpush1.msra.mxu0 0.0
        %1652 = vmatprep.mubr.f32.mxu0 0.0
        %1653 = vmatmul.mubr.f32.gmra.mrb[0].mxu0 %v1513
        %v1654 = vpop.f32.mrb[0].mxu0
        %v1655 = vadd.f32 %v1585, %v1654
        %v1656 = vpop.f32.mrb[0].mxu0
        %1657 = vdwg.mxu0
        %v1658 = vadd.f32 %v1463, %v1655
        %s1659 = scalar_lea.vmem %s3, 984
        %v1660 = vld [vmem:[%s1659] sm:$0xff]
        %v1661 = vld [vmem:[%s1659 + $0x8] sm:$0xff]
        %v1662 = vld [vmem:[%s1659 + $0x10] sm:$0xff]
        %v1663 = vld [vmem:[%s1659 + $0x18] sm:$0xff]
        %v1664 = vld [vmem:[%s1659 + $0x20] sm:$0xff]
        %v1665 = vld [vmem:[%s1659 + $0x28] sm:$0xff]
        %v1666 = vld [vmem:[%s1659 + $0x30] sm:$0xff]
        %v1667 = vld [vmem:[%s1659 + $0x38] sm:$0xff]
        %v1668 = vld [vmem:[%s1659 + $0x40] sm:$0xff]
        %v1669 = vld [vmem:[%s1659 + $0x48] sm:$0xff]
        %v1670 = vld [vmem:[%s1659 + $0x50] sm:$0xff]
        %v1671 = vld [vmem:[%s1659 + $0x58] sm:$0xff]
        %v1672 = vld [vmem:[%s1659 + $0x60] sm:$0xff]
        %v1673 = vld [vmem:[%s1659 + $0x68] sm:$0xff]
        %v1674 = vld [vmem:[%s1659 + $0x70] sm:$0xff]
        %v1675 = vld [vmem:[%s1659 + $0x78] sm:$0xff]
        %v1676 = vld [vmem:[%s1659 + $0x80] sm:$0xff]
        %v1677 = vld [vmem:[%s1659 + $0x88] sm:$0xff]
        %v1678 = vld [vmem:[%s1659 + $0x90] sm:$0xff]
        %v1679 = vld [vmem:[%s1659 + $0x98] sm:$0xff]
        %v1680 = vld [vmem:[%s1659 + $0xa0] sm:$0xff]
        %v1681 = vld [vmem:[%s1659 + $0xa8] sm:$0xff]
        %v1682 = vld [vmem:[%s1659 + $0xb0] sm:$0xff]
        %v1683 = vld [vmem:[%s1659 + $0xb8] sm:$0xff]
        %v1684 = vld [vmem:[%s1659 + $0xc0] sm:$0xff]
        %v1685 = vld [vmem:[%s1659 + $0xc8] sm:$0xff]
        %v1686 = vld [vmem:[%s1659 + $0xd0] sm:$0xff]
        %v1687 = vld [vmem:[%s1659 + $0xd8] sm:$0xff]
        %v1688 = vld [vmem:[%s1659 + $0xe0] sm:$0xff]
        %v1689 = vld [vmem:[%s1659 + $0xe8] sm:$0xff]
        %v1690 = vld [vmem:[%s1659 + $0xf0] sm:$0xff]
        %v1691 = vld [vmem:[%s1659 + $0xf8] sm:$0xff]
        %v1692 = vld [vmem:[%s1659 + $0x100] sm:$0xff]
        %v1693 = vld [vmem:[%s1659 + $0x108] sm:$0xff]
        %v1694 = vld [vmem:[%s1659 + $0x110] sm:$0xff]
        %v1695 = vld [vmem:[%s1659 + $0x118] sm:$0xff]
        %v1696 = vld [vmem:[%s1659 + $0x120] sm:$0xff]
        %v1697 = vld [vmem:[%s1659 + $0x128] sm:$0xff]
        %v1698 = vld [vmem:[%s1659 + $0x130] sm:$0xff]
        %v1699 = vld [vmem:[%s1659 + $0x138] sm:$0xff]
        %v1700 = vld [vmem:[%s1659 + $0x140] sm:$0xf]
        %v1701 = vrot.slane %v1071, 3
        %v1702 = vrot.slane %v1072, 3
        %v1703 = vrot.slane %v1073, 3
        %v1706 = vsel %vm1174, %v1703, 0
        %v1709 = vsel %vm1177, %v1700, 0
        %1711 = vmatprep.subr.mxu0 0.0
        %1712 = vmatpush1.msra.mxu0 %v1660
        %1713 = vmatprep.subr.mxu0 0.0
        %1714 = vmatpush1.msra.mxu0 %v1661
        %1715 = vmatprep.subr.mxu0 0.0
        %1716 = vmatpush1.msra.mxu0 %v1662
        %1717 = vmatprep.subr.mxu0 0.0
        %1718 = vmatpush1.msra.mxu0 %v1663
        %1719 = vmatprep.subr.mxu0 0.0
        %1720 = vmatpush1.msra.mxu0 %v1664
        %1721 = vmatprep.subr.mxu0 0.0
        %1722 = vmatpush1.msra.mxu0 %v1665
        %1723 = vmatprep.subr.mxu0 0.0
        %1724 = vmatpush1.msra.mxu0 %v1666
        %1725 = vmatprep.subr.mxu0 0.0
        %1726 = vmatpush1.msra.mxu0 %v1667
        %1727 = vmatprep.subr.mxu0 0.0
        %1728 = vmatpush1.msra.mxu0 %v1668
        %1729 = vmatprep.subr.mxu0 0.0
        %1730 = vmatpush1.msra.mxu0 %v1669
        %1731 = vmatprep.subr.mxu0 0.0
        %1732 = vmatpush1.msra.mxu0 %v1670
        %1733 = vmatprep.subr.mxu0 0.0
        %1734 = vmatpush1.msra.mxu0 %v1671
        %1735 = vmatprep.subr.mxu0 0.0
        %1736 = vmatpush1.msra.mxu0 %v1672
        %1737 = vmatprep.subr.mxu0 0.0
        %1738 = vmatpush1.msra.mxu0 %v1673
        %1739 = vmatprep.subr.mxu0 0.0
        %1740 = vmatpush1.msra.mxu0 %v1674
        %1741 = vmatprep.subr.mxu0 0.0
        %1742 = vmatpush1.msra.mxu0 %v1675
        %1743 = vmatprep.subr.mxu0 0.0
        %1744 = vmatpush1.msra.mxu0 %v1676
        %1745 = vmatprep.subr.mxu0 0.0
        %1746 = vmatpush1.msra.mxu0 %v1677
        %1747 = vmatprep.subr.mxu0 0.0
        %1748 = vmatpush1.msra.mxu0 %v1678
        %1749 = vmatprep.subr.mxu0 0.0
        %1750 = vmatpush1.msra.mxu0 %v1679
        %1751 = vmatprep.subr.mxu0 0.0
        %1752 = vmatpush1.msra.mxu0 %v1680
        %1753 = vmatprep.subr.mxu0 0.0
        %1754 = vmatpush1.msra.mxu0 %v1681
        %1755 = vmatprep.subr.mxu0 0.0
        %1756 = vmatpush1.msra.mxu0 %v1682
        %1757 = vmatprep.subr.mxu0 0.0
        %1758 = vmatpush1.msra.mxu0 %v1683
        %1759 = vmatprep.subr.mxu0 0.0
        %1760 = vmatpush1.msra.mxu0 %v1684
        %1761 = vmatprep.subr.mxu0 0.0
        %1762 = vmatpush1.msra.mxu0 %v1685
        %1763 = vmatprep.subr.mxu0 0.0
        %1764 = vmatpush1.msra.mxu0 %v1686
        %1765 = vmatprep.subr.mxu0 0.0
        %1766 = vmatpush1.msra.mxu0 %v1687
        %1767 = vmatprep.subr.mxu0 0.0
        %1768 = vmatpush1.msra.mxu0 %v1688
        %1769 = vmatprep.subr.mxu0 0.0
        %1770 = vmatpush1.msra.mxu0 %v1689
        %1771 = vmatprep.subr.mxu0 0.0
        %1772 = vmatpush1.msra.mxu0 %v1690
        %1773 = vmatprep.subr.mxu0 0.0
        %1774 = vmatpush1.msra.mxu0 %v1691
        %1775 = vmatprep.mubr.f32.mxu0 %v1702
        %1776 = vmatmul.mubr.f32.gmra.mrb[0].mxu0 %v1701
        %v1777 = vpop.f32.mrb[0].mxu0
        %v1778 = vadd.f32 0.0, %v1777
        %v1779 = vpop.f32.mrb[0].mxu0
        %1780 = vdwg.mxu0
        %1781 = vmatprep.subr.mxu0 0.0
        %1782 = vmatpush1.msra.mxu0 %v1692
        %1783 = vmatprep.subr.mxu0 0.0
        %1784 = vmatpush1.msra.mxu0 %v1693
        %1785 = vmatprep.subr.mxu0 0.0
        %1786 = vmatpush1.msra.mxu0 %v1694
        %1787 = vmatprep.subr.mxu0 0.0
        %1788 = vmatpush1.msra.mxu0 %v1695
        %1789 = vmatprep.subr.mxu0 0.0
        %1790 = vmatpush1.msra.mxu0 %v1696
        %1791 = vmatprep.subr.mxu0 0.0
        %1792 = vmatpush1.msra.mxu0 %v1697
        %1793 = vmatprep.subr.mxu0 0.0
        %1794 = vmatpush1.msra.mxu0 %v1698
        %1795 = vmatprep.subr.mxu0 0.0
        %1796 = vmatpush1.msra.mxu0 %v1699
        %1797 = vmatprep.subr.mxu0 0.0
        %1798 = vmatpush1.msra.mxu0 %v1709
        %1799 = vmatprep.subr.mxu0 0.0
        %1800 = vmatpush1.msra.mxu0 0.0
        %1801 = vmatprep.subr.mxu0 0.0
        %1802 = vmatpush1.msra.mxu0 0.0
        %1803 = vmatprep.subr.mxu0 0.0
        %1804 = vmatpush1.msra.mxu0 0.0
        %1805 = vmatprep.subr.mxu0 0.0
        %1806 = vmatpush1.msra.mxu0 0.0
        %1807 = vmatprep.subr.mxu0 0.0
        %1808 = vmatpush1.msra.mxu0 0.0
        %1809 = vmatprep.subr.mxu0 0.0
        %1810 = vmatpush1.msra.mxu0 0.0
        %1811 = vmatprep.subr.mxu0 0.0
        %1812 = vmatpush1.msra.mxu0 0.0
        %1813 = vmatprep.subr.mxu0 0.0
        %1814 = vmatpush1.msra.mxu0 0.0
        %1815 = vmatprep.subr.mxu0 0.0
        %1816 = vmatpush1.msra.mxu0 0.0
        %1817 = vmatprep.subr.mxu0 0.0
        %1818 = vmatpush1.msra.mxu0 0.0
        %1819 = vmatprep.subr.mxu0 0.0
        %1820 = vmatpush1.msra.mxu0 0.0
        %1821 = vmatprep.subr.mxu0 0.0
        %1822 = vmatpush1.msra.mxu0 0.0
        %1823 = vmatprep.subr.mxu0 0.0
        %1824 = vmatpush1.msra.mxu0 0.0
        %1825 = vmatprep.subr.mxu0 0.0
        %1826 = vmatpush1.msra.mxu0 0.0
        %1827 = vmatprep.subr.mxu0 0.0
        %1828 = vmatpush1.msra.mxu0 0.0
        %1829 = vmatprep.subr.mxu0 0.0
        %1830 = vmatpush1.msra.mxu0 0.0
        %1831 = vmatprep.subr.mxu0 0.0
        %1832 = vmatpush1.msra.mxu0 0.0
        %1833 = vmatprep.subr.mxu0 0.0
        %1834 = vmatpush1.msra.mxu0 0.0
        %1835 = vmatprep.subr.mxu0 0.0
        %1836 = vmatpush1.msra.mxu0 0.0
        %1837 = vmatprep.subr.mxu0 0.0
        %1838 = vmatpush1.msra.mxu0 0.0
        %1839 = vmatprep.subr.mxu0 0.0
        %1840 = vmatpush1.msra.mxu0 0.0
        %1841 = vmatprep.subr.mxu0 0.0
        %1842 = vmatpush1.msra.mxu0 0.0
        %1843 = vmatprep.subr.mxu0 0.0
        %1844 = vmatpush1.msra.mxu0 0.0
        %1845 = vmatprep.mubr.f32.mxu0 0.0
        %1846 = vmatmul.mubr.f32.gmra.mrb[0].mxu0 %v1706
        %v1847 = vpop.f32.mrb[0].mxu0
        %v1848 = vadd.f32 %v1778, %v1847
        %v1849 = vpop.f32.mrb[0].mxu0
        %1850 = vdwg.mxu0
        %v1851 = vadd.f32 %v1658, %v1848
        %s1852 = scalar_lea.vmem %s3, 1312
        %v1853 = vld [vmem:[%s1852] sm:$0xff]
        %v1854 = vld [vmem:[%s1852 + $0x8] sm:$0xff]
        %v1855 = vld [vmem:[%s1852 + $0x10] sm:$0xff]
        %v1856 = vld [vmem:[%s1852 + $0x18] sm:$0xff]
        %v1857 = vld [vmem:[%s1852 + $0x20] sm:$0xff]
        %v1858 = vld [vmem:[%s1852 + $0x28] sm:$0xff]
        %v1859 = vld [vmem:[%s1852 + $0x30] sm:$0xff]
        %v1860 = vld [vmem:[%s1852 + $0x38] sm:$0xff]
        %v1861 = vld [vmem:[%s1852 + $0x40] sm:$0xff]
        %v1862 = vld [vmem:[%s1852 + $0x48] sm:$0xff]
        %v1863 = vld [vmem:[%s1852 + $0x50] sm:$0xff]
        %v1864 = vld [vmem:[%s1852 + $0x58] sm:$0xff]
        %v1865 = vld [vmem:[%s1852 + $0x60] sm:$0xff]
        %v1866 = vld [vmem:[%s1852 + $0x68] sm:$0xff]
        %v1867 = vld [vmem:[%s1852 + $0x70] sm:$0xff]
        %v1868 = vld [vmem:[%s1852 + $0x78] sm:$0xff]
        %v1869 = vld [vmem:[%s1852 + $0x80] sm:$0xff]
        %v1870 = vld [vmem:[%s1852 + $0x88] sm:$0xff]
        %v1871 = vld [vmem:[%s1852 + $0x90] sm:$0xff]
        %v1872 = vld [vmem:[%s1852 + $0x98] sm:$0xff]
        %v1873 = vld [vmem:[%s1852 + $0xa0] sm:$0xff]
        %v1874 = vld [vmem:[%s1852 + $0xa8] sm:$0xff]
        %v1875 = vld [vmem:[%s1852 + $0xb0] sm:$0xff]
        %v1876 = vld [vmem:[%s1852 + $0xb8] sm:$0xff]
        %v1877 = vld [vmem:[%s1852 + $0xc0] sm:$0xff]
        %v1878 = vld [vmem:[%s1852 + $0xc8] sm:$0xff]
        %v1879 = vld [vmem:[%s1852 + $0xd0] sm:$0xff]
        %v1880 = vld [vmem:[%s1852 + $0xd8] sm:$0xff]
        %v1881 = vld [vmem:[%s1852 + $0xe0] sm:$0xff]
        %v1882 = vld [vmem:[%s1852 + $0xe8] sm:$0xff]
        %v1883 = vld [vmem:[%s1852 + $0xf0] sm:$0xff]
        %v1884 = vld [vmem:[%s1852 + $0xf8] sm:$0xff]
        %v1885 = vld [vmem:[%s1852 + $0x100] sm:$0xff]
        %v1886 = vld [vmem:[%s1852 + $0x108] sm:$0xff]
        %v1887 = vld [vmem:[%s1852 + $0x110] sm:$0xff]
        %v1888 = vld [vmem:[%s1852 + $0x118] sm:$0xff]
        %v1889 = vld [vmem:[%s1852 + $0x120] sm:$0xff]
        %v1890 = vld [vmem:[%s1852 + $0x128] sm:$0xff]
        %v1891 = vld [vmem:[%s1852 + $0x130] sm:$0xff]
        %v1892 = vld [vmem:[%s1852 + $0x138] sm:$0xff]
        %v1893 = vld [vmem:[%s1852 + $0x140] sm:$0xf]
        %v1894 = vrot.slane %v1071, 4
        %v1895 = vrot.slane %v1072, 4
        %v1896 = vrot.slane %v1073, 4
        %v1899 = vsel %vm1174, %v1896, 0
        %v1902 = vsel %vm1177, %v1893, 0
        %1904 = vmatprep.subr.mxu0 0.0
        %1905 = vmatpush1.msra.mxu0 %v1853
        %1906 = vmatprep.subr.mxu0 0.0
        %1907 = vmatpush1.msra.mxu0 %v1854
        %1908 = vmatprep.subr.mxu0 0.0
        %1909 = vmatpush1.msra.mxu0 %v1855
        %1910 = vmatprep.subr.mxu0 0.0
        %1911 = vmatpush1.msra.mxu0 %v1856
        %1912 = vmatprep.subr.mxu0 0.0
        %1913 = vmatpush1.msra.mxu0 %v1857
        %1914 = vmatprep.subr.mxu0 0.0
        %1915 = vmatpush1.msra.mxu0 %v1858
        %1916 = vmatprep.subr.mxu0 0.0
        %1917 = vmatpush1.msra.mxu0 %v1859
        %1918 = vmatprep.subr.mxu0 0.0
        %1919 = vmatpush1.msra.mxu0 %v1860
        %1920 = vmatprep.subr.mxu0 0.0
        %1921 = vmatpush1.msra.mxu0 %v1861
        %1922 = vmatprep.subr.mxu0 0.0
        %1923 = vmatpush1.msra.mxu0 %v1862
        %1924 = vmatprep.subr.mxu0 0.0
        %1925 = vmatpush1.msra.mxu0 %v1863
        %1926 = vmatprep.subr.mxu0 0.0
        %1927 = vmatpush1.msra.mxu0 %v1864
        %1928 = vmatprep.subr.mxu0 0.0
        %1929 = vmatpush1.msra.mxu0 %v1865
        %1930 = vmatprep.subr.mxu0 0.0
        %1931 = vmatpush1.msra.mxu0 %v1866
        %1932 = vmatprep.subr.mxu0 0.0
        %1933 = vmatpush1.msra.mxu0 %v1867
        %1934 = vmatprep.subr.mxu0 0.0
        %1935 = vmatpush1.msra.mxu0 %v1868
        %1936 = vmatprep.subr.mxu0 0.0
        %1937 = vmatpush1.msra.mxu0 %v1869
        %1938 = vmatprep.subr.mxu0 0.0
        %1939 = vmatpush1.msra.mxu0 %v1870
        %1940 = vmatprep.subr.mxu0 0.0
        %1941 = vmatpush1.msra.mxu0 %v1871
        %1942 = vmatprep.subr.mxu0 0.0
        %1943 = vmatpush1.msra.mxu0 %v1872
        %1944 = vmatprep.subr.mxu0 0.0
        %1945 = vmatpush1.msra.mxu0 %v1873
        %1946 = vmatprep.subr.mxu0 0.0
        %1947 = vmatpush1.msra.mxu0 %v1874
        %1948 = vmatprep.subr.mxu0 0.0
        %1949 = vmatpush1.msra.mxu0 %v1875
        %1950 = vmatprep.subr.mxu0 0.0
        %1951 = vmatpush1.msra.mxu0 %v1876
        %1952 = vmatprep.subr.mxu0 0.0
        %1953 = vmatpush1.msra.mxu0 %v1877
        %1954 = vmatprep.subr.mxu0 0.0
        %1955 = vmatpush1.msra.mxu0 %v1878
        %1956 = vmatprep.subr.mxu0 0.0
        %1957 = vmatpush1.msra.mxu0 %v1879
        %1958 = vmatprep.subr.mxu0 0.0
        %1959 = vmatpush1.msra.mxu0 %v1880
        %1960 = vmatprep.subr.mxu0 0.0
        %1961 = vmatpush1.msra.mxu0 %v1881
        %1962 = vmatprep.subr.mxu0 0.0
        %1963 = vmatpush1.msra.mxu0 %v1882
        %1964 = vmatprep.subr.mxu0 0.0
        %1965 = vmatpush1.msra.mxu0 %v1883
        %1966 = vmatprep.subr.mxu0 0.0
        %1967 = vmatpush1.msra.mxu0 %v1884
        %1968 = vmatprep.mubr.f32.mxu0 %v1895
        %1969 = vmatmul.mubr.f32.gmra.mrb[0].mxu0 %v1894
        %v1970 = vpop.f32.mrb[0].mxu0
        %v1971 = vadd.f32 0.0, %v1970
        %v1972 = vpop.f32.mrb[0].mxu0
        %1973 = vdwg.mxu0
        %1974 = vmatprep.subr.mxu0 0.0
        %1975 = vmatpush1.msra.mxu0 %v1885
        %1976 = vmatprep.subr.mxu0 0.0
        %1977 = vmatpush1.msra.mxu0 %v1886
        %1978 = vmatprep.subr.mxu0 0.0
        %1979 = vmatpush1.msra.mxu0 %v1887
        %1980 = vmatprep.subr.mxu0 0.0
        %1981 = vmatpush1.msra.mxu0 %v1888
        %1982 = vmatprep.subr.mxu0 0.0
        %1983 = vmatpush1.msra.mxu0 %v1889
        %1984 = vmatprep.subr.mxu0 0.0
        %1985 = vmatpush1.msra.mxu0 %v1890
        %1986 = vmatprep.subr.mxu0 0.0
        %1987 = vmatpush1.msra.mxu0 %v1891
        %1988 = vmatprep.subr.mxu0 0.0
        %1989 = vmatpush1.msra.mxu0 %v1892
        %1990 = vmatprep.subr.mxu0 0.0
        %1991 = vmatpush1.msra.mxu0 %v1902
        %1992 = vmatprep.subr.mxu0 0.0
        %1993 = vmatpush1.msra.mxu0 0.0
        %1994 = vmatprep.subr.mxu0 0.0
        %1995 = vmatpush1.msra.mxu0 0.0
        %1996 = vmatprep.subr.mxu0 0.0
        %1997 = vmatpush1.msra.mxu0 0.0
        %1998 = vmatprep.subr.mxu0 0.0
        %1999 = vmatpush1.msra.mxu0 0.0
        %2000 = vmatprep.subr.mxu0 0.0
        %2001 = vmatpush1.msra.mxu0 0.0
        %2002 = vmatprep.subr.mxu0 0.0
        %2003 = vmatpush1.msra.mxu0 0.0
        %2004 = vmatprep.subr.mxu0 0.0
        %2005 = vmatpush1.msra.mxu0 0.0
        %2006 = vmatprep.subr.mxu0 0.0
        %2007 = vmatpush1.msra.mxu0 0.0
        %2008 = vmatprep.subr.mxu0 0.0
        %2009 = vmatpush1.msra.mxu0 0.0
        %2010 = vmatprep.subr.mxu0 0.0
        %2011 = vmatpush1.msra.mxu0 0.0
        %2012 = vmatprep.subr.mxu0 0.0
        %2013 = vmatpush1.msra.mxu0 0.0
        %2014 = vmatprep.subr.mxu0 0.0
        %2015 = vmatpush1.msra.mxu0 0.0
        %2016 = vmatprep.subr.mxu0 0.0
        %2017 = vmatpush1.msra.mxu0 0.0
        %2018 = vmatprep.subr.mxu0 0.0
        %2019 = vmatpush1.msra.mxu0 0.0
        %2020 = vmatprep.subr.mxu0 0.0
        %2021 = vmatpush1.msra.mxu0 0.0
        %2022 = vmatprep.subr.mxu0 0.0
        %2023 = vmatpush1.msra.mxu0 0.0
        %2024 = vmatprep.subr.mxu0 0.0
        %2025 = vmatpush1.msra.mxu0 0.0
        %2026 = vmatprep.subr.mxu0 0.0
        %2027 = vmatpush1.msra.mxu0 0.0
        %2028 = vmatprep.subr.mxu0 0.0
        %2029 = vmatpush1.msra.mxu0 0.0
        %2030 = vmatprep.subr.mxu0 0.0
        %2031 = vmatpush1.msra.mxu0 0.0
        %2032 = vmatprep.subr.mxu0 0.0
        %2033 = vmatpush1.msra.mxu0 0.0
        %2034 = vmatprep.subr.mxu0 0.0
        %2035 = vmatpush1.msra.mxu0 0.0
        %2036 = vmatprep.subr.mxu0 0.0
        %2037 = vmatpush1.msra.mxu0 0.0
        %2038 = vmatprep.mubr.f32.mxu0 0.0
        %2039 = vmatmul.mubr.f32.gmra.mrb[0].mxu0 %v1899
        %v2040 = vpop.f32.mrb[0].mxu0
        %v2041 = vadd.f32 %v1971, %v2040
        %v2042 = vpop.f32.mrb[0].mxu0
        %2043 = vdwg.mxu0
        %v2044 = vadd.f32 %v1851, %v2041
        %s2045 = scalar_lea.vmem %s3, 1640
        %v2046 = vld [vmem:[%s2045] sm:$0xff]
        %v2047 = vld [vmem:[%s2045 + $0x8] sm:$0xff]
        %v2048 = vld [vmem:[%s2045 + $0x10] sm:$0xff]
        %v2049 = vld [vmem:[%s2045 + $0x18] sm:$0xff]
        %v2050 = vld [vmem:[%s2045 + $0x20] sm:$0xff]
        %v2051 = vld [vmem:[%s2045 + $0x28] sm:$0xff]
        %v2052 = vld [vmem:[%s2045 + $0x30] sm:$0xff]
        %v2053 = vld [vmem:[%s2045 + $0x38] sm:$0xff]
        %v2054 = vld [vmem:[%s2045 + $0x40] sm:$0xff]
        %v2055 = vld [vmem:[%s2045 + $0x48] sm:$0xff]
        %v2056 = vld [vmem:[%s2045 + $0x50] sm:$0xff]
        %v2057 = vld [vmem:[%s2045 + $0x58] sm:$0xff]
        %v2058 = vld [vmem:[%s2045 + $0x60] sm:$0xff]
        %v2059 = vld [vmem:[%s2045 + $0x68] sm:$0xff]
        %v2060 = vld [vmem:[%s2045 + $0x70] sm:$0xff]
        %v2061 = vld [vmem:[%s2045 + $0x78] sm:$0xff]
        %v2062 = vld [vmem:[%s2045 + $0x80] sm:$0xff]
        %v2063 = vld [vmem:[%s2045 + $0x88] sm:$0xff]
        %v2064 = vld [vmem:[%s2045 + $0x90] sm:$0xff]
        %v2065 = vld [vmem:[%s2045 + $0x98] sm:$0xff]
        %v2066 = vld [vmem:[%s2045 + $0xa0] sm:$0xff]
        %v2067 = vld [vmem:[%s2045 + $0xa8] sm:$0xff]
        %v2068 = vld [vmem:[%s2045 + $0xb0] sm:$0xff]
        %v2069 = vld [vmem:[%s2045 + $0xb8] sm:$0xff]
        %v2070 = vld [vmem:[%s2045 + $0xc0] sm:$0xff]
        %v2071 = vld [vmem:[%s2045 + $0xc8] sm:$0xff]
        %v2072 = vld [vmem:[%s2045 + $0xd0] sm:$0xff]
        %v2073 = vld [vmem:[%s2045 + $0xd8] sm:$0xff]
        %v2074 = vld [vmem:[%s2045 + $0xe0] sm:$0xff]
        %v2075 = vld [vmem:[%s2045 + $0xe8] sm:$0xff]
        %v2076 = vld [vmem:[%s2045 + $0xf0] sm:$0xff]
        %v2077 = vld [vmem:[%s2045 + $0xf8] sm:$0xff]
        %v2078 = vld [vmem:[%s2045 + $0x100] sm:$0xff]
        %v2079 = vld [vmem:[%s2045 + $0x108] sm:$0xff]
        %v2080 = vld [vmem:[%s2045 + $0x110] sm:$0xff]
        %v2081 = vld [vmem:[%s2045 + $0x118] sm:$0xff]
        %v2082 = vld [vmem:[%s2045 + $0x120] sm:$0xff]
        %v2083 = vld [vmem:[%s2045 + $0x128] sm:$0xff]
        %v2084 = vld [vmem:[%s2045 + $0x130] sm:$0xff]
        %v2085 = vld [vmem:[%s2045 + $0x138] sm:$0xff]
        %v2086 = vld [vmem:[%s2045 + $0x140] sm:$0xf]
        %v2087 = vrot.slane %v1071, 5
        %v2088 = vrot.slane %v1072, 5
        %v2089 = vrot.slane %v1073, 5
        %v2092 = vsel %vm1174, %v2089, 0
        %v2095 = vsel %vm1177, %v2086, 0
        %2097 = vmatprep.subr.mxu0 0.0
        %2098 = vmatpush1.msra.mxu0 %v2046
        %2099 = vmatprep.subr.mxu0 0.0
        %2100 = vmatpush1.msra.mxu0 %v2047
        %2101 = vmatprep.subr.mxu0 0.0
        %2102 = vmatpush1.msra.mxu0 %v2048
        %2103 = vmatprep.subr.mxu0 0.0
        %2104 = vmatpush1.msra.mxu0 %v2049
        %2105 = vmatprep.subr.mxu0 0.0
        %2106 = vmatpush1.msra.mxu0 %v2050
        %2107 = vmatprep.subr.mxu0 0.0
        %2108 = vmatpush1.msra.mxu0 %v2051
        %2109 = vmatprep.subr.mxu0 0.0
        %2110 = vmatpush1.msra.mxu0 %v2052
        %2111 = vmatprep.subr.mxu0 0.0
        %2112 = vmatpush1.msra.mxu0 %v2053
        %2113 = vmatprep.subr.mxu0 0.0
        %2114 = vmatpush1.msra.mxu0 %v2054
        %2115 = vmatprep.subr.mxu0 0.0
        %2116 = vmatpush1.msra.mxu0 %v2055
        %2117 = vmatprep.subr.mxu0 0.0
        %2118 = vmatpush1.msra.mxu0 %v2056
        %2119 = vmatprep.subr.mxu0 0.0
        %2120 = vmatpush1.msra.mxu0 %v2057
        %2121 = vmatprep.subr.mxu0 0.0
        %2122 = vmatpush1.msra.mxu0 %v2058
        %2123 = vmatprep.subr.mxu0 0.0
        %2124 = vmatpush1.msra.mxu0 %v2059
        %2125 = vmatprep.subr.mxu0 0.0
        %2126 = vmatpush1.msra.mxu0 %v2060
        %2127 = vmatprep.subr.mxu0 0.0
        %2128 = vmatpush1.msra.mxu0 %v2061
        %2129 = vmatprep.subr.mxu0 0.0
        %2130 = vmatpush1.msra.mxu0 %v2062
        %2131 = vmatprep.subr.mxu0 0.0
        %2132 = vmatpush1.msra.mxu0 %v2063
        %2133 = vmatprep.subr.mxu0 0.0
        %2134 = vmatpush1.msra.mxu0 %v2064
        %2135 = vmatprep.subr.mxu0 0.0
        %2136 = vmatpush1.msra.mxu0 %v2065
        %2137 = vmatprep.subr.mxu0 0.0
        %2138 = vmatpush1.msra.mxu0 %v2066
        %2139 = vmatprep.subr.mxu0 0.0
        %2140 = vmatpush1.msra.mxu0 %v2067
        %2141 = vmatprep.subr.mxu0 0.0
        %2142 = vmatpush1.msra.mxu0 %v2068
        %2143 = vmatprep.subr.mxu0 0.0
        %2144 = vmatpush1.msra.mxu0 %v2069
        %2145 = vmatprep.subr.mxu0 0.0
        %2146 = vmatpush1.msra.mxu0 %v2070
        %2147 = vmatprep.subr.mxu0 0.0
        %2148 = vmatpush1.msra.mxu0 %v2071
        %2149 = vmatprep.subr.mxu0 0.0
        %2150 = vmatpush1.msra.mxu0 %v2072
        %2151 = vmatprep.subr.mxu0 0.0
        %2152 = vmatpush1.msra.mxu0 %v2073
        %2153 = vmatprep.subr.mxu0 0.0
        %2154 = vmatpush1.msra.mxu0 %v2074
        %2155 = vmatprep.subr.mxu0 0.0
        %2156 = vmatpush1.msra.mxu0 %v2075
        %2157 = vmatprep.subr.mxu0 0.0
        %2158 = vmatpush1.msra.mxu0 %v2076
        %2159 = vmatprep.subr.mxu0 0.0
        %2160 = vmatpush1.msra.mxu0 %v2077
        %2161 = vmatprep.mubr.f32.mxu0 %v2088
        %2162 = vmatmul.mubr.f32.gmra.mrb[0].mxu0 %v2087
        %v2163 = vpop.f32.mrb[0].mxu0
        %v2164 = vadd.f32 0.0, %v2163
        %v2165 = vpop.f32.mrb[0].mxu0
        %2166 = vdwg.mxu0
        %2167 = vmatprep.subr.mxu0 0.0
        %2168 = vmatpush1.msra.mxu0 %v2078
        %2169 = vmatprep.subr.mxu0 0.0
        %2170 = vmatpush1.msra.mxu0 %v2079
        %2171 = vmatprep.subr.mxu0 0.0
        %2172 = vmatpush1.msra.mxu0 %v2080
        %2173 = vmatprep.subr.mxu0 0.0
        %2174 = vmatpush1.msra.mxu0 %v2081
        %2175 = vmatprep.subr.mxu0 0.0
        %2176 = vmatpush1.msra.mxu0 %v2082
        %2177 = vmatprep.subr.mxu0 0.0
        %2178 = vmatpush1.msra.mxu0 %v2083
        %2179 = vmatprep.subr.mxu0 0.0
        %2180 = vmatpush1.msra.mxu0 %v2084
        %2181 = vmatprep.subr.mxu0 0.0
        %2182 = vmatpush1.msra.mxu0 %v2085
        %2183 = vmatprep.subr.mxu0 0.0
        %2184 = vmatpush1.msra.mxu0 %v2095
        %2185 = vmatprep.subr.mxu0 0.0
        %2186 = vmatpush1.msra.mxu0 0.0
        %2187 = vmatprep.subr.mxu0 0.0
        %2188 = vmatpush1.msra.mxu0 0.0
        %2189 = vmatprep.subr.mxu0 0.0
        %2190 = vmatpush1.msra.mxu0 0.0
        %2191 = vmatprep.subr.mxu0 0.0
        %2192 = vmatpush1.msra.mxu0 0.0
        %2193 = vmatprep.subr.mxu0 0.0
        %2194 = vmatpush1.msra.mxu0 0.0
        %2195 = vmatprep.subr.mxu0 0.0
        %2196 = vmatpush1.msra.mxu0 0.0
        %2197 = vmatprep.subr.mxu0 0.0
        %2198 = vmatpush1.msra.mxu0 0.0
        %2199 = vmatprep.subr.mxu0 0.0
        %2200 = vmatpush1.msra.mxu0 0.0
        %2201 = vmatprep.subr.mxu0 0.0
        %2202 = vmatpush1.msra.mxu0 0.0
        %2203 = vmatprep.subr.mxu0 0.0
        %2204 = vmatpush1.msra.mxu0 0.0
        %2205 = vmatprep.subr.mxu0 0.0
        %2206 = vmatpush1.msra.mxu0 0.0
        %2207 = vmatprep.subr.mxu0 0.0
        %2208 = vmatpush1.msra.mxu0 0.0
        %2209 = vmatprep.subr.mxu0 0.0
        %2210 = vmatpush1.msra.mxu0 0.0
        %2211 = vmatprep.subr.mxu0 0.0
        %2212 = vmatpush1.msra.mxu0 0.0
        %2213 = vmatprep.subr.mxu0 0.0
        %2214 = vmatpush1.msra.mxu0 0.0
        %2215 = vmatprep.subr.mxu0 0.0
        %2216 = vmatpush1.msra.mxu0 0.0
        %2217 = vmatprep.subr.mxu0 0.0
        %2218 = vmatpush1.msra.mxu0 0.0
        %2219 = vmatprep.subr.mxu0 0.0
        %2220 = vmatpush1.msra.mxu0 0.0
        %2221 = vmatprep.subr.mxu0 0.0
        %2222 = vmatpush1.msra.mxu0 0.0
        %2223 = vmatprep.subr.mxu0 0.0
        %2224 = vmatpush1.msra.mxu0 0.0
        %2225 = vmatprep.subr.mxu0 0.0
        %2226 = vmatpush1.msra.mxu0 0.0
        %2227 = vmatprep.subr.mxu0 0.0
        %2228 = vmatpush1.msra.mxu0 0.0
        %2229 = vmatprep.subr.mxu0 0.0
        %2230 = vmatpush1.msra.mxu0 0.0
        %2231 = vmatprep.mubr.f32.mxu0 0.0
        %2232 = vmatmul.mubr.f32.gmra.mrb[0].mxu0 %v2092
        %v2233 = vpop.f32.mrb[0].mxu0
        %v2234 = vadd.f32 %v2164, %v2233
        %v2235 = vpop.f32.mrb[0].mxu0
        %2236 = vdwg.mxu0
        %v2237 = vadd.f32 %v2044, %v2234
        %s2238 = scalar_lea.vmem %s3, 1968
        %v2239 = vld [vmem:[%s2238] sm:$0xff]
        %v2240 = vld [vmem:[%s2238 + $0x8] sm:$0xff]
        %v2241 = vld [vmem:[%s2238 + $0x10] sm:$0xff]
        %v2242 = vld [vmem:[%s2238 + $0x18] sm:$0xff]
        %v2243 = vld [vmem:[%s2238 + $0x20] sm:$0xff]
        %v2244 = vld [vmem:[%s2238 + $0x28] sm:$0xff]
        %v2245 = vld [vmem:[%s2238 + $0x30] sm:$0xff]
        %v2246 = vld [vmem:[%s2238 + $0x38] sm:$0xff]
        %v2247 = vld [vmem:[%s2238 + $0x40] sm:$0xff]
        %v2248 = vld [vmem:[%s2238 + $0x48] sm:$0xff]
        %v2249 = vld [vmem:[%s2238 + $0x50] sm:$0xff]
        %v2250 = vld [vmem:[%s2238 + $0x58] sm:$0xff]
        %v2251 = vld [vmem:[%s2238 + $0x60] sm:$0xff]
        %v2252 = vld [vmem:[%s2238 + $0x68] sm:$0xff]
        %v2253 = vld [vmem:[%s2238 + $0x70] sm:$0xff]
        %v2254 = vld [vmem:[%s2238 + $0x78] sm:$0xff]
        %v2255 = vld [vmem:[%s2238 + $0x80] sm:$0xff]
        %v2256 = vld [vmem:[%s2238 + $0x88] sm:$0xff]
        %v2257 = vld [vmem:[%s2238 + $0x90] sm:$0xff]
        %v2258 = vld [vmem:[%s2238 + $0x98] sm:$0xff]
        %v2259 = vld [vmem:[%s2238 + $0xa0] sm:$0xff]
        %v2260 = vld [vmem:[%s2238 + $0xa8] sm:$0xff]
        %v2261 = vld [vmem:[%s2238 + $0xb0] sm:$0xff]
        %v2262 = vld [vmem:[%s2238 + $0xb8] sm:$0xff]
        %v2263 = vld [vmem:[%s2238 + $0xc0] sm:$0xff]
        %v2264 = vld [vmem:[%s2238 + $0xc8] sm:$0xff]
        %v2265 = vld [vmem:[%s2238 + $0xd0] sm:$0xff]
        %v2266 = vld [vmem:[%s2238 + $0xd8] sm:$0xff]
        %v2267 = vld [vmem:[%s2238 + $0xe0] sm:$0xff]
        %v2268 = vld [vmem:[%s2238 + $0xe8] sm:$0xff]
        %v2269 = vld [vmem:[%s2238 + $0xf0] sm:$0xff]
        %v2270 = vld [vmem:[%s2238 + $0xf8] sm:$0xff]
        %v2271 = vld [vmem:[%s2238 + $0x100] sm:$0xff]
        %v2272 = vld [vmem:[%s2238 + $0x108] sm:$0xff]
        %v2273 = vld [vmem:[%s2238 + $0x110] sm:$0xff]
        %v2274 = vld [vmem:[%s2238 + $0x118] sm:$0xff]
        %v2275 = vld [vmem:[%s2238 + $0x120] sm:$0xff]
        %v2276 = vld [vmem:[%s2238 + $0x128] sm:$0xff]
        %v2277 = vld [vmem:[%s2238 + $0x130] sm:$0xff]
        %v2278 = vld [vmem:[%s2238 + $0x138] sm:$0xff]
        %v2279 = vld [vmem:[%s2238 + $0x140] sm:$0xf]
        %v2280 = vrot.slane %v1071, 6
        %v2281 = vrot.slane %v1072, 6
        %v2282 = vrot.slane %v1073, 6
        %v2285 = vsel %vm1174, %v2282, 0
        %v2288 = vsel %vm1177, %v2279, 0
        %2290 = vmatprep.subr.mxu0 0.0
        %2291 = vmatpush1.msra.mxu0 %v2239
        %2292 = vmatprep.subr.mxu0 0.0
        %2293 = vmatpush1.msra.mxu0 %v2240
        %2294 = vmatprep.subr.mxu0 0.0
        %2295 = vmatpush1.msra.mxu0 %v2241
        %2296 = vmatprep.subr.mxu0 0.0
        %2297 = vmatpush1.msra.mxu0 %v2242
        %2298 = vmatprep.subr.mxu0 0.0
        %2299 = vmatpush1.msra.mxu0 %v2243
        %2300 = vmatprep.subr.mxu0 0.0
        %2301 = vmatpush1.msra.mxu0 %v2244
        %2302 = vmatprep.subr.mxu0 0.0
        %2303 = vmatpush1.msra.mxu0 %v2245
        %2304 = vmatprep.subr.mxu0 0.0
        %2305 = vmatpush1.msra.mxu0 %v2246
        %2306 = vmatprep.subr.mxu0 0.0
        %2307 = vmatpush1.msra.mxu0 %v2247
        %2308 = vmatprep.subr.mxu0 0.0
        %2309 = vmatpush1.msra.mxu0 %v2248
        %2310 = vmatprep.subr.mxu0 0.0
        %2311 = vmatpush1.msra.mxu0 %v2249
        %2312 = vmatprep.subr.mxu0 0.0
        %2313 = vmatpush1.msra.mxu0 %v2250
        %2314 = vmatprep.subr.mxu0 0.0
        %2315 = vmatpush1.msra.mxu0 %v2251
        %2316 = vmatprep.subr.mxu0 0.0
        %2317 = vmatpush1.msra.mxu0 %v2252
        %2318 = vmatprep.subr.mxu0 0.0
        %2319 = vmatpush1.msra.mxu0 %v2253
        %2320 = vmatprep.subr.mxu0 0.0
        %2321 = vmatpush1.msra.mxu0 %v2254
        %2322 = vmatprep.subr.mxu0 0.0
        %2323 = vmatpush1.msra.mxu0 %v2255
        %2324 = vmatprep.subr.mxu0 0.0
        %2325 = vmatpush1.msra.mxu0 %v2256
        %2326 = vmatprep.subr.mxu0 0.0
        %2327 = vmatpush1.msra.mxu0 %v2257
        %2328 = vmatprep.subr.mxu0 0.0
        %2329 = vmatpush1.msra.mxu0 %v2258
        %2330 = vmatprep.subr.mxu0 0.0
        %2331 = vmatpush1.msra.mxu0 %v2259
        %2332 = vmatprep.subr.mxu0 0.0
        %2333 = vmatpush1.msra.mxu0 %v2260
        %2334 = vmatprep.subr.mxu0 0.0
        %2335 = vmatpush1.msra.mxu0 %v2261
        %2336 = vmatprep.subr.mxu0 0.0
        %2337 = vmatpush1.msra.mxu0 %v2262
        %2338 = vmatprep.subr.mxu0 0.0
        %2339 = vmatpush1.msra.mxu0 %v2263
        %2340 = vmatprep.subr.mxu0 0.0
        %2341 = vmatpush1.msra.mxu0 %v2264
        %2342 = vmatprep.subr.mxu0 0.0
        %2343 = vmatpush1.msra.mxu0 %v2265
        %2344 = vmatprep.subr.mxu0 0.0
        %2345 = vmatpush1.msra.mxu0 %v2266
        %2346 = vmatprep.subr.mxu0 0.0
        %2347 = vmatpush1.msra.mxu0 %v2267
        %2348 = vmatprep.subr.mxu0 0.0
        %2349 = vmatpush1.msra.mxu0 %v2268
        %2350 = vmatprep.subr.mxu0 0.0
        %2351 = vmatpush1.msra.mxu0 %v2269
        %2352 = vmatprep.subr.mxu0 0.0
        %2353 = vmatpush1.msra.mxu0 %v2270
        %2354 = vmatprep.mubr.f32.mxu0 %v2281
        %2355 = vmatmul.mubr.f32.gmra.mrb[0].mxu0 %v2280
        %v2356 = vpop.f32.mrb[0].mxu0
        %v2357 = vadd.f32 0.0, %v2356
        %v2358 = vpop.f32.mrb[0].mxu0
        %2359 = vdwg.mxu0
        %2360 = vmatprep.subr.mxu0 0.0
        %2361 = vmatpush1.msra.mxu0 %v2271
        %2362 = vmatprep.subr.mxu0 0.0
        %2363 = vmatpush1.msra.mxu0 %v2272
        %2364 = vmatprep.subr.mxu0 0.0
        %2365 = vmatpush1.msra.mxu0 %v2273
        %2366 = vmatprep.subr.mxu0 0.0
        %2367 = vmatpush1.msra.mxu0 %v2274
        %2368 = vmatprep.subr.mxu0 0.0
        %2369 = vmatpush1.msra.mxu0 %v2275
        %2370 = vmatprep.subr.mxu0 0.0
        %2371 = vmatpush1.msra.mxu0 %v2276
        %2372 = vmatprep.subr.mxu0 0.0
        %2373 = vmatpush1.msra.mxu0 %v2277
        %2374 = vmatprep.subr.mxu0 0.0
        %2375 = vmatpush1.msra.mxu0 %v2278
        %2376 = vmatprep.subr.mxu0 0.0
        %2377 = vmatpush1.msra.mxu0 %v2288
        %2378 = vmatprep.subr.mxu0 0.0
        %2379 = vmatpush1.msra.mxu0 0.0
        %2380 = vmatprep.subr.mxu0 0.0
        %2381 = vmatpush1.msra.mxu0 0.0
        %2382 = vmatprep.subr.mxu0 0.0
        %2383 = vmatpush1.msra.mxu0 0.0
        %2384 = vmatprep.subr.mxu0 0.0
        %2385 = vmatpush1.msra.mxu0 0.0
        %2386 = vmatprep.subr.mxu0 0.0
        %2387 = vmatpush1.msra.mxu0 0.0
        %2388 = vmatprep.subr.mxu0 0.0
        %2389 = vmatpush1.msra.mxu0 0.0
        %2390 = vmatprep.subr.mxu0 0.0
        %2391 = vmatpush1.msra.mxu0 0.0
        %2392 = vmatprep.subr.mxu0 0.0
        %2393 = vmatpush1.msra.mxu0 0.0
        %2394 = vmatprep.subr.mxu0 0.0
        %2395 = vmatpush1.msra.mxu0 0.0
        %2396 = vmatprep.subr.mxu0 0.0
        %2397 = vmatpush1.msra.mxu0 0.0
        %2398 = vmatprep.subr.mxu0 0.0
        %2399 = vmatpush1.msra.mxu0 0.0
        %2400 = vmatprep.subr.mxu0 0.0
        %2401 = vmatpush1.msra.mxu0 0.0
        %2402 = vmatprep.subr.mxu0 0.0
        %2403 = vmatpush1.msra.mxu0 0.0
        %2404 = vmatprep.subr.mxu0 0.0
        %2405 = vmatpush1.msra.mxu0 0.0
        %2406 = vmatprep.subr.mxu0 0.0
        %2407 = vmatpush1.msra.mxu0 0.0
        %2408 = vmatprep.subr.mxu0 0.0
        %2409 = vmatpush1.msra.mxu0 0.0
        %2410 = vmatprep.subr.mxu0 0.0
        %2411 = vmatpush1.msra.mxu0 0.0
        %2412 = vmatprep.subr.mxu0 0.0
        %2413 = vmatpush1.msra.mxu0 0.0
        %2414 = vmatprep.subr.mxu0 0.0
        %2415 = vmatpush1.msra.mxu0 0.0
        %2416 = vmatprep.subr.mxu0 0.0
        %2417 = vmatpush1.msra.mxu0 0.0
        %2418 = vmatprep.subr.mxu0 0.0
        %2419 = vmatpush1.msra.mxu0 0.0
        %2420 = vmatprep.subr.mxu0 0.0
        %2421 = vmatpush1.msra.mxu0 0.0
        %2422 = vmatprep.subr.mxu0 0.0
        %2423 = vmatpush1.msra.mxu0 0.0
        %2424 = vmatprep.mubr.f32.mxu0 0.0
        %2425 = vmatmul.mubr.f32.gmra.mrb[0].mxu0 %v2285
        %v2426 = vpop.f32.mrb[0].mxu0
        %v2427 = vadd.f32 %v2357, %v2426
        %v2428 = vpop.f32.mrb[0].mxu0
        %2429 = vdwg.mxu0
        %v2430 = vadd.f32 %v2237, %v2427
        %s2431 = scalar_lea.vmem %s3, 2296
        %v2432 = vld [vmem:[%s2431] sm:$0xff]
        %v2433 = vld [vmem:[%s2431 + $0x8] sm:$0xff]
        %v2434 = vld [vmem:[%s2431 + $0x10] sm:$0xff]
        %v2435 = vld [vmem:[%s2431 + $0x18] sm:$0xff]
        %v2436 = vld [vmem:[%s2431 + $0x20] sm:$0xff]
        %v2437 = vld [vmem:[%s2431 + $0x28] sm:$0xff]
        %v2438 = vld [vmem:[%s2431 + $0x30] sm:$0xff]
        %v2439 = vld [vmem:[%s2431 + $0x38] sm:$0xff]
        %v2440 = vld [vmem:[%s2431 + $0x40] sm:$0xff]
        %v2441 = vld [vmem:[%s2431 + $0x48] sm:$0xff]
        %v2442 = vld [vmem:[%s2431 + $0x50] sm:$0xff]
        %v2443 = vld [vmem:[%s2431 + $0x58] sm:$0xff]
        %v2444 = vld [vmem:[%s2431 + $0x60] sm:$0xff]
        %v2445 = vld [vmem:[%s2431 + $0x68] sm:$0xff]
        %v2446 = vld [vmem:[%s2431 + $0x70] sm:$0xff]
        %v2447 = vld [vmem:[%s2431 + $0x78] sm:$0xff]
        %v2448 = vld [vmem:[%s2431 + $0x80] sm:$0xff]
        %v2449 = vld [vmem:[%s2431 + $0x88] sm:$0xff]
        %v2450 = vld [vmem:[%s2431 + $0x90] sm:$0xff]
        %v2451 = vld [vmem:[%s2431 + $0x98] sm:$0xff]
        %v2452 = vld [vmem:[%s2431 + $0xa0] sm:$0xff]
        %v2453 = vld [vmem:[%s2431 + $0xa8] sm:$0xff]
        %v2454 = vld [vmem:[%s2431 + $0xb0] sm:$0xff]
        %v2455 = vld [vmem:[%s2431 + $0xb8] sm:$0xff]
        %v2456 = vld [vmem:[%s2431 + $0xc0] sm:$0xff]
        %v2457 = vld [vmem:[%s2431 + $0xc8] sm:$0xff]
        %v2458 = vld [vmem:[%s2431 + $0xd0] sm:$0xff]
        %v2459 = vld [vmem:[%s2431 + $0xd8] sm:$0xff]
        %v2460 = vld [vmem:[%s2431 + $0xe0] sm:$0xff]
        %v2461 = vld [vmem:[%s2431 + $0xe8] sm:$0xff]
        %v2462 = vld [vmem:[%s2431 + $0xf0] sm:$0xff]
        %v2463 = vld [vmem:[%s2431 + $0xf8] sm:$0xff]
        %v2464 = vld [vmem:[%s2431 + $0x100] sm:$0xff]
        %v2465 = vld [vmem:[%s2431 + $0x108] sm:$0xff]
        %v2466 = vld [vmem:[%s2431 + $0x110] sm:$0xff]
        %v2467 = vld [vmem:[%s2431 + $0x118] sm:$0xff]
        %v2468 = vld [vmem:[%s2431 + $0x120] sm:$0xff]
        %v2469 = vld [vmem:[%s2431 + $0x128] sm:$0xff]
        %v2470 = vld [vmem:[%s2431 + $0x130] sm:$0xff]
        %v2471 = vld [vmem:[%s2431 + $0x138] sm:$0xff]
        %v2472 = vld [vmem:[%s2431 + $0x140] sm:$0xf]
        %v2473 = vrot.slane %v1071, 7
        %v2474 = vrot.slane %v1072, 7
        %v2475 = vrot.slane %v1073, 7
        %v2478 = vsel %vm1174, %v2475, 0
        %v2481 = vsel %vm1177, %v2472, 0
        %2483 = vmatprep.subr.mxu0 0.0
        %2484 = vmatpush1.msra.mxu0 %v2432
        %2485 = vmatprep.subr.mxu0 0.0
        %2486 = vmatpush1.msra.mxu0 %v2433
        %2487 = vmatprep.subr.mxu0 0.0
        %2488 = vmatpush1.msra.mxu0 %v2434
        %2489 = vmatprep.subr.mxu0 0.0
        %2490 = vmatpush1.msra.mxu0 %v2435
        %2491 = vmatprep.subr.mxu0 0.0
        %2492 = vmatpush1.msra.mxu0 %v2436
        %2493 = vmatprep.subr.mxu0 0.0
        %2494 = vmatpush1.msra.mxu0 %v2437
        %2495 = vmatprep.subr.mxu0 0.0
        %2496 = vmatpush1.msra.mxu0 %v2438
        %2497 = vmatprep.subr.mxu0 0.0
        %2498 = vmatpush1.msra.mxu0 %v2439
        %2499 = vmatprep.subr.mxu0 0.0
        %2500 = vmatpush1.msra.mxu0 %v2440
        %2501 = vmatprep.subr.mxu0 0.0
        %2502 = vmatpush1.msra.mxu0 %v2441
        %2503 = vmatprep.subr.mxu0 0.0
        %2504 = vmatpush1.msra.mxu0 %v2442
        %2505 = vmatprep.subr.mxu0 0.0
        %2506 = vmatpush1.msra.mxu0 %v2443
        %2507 = vmatprep.subr.mxu0 0.0
        %2508 = vmatpush1.msra.mxu0 %v2444
        %2509 = vmatprep.subr.mxu0 0.0
        %2510 = vmatpush1.msra.mxu0 %v2445
        %2511 = vmatprep.subr.mxu0 0.0
        %2512 = vmatpush1.msra.mxu0 %v2446
        %2513 = vmatprep.subr.mxu0 0.0
        %2514 = vmatpush1.msra.mxu0 %v2447
        %2515 = vmatprep.subr.mxu0 0.0
        %2516 = vmatpush1.msra.mxu0 %v2448
        %2517 = vmatprep.subr.mxu0 0.0
        %2518 = vmatpush1.msra.mxu0 %v2449
        %2519 = vmatprep.subr.mxu0 0.0
        %2520 = vmatpush1.msra.mxu0 %v2450
        %2521 = vmatprep.subr.mxu0 0.0
        %2522 = vmatpush1.msra.mxu0 %v2451
        %2523 = vmatprep.subr.mxu0 0.0
        %2524 = vmatpush1.msra.mxu0 %v2452
        %2525 = vmatprep.subr.mxu0 0.0
        %2526 = vmatpush1.msra.mxu0 %v2453
        %2527 = vmatprep.subr.mxu0 0.0
        %2528 = vmatpush1.msra.mxu0 %v2454
        %2529 = vmatprep.subr.mxu0 0.0
        %2530 = vmatpush1.msra.mxu0 %v2455
        %2531 = vmatprep.subr.mxu0 0.0
        %2532 = vmatpush1.msra.mxu0 %v2456
        %2533 = vmatprep.subr.mxu0 0.0
        %2534 = vmatpush1.msra.mxu0 %v2457
        %2535 = vmatprep.subr.mxu0 0.0
        %2536 = vmatpush1.msra.mxu0 %v2458
        %2537 = vmatprep.subr.mxu0 0.0
        %2538 = vmatpush1.msra.mxu0 %v2459
        %2539 = vmatprep.subr.mxu0 0.0
        %2540 = vmatpush1.msra.mxu0 %v2460
        %2541 = vmatprep.subr.mxu0 0.0
        %2542 = vmatpush1.msra.mxu0 %v2461
        %2543 = vmatprep.subr.mxu0 0.0
        %2544 = vmatpush1.msra.mxu0 %v2462
        %2545 = vmatprep.subr.mxu0 0.0
        %2546 = vmatpush1.msra.mxu0 %v2463
        %2547 = vmatprep.mubr.f32.mxu0 %v2474
        %2548 = vmatmul.mubr.f32.gmra.mrb[0].mxu0 %v2473
        %v2549 = vpop.f32.mrb[0].mxu0
        %v2550 = vadd.f32 0.0, %v2549
        %v2551 = vpop.f32.mrb[0].mxu0
        %2552 = vdwg.mxu0
        %2553 = vmatprep.subr.mxu0 0.0
        %2554 = vmatpush1.msra.mxu0 %v2464
        %2555 = vmatprep.subr.mxu0 0.0
        %2556 = vmatpush1.msra.mxu0 %v2465
        %2557 = vmatprep.subr.mxu0 0.0
        %2558 = vmatpush1.msra.mxu0 %v2466
        %2559 = vmatprep.subr.mxu0 0.0
        %2560 = vmatpush1.msra.mxu0 %v2467
        %2561 = vmatprep.subr.mxu0 0.0
        %2562 = vmatpush1.msra.mxu0 %v2468
        %2563 = vmatprep.subr.mxu0 0.0
        %2564 = vmatpush1.msra.mxu0 %v2469
        %2565 = vmatprep.subr.mxu0 0.0
        %2566 = vmatpush1.msra.mxu0 %v2470
        %2567 = vmatprep.subr.mxu0 0.0
        %2568 = vmatpush1.msra.mxu0 %v2471
        %2569 = vmatprep.subr.mxu0 0.0
        %2570 = vmatpush1.msra.mxu0 %v2481
        %2571 = vmatprep.subr.mxu0 0.0
        %2572 = vmatpush1.msra.mxu0 0.0
        %2573 = vmatprep.subr.mxu0 0.0
        %2574 = vmatpush1.msra.mxu0 0.0
        %2575 = vmatprep.subr.mxu0 0.0
        %2576 = vmatpush1.msra.mxu0 0.0
        %2577 = vmatprep.subr.mxu0 0.0
        %2578 = vmatpush1.msra.mxu0 0.0
        %2579 = vmatprep.subr.mxu0 0.0
        %2580 = vmatpush1.msra.mxu0 0.0
        %2581 = vmatprep.subr.mxu0 0.0
        %2582 = vmatpush1.msra.mxu0 0.0
        %2583 = vmatprep.subr.mxu0 0.0
        %2584 = vmatpush1.msra.mxu0 0.0
        %2585 = vmatprep.subr.mxu0 0.0
        %2586 = vmatpush1.msra.mxu0 0.0
        %2587 = vmatprep.subr.mxu0 0.0
        %2588 = vmatpush1.msra.mxu0 0.0
        %2589 = vmatprep.subr.mxu0 0.0
        %2590 = vmatpush1.msra.mxu0 0.0
        %2591 = vmatprep.subr.mxu0 0.0
        %2592 = vmatpush1.msra.mxu0 0.0
        %2593 = vmatprep.subr.mxu0 0.0
        %2594 = vmatpush1.msra.mxu0 0.0
        %2595 = vmatprep.subr.mxu0 0.0
        %2596 = vmatpush1.msra.mxu0 0.0
        %2597 = vmatprep.subr.mxu0 0.0
        %2598 = vmatpush1.msra.mxu0 0.0
        %2599 = vmatprep.subr.mxu0 0.0
        %2600 = vmatpush1.msra.mxu0 0.0
        %2601 = vmatprep.subr.mxu0 0.0
        %2602 = vmatpush1.msra.mxu0 0.0
        %2603 = vmatprep.subr.mxu0 0.0
        %2604 = vmatpush1.msra.mxu0 0.0
        %2605 = vmatprep.subr.mxu0 0.0
        %2606 = vmatpush1.msra.mxu0 0.0
        %2607 = vmatprep.subr.mxu0 0.0
        %2608 = vmatpush1.msra.mxu0 0.0
        %2609 = vmatprep.subr.mxu0 0.0
        %2610 = vmatpush1.msra.mxu0 0.0
        %2611 = vmatprep.subr.mxu0 0.0
        %2612 = vmatpush1.msra.mxu0 0.0
        %2613 = vmatprep.subr.mxu0 0.0
        %2614 = vmatpush1.msra.mxu0 0.0
        %2615 = vmatprep.subr.mxu0 0.0
        %2616 = vmatpush1.msra.mxu0 0.0
        %2617 = vmatprep.mubr.f32.mxu0 0.0
        %2618 = vmatmul.mubr.f32.gmra.mrb[0].mxu0 %v2478
        %v2619 = vpop.f32.mrb[0].mxu0
        %v2620 = vadd.f32 %v2550, %v2619
        %v2621 = vpop.f32.mrb[0].mxu0
        %2622 = vdwg.mxu0
        %v2623 = vadd.f32 %v2430, %v2620
        %s2624 = scalar_lea.vmem %s3, 2624
        %v2625 = vld [vmem:[%s2624] sm:$0xff]
        %v2626 = vld [vmem:[%s2624 + $0x8] sm:$0xff]
        %v2627 = vld [vmem:[%s2624 + $0x10] sm:$0xff]
        %v2628 = vld [vmem:[%s2624 + $0x18] sm:$0xff]
        %v2629 = vld [vmem:[%s2624 + $0x20] sm:$0xff]
        %v2630 = vld [vmem:[%s2624 + $0x28] sm:$0xff]
        %v2631 = vld [vmem:[%s2624 + $0x30] sm:$0xff]
        %v2632 = vld [vmem:[%s2624 + $0x38] sm:$0xff]
        %v2633 = vld [vmem:[%s2624 + $0x40] sm:$0xff]
        %v2634 = vld [vmem:[%s2624 + $0x48] sm:$0xff]
        %v2635 = vld [vmem:[%s2624 + $0x50] sm:$0xff]
        %v2636 = vld [vmem:[%s2624 + $0x58] sm:$0xff]
        %v2637 = vld [vmem:[%s2624 + $0x60] sm:$0xff]
        %v2638 = vld [vmem:[%s2624 + $0x68] sm:$0xff]
        %v2639 = vld [vmem:[%s2624 + $0x70] sm:$0xff]
        %v2640 = vld [vmem:[%s2624 + $0x78] sm:$0xff]
        %v2641 = vld [vmem:[%s2624 + $0x80] sm:$0xff]
        %v2642 = vld [vmem:[%s2624 + $0x88] sm:$0xff]
        %v2643 = vld [vmem:[%s2624 + $0x90] sm:$0xff]
        %v2644 = vld [vmem:[%s2624 + $0x98] sm:$0xff]
        %v2645 = vld [vmem:[%s2624 + $0xa0] sm:$0xff]
        %v2646 = vld [vmem:[%s2624 + $0xa8] sm:$0xff]
        %v2647 = vld [vmem:[%s2624 + $0xb0] sm:$0xff]
        %v2648 = vld [vmem:[%s2624 + $0xb8] sm:$0xff]
        %v2649 = vld [vmem:[%s2624 + $0xc0] sm:$0xff]
        %v2650 = vld [vmem:[%s2624 + $0xc8] sm:$0xff]
        %v2651 = vld [vmem:[%s2624 + $0xd0] sm:$0xff]
        %v2652 = vld [vmem:[%s2624 + $0xd8] sm:$0xff]
        %v2653 = vld [vmem:[%s2624 + $0xe0] sm:$0xff]
        %v2654 = vld [vmem:[%s2624 + $0xe8] sm:$0xff]
        %v2655 = vld [vmem:[%s2624 + $0xf0] sm:$0xff]
        %v2656 = vld [vmem:[%s2624 + $0xf8] sm:$0xff]
        %v2657 = vld [vmem:[%s2624 + $0x100] sm:$0xff]
        %v2658 = vld [vmem:[%s2624 + $0x108] sm:$0xff]
        %v2659 = vld [vmem:[%s2624 + $0x110] sm:$0xff]
        %v2660 = vld [vmem:[%s2624 + $0x118] sm:$0xff]
        %v2661 = vld [vmem:[%s2624 + $0x120] sm:$0xff]
        %v2662 = vld [vmem:[%s2624 + $0x128] sm:$0xff]
        %v2663 = vld [vmem:[%s2624 + $0x130] sm:$0xff]
        %v2664 = vld [vmem:[%s2624 + $0x138] sm:$0xff]
        %v2665 = vld [vmem:[%s2624 + $0x140] sm:$0xf]
        %v2667 = vsel %vm1174, %v1076, 0
        %v2670 = vsel %vm1177, %v2665, 0
        %2672 = vmatprep.subr.mxu0 0.0
        %2673 = vmatpush1.msra.mxu0 %v2625
        %2674 = vmatprep.subr.mxu0 0.0
        %2675 = vmatpush1.msra.mxu0 %v2626
        %2676 = vmatprep.subr.mxu0 0.0
        %2677 = vmatpush1.msra.mxu0 %v2627
        %2678 = vmatprep.subr.mxu0 0.0
        %2679 = vmatpush1.msra.mxu0 %v2628
        %2680 = vmatprep.subr.mxu0 0.0
        %2681 = vmatpush1.msra.mxu0 %v2629
        %2682 = vmatprep.subr.mxu0 0.0
        %2683 = vmatpush1.msra.mxu0 %v2630
        %2684 = vmatprep.subr.mxu0 0.0
        %2685 = vmatpush1.msra.mxu0 %v2631
        %2686 = vmatprep.subr.mxu0 0.0
        %2687 = vmatpush1.msra.mxu0 %v2632
        %2688 = vmatprep.subr.mxu0 0.0
        %2689 = vmatpush1.msra.mxu0 %v2633
        %2690 = vmatprep.subr.mxu0 0.0
        %2691 = vmatpush1.msra.mxu0 %v2634
        %2692 = vmatprep.subr.mxu0 0.0
        %2693 = vmatpush1.msra.mxu0 %v2635
        %2694 = vmatprep.subr.mxu0 0.0
        %2695 = vmatpush1.msra.mxu0 %v2636
        %2696 = vmatprep.subr.mxu0 0.0
        %2697 = vmatpush1.msra.mxu0 %v2637
        %2698 = vmatprep.subr.mxu0 0.0
        %2699 = vmatpush1.msra.mxu0 %v2638
        %2700 = vmatprep.subr.mxu0 0.0
        %2701 = vmatpush1.msra.mxu0 %v2639
        %2702 = vmatprep.subr.mxu0 0.0
        %2703 = vmatpush1.msra.mxu0 %v2640
        %2704 = vmatprep.subr.mxu0 0.0
        %2705 = vmatpush1.msra.mxu0 %v2641
        %2706 = vmatprep.subr.mxu0 0.0
        %2707 = vmatpush1.msra.mxu0 %v2642
        %2708 = vmatprep.subr.mxu0 0.0
        %2709 = vmatpush1.msra.mxu0 %v2643
        %2710 = vmatprep.subr.mxu0 0.0
        %2711 = vmatpush1.msra.mxu0 %v2644
        %2712 = vmatprep.subr.mxu0 0.0
        %2713 = vmatpush1.msra.mxu0 %v2645
        %2714 = vmatprep.subr.mxu0 0.0
        %2715 = vmatpush1.msra.mxu0 %v2646
        %2716 = vmatprep.subr.mxu0 0.0
        %2717 = vmatpush1.msra.mxu0 %v2647
        %2718 = vmatprep.subr.mxu0 0.0
        %2719 = vmatpush1.msra.mxu0 %v2648
        %2720 = vmatprep.subr.mxu0 0.0
        %2721 = vmatpush1.msra.mxu0 %v2649
        %2722 = vmatprep.subr.mxu0 0.0
        %2723 = vmatpush1.msra.mxu0 %v2650
        %2724 = vmatprep.subr.mxu0 0.0
        %2725 = vmatpush1.msra.mxu0 %v2651
        %2726 = vmatprep.subr.mxu0 0.0
        %2727 = vmatpush1.msra.mxu0 %v2652
        %2728 = vmatprep.subr.mxu0 0.0
        %2729 = vmatpush1.msra.mxu0 %v2653
        %2730 = vmatprep.subr.mxu0 0.0
        %2731 = vmatpush1.msra.mxu0 %v2654
        %2732 = vmatprep.subr.mxu0 0.0
        %2733 = vmatpush1.msra.mxu0 %v2655
        %2734 = vmatprep.subr.mxu0 0.0
        %2735 = vmatpush1.msra.mxu0 %v2656
        %2736 = vmatprep.mubr.f32.mxu0 %v1075
        %2737 = vmatmul.mubr.f32.gmra.mrb[0].mxu0 %v1074
        %v2738 = vpop.f32.mrb[0].mxu0
        %v2739 = vadd.f32 0.0, %v2738
        %v2740 = vpop.f32.mrb[0].mxu0
        %2741 = vdwg.mxu0
        %2742 = vmatprep.subr.mxu0 0.0
        %2743 = vmatpush1.msra.mxu0 %v2657
        %2744 = vmatprep.subr.mxu0 0.0
        %2745 = vmatpush1.msra.mxu0 %v2658
        %2746 = vmatprep.subr.mxu0 0.0
        %2747 = vmatpush1.msra.mxu0 %v2659
        %2748 = vmatprep.subr.mxu0 0.0
        %2749 = vmatpush1.msra.mxu0 %v2660
        %2750 = vmatprep.subr.mxu0 0.0
        %2751 = vmatpush1.msra.mxu0 %v2661
        %2752 = vmatprep.subr.mxu0 0.0
        %2753 = vmatpush1.msra.mxu0 %v2662
        %2754 = vmatprep.subr.mxu0 0.0
        %2755 = vmatpush1.msra.mxu0 %v2663
        %2756 = vmatprep.subr.mxu0 0.0
        %2757 = vmatpush1.msra.mxu0 %v2664
        %2758 = vmatprep.subr.mxu0 0.0
        %2759 = vmatpush1.msra.mxu0 %v2670
        %2760 = vmatprep.subr.mxu0 0.0
        %2761 = vmatpush1.msra.mxu0 0.0
        %2762 = vmatprep.subr.mxu0 0.0
        %2763 = vmatpush1.msra.mxu0 0.0
        %2764 = vmatprep.subr.mxu0 0.0
        %2765 = vmatpush1.msra.mxu0 0.0
        %2766 = vmatprep.subr.mxu0 0.0
        %2767 = vmatpush1.msra.mxu0 0.0
        %2768 = vmatprep.subr.mxu0 0.0
        %2769 = vmatpush1.msra.mxu0 0.0
        %2770 = vmatprep.subr.mxu0 0.0
        %2771 = vmatpush1.msra.mxu0 0.0
        %2772 = vmatprep.subr.mxu0 0.0
        %2773 = vmatpush1.msra.mxu0 0.0
        %2774 = vmatprep.subr.mxu0 0.0
        %2775 = vmatpush1.msra.mxu0 0.0
        %2776 = vmatprep.subr.mxu0 0.0
        %2777 = vmatpush1.msra.mxu0 0.0
        %2778 = vmatprep.subr.mxu0 0.0
        %2779 = vmatpush1.msra.mxu0 0.0
        %2780 = vmatprep.subr.mxu0 0.0
        %2781 = vmatpush1.msra.mxu0 0.0
        %2782 = vmatprep.subr.mxu0 0.0
        %2783 = vmatpush1.msra.mxu0 0.0
        %2784 = vmatprep.subr.mxu0 0.0
        %2785 = vmatpush1.msra.mxu0 0.0
        %2786 = vmatprep.subr.mxu0 0.0
        %2787 = vmatpush1.msra.mxu0 0.0
        %2788 = vmatprep.subr.mxu0 0.0
        %2789 = vmatpush1.msra.mxu0 0.0
        %2790 = vmatprep.subr.mxu0 0.0
        %2791 = vmatpush1.msra.mxu0 0.0
        %2792 = vmatprep.subr.mxu0 0.0
        %2793 = vmatpush1.msra.mxu0 0.0
        %2794 = vmatprep.subr.mxu0 0.0
        %2795 = vmatpush1.msra.mxu0 0.0
        %2796 = vmatprep.subr.mxu0 0.0
        %2797 = vmatpush1.msra.mxu0 0.0
        %2798 = vmatprep.subr.mxu0 0.0
        %2799 = vmatpush1.msra.mxu0 0.0
        %2800 = vmatprep.subr.mxu0 0.0
        %2801 = vmatpush1.msra.mxu0 0.0
        %2802 = vmatprep.subr.mxu0 0.0
        %2803 = vmatpush1.msra.mxu0 0.0
        %2804 = vmatprep.subr.mxu0 0.0
        %2805 = vmatpush1.msra.mxu0 0.0
        %2806 = vmatprep.mubr.f32.mxu0 0.0
        %2807 = vmatmul.mubr.f32.gmra.mrb[0].mxu0 %v2667
        %v2808 = vpop.f32.mrb[0].mxu0
        %v2809 = vadd.f32 %v2739, %v2808
        %v2810 = vpop.f32.mrb[0].mxu0
        %2811 = vdwg.mxu0
        %v2812 = vadd.f32 %v2623, %v2809
        %s2813 = scalar_lea.vmem %s3, 2952
        %v2814 = vld [vmem:[%s2813] sm:$0xff]
        %v2815 = vld [vmem:[%s2813 + $0x8] sm:$0xff]
        %v2816 = vld [vmem:[%s2813 + $0x10] sm:$0xff]
        %v2817 = vld [vmem:[%s2813 + $0x18] sm:$0xff]
        %v2818 = vld [vmem:[%s2813 + $0x20] sm:$0xff]
        %v2819 = vld [vmem:[%s2813 + $0x28] sm:$0xff]
        %v2820 = vld [vmem:[%s2813 + $0x30] sm:$0xff]
        %v2821 = vld [vmem:[%s2813 + $0x38] sm:$0xff]
        %v2822 = vld [vmem:[%s2813 + $0x40] sm:$0xff]
        %v2823 = vld [vmem:[%s2813 + $0x48] sm:$0xff]
        %v2824 = vld [vmem:[%s2813 + $0x50] sm:$0xff]
        %v2825 = vld [vmem:[%s2813 + $0x58] sm:$0xff]
        %v2826 = vld [vmem:[%s2813 + $0x60] sm:$0xff]
        %v2827 = vld [vmem:[%s2813 + $0x68] sm:$0xff]
        %v2828 = vld [vmem:[%s2813 + $0x70] sm:$0xff]
        %v2829 = vld [vmem:[%s2813 + $0x78] sm:$0xff]
        %v2830 = vld [vmem:[%s2813 + $0x80] sm:$0xff]
        %v2831 = vld [vmem:[%s2813 + $0x88] sm:$0xff]
        %v2832 = vld [vmem:[%s2813 + $0x90] sm:$0xff]
        %v2833 = vld [vmem:[%s2813 + $0x98] sm:$0xff]
        %v2834 = vld [vmem:[%s2813 + $0xa0] sm:$0xff]
        %v2835 = vld [vmem:[%s2813 + $0xa8] sm:$0xff]
        %v2836 = vld [vmem:[%s2813 + $0xb0] sm:$0xff]
        %v2837 = vld [vmem:[%s2813 + $0xb8] sm:$0xff]
        %v2838 = vld [vmem:[%s2813 + $0xc0] sm:$0xff]
        %v2839 = vld [vmem:[%s2813 + $0xc8] sm:$0xff]
        %v2840 = vld [vmem:[%s2813 + $0xd0] sm:$0xff]
        %v2841 = vld [vmem:[%s2813 + $0xd8] sm:$0xff]
        %v2842 = vld [vmem:[%s2813 + $0xe0] sm:$0xff]
        %v2843 = vld [vmem:[%s2813 + $0xe8] sm:$0xff]
        %v2844 = vld [vmem:[%s2813 + $0xf0] sm:$0xff]
        %v2845 = vld [vmem:[%s2813 + $0xf8] sm:$0xff]
        %v2846 = vld [vmem:[%s2813 + $0x100] sm:$0xff]
        %v2847 = vld [vmem:[%s2813 + $0x108] sm:$0xff]
        %v2848 = vld [vmem:[%s2813 + $0x110] sm:$0xff]
        %v2849 = vld [vmem:[%s2813 + $0x118] sm:$0xff]
        %v2850 = vld [vmem:[%s2813 + $0x120] sm:$0xff]
        %v2851 = vld [vmem:[%s2813 + $0x128] sm:$0xff]
        %v2852 = vld [vmem:[%s2813 + $0x130] sm:$0xff]
        %v2853 = vld [vmem:[%s2813 + $0x138] sm:$0xff]
        %v2854 = vld [vmem:[%s2813 + $0x140] sm:$0xf]
        %v2857 = vrot.slane %v1074, 1
        %v2858 = vrot.slane %v1075, 1
        %v2859 = vrot.slane %v1076, 1
        %v2862 = vsel %vm1174, %v2859, 0
        %v2865 = vsel %vm1177, %v2854, 0
        %2867 = vmatprep.subr.mxu0 0.0
        %2868 = vmatpush1.msra.mxu0 %v2814
        %2869 = vmatprep.subr.mxu0 0.0
        %2870 = vmatpush1.msra.mxu0 %v2815
        %2871 = vmatprep.subr.mxu0 0.0
        %2872 = vmatpush1.msra.mxu0 %v2816
        %2873 = vmatprep.subr.mxu0 0.0
        %2874 = vmatpush1.msra.mxu0 %v2817
        %2875 = vmatprep.subr.mxu0 0.0
        %2876 = vmatpush1.msra.mxu0 %v2818
        %2877 = vmatprep.subr.mxu0 0.0
        %2878 = vmatpush1.msra.mxu0 %v2819
        %2879 = vmatprep.subr.mxu0 0.0
        %2880 = vmatpush1.msra.mxu0 %v2820
        %2881 = vmatprep.subr.mxu0 0.0
        %2882 = vmatpush1.msra.mxu0 %v2821
        %2883 = vmatprep.subr.mxu0 0.0
        %2884 = vmatpush1.msra.mxu0 %v2822
        %2885 = vmatprep.subr.mxu0 0.0
        %2886 = vmatpush1.msra.mxu0 %v2823
        %2887 = vmatprep.subr.mxu0 0.0
        %2888 = vmatpush1.msra.mxu0 %v2824
        %2889 = vmatprep.subr.mxu0 0.0
        %2890 = vmatpush1.msra.mxu0 %v2825
        %2891 = vmatprep.subr.mxu0 0.0
        %2892 = vmatpush1.msra.mxu0 %v2826
        %2893 = vmatprep.subr.mxu0 0.0
        %2894 = vmatpush1.msra.mxu0 %v2827
        %2895 = vmatprep.subr.mxu0 0.0
        %2896 = vmatpush1.msra.mxu0 %v2828
        %2897 = vmatprep.subr.mxu0 0.0
        %2898 = vmatpush1.msra.mxu0 %v2829
        %2899 = vmatprep.subr.mxu0 0.0
        %2900 = vmatpush1.msra.mxu0 %v2830
        %2901 = vmatprep.subr.mxu0 0.0
        %2902 = vmatpush1.msra.mxu0 %v2831
        %2903 = vmatprep.subr.mxu0 0.0
        %2904 = vmatpush1.msra.mxu0 %v2832
        %2905 = vmatprep.subr.mxu0 0.0
        %2906 = vmatpush1.msra.mxu0 %v2833
        %2907 = vmatprep.subr.mxu0 0.0
        %2908 = vmatpush1.msra.mxu0 %v2834
        %2909 = vmatprep.subr.mxu0 0.0
        %2910 = vmatpush1.msra.mxu0 %v2835
        %2911 = vmatprep.subr.mxu0 0.0
        %2912 = vmatpush1.msra.mxu0 %v2836
        %2913 = vmatprep.subr.mxu0 0.0
        %2914 = vmatpush1.msra.mxu0 %v2837
        %2915 = vmatprep.subr.mxu0 0.0
        %2916 = vmatpush1.msra.mxu0 %v2838
        %2917 = vmatprep.subr.mxu0 0.0
        %2918 = vmatpush1.msra.mxu0 %v2839
        %2919 = vmatprep.subr.mxu0 0.0
        %2920 = vmatpush1.msra.mxu0 %v2840
        %2921 = vmatprep.subr.mxu0 0.0
        %2922 = vmatpush1.msra.mxu0 %v2841
        %2923 = vmatprep.subr.mxu0 0.0
        %2924 = vmatpush1.msra.mxu0 %v2842
        %2925 = vmatprep.subr.mxu0 0.0
        %2926 = vmatpush1.msra.mxu0 %v2843
        %2927 = vmatprep.subr.mxu0 0.0
        %2928 = vmatpush1.msra.mxu0 %v2844
        %2929 = vmatprep.subr.mxu0 0.0
        %2930 = vmatpush1.msra.mxu0 %v2845
        %2931 = vmatprep.mubr.f32.mxu0 %v2858
        %2932 = vmatmul.mubr.f32.gmra.mrb[0].mxu0 %v2857
        %v2933 = vpop.f32.mrb[0].mxu0
        %v2934 = vadd.f32 0.0, %v2933
        %v2935 = vpop.f32.mrb[0].mxu0
        %2936 = vdwg.mxu0
        %2937 = vmatprep.subr.mxu0 0.0
        %2938 = vmatpush1.msra.mxu0 %v2846
        %2939 = vmatprep.subr.mxu0 0.0
        %2940 = vmatpush1.msra.mxu0 %v2847
        %2941 = vmatprep.subr.mxu0 0.0
        %2942 = vmatpush1.msra.mxu0 %v2848
        %2943 = vmatprep.subr.mxu0 0.0
        %2944 = vmatpush1.msra.mxu0 %v2849
        %2945 = vmatprep.subr.mxu0 0.0
        %2946 = vmatpush1.msra.mxu0 %v2850
        %2947 = vmatprep.subr.mxu0 0.0
        %2948 = vmatpush1.msra.mxu0 %v2851
        %2949 = vmatprep.subr.mxu0 0.0
        %2950 = vmatpush1.msra.mxu0 %v2852
        %2951 = vmatprep.subr.mxu0 0.0
        %2952 = vmatpush1.msra.mxu0 %v2853
        %2953 = vmatprep.subr.mxu0 0.0
        %2954 = vmatpush1.msra.mxu0 %v2865
        %2955 = vmatprep.subr.mxu0 0.0
        %2956 = vmatpush1.msra.mxu0 0.0
        %2957 = vmatprep.subr.mxu0 0.0
        %2958 = vmatpush1.msra.mxu0 0.0
        %2959 = vmatprep.subr.mxu0 0.0
        %2960 = vmatpush1.msra.mxu0 0.0
        %2961 = vmatprep.subr.mxu0 0.0
        %2962 = vmatpush1.msra.mxu0 0.0
        %2963 = vmatprep.subr.mxu0 0.0
        %2964 = vmatpush1.msra.mxu0 0.0
        %2965 = vmatprep.subr.mxu0 0.0
        %2966 = vmatpush1.msra.mxu0 0.0
        %2967 = vmatprep.subr.mxu0 0.0
        %2968 = vmatpush1.msra.mxu0 0.0
        %2969 = vmatprep.subr.mxu0 0.0
        %2970 = vmatpush1.msra.mxu0 0.0
        %2971 = vmatprep.subr.mxu0 0.0
        %2972 = vmatpush1.msra.mxu0 0.0
        %2973 = vmatprep.subr.mxu0 0.0
        %2974 = vmatpush1.msra.mxu0 0.0
        %2975 = vmatprep.subr.mxu0 0.0
        %2976 = vmatpush1.msra.mxu0 0.0
        %2977 = vmatprep.subr.mxu0 0.0
        %2978 = vmatpush1.msra.mxu0 0.0
        %2979 = vmatprep.subr.mxu0 0.0
        %2980 = vmatpush1.msra.mxu0 0.0
        %2981 = vmatprep.subr.mxu0 0.0
        %2982 = vmatpush1.msra.mxu0 0.0
        %2983 = vmatprep.subr.mxu0 0.0
        %2984 = vmatpush1.msra.mxu0 0.0
        %2985 = vmatprep.subr.mxu0 0.0
        %2986 = vmatpush1.msra.mxu0 0.0
        %2987 = vmatprep.subr.mxu0 0.0
        %2988 = vmatpush1.msra.mxu0 0.0
        %2989 = vmatprep.subr.mxu0 0.0
        %2990 = vmatpush1.msra.mxu0 0.0
        %2991 = vmatprep.subr.mxu0 0.0
        %2992 = vmatpush1.msra.mxu0 0.0
        %2993 = vmatprep.subr.mxu0 0.0
        %2994 = vmatpush1.msra.mxu0 0.0
        %2995 = vmatprep.subr.mxu0 0.0
        %2996 = vmatpush1.msra.mxu0 0.0
        %2997 = vmatprep.subr.mxu0 0.0
        %2998 = vmatpush1.msra.mxu0 0.0
        %2999 = vmatprep.subr.mxu0 0.0
        %3000 = vmatpush1.msra.mxu0 0.0
        %3001 = vmatprep.mubr.f32.mxu0 0.0
        %3002 = vmatmul.mubr.f32.gmra.mrb[0].mxu0 %v2862
        %v3003 = vpop.f32.mrb[0].mxu0
        %v3004 = vadd.f32 %v2934, %v3003
        %v3005 = vpop.f32.mrb[0].mxu0
        %3006 = vdwg.mxu0
        %v3007 = vadd.f32 %v2812, %v3004
        %s3008 = scalar_lea.vmem %s3, 3280
        %v3009 = vld [vmem:[%s3008] sm:$0xff]
        %v3010 = vld [vmem:[%s3008 + $0x8] sm:$0xff]
        %v3011 = vld [vmem:[%s3008 + $0x10] sm:$0xff]
        %v3012 = vld [vmem:[%s3008 + $0x18] sm:$0xff]
        %v3013 = vld [vmem:[%s3008 + $0x20] sm:$0xff]
        %v3014 = vld [vmem:[%s3008 + $0x28] sm:$0xff]
        %v3015 = vld [vmem:[%s3008 + $0x30] sm:$0xff]
        %v3016 = vld [vmem:[%s3008 + $0x38] sm:$0xff]
        %v3017 = vld [vmem:[%s3008 + $0x40] sm:$0xff]
        %v3018 = vld [vmem:[%s3008 + $0x48] sm:$0xff]
        %v3019 = vld [vmem:[%s3008 + $0x50] sm:$0xff]
        %v3020 = vld [vmem:[%s3008 + $0x58] sm:$0xff]
        %v3021 = vld [vmem:[%s3008 + $0x60] sm:$0xff]
        %v3022 = vld [vmem:[%s3008 + $0x68] sm:$0xff]
        %v3023 = vld [vmem:[%s3008 + $0x70] sm:$0xff]
        %v3024 = vld [vmem:[%s3008 + $0x78] sm:$0xff]
        %v3025 = vld [vmem:[%s3008 + $0x80] sm:$0xff]
        %v3026 = vld [vmem:[%s3008 + $0x88] sm:$0xff]
        %v3027 = vld [vmem:[%s3008 + $0x90] sm:$0xff]
        %v3028 = vld [vmem:[%s3008 + $0x98] sm:$0xff]
        %v3029 = vld [vmem:[%s3008 + $0xa0] sm:$0xff]
        %v3030 = vld [vmem:[%s3008 + $0xa8] sm:$0xff]
        %v3031 = vld [vmem:[%s3008 + $0xb0] sm:$0xff]
        %v3032 = vld [vmem:[%s3008 + $0xb8] sm:$0xff]
        %v3033 = vld [vmem:[%s3008 + $0xc0] sm:$0xff]
        %v3034 = vld [vmem:[%s3008 + $0xc8] sm:$0xff]
        %v3035 = vld [vmem:[%s3008 + $0xd0] sm:$0xff]
        %v3036 = vld [vmem:[%s3008 + $0xd8] sm:$0xff]
        %v3037 = vld [vmem:[%s3008 + $0xe0] sm:$0xff]
        %v3038 = vld [vmem:[%s3008 + $0xe8] sm:$0xff]
        %v3039 = vld [vmem:[%s3008 + $0xf0] sm:$0xff]
        %v3040 = vld [vmem:[%s3008 + $0xf8] sm:$0xff]
        %v3041 = vld [vmem:[%s3008 + $0x100] sm:$0xff]
        %v3042 = vld [vmem:[%s3008 + $0x108] sm:$0xff]
        %v3043 = vld [vmem:[%s3008 + $0x110] sm:$0xff]
        %v3044 = vld [vmem:[%s3008 + $0x118] sm:$0xff]
        %v3045 = vld [vmem:[%s3008 + $0x120] sm:$0xff]
        %v3046 = vld [vmem:[%s3008 + $0x128] sm:$0xff]
        %v3047 = vld [vmem:[%s3008 + $0x130] sm:$0xff]
        %v3048 = vld [vmem:[%s3008 + $0x138] sm:$0xff]
        %v3049 = vld [vmem:[%s3008 + $0x140] sm:$0xf]
        %v3050 = vrot.slane %v1074, 2
        %v3051 = vrot.slane %v1075, 2
        %v3052 = vrot.slane %v1076, 2
        %v3055 = vsel %vm1174, %v3052, 0
        %v3058 = vsel %vm1177, %v3049, 0
        %3060 = vmatprep.subr.mxu0 0.0
        %3061 = vmatpush1.msra.mxu0 %v3009
        %3062 = vmatprep.subr.mxu0 0.0
        %3063 = vmatpush1.msra.mxu0 %v3010
        %3064 = vmatprep.subr.mxu0 0.0
        %3065 = vmatpush1.msra.mxu0 %v3011
        %3066 = vmatprep.subr.mxu0 0.0
        %3067 = vmatpush1.msra.mxu0 %v3012
        %3068 = vmatprep.subr.mxu0 0.0
        %3069 = vmatpush1.msra.mxu0 %v3013
        %3070 = vmatprep.subr.mxu0 0.0
        %3071 = vmatpush1.msra.mxu0 %v3014
        %3072 = vmatprep.subr.mxu0 0.0
        %3073 = vmatpush1.msra.mxu0 %v3015
        %3074 = vmatprep.subr.mxu0 0.0
        %3075 = vmatpush1.msra.mxu0 %v3016
        %3076 = vmatprep.subr.mxu0 0.0
        %3077 = vmatpush1.msra.mxu0 %v3017
        %3078 = vmatprep.subr.mxu0 0.0
        %3079 = vmatpush1.msra.mxu0 %v3018
        %3080 = vmatprep.subr.mxu0 0.0
        %3081 = vmatpush1.msra.mxu0 %v3019
        %3082 = vmatprep.subr.mxu0 0.0
        %3083 = vmatpush1.msra.mxu0 %v3020
        %3084 = vmatprep.subr.mxu0 0.0
        %3085 = vmatpush1.msra.mxu0 %v3021
        %3086 = vmatprep.subr.mxu0 0.0
        %3087 = vmatpush1.msra.mxu0 %v3022
        %3088 = vmatprep.subr.mxu0 0.0
        %3089 = vmatpush1.msra.mxu0 %v3023
        %3090 = vmatprep.subr.mxu0 0.0
        %3091 = vmatpush1.msra.mxu0 %v3024
        %3092 = vmatprep.subr.mxu0 0.0
        %3093 = vmatpush1.msra.mxu0 %v3025
        %3094 = vmatprep.subr.mxu0 0.0
        %3095 = vmatpush1.msra.mxu0 %v3026
        %3096 = vmatprep.subr.mxu0 0.0
        %3097 = vmatpush1.msra.mxu0 %v3027
        %3098 = vmatprep.subr.mxu0 0.0
        %3099 = vmatpush1.msra.mxu0 %v3028
        %3100 = vmatprep.subr.mxu0 0.0
        %3101 = vmatpush1.msra.mxu0 %v3029
        %3102 = vmatprep.subr.mxu0 0.0
        %3103 = vmatpush1.msra.mxu0 %v3030
        %3104 = vmatprep.subr.mxu0 0.0
        %3105 = vmatpush1.msra.mxu0 %v3031
        %3106 = vmatprep.subr.mxu0 0.0
        %3107 = vmatpush1.msra.mxu0 %v3032
        %3108 = vmatprep.subr.mxu0 0.0
        %3109 = vmatpush1.msra.mxu0 %v3033
        %3110 = vmatprep.subr.mxu0 0.0
        %3111 = vmatpush1.msra.mxu0 %v3034
        %3112 = vmatprep.subr.mxu0 0.0
        %3113 = vmatpush1.msra.mxu0 %v3035
        %3114 = vmatprep.subr.mxu0 0.0
        %3115 = vmatpush1.msra.mxu0 %v3036
        %3116 = vmatprep.subr.mxu0 0.0
        %3117 = vmatpush1.msra.mxu0 %v3037
        %3118 = vmatprep.subr.mxu0 0.0
        %3119 = vmatpush1.msra.mxu0 %v3038
        %3120 = vmatprep.subr.mxu0 0.0
        %3121 = vmatpush1.msra.mxu0 %v3039
        %3122 = vmatprep.subr.mxu0 0.0
        %3123 = vmatpush1.msra.mxu0 %v3040
        %3124 = vmatprep.mubr.f32.mxu0 %v3051
        %3125 = vmatmul.mubr.f32.gmra.mrb[0].mxu0 %v3050
        %v3126 = vpop.f32.mrb[0].mxu0
        %v3127 = vadd.f32 0.0, %v3126
        %v3128 = vpop.f32.mrb[0].mxu0
        %3129 = vdwg.mxu0
        %3130 = vmatprep.subr.mxu0 0.0
        %3131 = vmatpush1.msra.mxu0 %v3041
        %3132 = vmatprep.subr.mxu0 0.0
        %3133 = vmatpush1.msra.mxu0 %v3042
        %3134 = vmatprep.subr.mxu0 0.0
        %3135 = vmatpush1.msra.mxu0 %v3043
        %3136 = vmatprep.subr.mxu0 0.0
        %3137 = vmatpush1.msra.mxu0 %v3044
        %3138 = vmatprep.subr.mxu0 0.0
        %3139 = vmatpush1.msra.mxu0 %v3045
        %3140 = vmatprep.subr.mxu0 0.0
        %3141 = vmatpush1.msra.mxu0 %v3046
        %3142 = vmatprep.subr.mxu0 0.0
        %3143 = vmatpush1.msra.mxu0 %v3047
        %3144 = vmatprep.subr.mxu0 0.0
        %3145 = vmatpush1.msra.mxu0 %v3048
        %3146 = vmatprep.subr.mxu0 0.0
        %3147 = vmatpush1.msra.mxu0 %v3058
        %3148 = vmatprep.subr.mxu0 0.0
        %3149 = vmatpush1.msra.mxu0 0.0
        %3150 = vmatprep.subr.mxu0 0.0
        %3151 = vmatpush1.msra.mxu0 0.0
        %3152 = vmatprep.subr.mxu0 0.0
        %3153 = vmatpush1.msra.mxu0 0.0
        %3154 = vmatprep.subr.mxu0 0.0
        %3155 = vmatpush1.msra.mxu0 0.0
        %3156 = vmatprep.subr.mxu0 0.0
        %3157 = vmatpush1.msra.mxu0 0.0
        %3158 = vmatprep.subr.mxu0 0.0
        %3159 = vmatpush1.msra.mxu0 0.0
        %3160 = vmatprep.subr.mxu0 0.0
        %3161 = vmatpush1.msra.mxu0 0.0
        %3162 = vmatprep.subr.mxu0 0.0
        %3163 = vmatpush1.msra.mxu0 0.0
        %3164 = vmatprep.subr.mxu0 0.0
        %3165 = vmatpush1.msra.mxu0 0.0
        %3166 = vmatprep.subr.mxu0 0.0
        %3167 = vmatpush1.msra.mxu0 0.0
        %3168 = vmatprep.subr.mxu0 0.0
        %3169 = vmatpush1.msra.mxu0 0.0
        %3170 = vmatprep.subr.mxu0 0.0
        %3171 = vmatpush1.msra.mxu0 0.0
        %3172 = vmatprep.subr.mxu0 0.0
        %3173 = vmatpush1.msra.mxu0 0.0
        %3174 = vmatprep.subr.mxu0 0.0
        %3175 = vmatpush1.msra.mxu0 0.0
        %3176 = vmatprep.subr.mxu0 0.0
        %3177 = vmatpush1.msra.mxu0 0.0
        %3178 = vmatprep.subr.mxu0 0.0
        %3179 = vmatpush1.msra.mxu0 0.0
        %3180 = vmatprep.subr.mxu0 0.0
        %3181 = vmatpush1.msra.mxu0 0.0
        %3182 = vmatprep.subr.mxu0 0.0
        %3183 = vmatpush1.msra.mxu0 0.0
        %3184 = vmatprep.subr.mxu0 0.0
        %3185 = vmatpush1.msra.mxu0 0.0
        %3186 = vmatprep.subr.mxu0 0.0
        %3187 = vmatpush1.msra.mxu0 0.0
        %3188 = vmatprep.subr.mxu0 0.0
        %3189 = vmatpush1.msra.mxu0 0.0
        %3190 = vmatprep.subr.mxu0 0.0
        %3191 = vmatpush1.msra.mxu0 0.0
        %3192 = vmatprep.subr.mxu0 0.0
        %3193 = vmatpush1.msra.mxu0 0.0
        %3194 = vmatprep.mubr.f32.mxu0 0.0
        %3195 = vmatmul.mubr.f32.gmra.mrb[0].mxu0 %v3055
        %v3196 = vpop.f32.mrb[0].mxu0
        %v3197 = vadd.f32 %v3127, %v3196
        %v3198 = vpop.f32.mrb[0].mxu0
        %3199 = vdwg.mxu0
        %v3200 = vadd.f32 %v3007, %v3197
        %s3201 = scalar_lea.vmem %s3, 3608
        %v3202 = vld [vmem:[%s3201] sm:$0xff]
        %v3203 = vld [vmem:[%s3201 + $0x8] sm:$0xff]
        %v3204 = vld [vmem:[%s3201 + $0x10] sm:$0xff]
        %v3205 = vld [vmem:[%s3201 + $0x18] sm:$0xff]
        %v3206 = vld [vmem:[%s3201 + $0x20] sm:$0xff]
        %v3207 = vld [vmem:[%s3201 + $0x28] sm:$0xff]
        %v3208 = vld [vmem:[%s3201 + $0x30] sm:$0xff]
        %v3209 = vld [vmem:[%s3201 + $0x38] sm:$0xff]
        %v3210 = vld [vmem:[%s3201 + $0x40] sm:$0xff]
        %v3211 = vld [vmem:[%s3201 + $0x48] sm:$0xff]
        %v3212 = vld [vmem:[%s3201 + $0x50] sm:$0xff]
        %v3213 = vld [vmem:[%s3201 + $0x58] sm:$0xff]
        %v3214 = vld [vmem:[%s3201 + $0x60] sm:$0xff]
        %v3215 = vld [vmem:[%s3201 + $0x68] sm:$0xff]
        %v3216 = vld [vmem:[%s3201 + $0x70] sm:$0xff]
        %v3217 = vld [vmem:[%s3201 + $0x78] sm:$0xff]
        %v3218 = vld [vmem:[%s3201 + $0x80] sm:$0xff]
        %v3219 = vld [vmem:[%s3201 + $0x88] sm:$0xff]
        %v3220 = vld [vmem:[%s3201 + $0x90] sm:$0xff]
        %v3221 = vld [vmem:[%s3201 + $0x98] sm:$0xff]
        %v3222 = vld [vmem:[%s3201 + $0xa0] sm:$0xff]
        %v3223 = vld [vmem:[%s3201 + $0xa8] sm:$0xff]
        %v3224 = vld [vmem:[%s3201 + $0xb0] sm:$0xff]
        %v3225 = vld [vmem:[%s3201 + $0xb8] sm:$0xff]
        %v3226 = vld [vmem:[%s3201 + $0xc0] sm:$0xff]
        %v3227 = vld [vmem:[%s3201 + $0xc8] sm:$0xff]
        %v3228 = vld [vmem:[%s3201 + $0xd0] sm:$0xff]
        %v3229 = vld [vmem:[%s3201 + $0xd8] sm:$0xff]
        %v3230 = vld [vmem:[%s3201 + $0xe0] sm:$0xff]
        %v3231 = vld [vmem:[%s3201 + $0xe8] sm:$0xff]
        %v3232 = vld [vmem:[%s3201 + $0xf0] sm:$0xff]
        %v3233 = vld [vmem:[%s3201 + $0xf8] sm:$0xff]
        %v3234 = vld [vmem:[%s3201 + $0x100] sm:$0xff]
        %v3235 = vld [vmem:[%s3201 + $0x108] sm:$0xff]
        %v3236 = vld [vmem:[%s3201 + $0x110] sm:$0xff]
        %v3237 = vld [vmem:[%s3201 + $0x118] sm:$0xff]
        %v3238 = vld [vmem:[%s3201 + $0x120] sm:$0xff]
        %v3239 = vld [vmem:[%s3201 + $0x128] sm:$0xff]
        %v3240 = vld [vmem:[%s3201 + $0x130] sm:$0xff]
        %v3241 = vld [vmem:[%s3201 + $0x138] sm:$0xff]
        %v3242 = vld [vmem:[%s3201 + $0x140] sm:$0xf]
        %v3243 = vrot.slane %v1074, 3
        %v3244 = vrot.slane %v1075, 3
        %v3245 = vrot.slane %v1076, 3
        %v3248 = vsel %vm1174, %v3245, 0
        %v3251 = vsel %vm1177, %v3242, 0
        %3253 = vmatprep.subr.mxu0 0.0
        %3254 = vmatpush1.msra.mxu0 %v3202
        %3255 = vmatprep.subr.mxu0 0.0
        %3256 = vmatpush1.msra.mxu0 %v3203
        %3257 = vmatprep.subr.mxu0 0.0
        %3258 = vmatpush1.msra.mxu0 %v3204
        %3259 = vmatprep.subr.mxu0 0.0
        %3260 = vmatpush1.msra.mxu0 %v3205
        %3261 = vmatprep.subr.mxu0 0.0
        %3262 = vmatpush1.msra.mxu0 %v3206
        %3263 = vmatprep.subr.mxu0 0.0
        %3264 = vmatpush1.msra.mxu0 %v3207
        %3265 = vmatprep.subr.mxu0 0.0
        %3266 = vmatpush1.msra.mxu0 %v3208
        %3267 = vmatprep.subr.mxu0 0.0
        %3268 = vmatpush1.msra.mxu0 %v3209
        %3269 = vmatprep.subr.mxu0 0.0
        %3270 = vmatpush1.msra.mxu0 %v3210
        %3271 = vmatprep.subr.mxu0 0.0
        %3272 = vmatpush1.msra.mxu0 %v3211
        %3273 = vmatprep.subr.mxu0 0.0
        %3274 = vmatpush1.msra.mxu0 %v3212
        %3275 = vmatprep.subr.mxu0 0.0
        %3276 = vmatpush1.msra.mxu0 %v3213
        %3277 = vmatprep.subr.mxu0 0.0
        %3278 = vmatpush1.msra.mxu0 %v3214
        %3279 = vmatprep.subr.mxu0 0.0
        %3280 = vmatpush1.msra.mxu0 %v3215
        %3281 = vmatprep.subr.mxu0 0.0
        %3282 = vmatpush1.msra.mxu0 %v3216
        %3283 = vmatprep.subr.mxu0 0.0
        %3284 = vmatpush1.msra.mxu0 %v3217
        %3285 = vmatprep.subr.mxu0 0.0
        %3286 = vmatpush1.msra.mxu0 %v3218
        %3287 = vmatprep.subr.mxu0 0.0
        %3288 = vmatpush1.msra.mxu0 %v3219
        %3289 = vmatprep.subr.mxu0 0.0
        %3290 = vmatpush1.msra.mxu0 %v3220
        %3291 = vmatprep.subr.mxu0 0.0
        %3292 = vmatpush1.msra.mxu0 %v3221
        %3293 = vmatprep.subr.mxu0 0.0
        %3294 = vmatpush1.msra.mxu0 %v3222
        %3295 = vmatprep.subr.mxu0 0.0
        %3296 = vmatpush1.msra.mxu0 %v3223
        %3297 = vmatprep.subr.mxu0 0.0
        %3298 = vmatpush1.msra.mxu0 %v3224
        %3299 = vmatprep.subr.mxu0 0.0
        %3300 = vmatpush1.msra.mxu0 %v3225
        %3301 = vmatprep.subr.mxu0 0.0
        %3302 = vmatpush1.msra.mxu0 %v3226
        %3303 = vmatprep.subr.mxu0 0.0
        %3304 = vmatpush1.msra.mxu0 %v3227
        %3305 = vmatprep.subr.mxu0 0.0
        %3306 = vmatpush1.msra.mxu0 %v3228
        %3307 = vmatprep.subr.mxu0 0.0
        %3308 = vmatpush1.msra.mxu0 %v3229
        %3309 = vmatprep.subr.mxu0 0.0
        %3310 = vmatpush1.msra.mxu0 %v3230
        %3311 = vmatprep.subr.mxu0 0.0
        %3312 = vmatpush1.msra.mxu0 %v3231
        %3313 = vmatprep.subr.mxu0 0.0
        %3314 = vmatpush1.msra.mxu0 %v3232
        %3315 = vmatprep.subr.mxu0 0.0
        %3316 = vmatpush1.msra.mxu0 %v3233
        %3317 = vmatprep.mubr.f32.mxu0 %v3244
        %3318 = vmatmul.mubr.f32.gmra.mrb[0].mxu0 %v3243
        %v3319 = vpop.f32.mrb[0].mxu0
        %v3320 = vadd.f32 0.0, %v3319
        %v3321 = vpop.f32.mrb[0].mxu0
        %3322 = vdwg.mxu0
        %3323 = vmatprep.subr.mxu0 0.0
        %3324 = vmatpush1.msra.mxu0 %v3234
        %3325 = vmatprep.subr.mxu0 0.0
        %3326 = vmatpush1.msra.mxu0 %v3235
        %3327 = vmatprep.subr.mxu0 0.0
        %3328 = vmatpush1.msra.mxu0 %v3236
        %3329 = vmatprep.subr.mxu0 0.0
        %3330 = vmatpush1.msra.mxu0 %v3237
        %3331 = vmatprep.subr.mxu0 0.0
        %3332 = vmatpush1.msra.mxu0 %v3238
        %3333 = vmatprep.subr.mxu0 0.0
        %3334 = vmatpush1.msra.mxu0 %v3239
        %3335 = vmatprep.subr.mxu0 0.0
        %3336 = vmatpush1.msra.mxu0 %v3240
        %3337 = vmatprep.subr.mxu0 0.0
        %3338 = vmatpush1.msra.mxu0 %v3241
        %3339 = vmatprep.subr.mxu0 0.0
        %3340 = vmatpush1.msra.mxu0 %v3251
        %3341 = vmatprep.subr.mxu0 0.0
        %3342 = vmatpush1.msra.mxu0 0.0
        %3343 = vmatprep.subr.mxu0 0.0
        %3344 = vmatpush1.msra.mxu0 0.0
        %3345 = vmatprep.subr.mxu0 0.0
        %3346 = vmatpush1.msra.mxu0 0.0
        %3347 = vmatprep.subr.mxu0 0.0
        %3348 = vmatpush1.msra.mxu0 0.0
        %3349 = vmatprep.subr.mxu0 0.0
        %3350 = vmatpush1.msra.mxu0 0.0
        %3351 = vmatprep.subr.mxu0 0.0
        %3352 = vmatpush1.msra.mxu0 0.0
        %3353 = vmatprep.subr.mxu0 0.0
        %3354 = vmatpush1.msra.mxu0 0.0
        %3355 = vmatprep.subr.mxu0 0.0
        %3356 = vmatpush1.msra.mxu0 0.0
        %3357 = vmatprep.subr.mxu0 0.0
        %3358 = vmatpush1.msra.mxu0 0.0
        %3359 = vmatprep.subr.mxu0 0.0
        %3360 = vmatpush1.msra.mxu0 0.0
        %3361 = vmatprep.subr.mxu0 0.0
        %3362 = vmatpush1.msra.mxu0 0.0
        %3363 = vmatprep.subr.mxu0 0.0
        %3364 = vmatpush1.msra.mxu0 0.0
        %3365 = vmatprep.subr.mxu0 0.0
        %3366 = vmatpush1.msra.mxu0 0.0
        %3367 = vmatprep.subr.mxu0 0.0
        %3368 = vmatpush1.msra.mxu0 0.0
        %3369 = vmatprep.subr.mxu0 0.0
        %3370 = vmatpush1.msra.mxu0 0.0
        %3371 = vmatprep.subr.mxu0 0.0
        %3372 = vmatpush1.msra.mxu0 0.0
        %3373 = vmatprep.subr.mxu0 0.0
        %3374 = vmatpush1.msra.mxu0 0.0
        %3375 = vmatprep.subr.mxu0 0.0
        %3376 = vmatpush1.msra.mxu0 0.0
        %3377 = vmatprep.subr.mxu0 0.0
        %3378 = vmatpush1.msra.mxu0 0.0
        %3379 = vmatprep.subr.mxu0 0.0
        %3380 = vmatpush1.msra.mxu0 0.0
        %3381 = vmatprep.subr.mxu0 0.0
        %3382 = vmatpush1.msra.mxu0 0.0
        %3383 = vmatprep.subr.mxu0 0.0
        %3384 = vmatpush1.msra.mxu0 0.0
        %3385 = vmatprep.subr.mxu0 0.0
        %3386 = vmatpush1.msra.mxu0 0.0
        %3387 = vmatprep.mubr.f32.mxu0 0.0
        %3388 = vmatmul.mubr.f32.gmra.mrb[0].mxu0 %v3248
        %v3389 = vpop.f32.mrb[0].mxu0
        %v3390 = vadd.f32 %v3320, %v3389
        %v3391 = vpop.f32.mrb[0].mxu0
        %3392 = vdwg.mxu0
        %v3393 = vadd.f32 %v3200, %v3390
        %s3394 = scalar_lea.vmem %s3, 3936
        %v3395 = vld [vmem:[%s3394] sm:$0xff]
        %v3396 = vld [vmem:[%s3394 + $0x8] sm:$0xff]
        %v3397 = vld [vmem:[%s3394 + $0x10] sm:$0xff]
        %v3398 = vld [vmem:[%s3394 + $0x18] sm:$0xff]
        %v3399 = vld [vmem:[%s3394 + $0x20] sm:$0xff]
        %v3400 = vld [vmem:[%s3394 + $0x28] sm:$0xff]
        %v3401 = vld [vmem:[%s3394 + $0x30] sm:$0xff]
        %v3402 = vld [vmem:[%s3394 + $0x38] sm:$0xff]
        %v3403 = vld [vmem:[%s3394 + $0x40] sm:$0xff]
        %v3404 = vld [vmem:[%s3394 + $0x48] sm:$0xff]
        %v3405 = vld [vmem:[%s3394 + $0x50] sm:$0xff]
        %v3406 = vld [vmem:[%s3394 + $0x58] sm:$0xff]
        %v3407 = vld [vmem:[%s3394 + $0x60] sm:$0xff]
        %v3408 = vld [vmem:[%s3394 + $0x68] sm:$0xff]
        %v3409 = vld [vmem:[%s3394 + $0x70] sm:$0xff]
        %v3410 = vld [vmem:[%s3394 + $0x78] sm:$0xff]
        %v3411 = vld [vmem:[%s3394 + $0x80] sm:$0xff]
        %v3412 = vld [vmem:[%s3394 + $0x88] sm:$0xff]
        %v3413 = vld [vmem:[%s3394 + $0x90] sm:$0xff]
        %v3414 = vld [vmem:[%s3394 + $0x98] sm:$0xff]
        %v3415 = vld [vmem:[%s3394 + $0xa0] sm:$0xff]
        %v3416 = vld [vmem:[%s3394 + $0xa8] sm:$0xff]
        %v3417 = vld [vmem:[%s3394 + $0xb0] sm:$0xff]
        %v3418 = vld [vmem:[%s3394 + $0xb8] sm:$0xff]
        %v3419 = vld [vmem:[%s3394 + $0xc0] sm:$0xff]
        %v3420 = vld [vmem:[%s3394 + $0xc8] sm:$0xff]
        %v3421 = vld [vmem:[%s3394 + $0xd0] sm:$0xff]
        %v3422 = vld [vmem:[%s3394 + $0xd8] sm:$0xff]
        %v3423 = vld [vmem:[%s3394 + $0xe0] sm:$0xff]
        %v3424 = vld [vmem:[%s3394 + $0xe8] sm:$0xff]
        %v3425 = vld [vmem:[%s3394 + $0xf0] sm:$0xff]
        %v3426 = vld [vmem:[%s3394 + $0xf8] sm:$0xff]
        %v3427 = vld [vmem:[%s3394 + $0x100] sm:$0xff]
        %v3428 = vld [vmem:[%s3394 + $0x108] sm:$0xff]
        %v3429 = vld [vmem:[%s3394 + $0x110] sm:$0xff]
        %v3430 = vld [vmem:[%s3394 + $0x118] sm:$0xff]
        %v3431 = vld [vmem:[%s3394 + $0x120] sm:$0xff]
        %v3432 = vld [vmem:[%s3394 + $0x128] sm:$0xff]
        %v3433 = vld [vmem:[%s3394 + $0x130] sm:$0xff]
        %v3434 = vld [vmem:[%s3394 + $0x138] sm:$0xff]
        %v3435 = vld [vmem:[%s3394 + $0x140] sm:$0xf]
        %v3436 = vrot.slane %v1074, 4
        %v3437 = vrot.slane %v1075, 4
        %v3438 = vrot.slane %v1076, 4
        %v3441 = vsel %vm1174, %v3438, 0
        %v3444 = vsel %vm1177, %v3435, 0
        %3446 = vmatprep.subr.mxu0 0.0
        %3447 = vmatpush1.msra.mxu0 %v3395
        %3448 = vmatprep.subr.mxu0 0.0
        %3449 = vmatpush1.msra.mxu0 %v3396
        %3450 = vmatprep.subr.mxu0 0.0
        %3451 = vmatpush1.msra.mxu0 %v3397
        %3452 = vmatprep.subr.mxu0 0.0
        %3453 = vmatpush1.msra.mxu0 %v3398
        %3454 = vmatprep.subr.mxu0 0.0
        %3455 = vmatpush1.msra.mxu0 %v3399
        %3456 = vmatprep.subr.mxu0 0.0
        %3457 = vmatpush1.msra.mxu0 %v3400
        %3458 = vmatprep.subr.mxu0 0.0
        %3459 = vmatpush1.msra.mxu0 %v3401
        %3460 = vmatprep.subr.mxu0 0.0
        %3461 = vmatpush1.msra.mxu0 %v3402
        %3462 = vmatprep.subr.mxu0 0.0
        %3463 = vmatpush1.msra.mxu0 %v3403
        %3464 = vmatprep.subr.mxu0 0.0
        %3465 = vmatpush1.msra.mxu0 %v3404
        %3466 = vmatprep.subr.mxu0 0.0
        %3467 = vmatpush1.msra.mxu0 %v3405
        %3468 = vmatprep.subr.mxu0 0.0
        %3469 = vmatpush1.msra.mxu0 %v3406
        %3470 = vmatprep.subr.mxu0 0.0
        %3471 = vmatpush1.msra.mxu0 %v3407
        %3472 = vmatprep.subr.mxu0 0.0
        %3473 = vmatpush1.msra.mxu0 %v3408
        %3474 = vmatprep.subr.mxu0 0.0
        %3475 = vmatpush1.msra.mxu0 %v3409
        %3476 = vmatprep.subr.mxu0 0.0
        %3477 = vmatpush1.msra.mxu0 %v3410
        %3478 = vmatprep.subr.mxu0 0.0
        %3479 = vmatpush1.msra.mxu0 %v3411
        %3480 = vmatprep.subr.mxu0 0.0
        %3481 = vmatpush1.msra.mxu0 %v3412
        %3482 = vmatprep.subr.mxu0 0.0
        %3483 = vmatpush1.msra.mxu0 %v3413
        %3484 = vmatprep.subr.mxu0 0.0
        %3485 = vmatpush1.msra.mxu0 %v3414
        %3486 = vmatprep.subr.mxu0 0.0
        %3487 = vmatpush1.msra.mxu0 %v3415
        %3488 = vmatprep.subr.mxu0 0.0
        %3489 = vmatpush1.msra.mxu0 %v3416
        %3490 = vmatprep.subr.mxu0 0.0
        %3491 = vmatpush1.msra.mxu0 %v3417
        %3492 = vmatprep.subr.mxu0 0.0
        %3493 = vmatpush1.msra.mxu0 %v3418
        %3494 = vmatprep.subr.mxu0 0.0
        %3495 = vmatpush1.msra.mxu0 %v3419
        %3496 = vmatprep.subr.mxu0 0.0
        %3497 = vmatpush1.msra.mxu0 %v3420
        %3498 = vmatprep.subr.mxu0 0.0
        %3499 = vmatpush1.msra.mxu0 %v3421
        %3500 = vmatprep.subr.mxu0 0.0
        %3501 = vmatpush1.msra.mxu0 %v3422
        %3502 = vmatprep.subr.mxu0 0.0
        %3503 = vmatpush1.msra.mxu0 %v3423
        %3504 = vmatprep.subr.mxu0 0.0
        %3505 = vmatpush1.msra.mxu0 %v3424
        %3506 = vmatprep.subr.mxu0 0.0
        %3507 = vmatpush1.msra.mxu0 %v3425
        %3508 = vmatprep.subr.mxu0 0.0
        %3509 = vmatpush1.msra.mxu0 %v3426
        %3510 = vmatprep.mubr.f32.mxu0 %v3437
        %3511 = vmatmul.mubr.f32.gmra.mrb[0].mxu0 %v3436
        %v3512 = vpop.f32.mrb[0].mxu0
        %v3513 = vadd.f32 0.0, %v3512
        %v3514 = vpop.f32.mrb[0].mxu0
        %3515 = vdwg.mxu0
        %3516 = vmatprep.subr.mxu0 0.0
        %3517 = vmatpush1.msra.mxu0 %v3427
        %3518 = vmatprep.subr.mxu0 0.0
        %3519 = vmatpush1.msra.mxu0 %v3428
        %3520 = vmatprep.subr.mxu0 0.0
        %3521 = vmatpush1.msra.mxu0 %v3429
        %3522 = vmatprep.subr.mxu0 0.0
        %3523 = vmatpush1.msra.mxu0 %v3430
        %3524 = vmatprep.subr.mxu0 0.0
        %3525 = vmatpush1.msra.mxu0 %v3431
        %3526 = vmatprep.subr.mxu0 0.0
        %3527 = vmatpush1.msra.mxu0 %v3432
        %3528 = vmatprep.subr.mxu0 0.0
        %3529 = vmatpush1.msra.mxu0 %v3433
        %3530 = vmatprep.subr.mxu0 0.0
        %3531 = vmatpush1.msra.mxu0 %v3434
        %3532 = vmatprep.subr.mxu0 0.0
        %3533 = vmatpush1.msra.mxu0 %v3444
        %3534 = vmatprep.subr.mxu0 0.0
        %3535 = vmatpush1.msra.mxu0 0.0
        %3536 = vmatprep.subr.mxu0 0.0
        %3537 = vmatpush1.msra.mxu0 0.0
        %3538 = vmatprep.subr.mxu0 0.0
        %3539 = vmatpush1.msra.mxu0 0.0
        %3540 = vmatprep.subr.mxu0 0.0
        %3541 = vmatpush1.msra.mxu0 0.0
        %3542 = vmatprep.subr.mxu0 0.0
        %3543 = vmatpush1.msra.mxu0 0.0
        %3544 = vmatprep.subr.mxu0 0.0
        %3545 = vmatpush1.msra.mxu0 0.0
        %3546 = vmatprep.subr.mxu0 0.0
        %3547 = vmatpush1.msra.mxu0 0.0
        %3548 = vmatprep.subr.mxu0 0.0
        %3549 = vmatpush1.msra.mxu0 0.0
        %3550 = vmatprep.subr.mxu0 0.0
        %3551 = vmatpush1.msra.mxu0 0.0
        %3552 = vmatprep.subr.mxu0 0.0
        %3553 = vmatpush1.msra.mxu0 0.0
        %3554 = vmatprep.subr.mxu0 0.0
        %3555 = vmatpush1.msra.mxu0 0.0
        %3556 = vmatprep.subr.mxu0 0.0
        %3557 = vmatpush1.msra.mxu0 0.0
        %3558 = vmatprep.subr.mxu0 0.0
        %3559 = vmatpush1.msra.mxu0 0.0
        %3560 = vmatprep.subr.mxu0 0.0
        %3561 = vmatpush1.msra.mxu0 0.0
        %3562 = vmatprep.subr.mxu0 0.0
        %3563 = vmatpush1.msra.mxu0 0.0
        %3564 = vmatprep.subr.mxu0 0.0
        %3565 = vmatpush1.msra.mxu0 0.0
        %3566 = vmatprep.subr.mxu0 0.0
        %3567 = vmatpush1.msra.mxu0 0.0
        %3568 = vmatprep.subr.mxu0 0.0
        %3569 = vmatpush1.msra.mxu0 0.0
        %3570 = vmatprep.subr.mxu0 0.0
        %3571 = vmatpush1.msra.mxu0 0.0
        %3572 = vmatprep.subr.mxu0 0.0
        %3573 = vmatpush1.msra.mxu0 0.0
        %3574 = vmatprep.subr.mxu0 0.0
        %3575 = vmatpush1.msra.mxu0 0.0
        %3576 = vmatprep.subr.mxu0 0.0
        %3577 = vmatpush1.msra.mxu0 0.0
        %3578 = vmatprep.subr.mxu0 0.0
        %3579 = vmatpush1.msra.mxu0 0.0
        %3580 = vmatprep.mubr.f32.mxu0 0.0
        %3581 = vmatmul.mubr.f32.gmra.mrb[0].mxu0 %v3441
        %v3582 = vpop.f32.mrb[0].mxu0
        %v3583 = vadd.f32 %v3513, %v3582
        %v3584 = vpop.f32.mrb[0].mxu0
        %3585 = vdwg.mxu0
        %v3586 = vadd.f32 %v3393, %v3583
        %s3587 = scalar_lea.vmem %s3, 4264
        %v3588 = vld [vmem:[%s3587] sm:$0xff]
        %v3589 = vld [vmem:[%s3587 + $0x8] sm:$0xff]
        %v3590 = vld [vmem:[%s3587 + $0x10] sm:$0xff]
        %v3591 = vld [vmem:[%s3587 + $0x18] sm:$0xff]
        %v3592 = vld [vmem:[%s3587 + $0x20] sm:$0xff]
        %v3593 = vld [vmem:[%s3587 + $0x28] sm:$0xff]
        %v3594 = vld [vmem:[%s3587 + $0x30] sm:$0xff]
        %v3595 = vld [vmem:[%s3587 + $0x38] sm:$0xff]
        %v3596 = vld [vmem:[%s3587 + $0x40] sm:$0xff]
        %v3597 = vld [vmem:[%s3587 + $0x48] sm:$0xff]
        %v3598 = vld [vmem:[%s3587 + $0x50] sm:$0xff]
        %v3599 = vld [vmem:[%s3587 + $0x58] sm:$0xff]
        %v3600 = vld [vmem:[%s3587 + $0x60] sm:$0xff]
        %v3601 = vld [vmem:[%s3587 + $0x68] sm:$0xff]
        %v3602 = vld [vmem:[%s3587 + $0x70] sm:$0xff]
        %v3603 = vld [vmem:[%s3587 + $0x78] sm:$0xff]
        %v3604 = vld [vmem:[%s3587 + $0x80] sm:$0xff]
        %v3605 = vld [vmem:[%s3587 + $0x88] sm:$0xff]
        %v3606 = vld [vmem:[%s3587 + $0x90] sm:$0xff]
        %v3607 = vld [vmem:[%s3587 + $0x98] sm:$0xff]
        %v3608 = vld [vmem:[%s3587 + $0xa0] sm:$0xff]
        %v3609 = vld [vmem:[%s3587 + $0xa8] sm:$0xff]
        %v3610 = vld [vmem:[%s3587 + $0xb0] sm:$0xff]
        %v3611 = vld [vmem:[%s3587 + $0xb8] sm:$0xff]
        %v3612 = vld [vmem:[%s3587 + $0xc0] sm:$0xff]
        %v3613 = vld [vmem:[%s3587 + $0xc8] sm:$0xff]
        %v3614 = vld [vmem:[%s3587 + $0xd0] sm:$0xff]
        %v3615 = vld [vmem:[%s3587 + $0xd8] sm:$0xff]
        %v3616 = vld [vmem:[%s3587 + $0xe0] sm:$0xff]
        %v3617 = vld [vmem:[%s3587 + $0xe8] sm:$0xff]
        %v3618 = vld [vmem:[%s3587 + $0xf0] sm:$0xff]
        %v3619 = vld [vmem:[%s3587 + $0xf8] sm:$0xff]
        %v3620 = vld [vmem:[%s3587 + $0x100] sm:$0xff]
        %v3621 = vld [vmem:[%s3587 + $0x108] sm:$0xff]
        %v3622 = vld [vmem:[%s3587 + $0x110] sm:$0xff]
        %v3623 = vld [vmem:[%s3587 + $0x118] sm:$0xff]
        %v3624 = vld [vmem:[%s3587 + $0x120] sm:$0xff]
        %v3625 = vld [vmem:[%s3587 + $0x128] sm:$0xff]
        %v3626 = vld [vmem:[%s3587 + $0x130] sm:$0xff]
        %v3627 = vld [vmem:[%s3587 + $0x138] sm:$0xff]
        %v3628 = vld [vmem:[%s3587 + $0x140] sm:$0xf]
        %v3629 = vrot.slane %v1074, 5
        %v3630 = vrot.slane %v1075, 5
        %v3631 = vrot.slane %v1076, 5
        %v3634 = vsel %vm1174, %v3631, 0
        %v3637 = vsel %vm1177, %v3628, 0
        %3639 = vmatprep.subr.mxu0 0.0
        %3640 = vmatpush1.msra.mxu0 %v3588
        %3641 = vmatprep.subr.mxu0 0.0
        %3642 = vmatpush1.msra.mxu0 %v3589
        %3643 = vmatprep.subr.mxu0 0.0
        %3644 = vmatpush1.msra.mxu0 %v3590
        %3645 = vmatprep.subr.mxu0 0.0
        %3646 = vmatpush1.msra.mxu0 %v3591
        %3647 = vmatprep.subr.mxu0 0.0
        %3648 = vmatpush1.msra.mxu0 %v3592
        %3649 = vmatprep.subr.mxu0 0.0
        %3650 = vmatpush1.msra.mxu0 %v3593
        %3651 = vmatprep.subr.mxu0 0.0
        %3652 = vmatpush1.msra.mxu0 %v3594
        %3653 = vmatprep.subr.mxu0 0.0
        %3654 = vmatpush1.msra.mxu0 %v3595
        %3655 = vmatprep.subr.mxu0 0.0
        %3656 = vmatpush1.msra.mxu0 %v3596
        %3657 = vmatprep.subr.mxu0 0.0
        %3658 = vmatpush1.msra.mxu0 %v3597
        %3659 = vmatprep.subr.mxu0 0.0
        %3660 = vmatpush1.msra.mxu0 %v3598
        %3661 = vmatprep.subr.mxu0 0.0
        %3662 = vmatpush1.msra.mxu0 %v3599
        %3663 = vmatprep.subr.mxu0 0.0
        %3664 = vmatpush1.msra.mxu0 %v3600
        %3665 = vmatprep.subr.mxu0 0.0
        %3666 = vmatpush1.msra.mxu0 %v3601
        %3667 = vmatprep.subr.mxu0 0.0
        %3668 = vmatpush1.msra.mxu0 %v3602
        %3669 = vmatprep.subr.mxu0 0.0
        %3670 = vmatpush1.msra.mxu0 %v3603
        %3671 = vmatprep.subr.mxu0 0.0
        %3672 = vmatpush1.msra.mxu0 %v3604
        %3673 = vmatprep.subr.mxu0 0.0
        %3674 = vmatpush1.msra.mxu0 %v3605
        %3675 = vmatprep.subr.mxu0 0.0
        %3676 = vmatpush1.msra.mxu0 %v3606
        %3677 = vmatprep.subr.mxu0 0.0
        %3678 = vmatpush1.msra.mxu0 %v3607
        %3679 = vmatprep.subr.mxu0 0.0
        %3680 = vmatpush1.msra.mxu0 %v3608
        %3681 = vmatprep.subr.mxu0 0.0
        %3682 = vmatpush1.msra.mxu0 %v3609
        %3683 = vmatprep.subr.mxu0 0.0
        %3684 = vmatpush1.msra.mxu0 %v3610
        %3685 = vmatprep.subr.mxu0 0.0
        %3686 = vmatpush1.msra.mxu0 %v3611
        %3687 = vmatprep.subr.mxu0 0.0
        %3688 = vmatpush1.msra.mxu0 %v3612
        %3689 = vmatprep.subr.mxu0 0.0
        %3690 = vmatpush1.msra.mxu0 %v3613
        %3691 = vmatprep.subr.mxu0 0.0
        %3692 = vmatpush1.msra.mxu0 %v3614
        %3693 = vmatprep.subr.mxu0 0.0
        %3694 = vmatpush1.msra.mxu0 %v3615
        %3695 = vmatprep.subr.mxu0 0.0
        %3696 = vmatpush1.msra.mxu0 %v3616
        %3697 = vmatprep.subr.mxu0 0.0
        %3698 = vmatpush1.msra.mxu0 %v3617
        %3699 = vmatprep.subr.mxu0 0.0
        %3700 = vmatpush1.msra.mxu0 %v3618
        %3701 = vmatprep.subr.mxu0 0.0
        %3702 = vmatpush1.msra.mxu0 %v3619
        %3703 = vmatprep.mubr.f32.mxu0 %v3630
        %3704 = vmatmul.mubr.f32.gmra.mrb[0].mxu0 %v3629
        %v3705 = vpop.f32.mrb[0].mxu0
        %v3706 = vadd.f32 0.0, %v3705
        %v3707 = vpop.f32.mrb[0].mxu0
        %3708 = vdwg.mxu0
        %3709 = vmatprep.subr.mxu0 0.0
        %3710 = vmatpush1.msra.mxu0 %v3620
        %3711 = vmatprep.subr.mxu0 0.0
        %3712 = vmatpush1.msra.mxu0 %v3621
        %3713 = vmatprep.subr.mxu0 0.0
        %3714 = vmatpush1.msra.mxu0 %v3622
        %3715 = vmatprep.subr.mxu0 0.0
        %3716 = vmatpush1.msra.mxu0 %v3623
        %3717 = vmatprep.subr.mxu0 0.0
        %3718 = vmatpush1.msra.mxu0 %v3624
        %3719 = vmatprep.subr.mxu0 0.0
        %3720 = vmatpush1.msra.mxu0 %v3625
        %3721 = vmatprep.subr.mxu0 0.0
        %3722 = vmatpush1.msra.mxu0 %v3626
        %3723 = vmatprep.subr.mxu0 0.0
        %3724 = vmatpush1.msra.mxu0 %v3627
        %3725 = vmatprep.subr.mxu0 0.0
        %3726 = vmatpush1.msra.mxu0 %v3637
        %3727 = vmatprep.subr.mxu0 0.0
        %3728 = vmatpush1.msra.mxu0 0.0
        %3729 = vmatprep.subr.mxu0 0.0
        %3730 = vmatpush1.msra.mxu0 0.0
        %3731 = vmatprep.subr.mxu0 0.0
        %3732 = vmatpush1.msra.mxu0 0.0
        %3733 = vmatprep.subr.mxu0 0.0
        %3734 = vmatpush1.msra.mxu0 0.0
        %3735 = vmatprep.subr.mxu0 0.0
        %3736 = vmatpush1.msra.mxu0 0.0
        %3737 = vmatprep.subr.mxu0 0.0
        %3738 = vmatpush1.msra.mxu0 0.0
        %3739 = vmatprep.subr.mxu0 0.0
        %3740 = vmatpush1.msra.mxu0 0.0
        %3741 = vmatprep.subr.mxu0 0.0
        %3742 = vmatpush1.msra.mxu0 0.0
        %3743 = vmatprep.subr.mxu0 0.0
        %3744 = vmatpush1.msra.mxu0 0.0
        %3745 = vmatprep.subr.mxu0 0.0
        %3746 = vmatpush1.msra.mxu0 0.0
        %3747 = vmatprep.subr.mxu0 0.0
        %3748 = vmatpush1.msra.mxu0 0.0
        %3749 = vmatprep.subr.mxu0 0.0
        %3750 = vmatpush1.msra.mxu0 0.0
        %3751 = vmatprep.subr.mxu0 0.0
        %3752 = vmatpush1.msra.mxu0 0.0
        %3753 = vmatprep.subr.mxu0 0.0
        %3754 = vmatpush1.msra.mxu0 0.0
        %3755 = vmatprep.subr.mxu0 0.0
        %3756 = vmatpush1.msra.mxu0 0.0
        %3757 = vmatprep.subr.mxu0 0.0
        %3758 = vmatpush1.msra.mxu0 0.0
        %3759 = vmatprep.subr.mxu0 0.0
        %3760 = vmatpush1.msra.mxu0 0.0
        %3761 = vmatprep.subr.mxu0 0.0
        %3762 = vmatpush1.msra.mxu0 0.0
        %3763 = vmatprep.subr.mxu0 0.0
        %3764 = vmatpush1.msra.mxu0 0.0
        %3765 = vmatprep.subr.mxu0 0.0
        %3766 = vmatpush1.msra.mxu0 0.0
        %3767 = vmatprep.subr.mxu0 0.0
        %3768 = vmatpush1.msra.mxu0 0.0
        %3769 = vmatprep.subr.mxu0 0.0
        %3770 = vmatpush1.msra.mxu0 0.0
        %3771 = vmatprep.subr.mxu0 0.0
        %3772 = vmatpush1.msra.mxu0 0.0
        %3773 = vmatprep.mubr.f32.mxu0 0.0
        %3774 = vmatmul.mubr.f32.gmra.mrb[0].mxu0 %v3634
        %v3775 = vpop.f32.mrb[0].mxu0
        %v3776 = vadd.f32 %v3706, %v3775
        %v3777 = vpop.f32.mrb[0].mxu0
        %3778 = vdwg.mxu0
        %v3779 = vadd.f32 %v3586, %v3776
        %s3780 = scalar_lea.vmem %s3, 4592
        %v3781 = vld [vmem:[%s3780] sm:$0xff]
        %v3782 = vld [vmem:[%s3780 + $0x8] sm:$0xff]
        %v3783 = vld [vmem:[%s3780 + $0x10] sm:$0xff]
        %v3784 = vld [vmem:[%s3780 + $0x18] sm:$0xff]
        %v3785 = vld [vmem:[%s3780 + $0x20] sm:$0xff]
        %v3786 = vld [vmem:[%s3780 + $0x28] sm:$0xff]
        %v3787 = vld [vmem:[%s3780 + $0x30] sm:$0xff]
        %v3788 = vld [vmem:[%s3780 + $0x38] sm:$0xff]
        %v3789 = vld [vmem:[%s3780 + $0x40] sm:$0xff]
        %v3790 = vld [vmem:[%s3780 + $0x48] sm:$0xff]
        %v3791 = vld [vmem:[%s3780 + $0x50] sm:$0xff]
        %v3792 = vld [vmem:[%s3780 + $0x58] sm:$0xff]
        %v3793 = vld [vmem:[%s3780 + $0x60] sm:$0xff]
        %v3794 = vld [vmem:[%s3780 + $0x68] sm:$0xff]
        %v3795 = vld [vmem:[%s3780 + $0x70] sm:$0xff]
        %v3796 = vld [vmem:[%s3780 + $0x78] sm:$0xff]
        %v3797 = vld [vmem:[%s3780 + $0x80] sm:$0xff]
        %v3798 = vld [vmem:[%s3780 + $0x88] sm:$0xff]
        %v3799 = vld [vmem:[%s3780 + $0x90] sm:$0xff]
        %v3800 = vld [vmem:[%s3780 + $0x98] sm:$0xff]
        %v3801 = vld [vmem:[%s3780 + $0xa0] sm:$0xff]
        %v3802 = vld [vmem:[%s3780 + $0xa8] sm:$0xff]
        %v3803 = vld [vmem:[%s3780 + $0xb0] sm:$0xff]
        %v3804 = vld [vmem:[%s3780 + $0xb8] sm:$0xff]
        %v3805 = vld [vmem:[%s3780 + $0xc0] sm:$0xff]
        %v3806 = vld [vmem:[%s3780 + $0xc8] sm:$0xff]
        %v3807 = vld [vmem:[%s3780 + $0xd0] sm:$0xff]
        %v3808 = vld [vmem:[%s3780 + $0xd8] sm:$0xff]
        %v3809 = vld [vmem:[%s3780 + $0xe0] sm:$0xff]
        %v3810 = vld [vmem:[%s3780 + $0xe8] sm:$0xff]
        %v3811 = vld [vmem:[%s3780 + $0xf0] sm:$0xff]
        %v3812 = vld [vmem:[%s3780 + $0xf8] sm:$0xff]
        %v3813 = vld [vmem:[%s3780 + $0x100] sm:$0xff]
        %v3814 = vld [vmem:[%s3780 + $0x108] sm:$0xff]
        %v3815 = vld [vmem:[%s3780 + $0x110] sm:$0xff]
        %v3816 = vld [vmem:[%s3780 + $0x118] sm:$0xff]
        %v3817 = vld [vmem:[%s3780 + $0x120] sm:$0xff]
        %v3818 = vld [vmem:[%s3780 + $0x128] sm:$0xff]
        %v3819 = vld [vmem:[%s3780 + $0x130] sm:$0xff]
        %v3820 = vld [vmem:[%s3780 + $0x138] sm:$0xff]
        %v3821 = vld [vmem:[%s3780 + $0x140] sm:$0xf]
        %v3822 = vrot.slane %v1074, 6
        %v3823 = vrot.slane %v1075, 6
        %v3824 = vrot.slane %v1076, 6
        %v3827 = vsel %vm1174, %v3824, 0
        %v3830 = vsel %vm1177, %v3821, 0
        %3832 = vmatprep.subr.mxu0 0.0
        %3833 = vmatpush1.msra.mxu0 %v3781
        %3834 = vmatprep.subr.mxu0 0.0
        %3835 = vmatpush1.msra.mxu0 %v3782
        %3836 = vmatprep.subr.mxu0 0.0
        %3837 = vmatpush1.msra.mxu0 %v3783
        %3838 = vmatprep.subr.mxu0 0.0
        %3839 = vmatpush1.msra.mxu0 %v3784
        %3840 = vmatprep.subr.mxu0 0.0
        %3841 = vmatpush1.msra.mxu0 %v3785
        %3842 = vmatprep.subr.mxu0 0.0
        %3843 = vmatpush1.msra.mxu0 %v3786
        %3844 = vmatprep.subr.mxu0 0.0
        %3845 = vmatpush1.msra.mxu0 %v3787
        %3846 = vmatprep.subr.mxu0 0.0
        %3847 = vmatpush1.msra.mxu0 %v3788
        %3848 = vmatprep.subr.mxu0 0.0
        %3849 = vmatpush1.msra.mxu0 %v3789
        %3850 = vmatprep.subr.mxu0 0.0
        %3851 = vmatpush1.msra.mxu0 %v3790
        %3852 = vmatprep.subr.mxu0 0.0
        %3853 = vmatpush1.msra.mxu0 %v3791
        %3854 = vmatprep.subr.mxu0 0.0
        %3855 = vmatpush1.msra.mxu0 %v3792
        %3856 = vmatprep.subr.mxu0 0.0
        %3857 = vmatpush1.msra.mxu0 %v3793
        %3858 = vmatprep.subr.mxu0 0.0
        %3859 = vmatpush1.msra.mxu0 %v3794
        %3860 = vmatprep.subr.mxu0 0.0
        %3861 = vmatpush1.msra.mxu0 %v3795
        %3862 = vmatprep.subr.mxu0 0.0
        %3863 = vmatpush1.msra.mxu0 %v3796
        %3864 = vmatprep.subr.mxu0 0.0
        %3865 = vmatpush1.msra.mxu0 %v3797
        %3866 = vmatprep.subr.mxu0 0.0
        %3867 = vmatpush1.msra.mxu0 %v3798
        %3868 = vmatprep.subr.mxu0 0.0
        %3869 = vmatpush1.msra.mxu0 %v3799
        %3870 = vmatprep.subr.mxu0 0.0
        %3871 = vmatpush1.msra.mxu0 %v3800
        %3872 = vmatprep.subr.mxu0 0.0
        %3873 = vmatpush1.msra.mxu0 %v3801
        %3874 = vmatprep.subr.mxu0 0.0
        %3875 = vmatpush1.msra.mxu0 %v3802
        %3876 = vmatprep.subr.mxu0 0.0
        %3877 = vmatpush1.msra.mxu0 %v3803
        %3878 = vmatprep.subr.mxu0 0.0
        %3879 = vmatpush1.msra.mxu0 %v3804
        %3880 = vmatprep.subr.mxu0 0.0
        %3881 = vmatpush1.msra.mxu0 %v3805
        %3882 = vmatprep.subr.mxu0 0.0
        %3883 = vmatpush1.msra.mxu0 %v3806
        %3884 = vmatprep.subr.mxu0 0.0
        %3885 = vmatpush1.msra.mxu0 %v3807
        %3886 = vmatprep.subr.mxu0 0.0
        %3887 = vmatpush1.msra.mxu0 %v3808
        %3888 = vmatprep.subr.mxu0 0.0
        %3889 = vmatpush1.msra.mxu0 %v3809
        %3890 = vmatprep.subr.mxu0 0.0
        %3891 = vmatpush1.msra.mxu0 %v3810
        %3892 = vmatprep.subr.mxu0 0.0
        %3893 = vmatpush1.msra.mxu0 %v3811
        %3894 = vmatprep.subr.mxu0 0.0
        %3895 = vmatpush1.msra.mxu0 %v3812
        %3896 = vmatprep.mubr.f32.mxu0 %v3823
        %3897 = vmatmul.mubr.f32.gmra.mrb[0].mxu0 %v3822
        %v3898 = vpop.f32.mrb[0].mxu0
        %v3899 = vadd.f32 0.0, %v3898
        %v3900 = vpop.f32.mrb[0].mxu0
        %3901 = vdwg.mxu0
        %3902 = vmatprep.subr.mxu0 0.0
        %3903 = vmatpush1.msra.mxu0 %v3813
        %3904 = vmatprep.subr.mxu0 0.0
        %3905 = vmatpush1.msra.mxu0 %v3814
        %3906 = vmatprep.subr.mxu0 0.0
        %3907 = vmatpush1.msra.mxu0 %v3815
        %3908 = vmatprep.subr.mxu0 0.0
        %3909 = vmatpush1.msra.mxu0 %v3816
        %3910 = vmatprep.subr.mxu0 0.0
        %3911 = vmatpush1.msra.mxu0 %v3817
        %3912 = vmatprep.subr.mxu0 0.0
        %3913 = vmatpush1.msra.mxu0 %v3818
        %3914 = vmatprep.subr.mxu0 0.0
        %3915 = vmatpush1.msra.mxu0 %v3819
        %3916 = vmatprep.subr.mxu0 0.0
        %3917 = vmatpush1.msra.mxu0 %v3820
        %3918 = vmatprep.subr.mxu0 0.0
        %3919 = vmatpush1.msra.mxu0 %v3830
        %3920 = vmatprep.subr.mxu0 0.0
        %3921 = vmatpush1.msra.mxu0 0.0
        %3922 = vmatprep.subr.mxu0 0.0
        %3923 = vmatpush1.msra.mxu0 0.0
        %3924 = vmatprep.subr.mxu0 0.0
        %3925 = vmatpush1.msra.mxu0 0.0
        %3926 = vmatprep.subr.mxu0 0.0
        %3927 = vmatpush1.msra.mxu0 0.0
        %3928 = vmatprep.subr.mxu0 0.0
        %3929 = vmatpush1.msra.mxu0 0.0
        %3930 = vmatprep.subr.mxu0 0.0
        %3931 = vmatpush1.msra.mxu0 0.0
        %3932 = vmatprep.subr.mxu0 0.0
        %3933 = vmatpush1.msra.mxu0 0.0
        %3934 = vmatprep.subr.mxu0 0.0
        %3935 = vmatpush1.msra.mxu0 0.0
        %3936 = vmatprep.subr.mxu0 0.0
        %3937 = vmatpush1.msra.mxu0 0.0
        %3938 = vmatprep.subr.mxu0 0.0
        %3939 = vmatpush1.msra.mxu0 0.0
        %3940 = vmatprep.subr.mxu0 0.0
        %3941 = vmatpush1.msra.mxu0 0.0
        %3942 = vmatprep.subr.mxu0 0.0
        %3943 = vmatpush1.msra.mxu0 0.0
        %3944 = vmatprep.subr.mxu0 0.0
        %3945 = vmatpush1.msra.mxu0 0.0
        %3946 = vmatprep.subr.mxu0 0.0
        %3947 = vmatpush1.msra.mxu0 0.0
        %3948 = vmatprep.subr.mxu0 0.0
        %3949 = vmatpush1.msra.mxu0 0.0
        %3950 = vmatprep.subr.mxu0 0.0
        %3951 = vmatpush1.msra.mxu0 0.0
        %3952 = vmatprep.subr.mxu0 0.0
        %3953 = vmatpush1.msra.mxu0 0.0
        %3954 = vmatprep.subr.mxu0 0.0
        %3955 = vmatpush1.msra.mxu0 0.0
        %3956 = vmatprep.subr.mxu0 0.0
        %3957 = vmatpush1.msra.mxu0 0.0
        %3958 = vmatprep.subr.mxu0 0.0
        %3959 = vmatpush1.msra.mxu0 0.0
        %3960 = vmatprep.subr.mxu0 0.0
        %3961 = vmatpush1.msra.mxu0 0.0
        %3962 = vmatprep.subr.mxu0 0.0
        %3963 = vmatpush1.msra.mxu0 0.0
        %3964 = vmatprep.subr.mxu0 0.0
        %3965 = vmatpush1.msra.mxu0 0.0
        %3966 = vmatprep.mubr.f32.mxu0 0.0
        %3967 = vmatmul.mubr.f32.gmra.mrb[0].mxu0 %v3827
        %v3968 = vpop.f32.mrb[0].mxu0
        %v3969 = vadd.f32 %v3899, %v3968
        %v3970 = vpop.f32.mrb[0].mxu0
        %3971 = vdwg.mxu0
        %v3972 = vadd.f32 %v3779, %v3969
        %s3973 = scalar_lea.vmem %s3, 4920
        %v3974 = vld [vmem:[%s3973] sm:$0xff]
        %v3975 = vld [vmem:[%s3973 + $0x8] sm:$0xff]
        %v3976 = vld [vmem:[%s3973 + $0x10] sm:$0xff]
        %v3977 = vld [vmem:[%s3973 + $0x18] sm:$0xff]
        %v3978 = vld [vmem:[%s3973 + $0x20] sm:$0xff]
        %v3979 = vld [vmem:[%s3973 + $0x28] sm:$0xff]
        %v3980 = vld [vmem:[%s3973 + $0x30] sm:$0xff]
        %v3981 = vld [vmem:[%s3973 + $0x38] sm:$0xff]
        %v3982 = vld [vmem:[%s3973 + $0x40] sm:$0xff]
        %v3983 = vld [vmem:[%s3973 + $0x48] sm:$0xff]
        %v3984 = vld [vmem:[%s3973 + $0x50] sm:$0xff]
        %v3985 = vld [vmem:[%s3973 + $0x58] sm:$0xff]
        %v3986 = vld [vmem:[%s3973 + $0x60] sm:$0xff]
        %v3987 = vld [vmem:[%s3973 + $0x68] sm:$0xff]
        %v3988 = vld [vmem:[%s3973 + $0x70] sm:$0xff]
        %v3989 = vld [vmem:[%s3973 + $0x78] sm:$0xff]
        %v3990 = vld [vmem:[%s3973 + $0x80] sm:$0xff]
        %v3991 = vld [vmem:[%s3973 + $0x88] sm:$0xff]
        %v3992 = vld [vmem:[%s3973 + $0x90] sm:$0xff]
        %v3993 = vld [vmem:[%s3973 + $0x98] sm:$0xff]
        %v3994 = vld [vmem:[%s3973 + $0xa0] sm:$0xff]
        %v3995 = vld [vmem:[%s3973 + $0xa8] sm:$0xff]
        %v3996 = vld [vmem:[%s3973 + $0xb0] sm:$0xff]
        %v3997 = vld [vmem:[%s3973 + $0xb8] sm:$0xff]
        %v3998 = vld [vmem:[%s3973 + $0xc0] sm:$0xff]
        %v3999 = vld [vmem:[%s3973 + $0xc8] sm:$0xff]
        %v4000 = vld [vmem:[%s3973 + $0xd0] sm:$0xff]
        %v4001 = vld [vmem:[%s3973 + $0xd8] sm:$0xff]
        %v4002 = vld [vmem:[%s3973 + $0xe0] sm:$0xff]
        %v4003 = vld [vmem:[%s3973 + $0xe8] sm:$0xff]
        %v4004 = vld [vmem:[%s3973 + $0xf0] sm:$0xff]
        %v4005 = vld [vmem:[%s3973 + $0xf8] sm:$0xff]
        %v4006 = vld [vmem:[%s3973 + $0x100] sm:$0xff]
        %v4007 = vld [vmem:[%s3973 + $0x108] sm:$0xff]
        %v4008 = vld [vmem:[%s3973 + $0x110] sm:$0xff]
        %v4009 = vld [vmem:[%s3973 + $0x118] sm:$0xff]
        %v4010 = vld [vmem:[%s3973 + $0x120] sm:$0xff]
        %v4011 = vld [vmem:[%s3973 + $0x128] sm:$0xff]
        %v4012 = vld [vmem:[%s3973 + $0x130] sm:$0xff]
        %v4013 = vld [vmem:[%s3973 + $0x138] sm:$0xff]
        %v4014 = vld [vmem:[%s3973 + $0x140] sm:$0xf]
        %v4015 = vrot.slane %v1074, 7
        %v4016 = vrot.slane %v1075, 7
        %v4017 = vrot.slane %v1076, 7
        %v4020 = vsel %vm1174, %v4017, 0
        %v4023 = vsel %vm1177, %v4014, 0
        %4025 = vmatprep.subr.mxu0 0.0
        %4026 = vmatpush1.msra.mxu0 %v3974
        %4027 = vmatprep.subr.mxu0 0.0
        %4028 = vmatpush1.msra.mxu0 %v3975
        %4029 = vmatprep.subr.mxu0 0.0
        %4030 = vmatpush1.msra.mxu0 %v3976
        %4031 = vmatprep.subr.mxu0 0.0
        %4032 = vmatpush1.msra.mxu0 %v3977
        %4033 = vmatprep.subr.mxu0 0.0
        %4034 = vmatpush1.msra.mxu0 %v3978
        %4035 = vmatprep.subr.mxu0 0.0
        %4036 = vmatpush1.msra.mxu0 %v3979
        %4037 = vmatprep.subr.mxu0 0.0
        %4038 = vmatpush1.msra.mxu0 %v3980
        %4039 = vmatprep.subr.mxu0 0.0
        %4040 = vmatpush1.msra.mxu0 %v3981
        %4041 = vmatprep.subr.mxu0 0.0
        %4042 = vmatpush1.msra.mxu0 %v3982
        %4043 = vmatprep.subr.mxu0 0.0
        %4044 = vmatpush1.msra.mxu0 %v3983
        %4045 = vmatprep.subr.mxu0 0.0
        %4046 = vmatpush1.msra.mxu0 %v3984
        %4047 = vmatprep.subr.mxu0 0.0
        %4048 = vmatpush1.msra.mxu0 %v3985
        %4049 = vmatprep.subr.mxu0 0.0
        %4050 = vmatpush1.msra.mxu0 %v3986
        %4051 = vmatprep.subr.mxu0 0.0
        %4052 = vmatpush1.msra.mxu0 %v3987
        %4053 = vmatprep.subr.mxu0 0.0
        %4054 = vmatpush1.msra.mxu0 %v3988
        %4055 = vmatprep.subr.mxu0 0.0
        %4056 = vmatpush1.msra.mxu0 %v3989
        %4057 = vmatprep.subr.mxu0 0.0
        %4058 = vmatpush1.msra.mxu0 %v3990
        %4059 = vmatprep.subr.mxu0 0.0
        %4060 = vmatpush1.msra.mxu0 %v3991
        %4061 = vmatprep.subr.mxu0 0.0
        %4062 = vmatpush1.msra.mxu0 %v3992
        %4063 = vmatprep.subr.mxu0 0.0
        %4064 = vmatpush1.msra.mxu0 %v3993
        %4065 = vmatprep.subr.mxu0 0.0
        %4066 = vmatpush1.msra.mxu0 %v3994
        %4067 = vmatprep.subr.mxu0 0.0
        %4068 = vmatpush1.msra.mxu0 %v3995
        %4069 = vmatprep.subr.mxu0 0.0
        %4070 = vmatpush1.msra.mxu0 %v3996
        %4071 = vmatprep.subr.mxu0 0.0
        %4072 = vmatpush1.msra.mxu0 %v3997
        %4073 = vmatprep.subr.mxu0 0.0
        %4074 = vmatpush1.msra.mxu0 %v3998
        %4075 = vmatprep.subr.mxu0 0.0
        %4076 = vmatpush1.msra.mxu0 %v3999
        %4077 = vmatprep.subr.mxu0 0.0
        %4078 = vmatpush1.msra.mxu0 %v4000
        %4079 = vmatprep.subr.mxu0 0.0
        %4080 = vmatpush1.msra.mxu0 %v4001
        %4081 = vmatprep.subr.mxu0 0.0
        %4082 = vmatpush1.msra.mxu0 %v4002
        %4083 = vmatprep.subr.mxu0 0.0
        %4084 = vmatpush1.msra.mxu0 %v4003
        %4085 = vmatprep.subr.mxu0 0.0
        %4086 = vmatpush1.msra.mxu0 %v4004
        %4087 = vmatprep.subr.mxu0 0.0
        %4088 = vmatpush1.msra.mxu0 %v4005
        %4089 = vmatprep.mubr.f32.mxu0 %v4016
        %4090 = vmatmul.mubr.f32.gmra.mrb[0].mxu0 %v4015
        %v4091 = vpop.f32.mrb[0].mxu0
        %v4092 = vadd.f32 0.0, %v4091
        %v4093 = vpop.f32.mrb[0].mxu0
        %4094 = vdwg.mxu0
        %4095 = vmatprep.subr.mxu0 0.0
        %4096 = vmatpush1.msra.mxu0 %v4006
        %4097 = vmatprep.subr.mxu0 0.0
        %4098 = vmatpush1.msra.mxu0 %v4007
        %4099 = vmatprep.subr.mxu0 0.0
        %4100 = vmatpush1.msra.mxu0 %v4008
        %4101 = vmatprep.subr.mxu0 0.0
        %4102 = vmatpush1.msra.mxu0 %v4009
        %4103 = vmatprep.subr.mxu0 0.0
        %4104 = vmatpush1.msra.mxu0 %v4010
        %4105 = vmatprep.subr.mxu0 0.0
        %4106 = vmatpush1.msra.mxu0 %v4011
        %4107 = vmatprep.subr.mxu0 0.0
        %4108 = vmatpush1.msra.mxu0 %v4012
        %4109 = vmatprep.subr.mxu0 0.0
        %4110 = vmatpush1.msra.mxu0 %v4013
        %4111 = vmatprep.subr.mxu0 0.0
        %4112 = vmatpush1.msra.mxu0 %v4023
        %4113 = vmatprep.subr.mxu0 0.0
        %4114 = vmatpush1.msra.mxu0 0.0
        %4115 = vmatprep.subr.mxu0 0.0
        %4116 = vmatpush1.msra.mxu0 0.0
        %4117 = vmatprep.subr.mxu0 0.0
        %4118 = vmatpush1.msra.mxu0 0.0
        %4119 = vmatprep.subr.mxu0 0.0
        %4120 = vmatpush1.msra.mxu0 0.0
        %4121 = vmatprep.subr.mxu0 0.0
        %4122 = vmatpush1.msra.mxu0 0.0
        %4123 = vmatprep.subr.mxu0 0.0
        %4124 = vmatpush1.msra.mxu0 0.0
        %4125 = vmatprep.subr.mxu0 0.0
        %4126 = vmatpush1.msra.mxu0 0.0
        %4127 = vmatprep.subr.mxu0 0.0
        %4128 = vmatpush1.msra.mxu0 0.0
        %4129 = vmatprep.subr.mxu0 0.0
        %4130 = vmatpush1.msra.mxu0 0.0
        %4131 = vmatprep.subr.mxu0 0.0
        %4132 = vmatpush1.msra.mxu0 0.0
        %4133 = vmatprep.subr.mxu0 0.0
        %4134 = vmatpush1.msra.mxu0 0.0
        %4135 = vmatprep.subr.mxu0 0.0
        %4136 = vmatpush1.msra.mxu0 0.0
        %4137 = vmatprep.subr.mxu0 0.0
        %4138 = vmatpush1.msra.mxu0 0.0
        %4139 = vmatprep.subr.mxu0 0.0
        %4140 = vmatpush1.msra.mxu0 0.0
        %4141 = vmatprep.subr.mxu0 0.0
        %4142 = vmatpush1.msra.mxu0 0.0
        %4143 = vmatprep.subr.mxu0 0.0
        %4144 = vmatpush1.msra.mxu0 0.0
        %4145 = vmatprep.subr.mxu0 0.0
        %4146 = vmatpush1.msra.mxu0 0.0
        %4147 = vmatprep.subr.mxu0 0.0
        %4148 = vmatpush1.msra.mxu0 0.0
        %4149 = vmatprep.subr.mxu0 0.0
        %4150 = vmatpush1.msra.mxu0 0.0
        %4151 = vmatprep.subr.mxu0 0.0
        %4152 = vmatpush1.msra.mxu0 0.0
        %4153 = vmatprep.subr.mxu0 0.0
        %4154 = vmatpush1.msra.mxu0 0.0
        %4155 = vmatprep.subr.mxu0 0.0
        %4156 = vmatpush1.msra.mxu0 0.0
        %4157 = vmatprep.subr.mxu0 0.0
        %4158 = vmatpush1.msra.mxu0 0.0
        %4159 = vmatprep.mubr.f32.mxu0 0.0
        %4160 = vmatmul.mubr.f32.gmra.mrb[0].mxu0 %v4020
        %v4161 = vpop.f32.mrb[0].mxu0
        %v4162 = vadd.f32 %v4092, %v4161
        %v4163 = vpop.f32.mrb[0].mxu0
        %4164 = vdwg.mxu0
        %v4165 = vadd.f32 %v3972, %v4162
        %s4166 = scalar_lea.vmem %s3, 5248
        %v4167 = vld [vmem:[%s4166] sm:$0xff]
        %v4168 = vld [vmem:[%s4166 + $0x8] sm:$0xff]
        %v4169 = vld [vmem:[%s4166 + $0x10] sm:$0xff]
        %v4170 = vld [vmem:[%s4166 + $0x18] sm:$0xff]
        %v4171 = vld [vmem:[%s4166 + $0x20] sm:$0xff]
        %v4172 = vld [vmem:[%s4166 + $0x28] sm:$0xff]
        %v4173 = vld [vmem:[%s4166 + $0x30] sm:$0xff]
        %v4174 = vld [vmem:[%s4166 + $0x38] sm:$0xff]
        %v4175 = vld [vmem:[%s4166 + $0x40] sm:$0xff]
        %v4176 = vld [vmem:[%s4166 + $0x48] sm:$0xff]
        %v4177 = vld [vmem:[%s4166 + $0x50] sm:$0xff]
        %v4178 = vld [vmem:[%s4166 + $0x58] sm:$0xff]
        %v4179 = vld [vmem:[%s4166 + $0x60] sm:$0xff]
        %v4180 = vld [vmem:[%s4166 + $0x68] sm:$0xff]
        %v4181 = vld [vmem:[%s4166 + $0x70] sm:$0xff]
        %v4182 = vld [vmem:[%s4166 + $0x78] sm:$0xff]
        %v4183 = vld [vmem:[%s4166 + $0x80] sm:$0xff]
        %v4184 = vld [vmem:[%s4166 + $0x88] sm:$0xff]
        %v4185 = vld [vmem:[%s4166 + $0x90] sm:$0xff]
        %v4186 = vld [vmem:[%s4166 + $0x98] sm:$0xff]
        %v4187 = vld [vmem:[%s4166 + $0xa0] sm:$0xff]
        %v4188 = vld [vmem:[%s4166 + $0xa8] sm:$0xff]
        %v4189 = vld [vmem:[%s4166 + $0xb0] sm:$0xff]
        %v4190 = vld [vmem:[%s4166 + $0xb8] sm:$0xff]
        %v4191 = vld [vmem:[%s4166 + $0xc0] sm:$0xff]
        %v4192 = vld [vmem:[%s4166 + $0xc8] sm:$0xff]
        %v4193 = vld [vmem:[%s4166 + $0xd0] sm:$0xff]
        %v4194 = vld [vmem:[%s4166 + $0xd8] sm:$0xff]
        %v4195 = vld [vmem:[%s4166 + $0xe0] sm:$0xff]
        %v4196 = vld [vmem:[%s4166 + $0xe8] sm:$0xff]
        %v4197 = vld [vmem:[%s4166 + $0xf0] sm:$0xff]
        %v4198 = vld [vmem:[%s4166 + $0xf8] sm:$0xff]
        %v4199 = vld [vmem:[%s4166 + $0x100] sm:$0xff]
        %v4200 = vld [vmem:[%s4166 + $0x108] sm:$0xff]
        %v4201 = vld [vmem:[%s4166 + $0x110] sm:$0xff]
        %v4202 = vld [vmem:[%s4166 + $0x118] sm:$0xff]
        %v4203 = vld [vmem:[%s4166 + $0x120] sm:$0xff]
        %v4204 = vld [vmem:[%s4166 + $0x128] sm:$0xff]
        %v4205 = vld [vmem:[%s4166 + $0x130] sm:$0xff]
        %v4206 = vld [vmem:[%s4166 + $0x138] sm:$0xff]
        %v4207 = vld [vmem:[%s4166 + $0x140] sm:$0xf]
        %v4209 = vsel %vm1174, %v1079, 0
        %v4212 = vsel %vm1177, %v4207, 0
        %4214 = vmatprep.subr.mxu0 0.0
        %4215 = vmatpush1.msra.mxu0 %v4167
        %4216 = vmatprep.subr.mxu0 0.0
        %4217 = vmatpush1.msra.mxu0 %v4168
        %4218 = vmatprep.subr.mxu0 0.0
        %4219 = vmatpush1.msra.mxu0 %v4169
        %4220 = vmatprep.subr.mxu0 0.0
        %4221 = vmatpush1.msra.mxu0 %v4170
        %4222 = vmatprep.subr.mxu0 0.0
        %4223 = vmatpush1.msra.mxu0 %v4171
        %4224 = vmatprep.subr.mxu0 0.0
        %4225 = vmatpush1.msra.mxu0 %v4172
        %4226 = vmatprep.subr.mxu0 0.0
        %4227 = vmatpush1.msra.mxu0 %v4173
        %4228 = vmatprep.subr.mxu0 0.0
        %4229 = vmatpush1.msra.mxu0 %v4174
        %4230 = vmatprep.subr.mxu0 0.0
        %4231 = vmatpush1.msra.mxu0 %v4175
        %4232 = vmatprep.subr.mxu0 0.0
        %4233 = vmatpush1.msra.mxu0 %v4176
        %4234 = vmatprep.subr.mxu0 0.0
        %4235 = vmatpush1.msra.mxu0 %v4177
        %4236 = vmatprep.subr.mxu0 0.0
        %4237 = vmatpush1.msra.mxu0 %v4178
        %4238 = vmatprep.subr.mxu0 0.0
        %4239 = vmatpush1.msra.mxu0 %v4179
        %4240 = vmatprep.subr.mxu0 0.0
        %4241 = vmatpush1.msra.mxu0 %v4180
        %4242 = vmatprep.subr.mxu0 0.0
        %4243 = vmatpush1.msra.mxu0 %v4181
        %4244 = vmatprep.subr.mxu0 0.0
        %4245 = vmatpush1.msra.mxu0 %v4182
        %4246 = vmatprep.subr.mxu0 0.0
        %4247 = vmatpush1.msra.mxu0 %v4183
        %4248 = vmatprep.subr.mxu0 0.0
        %4249 = vmatpush1.msra.mxu0 %v4184
        %4250 = vmatprep.subr.mxu0 0.0
        %4251 = vmatpush1.msra.mxu0 %v4185
        %4252 = vmatprep.subr.mxu0 0.0
        %4253 = vmatpush1.msra.mxu0 %v4186
        %4254 = vmatprep.subr.mxu0 0.0
        %4255 = vmatpush1.msra.mxu0 %v4187
        %4256 = vmatprep.subr.mxu0 0.0
        %4257 = vmatpush1.msra.mxu0 %v4188
        %4258 = vmatprep.subr.mxu0 0.0
        %4259 = vmatpush1.msra.mxu0 %v4189
        %4260 = vmatprep.subr.mxu0 0.0
        %4261 = vmatpush1.msra.mxu0 %v4190
        %4262 = vmatprep.subr.mxu0 0.0
        %4263 = vmatpush1.msra.mxu0 %v4191
        %4264 = vmatprep.subr.mxu0 0.0
        %4265 = vmatpush1.msra.mxu0 %v4192
        %4266 = vmatprep.subr.mxu0 0.0
        %4267 = vmatpush1.msra.mxu0 %v4193
        %4268 = vmatprep.subr.mxu0 0.0
        %4269 = vmatpush1.msra.mxu0 %v4194
        %4270 = vmatprep.subr.mxu0 0.0
        %4271 = vmatpush1.msra.mxu0 %v4195
        %4272 = vmatprep.subr.mxu0 0.0
        %4273 = vmatpush1.msra.mxu0 %v4196
        %4274 = vmatprep.subr.mxu0 0.0
        %4275 = vmatpush1.msra.mxu0 %v4197
        %4276 = vmatprep.subr.mxu0 0.0
        %4277 = vmatpush1.msra.mxu0 %v4198
        %4278 = vmatprep.mubr.f32.mxu0 %v1078
        %4279 = vmatmul.mubr.f32.gmra.mrb[0].mxu0 %v1077
        %v4280 = vpop.f32.mrb[0].mxu0
        %v4281 = vadd.f32 0.0, %v4280
        %v4282 = vpop.f32.mrb[0].mxu0
        %4283 = vdwg.mxu0
        %4284 = vmatprep.subr.mxu0 0.0
        %4285 = vmatpush1.msra.mxu0 %v4199
        %4286 = vmatprep.subr.mxu0 0.0
        %4287 = vmatpush1.msra.mxu0 %v4200
        %4288 = vmatprep.subr.mxu0 0.0
        %4289 = vmatpush1.msra.mxu0 %v4201
        %4290 = vmatprep.subr.mxu0 0.0
        %4291 = vmatpush1.msra.mxu0 %v4202
        %4292 = vmatprep.subr.mxu0 0.0
        %4293 = vmatpush1.msra.mxu0 %v4203
        %4294 = vmatprep.subr.mxu0 0.0
        %4295 = vmatpush1.msra.mxu0 %v4204
        %4296 = vmatprep.subr.mxu0 0.0
        %4297 = vmatpush1.msra.mxu0 %v4205
        %4298 = vmatprep.subr.mxu0 0.0
        %4299 = vmatpush1.msra.mxu0 %v4206
        %4300 = vmatprep.subr.mxu0 0.0
        %4301 = vmatpush1.msra.mxu0 %v4212
        %4302 = vmatprep.subr.mxu0 0.0
        %4303 = vmatpush1.msra.mxu0 0.0
        %4304 = vmatprep.subr.mxu0 0.0
        %4305 = vmatpush1.msra.mxu0 0.0
        %4306 = vmatprep.subr.mxu0 0.0
        %4307 = vmatpush1.msra.mxu0 0.0
        %4308 = vmatprep.subr.mxu0 0.0
        %4309 = vmatpush1.msra.mxu0 0.0
        %4310 = vmatprep.subr.mxu0 0.0
        %4311 = vmatpush1.msra.mxu0 0.0
        %4312 = vmatprep.subr.mxu0 0.0
        %4313 = vmatpush1.msra.mxu0 0.0
        %4314 = vmatprep.subr.mxu0 0.0
        %4315 = vmatpush1.msra.mxu0 0.0
        %4316 = vmatprep.subr.mxu0 0.0
        %4317 = vmatpush1.msra.mxu0 0.0
        %4318 = vmatprep.subr.mxu0 0.0
        %4319 = vmatpush1.msra.mxu0 0.0
        %4320 = vmatprep.subr.mxu0 0.0
        %4321 = vmatpush1.msra.mxu0 0.0
        %4322 = vmatprep.subr.mxu0 0.0
        %4323 = vmatpush1.msra.mxu0 0.0
        %4324 = vmatprep.subr.mxu0 0.0
        %4325 = vmatpush1.msra.mxu0 0.0
        %4326 = vmatprep.subr.mxu0 0.0
        %4327 = vmatpush1.msra.mxu0 0.0
        %4328 = vmatprep.subr.mxu0 0.0
        %4329 = vmatpush1.msra.mxu0 0.0
        %4330 = vmatprep.subr.mxu0 0.0
        %4331 = vmatpush1.msra.mxu0 0.0
        %4332 = vmatprep.subr.mxu0 0.0
        %4333 = vmatpush1.msra.mxu0 0.0
        %4334 = vmatprep.subr.mxu0 0.0
        %4335 = vmatpush1.msra.mxu0 0.0
        %4336 = vmatprep.subr.mxu0 0.0
        %4337 = vmatpush1.msra.mxu0 0.0
        %4338 = vmatprep.subr.mxu0 0.0
        %4339 = vmatpush1.msra.mxu0 0.0
        %4340 = vmatprep.subr.mxu0 0.0
        %4341 = vmatpush1.msra.mxu0 0.0
        %4342 = vmatprep.subr.mxu0 0.0
        %4343 = vmatpush1.msra.mxu0 0.0
        %4344 = vmatprep.subr.mxu0 0.0
        %4345 = vmatpush1.msra.mxu0 0.0
        %4346 = vmatprep.subr.mxu0 0.0
        %4347 = vmatpush1.msra.mxu0 0.0
        %4348 = vmatprep.mubr.f32.mxu0 0.0
        %4349 = vmatmul.mubr.f32.gmra.mrb[0].mxu0 %v4209
        %v4350 = vpop.f32.mrb[0].mxu0
        %v4351 = vadd.f32 %v4281, %v4350
        %v4352 = vpop.f32.mrb[0].mxu0
        %4353 = vdwg.mxu0
        %v4354 = vadd.f32 %v4165, %v4351
        %s4355 = scalar_lea.vmem %s3, 5576
        %v4356 = vld [vmem:[%s4355] sm:$0xff]
        %v4357 = vld [vmem:[%s4355 + $0x8] sm:$0xff]
        %v4358 = vld [vmem:[%s4355 + $0x10] sm:$0xff]
        %v4359 = vld [vmem:[%s4355 + $0x18] sm:$0xff]
        %v4360 = vld [vmem:[%s4355 + $0x20] sm:$0xff]
        %v4361 = vld [vmem:[%s4355 + $0x28] sm:$0xff]
        %v4362 = vld [vmem:[%s4355 + $0x30] sm:$0xff]
        %v4363 = vld [vmem:[%s4355 + $0x38] sm:$0xff]
        %v4364 = vld [vmem:[%s4355 + $0x40] sm:$0xff]
        %v4365 = vld [vmem:[%s4355 + $0x48] sm:$0xff]
        %v4366 = vld [vmem:[%s4355 + $0x50] sm:$0xff]
        %v4367 = vld [vmem:[%s4355 + $0x58] sm:$0xff]
        %v4368 = vld [vmem:[%s4355 + $0x60] sm:$0xff]
        %v4369 = vld [vmem:[%s4355 + $0x68] sm:$0xff]
        %v4370 = vld [vmem:[%s4355 + $0x70] sm:$0xff]
        %v4371 = vld [vmem:[%s4355 + $0x78] sm:$0xff]
        %v4372 = vld [vmem:[%s4355 + $0x80] sm:$0xff]
        %v4373 = vld [vmem:[%s4355 + $0x88] sm:$0xff]
        %v4374 = vld [vmem:[%s4355 + $0x90] sm:$0xff]
        %v4375 = vld [vmem:[%s4355 + $0x98] sm:$0xff]
        %v4376 = vld [vmem:[%s4355 + $0xa0] sm:$0xff]
        %v4377 = vld [vmem:[%s4355 + $0xa8] sm:$0xff]
        %v4378 = vld [vmem:[%s4355 + $0xb0] sm:$0xff]
        %v4379 = vld [vmem:[%s4355 + $0xb8] sm:$0xff]
        %v4380 = vld [vmem:[%s4355 + $0xc0] sm:$0xff]
        %v4381 = vld [vmem:[%s4355 + $0xc8] sm:$0xff]
        %v4382 = vld [vmem:[%s4355 + $0xd0] sm:$0xff]
        %v4383 = vld [vmem:[%s4355 + $0xd8] sm:$0xff]
        %v4384 = vld [vmem:[%s4355 + $0xe0] sm:$0xff]
        %v4385 = vld [vmem:[%s4355 + $0xe8] sm:$0xff]
        %v4386 = vld [vmem:[%s4355 + $0xf0] sm:$0xff]
        %v4387 = vld [vmem:[%s4355 + $0xf8] sm:$0xff]
        %v4388 = vld [vmem:[%s4355 + $0x100] sm:$0xff]
        %v4389 = vld [vmem:[%s4355 + $0x108] sm:$0xff]
        %v4390 = vld [vmem:[%s4355 + $0x110] sm:$0xff]
        %v4391 = vld [vmem:[%s4355 + $0x118] sm:$0xff]
        %v4392 = vld [vmem:[%s4355 + $0x120] sm:$0xff]
        %v4393 = vld [vmem:[%s4355 + $0x128] sm:$0xff]
        %v4394 = vld [vmem:[%s4355 + $0x130] sm:$0xff]
        %v4395 = vld [vmem:[%s4355 + $0x138] sm:$0xff]
        %v4396 = vld [vmem:[%s4355 + $0x140] sm:$0xf]
        %v4399 = vrot.slane %v1077, 1
        %v4400 = vrot.slane %v1078, 1
        %v4401 = vrot.slane %v1079, 1
        %v4404 = vsel %vm1174, %v4401, 0
        %v4407 = vsel %vm1177, %v4396, 0
        %4409 = vmatprep.subr.mxu0 0.0
        %4410 = vmatpush1.msra.mxu0 %v4356
        %4411 = vmatprep.subr.mxu0 0.0
        %4412 = vmatpush1.msra.mxu0 %v4357
        %4413 = vmatprep.subr.mxu0 0.0
        %4414 = vmatpush1.msra.mxu0 %v4358
        %4415 = vmatprep.subr.mxu0 0.0
        %4416 = vmatpush1.msra.mxu0 %v4359
        %4417 = vmatprep.subr.mxu0 0.0
        %4418 = vmatpush1.msra.mxu0 %v4360
        %4419 = vmatprep.subr.mxu0 0.0
        %4420 = vmatpush1.msra.mxu0 %v4361
        %4421 = vmatprep.subr.mxu0 0.0
        %4422 = vmatpush1.msra.mxu0 %v4362
        %4423 = vmatprep.subr.mxu0 0.0
        %4424 = vmatpush1.msra.mxu0 %v4363
        %4425 = vmatprep.subr.mxu0 0.0
        %4426 = vmatpush1.msra.mxu0 %v4364
        %4427 = vmatprep.subr.mxu0 0.0
        %4428 = vmatpush1.msra.mxu0 %v4365
        %4429 = vmatprep.subr.mxu0 0.0
        %4430 = vmatpush1.msra.mxu0 %v4366
        %4431 = vmatprep.subr.mxu0 0.0
        %4432 = vmatpush1.msra.mxu0 %v4367
        %4433 = vmatprep.subr.mxu0 0.0
        %4434 = vmatpush1.msra.mxu0 %v4368
        %4435 = vmatprep.subr.mxu0 0.0
        %4436 = vmatpush1.msra.mxu0 %v4369
        %4437 = vmatprep.subr.mxu0 0.0
        %4438 = vmatpush1.msra.mxu0 %v4370
        %4439 = vmatprep.subr.mxu0 0.0
        %4440 = vmatpush1.msra.mxu0 %v4371
        %4441 = vmatprep.subr.mxu0 0.0
        %4442 = vmatpush1.msra.mxu0 %v4372
        %4443 = vmatprep.subr.mxu0 0.0
        %4444 = vmatpush1.msra.mxu0 %v4373
        %4445 = vmatprep.subr.mxu0 0.0
        %4446 = vmatpush1.msra.mxu0 %v4374
        %4447 = vmatprep.subr.mxu0 0.0
        %4448 = vmatpush1.msra.mxu0 %v4375
        %4449 = vmatprep.subr.mxu0 0.0
        %4450 = vmatpush1.msra.mxu0 %v4376
        %4451 = vmatprep.subr.mxu0 0.0
        %4452 = vmatpush1.msra.mxu0 %v4377
        %4453 = vmatprep.subr.mxu0 0.0
        %4454 = vmatpush1.msra.mxu0 %v4378
        %4455 = vmatprep.subr.mxu0 0.0
        %4456 = vmatpush1.msra.mxu0 %v4379
        %4457 = vmatprep.subr.mxu0 0.0
        %4458 = vmatpush1.msra.mxu0 %v4380
        %4459 = vmatprep.subr.mxu0 0.0
        %4460 = vmatpush1.msra.mxu0 %v4381
        %4461 = vmatprep.subr.mxu0 0.0
        %4462 = vmatpush1.msra.mxu0 %v4382
        %4463 = vmatprep.subr.mxu0 0.0
        %4464 = vmatpush1.msra.mxu0 %v4383
        %4465 = vmatprep.subr.mxu0 0.0
        %4466 = vmatpush1.msra.mxu0 %v4384
        %4467 = vmatprep.subr.mxu0 0.0
        %4468 = vmatpush1.msra.mxu0 %v4385
        %4469 = vmatprep.subr.mxu0 0.0
        %4470 = vmatpush1.msra.mxu0 %v4386
        %4471 = vmatprep.subr.mxu0 0.0
        %4472 = vmatpush1.msra.mxu0 %v4387
        %4473 = vmatprep.mubr.f32.mxu0 %v4400
        %4474 = vmatmul.mubr.f32.gmra.mrb[0].mxu0 %v4399
        %v4475 = vpop.f32.mrb[0].mxu0
        %v4476 = vadd.f32 0.0, %v4475
        %v4477 = vpop.f32.mrb[0].mxu0
        %4478 = vdwg.mxu0
        %4479 = vmatprep.subr.mxu0 0.0
        %4480 = vmatpush1.msra.mxu0 %v4388
        %4481 = vmatprep.subr.mxu0 0.0
        %4482 = vmatpush1.msra.mxu0 %v4389
        %4483 = vmatprep.subr.mxu0 0.0
        %4484 = vmatpush1.msra.mxu0 %v4390
        %4485 = vmatprep.subr.mxu0 0.0
        %4486 = vmatpush1.msra.mxu0 %v4391
        %4487 = vmatprep.subr.mxu0 0.0
        %4488 = vmatpush1.msra.mxu0 %v4392
        %4489 = vmatprep.subr.mxu0 0.0
        %4490 = vmatpush1.msra.mxu0 %v4393
        %4491 = vmatprep.subr.mxu0 0.0
        %4492 = vmatpush1.msra.mxu0 %v4394
        %4493 = vmatprep.subr.mxu0 0.0
        %4494 = vmatpush1.msra.mxu0 %v4395
        %4495 = vmatprep.subr.mxu0 0.0
        %4496 = vmatpush1.msra.mxu0 %v4407
        %4497 = vmatprep.subr.mxu0 0.0
        %4498 = vmatpush1.msra.mxu0 0.0
        %4499 = vmatprep.subr.mxu0 0.0
        %4500 = vmatpush1.msra.mxu0 0.0
        %4501 = vmatprep.subr.mxu0 0.0
        %4502 = vmatpush1.msra.mxu0 0.0
        %4503 = vmatprep.subr.mxu0 0.0
        %4504 = vmatpush1.msra.mxu0 0.0
        %4505 = vmatprep.subr.mxu0 0.0
        %4506 = vmatpush1.msra.mxu0 0.0
        %4507 = vmatprep.subr.mxu0 0.0
        %4508 = vmatpush1.msra.mxu0 0.0
        %4509 = vmatprep.subr.mxu0 0.0
        %4510 = vmatpush1.msra.mxu0 0.0
        %4511 = vmatprep.subr.mxu0 0.0
        %4512 = vmatpush1.msra.mxu0 0.0
        %4513 = vmatprep.subr.mxu0 0.0
        %4514 = vmatpush1.msra.mxu0 0.0
        %4515 = vmatprep.subr.mxu0 0.0
        %4516 = vmatpush1.msra.mxu0 0.0
        %4517 = vmatprep.subr.mxu0 0.0
        %4518 = vmatpush1.msra.mxu0 0.0
        %4519 = vmatprep.subr.mxu0 0.0
        %4520 = vmatpush1.msra.mxu0 0.0
        %4521 = vmatprep.subr.mxu0 0.0
        %4522 = vmatpush1.msra.mxu0 0.0
        %4523 = vmatprep.subr.mxu0 0.0
        %4524 = vmatpush1.msra.mxu0 0.0
        %4525 = vmatprep.subr.mxu0 0.0
        %4526 = vmatpush1.msra.mxu0 0.0
        %4527 = vmatprep.subr.mxu0 0.0
        %4528 = vmatpush1.msra.mxu0 0.0
        %4529 = vmatprep.subr.mxu0 0.0
        %4530 = vmatpush1.msra.mxu0 0.0
        %4531 = vmatprep.subr.mxu0 0.0
        %4532 = vmatpush1.msra.mxu0 0.0
        %4533 = vmatprep.subr.mxu0 0.0
        %4534 = vmatpush1.msra.mxu0 0.0
        %4535 = vmatprep.subr.mxu0 0.0
        %4536 = vmatpush1.msra.mxu0 0.0
        %4537 = vmatprep.subr.mxu0 0.0
        %4538 = vmatpush1.msra.mxu0 0.0
        %4539 = vmatprep.subr.mxu0 0.0
        %4540 = vmatpush1.msra.mxu0 0.0
        %4541 = vmatprep.subr.mxu0 0.0
        %4542 = vmatpush1.msra.mxu0 0.0
        %4543 = vmatprep.mubr.f32.mxu0 0.0
        %4544 = vmatmul.mubr.f32.gmra.mrb[0].mxu0 %v4404
        %v4545 = vpop.f32.mrb[0].mxu0
        %v4546 = vadd.f32 %v4476, %v4545
        %v4547 = vpop.f32.mrb[0].mxu0
        %4548 = vdwg.mxu0
        %v4549 = vadd.f32 %v4354, %v4546
        %s4550 = scalar_lea.vmem %s3, 5904
        %v4551 = vld [vmem:[%s4550] sm:$0xff]
        %v4552 = vld [vmem:[%s4550 + $0x8] sm:$0xff]
        %v4553 = vld [vmem:[%s4550 + $0x10] sm:$0xff]
        %v4554 = vld [vmem:[%s4550 + $0x18] sm:$0xff]
        %v4555 = vld [vmem:[%s4550 + $0x20] sm:$0xff]
        %v4556 = vld [vmem:[%s4550 + $0x28] sm:$0xff]
        %v4557 = vld [vmem:[%s4550 + $0x30] sm:$0xff]
        %v4558 = vld [vmem:[%s4550 + $0x38] sm:$0xff]
        %v4559 = vld [vmem:[%s4550 + $0x40] sm:$0xff]
        %v4560 = vld [vmem:[%s4550 + $0x48] sm:$0xff]
        %v4561 = vld [vmem:[%s4550 + $0x50] sm:$0xff]
        %v4562 = vld [vmem:[%s4550 + $0x58] sm:$0xff]
        %v4563 = vld [vmem:[%s4550 + $0x60] sm:$0xff]
        %v4564 = vld [vmem:[%s4550 + $0x68] sm:$0xff]
        %v4565 = vld [vmem:[%s4550 + $0x70] sm:$0xff]
        %v4566 = vld [vmem:[%s4550 + $0x78] sm:$0xff]
        %v4567 = vld [vmem:[%s4550 + $0x80] sm:$0xff]
        %v4568 = vld [vmem:[%s4550 + $0x88] sm:$0xff]
        %v4569 = vld [vmem:[%s4550 + $0x90] sm:$0xff]
        %v4570 = vld [vmem:[%s4550 + $0x98] sm:$0xff]
        %v4571 = vld [vmem:[%s4550 + $0xa0] sm:$0xff]
        %v4572 = vld [vmem:[%s4550 + $0xa8] sm:$0xff]
        %v4573 = vld [vmem:[%s4550 + $0xb0] sm:$0xff]
        %v4574 = vld [vmem:[%s4550 + $0xb8] sm:$0xff]
        %v4575 = vld [vmem:[%s4550 + $0xc0] sm:$0xff]
        %v4576 = vld [vmem:[%s4550 + $0xc8] sm:$0xff]
        %v4577 = vld [vmem:[%s4550 + $0xd0] sm:$0xff]
        %v4578 = vld [vmem:[%s4550 + $0xd8] sm:$0xff]
        %v4579 = vld [vmem:[%s4550 + $0xe0] sm:$0xff]
        %v4580 = vld [vmem:[%s4550 + $0xe8] sm:$0xff]
        %v4581 = vld [vmem:[%s4550 + $0xf0] sm:$0xff]
        %v4582 = vld [vmem:[%s4550 + $0xf8] sm:$0xff]
        %v4583 = vld [vmem:[%s4550 + $0x100] sm:$0xff]
        %v4584 = vld [vmem:[%s4550 + $0x108] sm:$0xff]
        %v4585 = vld [vmem:[%s4550 + $0x110] sm:$0xff]
        %v4586 = vld [vmem:[%s4550 + $0x118] sm:$0xff]
        %v4587 = vld [vmem:[%s4550 + $0x120] sm:$0xff]
        %v4588 = vld [vmem:[%s4550 + $0x128] sm:$0xff]
        %v4589 = vld [vmem:[%s4550 + $0x130] sm:$0xff]
        %v4590 = vld [vmem:[%s4550 + $0x138] sm:$0xff]
        %v4591 = vld [vmem:[%s4550 + $0x140] sm:$0xf]
        %v4592 = vrot.slane %v1077, 2
        %v4593 = vrot.slane %v1078, 2
        %v4594 = vrot.slane %v1079, 2
        %v4597 = vsel %vm1174, %v4594, 0
        %v4600 = vsel %vm1177, %v4591, 0
        %4602 = vmatprep.subr.mxu0 0.0
        %4603 = vmatpush1.msra.mxu0 %v4551
        %4604 = vmatprep.subr.mxu0 0.0
        %4605 = vmatpush1.msra.mxu0 %v4552
        %4606 = vmatprep.subr.mxu0 0.0
        %4607 = vmatpush1.msra.mxu0 %v4553
        %4608 = vmatprep.subr.mxu0 0.0
        %4609 = vmatpush1.msra.mxu0 %v4554
        %4610 = vmatprep.subr.mxu0 0.0
        %4611 = vmatpush1.msra.mxu0 %v4555
        %4612 = vmatprep.subr.mxu0 0.0
        %4613 = vmatpush1.msra.mxu0 %v4556
        %4614 = vmatprep.subr.mxu0 0.0
        %4615 = vmatpush1.msra.mxu0 %v4557
        %4616 = vmatprep.subr.mxu0 0.0
        %4617 = vmatpush1.msra.mxu0 %v4558
        %4618 = vmatprep.subr.mxu0 0.0
        %4619 = vmatpush1.msra.mxu0 %v4559
        %4620 = vmatprep.subr.mxu0 0.0
        %4621 = vmatpush1.msra.mxu0 %v4560
        %4622 = vmatprep.subr.mxu0 0.0
        %4623 = vmatpush1.msra.mxu0 %v4561
        %4624 = vmatprep.subr.mxu0 0.0
        %4625 = vmatpush1.msra.mxu0 %v4562
        %4626 = vmatprep.subr.mxu0 0.0
        %4627 = vmatpush1.msra.mxu0 %v4563
        %4628 = vmatprep.subr.mxu0 0.0
        %4629 = vmatpush1.msra.mxu0 %v4564
        %4630 = vmatprep.subr.mxu0 0.0
        %4631 = vmatpush1.msra.mxu0 %v4565
        %4632 = vmatprep.subr.mxu0 0.0
        %4633 = vmatpush1.msra.mxu0 %v4566
        %4634 = vmatprep.subr.mxu0 0.0
        %4635 = vmatpush1.msra.mxu0 %v4567
        %4636 = vmatprep.subr.mxu0 0.0
        %4637 = vmatpush1.msra.mxu0 %v4568
        %4638 = vmatprep.subr.mxu0 0.0
        %4639 = vmatpush1.msra.mxu0 %v4569
        %4640 = vmatprep.subr.mxu0 0.0
        %4641 = vmatpush1.msra.mxu0 %v4570
        %4642 = vmatprep.subr.mxu0 0.0
        %4643 = vmatpush1.msra.mxu0 %v4571
        %4644 = vmatprep.subr.mxu0 0.0
        %4645 = vmatpush1.msra.mxu0 %v4572
        %4646 = vmatprep.subr.mxu0 0.0
        %4647 = vmatpush1.msra.mxu0 %v4573
        %4648 = vmatprep.subr.mxu0 0.0
        %4649 = vmatpush1.msra.mxu0 %v4574
        %4650 = vmatprep.subr.mxu0 0.0
        %4651 = vmatpush1.msra.mxu0 %v4575
        %4652 = vmatprep.subr.mxu0 0.0
        %4653 = vmatpush1.msra.mxu0 %v4576
        %4654 = vmatprep.subr.mxu0 0.0
        %4655 = vmatpush1.msra.mxu0 %v4577
        %4656 = vmatprep.subr.mxu0 0.0
        %4657 = vmatpush1.msra.mxu0 %v4578
        %4658 = vmatprep.subr.mxu0 0.0
        %4659 = vmatpush1.msra.mxu0 %v4579
        %4660 = vmatprep.subr.mxu0 0.0
        %4661 = vmatpush1.msra.mxu0 %v4580
        %4662 = vmatprep.subr.mxu0 0.0
        %4663 = vmatpush1.msra.mxu0 %v4581
        %4664 = vmatprep.subr.mxu0 0.0
        %4665 = vmatpush1.msra.mxu0 %v4582
        %4666 = vmatprep.mubr.f32.mxu0 %v4593
        %4667 = vmatmul.mubr.f32.gmra.mrb[0].mxu0 %v4592
        %v4668 = vpop.f32.mrb[0].mxu0
        %v4669 = vadd.f32 0.0, %v4668
        %v4670 = vpop.f32.mrb[0].mxu0
        %4671 = vdwg.mxu0
        %4672 = vmatprep.subr.mxu0 0.0
        %4673 = vmatpush1.msra.mxu0 %v4583
        %4674 = vmatprep.subr.mxu0 0.0
        %4675 = vmatpush1.msra.mxu0 %v4584
        %4676 = vmatprep.subr.mxu0 0.0
        %4677 = vmatpush1.msra.mxu0 %v4585
        %4678 = vmatprep.subr.mxu0 0.0
        %4679 = vmatpush1.msra.mxu0 %v4586
        %4680 = vmatprep.subr.mxu0 0.0
        %4681 = vmatpush1.msra.mxu0 %v4587
        %4682 = vmatprep.subr.mxu0 0.0
        %4683 = vmatpush1.msra.mxu0 %v4588
        %4684 = vmatprep.subr.mxu0 0.0
        %4685 = vmatpush1.msra.mxu0 %v4589
        %4686 = vmatprep.subr.mxu0 0.0
        %4687 = vmatpush1.msra.mxu0 %v4590
        %4688 = vmatprep.subr.mxu0 0.0
        %4689 = vmatpush1.msra.mxu0 %v4600
        %4690 = vmatprep.subr.mxu0 0.0
        %4691 = vmatpush1.msra.mxu0 0.0
        %4692 = vmatprep.subr.mxu0 0.0
        %4693 = vmatpush1.msra.mxu0 0.0
        %4694 = vmatprep.subr.mxu0 0.0
        %4695 = vmatpush1.msra.mxu0 0.0
        %4696 = vmatprep.subr.mxu0 0.0
        %4697 = vmatpush1.msra.mxu0 0.0
        %4698 = vmatprep.subr.mxu0 0.0
        %4699 = vmatpush1.msra.mxu0 0.0
        %4700 = vmatprep.subr.mxu0 0.0
        %4701 = vmatpush1.msra.mxu0 0.0
        %4702 = vmatprep.subr.mxu0 0.0
        %4703 = vmatpush1.msra.mxu0 0.0
        %4704 = vmatprep.subr.mxu0 0.0
        %4705 = vmatpush1.msra.mxu0 0.0
        %4706 = vmatprep.subr.mxu0 0.0
        %4707 = vmatpush1.msra.mxu0 0.0
        %4708 = vmatprep.subr.mxu0 0.0
        %4709 = vmatpush1.msra.mxu0 0.0
        %4710 = vmatprep.subr.mxu0 0.0
        %4711 = vmatpush1.msra.mxu0 0.0
        %4712 = vmatprep.subr.mxu0 0.0
        %4713 = vmatpush1.msra.mxu0 0.0
        %4714 = vmatprep.subr.mxu0 0.0
        %4715 = vmatpush1.msra.mxu0 0.0
        %4716 = vmatprep.subr.mxu0 0.0
        %4717 = vmatpush1.msra.mxu0 0.0
        %4718 = vmatprep.subr.mxu0 0.0
        %4719 = vmatpush1.msra.mxu0 0.0
        %4720 = vmatprep.subr.mxu0 0.0
        %4721 = vmatpush1.msra.mxu0 0.0
        %4722 = vmatprep.subr.mxu0 0.0
        %4723 = vmatpush1.msra.mxu0 0.0
        %4724 = vmatprep.subr.mxu0 0.0
        %4725 = vmatpush1.msra.mxu0 0.0
        %4726 = vmatprep.subr.mxu0 0.0
        %4727 = vmatpush1.msra.mxu0 0.0
        %4728 = vmatprep.subr.mxu0 0.0
        %4729 = vmatpush1.msra.mxu0 0.0
        %4730 = vmatprep.subr.mxu0 0.0
        %4731 = vmatpush1.msra.mxu0 0.0
        %4732 = vmatprep.subr.mxu0 0.0
        %4733 = vmatpush1.msra.mxu0 0.0
        %4734 = vmatprep.subr.mxu0 0.0
        %4735 = vmatpush1.msra.mxu0 0.0
        %4736 = vmatprep.mubr.f32.mxu0 0.0
        %4737 = vmatmul.mubr.f32.gmra.mrb[0].mxu0 %v4597
        %v4738 = vpop.f32.mrb[0].mxu0
        %v4739 = vadd.f32 %v4669, %v4738
        %v4740 = vpop.f32.mrb[0].mxu0
        %4741 = vdwg.mxu0
        %v4742 = vadd.f32 %v4549, %v4739
        %s4743 = scalar_lea.vmem %s3, 6232
        %v4744 = vld [vmem:[%s4743] sm:$0xff]
        %v4745 = vld [vmem:[%s4743 + $0x8] sm:$0xff]
        %v4746 = vld [vmem:[%s4743 + $0x10] sm:$0xff]
        %v4747 = vld [vmem:[%s4743 + $0x18] sm:$0xff]
        %v4748 = vld [vmem:[%s4743 + $0x20] sm:$0xff]
        %v4749 = vld [vmem:[%s4743 + $0x28] sm:$0xff]
        %v4750 = vld [vmem:[%s4743 + $0x30] sm:$0xff]
        %v4751 = vld [vmem:[%s4743 + $0x38] sm:$0xff]
        %v4752 = vld [vmem:[%s4743 + $0x40] sm:$0xff]
        %v4753 = vld [vmem:[%s4743 + $0x48] sm:$0xff]
        %v4754 = vld [vmem:[%s4743 + $0x50] sm:$0xff]
        %v4755 = vld [vmem:[%s4743 + $0x58] sm:$0xff]
        %v4756 = vld [vmem:[%s4743 + $0x60] sm:$0xff]
        %v4757 = vld [vmem:[%s4743 + $0x68] sm:$0xff]
        %v4758 = vld [vmem:[%s4743 + $0x70] sm:$0xff]
        %v4759 = vld [vmem:[%s4743 + $0x78] sm:$0xff]
        %v4760 = vld [vmem:[%s4743 + $0x80] sm:$0xff]
        %v4761 = vld [vmem:[%s4743 + $0x88] sm:$0xff]
        %v4762 = vld [vmem:[%s4743 + $0x90] sm:$0xff]
        %v4763 = vld [vmem:[%s4743 + $0x98] sm:$0xff]
        %v4764 = vld [vmem:[%s4743 + $0xa0] sm:$0xff]
        %v4765 = vld [vmem:[%s4743 + $0xa8] sm:$0xff]
        %v4766 = vld [vmem:[%s4743 + $0xb0] sm:$0xff]
        %v4767 = vld [vmem:[%s4743 + $0xb8] sm:$0xff]
        %v4768 = vld [vmem:[%s4743 + $0xc0] sm:$0xff]
        %v4769 = vld [vmem:[%s4743 + $0xc8] sm:$0xff]
        %v4770 = vld [vmem:[%s4743 + $0xd0] sm:$0xff]
        %v4771 = vld [vmem:[%s4743 + $0xd8] sm:$0xff]
        %v4772 = vld [vmem:[%s4743 + $0xe0] sm:$0xff]
        %v4773 = vld [vmem:[%s4743 + $0xe8] sm:$0xff]
        %v4774 = vld [vmem:[%s4743 + $0xf0] sm:$0xff]
        %v4775 = vld [vmem:[%s4743 + $0xf8] sm:$0xff]
        %v4776 = vld [vmem:[%s4743 + $0x100] sm:$0xff]
        %v4777 = vld [vmem:[%s4743 + $0x108] sm:$0xff]
        %v4778 = vld [vmem:[%s4743 + $0x110] sm:$0xff]
        %v4779 = vld [vmem:[%s4743 + $0x118] sm:$0xff]
        %v4780 = vld [vmem:[%s4743 + $0x120] sm:$0xff]
        %v4781 = vld [vmem:[%s4743 + $0x128] sm:$0xff]
        %v4782 = vld [vmem:[%s4743 + $0x130] sm:$0xff]
        %v4783 = vld [vmem:[%s4743 + $0x138] sm:$0xff]
        %v4784 = vld [vmem:[%s4743 + $0x140] sm:$0xf]
        %v4785 = vrot.slane %v1077, 3
        %v4786 = vrot.slane %v1078, 3
        %v4787 = vrot.slane %v1079, 3
        %v4790 = vsel %vm1174, %v4787, 0
        %v4793 = vsel %vm1177, %v4784, 0
        %4795 = vmatprep.subr.mxu0 0.0
        %4796 = vmatpush1.msra.mxu0 %v4744
        %4797 = vmatprep.subr.mxu0 0.0
        %4798 = vmatpush1.msra.mxu0 %v4745
        %4799 = vmatprep.subr.mxu0 0.0
        %4800 = vmatpush1.msra.mxu0 %v4746
        %4801 = vmatprep.subr.mxu0 0.0
        %4802 = vmatpush1.msra.mxu0 %v4747
        %4803 = vmatprep.subr.mxu0 0.0
        %4804 = vmatpush1.msra.mxu0 %v4748
        %4805 = vmatprep.subr.mxu0 0.0
        %4806 = vmatpush1.msra.mxu0 %v4749
        %4807 = vmatprep.subr.mxu0 0.0
        %4808 = vmatpush1.msra.mxu0 %v4750
        %4809 = vmatprep.subr.mxu0 0.0
        %4810 = vmatpush1.msra.mxu0 %v4751
        %4811 = vmatprep.subr.mxu0 0.0
        %4812 = vmatpush1.msra.mxu0 %v4752
        %4813 = vmatprep.subr.mxu0 0.0
        %4814 = vmatpush1.msra.mxu0 %v4753
        %4815 = vmatprep.subr.mxu0 0.0
        %4816 = vmatpush1.msra.mxu0 %v4754
        %4817 = vmatprep.subr.mxu0 0.0
        %4818 = vmatpush1.msra.mxu0 %v4755
        %4819 = vmatprep.subr.mxu0 0.0
        %4820 = vmatpush1.msra.mxu0 %v4756
        %4821 = vmatprep.subr.mxu0 0.0
        %4822 = vmatpush1.msra.mxu0 %v4757
        %4823 = vmatprep.subr.mxu0 0.0
        %4824 = vmatpush1.msra.mxu0 %v4758
        %4825 = vmatprep.subr.mxu0 0.0
        %4826 = vmatpush1.msra.mxu0 %v4759
        %4827 = vmatprep.subr.mxu0 0.0
        %4828 = vmatpush1.msra.mxu0 %v4760
        %4829 = vmatprep.subr.mxu0 0.0
        %4830 = vmatpush1.msra.mxu0 %v4761
        %4831 = vmatprep.subr.mxu0 0.0
        %4832 = vmatpush1.msra.mxu0 %v4762
        %4833 = vmatprep.subr.mxu0 0.0
        %4834 = vmatpush1.msra.mxu0 %v4763
        %4835 = vmatprep.subr.mxu0 0.0
        %4836 = vmatpush1.msra.mxu0 %v4764
        %4837 = vmatprep.subr.mxu0 0.0
        %4838 = vmatpush1.msra.mxu0 %v4765
        %4839 = vmatprep.subr.mxu0 0.0
        %4840 = vmatpush1.msra.mxu0 %v4766
        %4841 = vmatprep.subr.mxu0 0.0
        %4842 = vmatpush1.msra.mxu0 %v4767
        %4843 = vmatprep.subr.mxu0 0.0
        %4844 = vmatpush1.msra.mxu0 %v4768
        %4845 = vmatprep.subr.mxu0 0.0
        %4846 = vmatpush1.msra.mxu0 %v4769
        %4847 = vmatprep.subr.mxu0 0.0
        %4848 = vmatpush1.msra.mxu0 %v4770
        %4849 = vmatprep.subr.mxu0 0.0
        %4850 = vmatpush1.msra.mxu0 %v4771
        %4851 = vmatprep.subr.mxu0 0.0
        %4852 = vmatpush1.msra.mxu0 %v4772
        %4853 = vmatprep.subr.mxu0 0.0
        %4854 = vmatpush1.msra.mxu0 %v4773
        %4855 = vmatprep.subr.mxu0 0.0
        %4856 = vmatpush1.msra.mxu0 %v4774
        %4857 = vmatprep.subr.mxu0 0.0
        %4858 = vmatpush1.msra.mxu0 %v4775
        %4859 = vmatprep.mubr.f32.mxu0 %v4786
        %4860 = vmatmul.mubr.f32.gmra.mrb[0].mxu0 %v4785
        %v4861 = vpop.f32.mrb[0].mxu0
        %v4862 = vadd.f32 0.0, %v4861
        %v4863 = vpop.f32.mrb[0].mxu0
        %4864 = vdwg.mxu0
        %4865 = vmatprep.subr.mxu0 0.0
        %4866 = vmatpush1.msra.mxu0 %v4776
        %4867 = vmatprep.subr.mxu0 0.0
        %4868 = vmatpush1.msra.mxu0 %v4777
        %4869 = vmatprep.subr.mxu0 0.0
        %4870 = vmatpush1.msra.mxu0 %v4778
        %4871 = vmatprep.subr.mxu0 0.0
        %4872 = vmatpush1.msra.mxu0 %v4779
        %4873 = vmatprep.subr.mxu0 0.0
        %4874 = vmatpush1.msra.mxu0 %v4780
        %4875 = vmatprep.subr.mxu0 0.0
        %4876 = vmatpush1.msra.mxu0 %v4781
        %4877 = vmatprep.subr.mxu0 0.0
        %4878 = vmatpush1.msra.mxu0 %v4782
        %4879 = vmatprep.subr.mxu0 0.0
        %4880 = vmatpush1.msra.mxu0 %v4783
        %4881 = vmatprep.subr.mxu0 0.0
        %4882 = vmatpush1.msra.mxu0 %v4793
        %4883 = vmatprep.subr.mxu0 0.0
        %4884 = vmatpush1.msra.mxu0 0.0
        %4885 = vmatprep.subr.mxu0 0.0
        %4886 = vmatpush1.msra.mxu0 0.0
        %4887 = vmatprep.subr.mxu0 0.0
        %4888 = vmatpush1.msra.mxu0 0.0
        %4889 = vmatprep.subr.mxu0 0.0
        %4890 = vmatpush1.msra.mxu0 0.0
        %4891 = vmatprep.subr.mxu0 0.0
        %4892 = vmatpush1.msra.mxu0 0.0
        %4893 = vmatprep.subr.mxu0 0.0
        %4894 = vmatpush1.msra.mxu0 0.0
        %4895 = vmatprep.subr.mxu0 0.0
        %4896 = vmatpush1.msra.mxu0 0.0
        %4897 = vmatprep.subr.mxu0 0.0
        %4898 = vmatpush1.msra.mxu0 0.0
        %4899 = vmatprep.subr.mxu0 0.0
        %4900 = vmatpush1.msra.mxu0 0.0
        %4901 = vmatprep.subr.mxu0 0.0
        %4902 = vmatpush1.msra.mxu0 0.0
        %4903 = vmatprep.subr.mxu0 0.0
        %4904 = vmatpush1.msra.mxu0 0.0
        %4905 = vmatprep.subr.mxu0 0.0
        %4906 = vmatpush1.msra.mxu0 0.0
        %4907 = vmatprep.subr.mxu0 0.0
        %4908 = vmatpush1.msra.mxu0 0.0
        %4909 = vmatprep.subr.mxu0 0.0
        %4910 = vmatpush1.msra.mxu0 0.0
        %4911 = vmatprep.subr.mxu0 0.0
        %4912 = vmatpush1.msra.mxu0 0.0
        %4913 = vmatprep.subr.mxu0 0.0
        %4914 = vmatpush1.msra.mxu0 0.0
        %4915 = vmatprep.subr.mxu0 0.0
        %4916 = vmatpush1.msra.mxu0 0.0
        %4917 = vmatprep.subr.mxu0 0.0
        %4918 = vmatpush1.msra.mxu0 0.0
        %4919 = vmatprep.subr.mxu0 0.0
        %4920 = vmatpush1.msra.mxu0 0.0
        %4921 = vmatprep.subr.mxu0 0.0
        %4922 = vmatpush1.msra.mxu0 0.0
        %4923 = vmatprep.subr.mxu0 0.0
        %4924 = vmatpush1.msra.mxu0 0.0
        %4925 = vmatprep.subr.mxu0 0.0
        %4926 = vmatpush1.msra.mxu0 0.0
        %4927 = vmatprep.subr.mxu0 0.0
        %4928 = vmatpush1.msra.mxu0 0.0
        %4929 = vmatprep.mubr.f32.mxu0 0.0
        %4930 = vmatmul.mubr.f32.gmra.mrb[0].mxu0 %v4790
        %v4931 = vpop.f32.mrb[0].mxu0
        %v4932 = vadd.f32 %v4862, %v4931
        %v4933 = vpop.f32.mrb[0].mxu0
        %4934 = vdwg.mxu0
        %v4935 = vadd.f32 %v4742, %v4932
        %s4936 = scalar_lea.vmem %s3, 6560
        %v4937 = vld [vmem:[%s4936] sm:$0xff]
        %v4938 = vld [vmem:[%s4936 + $0x8] sm:$0xff]
        %v4939 = vld [vmem:[%s4936 + $0x10] sm:$0xff]
        %v4940 = vld [vmem:[%s4936 + $0x18] sm:$0xff]
        %v4941 = vld [vmem:[%s4936 + $0x20] sm:$0xff]
        %v4942 = vld [vmem:[%s4936 + $0x28] sm:$0xff]
        %v4943 = vld [vmem:[%s4936 + $0x30] sm:$0xff]
        %v4944 = vld [vmem:[%s4936 + $0x38] sm:$0xff]
        %v4945 = vld [vmem:[%s4936 + $0x40] sm:$0xff]
        %v4946 = vld [vmem:[%s4936 + $0x48] sm:$0xff]
        %v4947 = vld [vmem:[%s4936 + $0x50] sm:$0xff]
        %v4948 = vld [vmem:[%s4936 + $0x58] sm:$0xff]
        %v4949 = vld [vmem:[%s4936 + $0x60] sm:$0xff]
        %v4950 = vld [vmem:[%s4936 + $0x68] sm:$0xff]
        %v4951 = vld [vmem:[%s4936 + $0x70] sm:$0xff]
        %v4952 = vld [vmem:[%s4936 + $0x78] sm:$0xff]
        %v4953 = vld [vmem:[%s4936 + $0x80] sm:$0xff]
        %v4954 = vld [vmem:[%s4936 + $0x88] sm:$0xff]
        %v4955 = vld [vmem:[%s4936 + $0x90] sm:$0xff]
        %v4956 = vld [vmem:[%s4936 + $0x98] sm:$0xff]
        %v4957 = vld [vmem:[%s4936 + $0xa0] sm:$0xff]
        %v4958 = vld [vmem:[%s4936 + $0xa8] sm:$0xff]
        %v4959 = vld [vmem:[%s4936 + $0xb0] sm:$0xff]
        %v4960 = vld [vmem:[%s4936 + $0xb8] sm:$0xff]
        %v4961 = vld [vmem:[%s4936 + $0xc0] sm:$0xff]
        %v4962 = vld [vmem:[%s4936 + $0xc8] sm:$0xff]
        %v4963 = vld [vmem:[%s4936 + $0xd0] sm:$0xff]
        %v4964 = vld [vmem:[%s4936 + $0xd8] sm:$0xff]
        %v4965 = vld [vmem:[%s4936 + $0xe0] sm:$0xff]
        %v4966 = vld [vmem:[%s4936 + $0xe8] sm:$0xff]
        %v4967 = vld [vmem:[%s4936 + $0xf0] sm:$0xff]
        %v4968 = vld [vmem:[%s4936 + $0xf8] sm:$0xff]
        %v4969 = vld [vmem:[%s4936 + $0x100] sm:$0xff]
        %v4970 = vld [vmem:[%s4936 + $0x108] sm:$0xff]
        %v4971 = vld [vmem:[%s4936 + $0x110] sm:$0xff]
        %v4972 = vld [vmem:[%s4936 + $0x118] sm:$0xff]
        %v4973 = vld [vmem:[%s4936 + $0x120] sm:$0xff]
        %v4974 = vld [vmem:[%s4936 + $0x128] sm:$0xff]
        %v4975 = vld [vmem:[%s4936 + $0x130] sm:$0xff]
        %v4976 = vld [vmem:[%s4936 + $0x138] sm:$0xff]
        %v4977 = vld [vmem:[%s4936 + $0x140] sm:$0xf]
        %v4978 = vrot.slane %v1077, 4
        %v4979 = vrot.slane %v1078, 4
        %v4980 = vrot.slane %v1079, 4
        %v4983 = vsel %vm1174, %v4980, 0
        %v4986 = vsel %vm1177, %v4977, 0
        %4988 = vmatprep.subr.mxu0 0.0
        %4989 = vmatpush1.msra.mxu0 %v4937
        %4990 = vmatprep.subr.mxu0 0.0
        %4991 = vmatpush1.msra.mxu0 %v4938
        %4992 = vmatprep.subr.mxu0 0.0
        %4993 = vmatpush1.msra.mxu0 %v4939
        %4994 = vmatprep.subr.mxu0 0.0
        %4995 = vmatpush1.msra.mxu0 %v4940
        %4996 = vmatprep.subr.mxu0 0.0
        %4997 = vmatpush1.msra.mxu0 %v4941
        %4998 = vmatprep.subr.mxu0 0.0
        %4999 = vmatpush1.msra.mxu0 %v4942
        %5000 = vmatprep.subr.mxu0 0.0
        %5001 = vmatpush1.msra.mxu0 %v4943
        %5002 = vmatprep.subr.mxu0 0.0
        %5003 = vmatpush1.msra.mxu0 %v4944
        %5004 = vmatprep.subr.mxu0 0.0
        %5005 = vmatpush1.msra.mxu0 %v4945
        %5006 = vmatprep.subr.mxu0 0.0
        %5007 = vmatpush1.msra.mxu0 %v4946
        %5008 = vmatprep.subr.mxu0 0.0
        %5009 = vmatpush1.msra.mxu0 %v4947
        %5010 = vmatprep.subr.mxu0 0.0
        %5011 = vmatpush1.msra.mxu0 %v4948
        %5012 = vmatprep.subr.mxu0 0.0
        %5013 = vmatpush1.msra.mxu0 %v4949
        %5014 = vmatprep.subr.mxu0 0.0
        %5015 = vmatpush1.msra.mxu0 %v4950
        %5016 = vmatprep.subr.mxu0 0.0
        %5017 = vmatpush1.msra.mxu0 %v4951
        %5018 = vmatprep.subr.mxu0 0.0
        %5019 = vmatpush1.msra.mxu0 %v4952
        %5020 = vmatprep.subr.mxu0 0.0
        %5021 = vmatpush1.msra.mxu0 %v4953
        %5022 = vmatprep.subr.mxu0 0.0
        %5023 = vmatpush1.msra.mxu0 %v4954
        %5024 = vmatprep.subr.mxu0 0.0
        %5025 = vmatpush1.msra.mxu0 %v4955
        %5026 = vmatprep.subr.mxu0 0.0
        %5027 = vmatpush1.msra.mxu0 %v4956
        %5028 = vmatprep.subr.mxu0 0.0
        %5029 = vmatpush1.msra.mxu0 %v4957
        %5030 = vmatprep.subr.mxu0 0.0
        %5031 = vmatpush1.msra.mxu0 %v4958
        %5032 = vmatprep.subr.mxu0 0.0
        %5033 = vmatpush1.msra.mxu0 %v4959
        %5034 = vmatprep.subr.mxu0 0.0
        %5035 = vmatpush1.msra.mxu0 %v4960
        %5036 = vmatprep.subr.mxu0 0.0
        %5037 = vmatpush1.msra.mxu0 %v4961
        %5038 = vmatprep.subr.mxu0 0.0
        %5039 = vmatpush1.msra.mxu0 %v4962
        %5040 = vmatprep.subr.mxu0 0.0
        %5041 = vmatpush1.msra.mxu0 %v4963
        %5042 = vmatprep.subr.mxu0 0.0
        %5043 = vmatpush1.msra.mxu0 %v4964
        %5044 = vmatprep.subr.mxu0 0.0
        %5045 = vmatpush1.msra.mxu0 %v4965
        %5046 = vmatprep.subr.mxu0 0.0
        %5047 = vmatpush1.msra.mxu0 %v4966
        %5048 = vmatprep.subr.mxu0 0.0
        %5049 = vmatpush1.msra.mxu0 %v4967
        %5050 = vmatprep.subr.mxu0 0.0
        %5051 = vmatpush1.msra.mxu0 %v4968
        %5052 = vmatprep.mubr.f32.mxu0 %v4979
        %5053 = vmatmul.mubr.f32.gmra.mrb[0].mxu0 %v4978
        %v5054 = vpop.f32.mrb[0].mxu0
        %v5055 = vadd.f32 0.0, %v5054
        %v5056 = vpop.f32.mrb[0].mxu0
        %5057 = vdwg.mxu0
        %5058 = vmatprep.subr.mxu0 0.0
        %5059 = vmatpush1.msra.mxu0 %v4969
        %5060 = vmatprep.subr.mxu0 0.0
        %5061 = vmatpush1.msra.mxu0 %v4970
        %5062 = vmatprep.subr.mxu0 0.0
        %5063 = vmatpush1.msra.mxu0 %v4971
        %5064 = vmatprep.subr.mxu0 0.0
        %5065 = vmatpush1.msra.mxu0 %v4972
        %5066 = vmatprep.subr.mxu0 0.0
        %5067 = vmatpush1.msra.mxu0 %v4973
        %5068 = vmatprep.subr.mxu0 0.0
        %5069 = vmatpush1.msra.mxu0 %v4974
        %5070 = vmatprep.subr.mxu0 0.0
        %5071 = vmatpush1.msra.mxu0 %v4975
        %5072 = vmatprep.subr.mxu0 0.0
        %5073 = vmatpush1.msra.mxu0 %v4976
        %5074 = vmatprep.subr.mxu0 0.0
        %5075 = vmatpush1.msra.mxu0 %v4986
        %5076 = vmatprep.subr.mxu0 0.0
        %5077 = vmatpush1.msra.mxu0 0.0
        %5078 = vmatprep.subr.mxu0 0.0
        %5079 = vmatpush1.msra.mxu0 0.0
        %5080 = vmatprep.subr.mxu0 0.0
        %5081 = vmatpush1.msra.mxu0 0.0
        %5082 = vmatprep.subr.mxu0 0.0
        %5083 = vmatpush1.msra.mxu0 0.0
        %5084 = vmatprep.subr.mxu0 0.0
        %5085 = vmatpush1.msra.mxu0 0.0
        %5086 = vmatprep.subr.mxu0 0.0
        %5087 = vmatpush1.msra.mxu0 0.0
        %5088 = vmatprep.subr.mxu0 0.0
        %5089 = vmatpush1.msra.mxu0 0.0
        %5090 = vmatprep.subr.mxu0 0.0
        %5091 = vmatpush1.msra.mxu0 0.0
        %5092 = vmatprep.subr.mxu0 0.0
        %5093 = vmatpush1.msra.mxu0 0.0
        %5094 = vmatprep.subr.mxu0 0.0
        %5095 = vmatpush1.msra.mxu0 0.0
        %5096 = vmatprep.subr.mxu0 0.0
        %5097 = vmatpush1.msra.mxu0 0.0
        %5098 = vmatprep.subr.mxu0 0.0
        %5099 = vmatpush1.msra.mxu0 0.0
        %5100 = vmatprep.subr.mxu0 0.0
        %5101 = vmatpush1.msra.mxu0 0.0
        %5102 = vmatprep.subr.mxu0 0.0
        %5103 = vmatpush1.msra.mxu0 0.0
        %5104 = vmatprep.subr.mxu0 0.0
        %5105 = vmatpush1.msra.mxu0 0.0
        %5106 = vmatprep.subr.mxu0 0.0
        %5107 = vmatpush1.msra.mxu0 0.0
        %5108 = vmatprep.subr.mxu0 0.0
        %5109 = vmatpush1.msra.mxu0 0.0
        %5110 = vmatprep.subr.mxu0 0.0
        %5111 = vmatpush1.msra.mxu0 0.0
        %5112 = vmatprep.subr.mxu0 0.0
        %5113 = vmatpush1.msra.mxu0 0.0
        %5114 = vmatprep.subr.mxu0 0.0
        %5115 = vmatpush1.msra.mxu0 0.0
        %5116 = vmatprep.subr.mxu0 0.0
        %5117 = vmatpush1.msra.mxu0 0.0
        %5118 = vmatprep.subr.mxu0 0.0
        %5119 = vmatpush1.msra.mxu0 0.0
        %5120 = vmatprep.subr.mxu0 0.0
        %5121 = vmatpush1.msra.mxu0 0.0
        %5122 = vmatprep.mubr.f32.mxu0 0.0
        %5123 = vmatmul.mubr.f32.gmra.mrb[0].mxu0 %v4983
        %v5124 = vpop.f32.mrb[0].mxu0
        %v5125 = vadd.f32 %v5055, %v5124
        %v5126 = vpop.f32.mrb[0].mxu0
        %5127 = vdwg.mxu0
        %v5128 = vadd.f32 %v4935, %v5125
        %s5129 = scalar_lea.vmem %s3, 6888
        %v5130 = vld [vmem:[%s5129] sm:$0xff]
        %v5131 = vld [vmem:[%s5129 + $0x8] sm:$0xff]
        %v5132 = vld [vmem:[%s5129 + $0x10] sm:$0xff]
        %v5133 = vld [vmem:[%s5129 + $0x18] sm:$0xff]
        %v5134 = vld [vmem:[%s5129 + $0x20] sm:$0xff]
        %v5135 = vld [vmem:[%s5129 + $0x28] sm:$0xff]
        %v5136 = vld [vmem:[%s5129 + $0x30] sm:$0xff]
        %v5137 = vld [vmem:[%s5129 + $0x38] sm:$0xff]
        %v5138 = vld [vmem:[%s5129 + $0x40] sm:$0xff]
        %v5139 = vld [vmem:[%s5129 + $0x48] sm:$0xff]
        %v5140 = vld [vmem:[%s5129 + $0x50] sm:$0xff]
        %v5141 = vld [vmem:[%s5129 + $0x58] sm:$0xff]
        %v5142 = vld [vmem:[%s5129 + $0x60] sm:$0xff]
        %v5143 = vld [vmem:[%s5129 + $0x68] sm:$0xff]
        %v5144 = vld [vmem:[%s5129 + $0x70] sm:$0xff]
        %v5145 = vld [vmem:[%s5129 + $0x78] sm:$0xff]
        %v5146 = vld [vmem:[%s5129 + $0x80] sm:$0xff]
        %v5147 = vld [vmem:[%s5129 + $0x88] sm:$0xff]
        %v5148 = vld [vmem:[%s5129 + $0x90] sm:$0xff]
        %v5149 = vld [vmem:[%s5129 + $0x98] sm:$0xff]
        %v5150 = vld [vmem:[%s5129 + $0xa0] sm:$0xff]
        %v5151 = vld [vmem:[%s5129 + $0xa8] sm:$0xff]
        %v5152 = vld [vmem:[%s5129 + $0xb0] sm:$0xff]
        %v5153 = vld [vmem:[%s5129 + $0xb8] sm:$0xff]
        %v5154 = vld [vmem:[%s5129 + $0xc0] sm:$0xff]
        %v5155 = vld [vmem:[%s5129 + $0xc8] sm:$0xff]
        %v5156 = vld [vmem:[%s5129 + $0xd0] sm:$0xff]
        %v5157 = vld [vmem:[%s5129 + $0xd8] sm:$0xff]
        %v5158 = vld [vmem:[%s5129 + $0xe0] sm:$0xff]
        %v5159 = vld [vmem:[%s5129 + $0xe8] sm:$0xff]
        %v5160 = vld [vmem:[%s5129 + $0xf0] sm:$0xff]
        %v5161 = vld [vmem:[%s5129 + $0xf8] sm:$0xff]
        %v5162 = vld [vmem:[%s5129 + $0x100] sm:$0xff]
        %v5163 = vld [vmem:[%s5129 + $0x108] sm:$0xff]
        %v5164 = vld [vmem:[%s5129 + $0x110] sm:$0xff]
        %v5165 = vld [vmem:[%s5129 + $0x118] sm:$0xff]
        %v5166 = vld [vmem:[%s5129 + $0x120] sm:$0xff]
        %v5167 = vld [vmem:[%s5129 + $0x128] sm:$0xff]
        %v5168 = vld [vmem:[%s5129 + $0x130] sm:$0xff]
        %v5169 = vld [vmem:[%s5129 + $0x138] sm:$0xff]
        %v5170 = vld [vmem:[%s5129 + $0x140] sm:$0xf]
        %v5171 = vrot.slane %v1077, 5
        %v5172 = vrot.slane %v1078, 5
        %v5173 = vrot.slane %v1079, 5
        %v5176 = vsel %vm1174, %v5173, 0
        %v5179 = vsel %vm1177, %v5170, 0
        %5181 = vmatprep.subr.mxu0 0.0
        %5182 = vmatpush1.msra.mxu0 %v5130
        %5183 = vmatprep.subr.mxu0 0.0
        %5184 = vmatpush1.msra.mxu0 %v5131
        %5185 = vmatprep.subr.mxu0 0.0
        %5186 = vmatpush1.msra.mxu0 %v5132
        %5187 = vmatprep.subr.mxu0 0.0
        %5188 = vmatpush1.msra.mxu0 %v5133
        %5189 = vmatprep.subr.mxu0 0.0
        %5190 = vmatpush1.msra.mxu0 %v5134
        %5191 = vmatprep.subr.mxu0 0.0
        %5192 = vmatpush1.msra.mxu0 %v5135
        %5193 = vmatprep.subr.mxu0 0.0
        %5194 = vmatpush1.msra.mxu0 %v5136
        %5195 = vmatprep.subr.mxu0 0.0
        %5196 = vmatpush1.msra.mxu0 %v5137
        %5197 = vmatprep.subr.mxu0 0.0
        %5198 = vmatpush1.msra.mxu0 %v5138
        %5199 = vmatprep.subr.mxu0 0.0
        %5200 = vmatpush1.msra.mxu0 %v5139
        %5201 = vmatprep.subr.mxu0 0.0
        %5202 = vmatpush1.msra.mxu0 %v5140
        %5203 = vmatprep.subr.mxu0 0.0
        %5204 = vmatpush1.msra.mxu0 %v5141
        %5205 = vmatprep.subr.mxu0 0.0
        %5206 = vmatpush1.msra.mxu0 %v5142
        %5207 = vmatprep.subr.mxu0 0.0
        %5208 = vmatpush1.msra.mxu0 %v5143
        %5209 = vmatprep.subr.mxu0 0.0
        %5210 = vmatpush1.msra.mxu0 %v5144
        %5211 = vmatprep.subr.mxu0 0.0
        %5212 = vmatpush1.msra.mxu0 %v5145
        %5213 = vmatprep.subr.mxu0 0.0
        %5214 = vmatpush1.msra.mxu0 %v5146
        %5215 = vmatprep.subr.mxu0 0.0
        %5216 = vmatpush1.msra.mxu0 %v5147
        %5217 = vmatprep.subr.mxu0 0.0
        %5218 = vmatpush1.msra.mxu0 %v5148
        %5219 = vmatprep.subr.mxu0 0.0
        %5220 = vmatpush1.msra.mxu0 %v5149
        %5221 = vmatprep.subr.mxu0 0.0
        %5222 = vmatpush1.msra.mxu0 %v5150
        %5223 = vmatprep.subr.mxu0 0.0
        %5224 = vmatpush1.msra.mxu0 %v5151
        %5225 = vmatprep.subr.mxu0 0.0
        %5226 = vmatpush1.msra.mxu0 %v5152
        %5227 = vmatprep.subr.mxu0 0.0
        %5228 = vmatpush1.msra.mxu0 %v5153
        %5229 = vmatprep.subr.mxu0 0.0
        %5230 = vmatpush1.msra.mxu0 %v5154
        %5231 = vmatprep.subr.mxu0 0.0
        %5232 = vmatpush1.msra.mxu0 %v5155
        %5233 = vmatprep.subr.mxu0 0.0
        %5234 = vmatpush1.msra.mxu0 %v5156
        %5235 = vmatprep.subr.mxu0 0.0
        %5236 = vmatpush1.msra.mxu0 %v5157
        %5237 = vmatprep.subr.mxu0 0.0
        %5238 = vmatpush1.msra.mxu0 %v5158
        %5239 = vmatprep.subr.mxu0 0.0
        %5240 = vmatpush1.msra.mxu0 %v5159
        %5241 = vmatprep.subr.mxu0 0.0
        %5242 = vmatpush1.msra.mxu0 %v5160
        %5243 = vmatprep.subr.mxu0 0.0
        %5244 = vmatpush1.msra.mxu0 %v5161
        %5245 = vmatprep.mubr.f32.mxu0 %v5172
        %5246 = vmatmul.mubr.f32.gmra.mrb[0].mxu0 %v5171
        %v5247 = vpop.f32.mrb[0].mxu0
        %v5248 = vadd.f32 0.0, %v5247
        %v5249 = vpop.f32.mrb[0].mxu0
        %5250 = vdwg.mxu0
        %5251 = vmatprep.subr.mxu0 0.0
        %5252 = vmatpush1.msra.mxu0 %v5162
        %5253 = vmatprep.subr.mxu0 0.0
        %5254 = vmatpush1.msra.mxu0 %v5163
        %5255 = vmatprep.subr.mxu0 0.0
        %5256 = vmatpush1.msra.mxu0 %v5164
        %5257 = vmatprep.subr.mxu0 0.0
        %5258 = vmatpush1.msra.mxu0 %v5165
        %5259 = vmatprep.subr.mxu0 0.0
        %5260 = vmatpush1.msra.mxu0 %v5166
        %5261 = vmatprep.subr.mxu0 0.0
        %5262 = vmatpush1.msra.mxu0 %v5167
        %5263 = vmatprep.subr.mxu0 0.0
        %5264 = vmatpush1.msra.mxu0 %v5168
        %5265 = vmatprep.subr.mxu0 0.0
        %5266 = vmatpush1.msra.mxu0 %v5169
        %5267 = vmatprep.subr.mxu0 0.0
        %5268 = vmatpush1.msra.mxu0 %v5179
        %5269 = vmatprep.subr.mxu0 0.0
        %5270 = vmatpush1.msra.mxu0 0.0
        %5271 = vmatprep.subr.mxu0 0.0
        %5272 = vmatpush1.msra.mxu0 0.0
        %5273 = vmatprep.subr.mxu0 0.0
        %5274 = vmatpush1.msra.mxu0 0.0
        %5275 = vmatprep.subr.mxu0 0.0
        %5276 = vmatpush1.msra.mxu0 0.0
        %5277 = vmatprep.subr.mxu0 0.0
        %5278 = vmatpush1.msra.mxu0 0.0
        %5279 = vmatprep.subr.mxu0 0.0
        %5280 = vmatpush1.msra.mxu0 0.0
        %5281 = vmatprep.subr.mxu0 0.0
        %5282 = vmatpush1.msra.mxu0 0.0
        %5283 = vmatprep.subr.mxu0 0.0
        %5284 = vmatpush1.msra.mxu0 0.0
        %5285 = vmatprep.subr.mxu0 0.0
        %5286 = vmatpush1.msra.mxu0 0.0
        %5287 = vmatprep.subr.mxu0 0.0
        %5288 = vmatpush1.msra.mxu0 0.0
        %5289 = vmatprep.subr.mxu0 0.0
        %5290 = vmatpush1.msra.mxu0 0.0
        %5291 = vmatprep.subr.mxu0 0.0
        %5292 = vmatpush1.msra.mxu0 0.0
        %5293 = vmatprep.subr.mxu0 0.0
        %5294 = vmatpush1.msra.mxu0 0.0
        %5295 = vmatprep.subr.mxu0 0.0
        %5296 = vmatpush1.msra.mxu0 0.0
        %5297 = vmatprep.subr.mxu0 0.0
        %5298 = vmatpush1.msra.mxu0 0.0
        %5299 = vmatprep.subr.mxu0 0.0
        %5300 = vmatpush1.msra.mxu0 0.0
        %5301 = vmatprep.subr.mxu0 0.0
        %5302 = vmatpush1.msra.mxu0 0.0
        %5303 = vmatprep.subr.mxu0 0.0
        %5304 = vmatpush1.msra.mxu0 0.0
        %5305 = vmatprep.subr.mxu0 0.0
        %5306 = vmatpush1.msra.mxu0 0.0
        %5307 = vmatprep.subr.mxu0 0.0
        %5308 = vmatpush1.msra.mxu0 0.0
        %5309 = vmatprep.subr.mxu0 0.0
        %5310 = vmatpush1.msra.mxu0 0.0
        %5311 = vmatprep.subr.mxu0 0.0
        %5312 = vmatpush1.msra.mxu0 0.0
        %5313 = vmatprep.subr.mxu0 0.0
        %5314 = vmatpush1.msra.mxu0 0.0
        %5315 = vmatprep.mubr.f32.mxu0 0.0
        %5316 = vmatmul.mubr.f32.gmra.mrb[0].mxu0 %v5176
        %v5317 = vpop.f32.mrb[0].mxu0
        %v5318 = vadd.f32 %v5248, %v5317
        %v5319 = vpop.f32.mrb[0].mxu0
        %5320 = vdwg.mxu0
        %v5321 = vadd.f32 %v5128, %v5318
        %s5322 = scalar_lea.vmem %s3, 7216
        %v5323 = vld [vmem:[%s5322] sm:$0xff]
        %v5324 = vld [vmem:[%s5322 + $0x8] sm:$0xff]
        %v5325 = vld [vmem:[%s5322 + $0x10] sm:$0xff]
        %v5326 = vld [vmem:[%s5322 + $0x18] sm:$0xff]
        %v5327 = vld [vmem:[%s5322 + $0x20] sm:$0xff]
        %v5328 = vld [vmem:[%s5322 + $0x28] sm:$0xff]
        %v5329 = vld [vmem:[%s5322 + $0x30] sm:$0xff]
        %v5330 = vld [vmem:[%s5322 + $0x38] sm:$0xff]
        %v5331 = vld [vmem:[%s5322 + $0x40] sm:$0xff]
        %v5332 = vld [vmem:[%s5322 + $0x48] sm:$0xff]
        %v5333 = vld [vmem:[%s5322 + $0x50] sm:$0xff]
        %v5334 = vld [vmem:[%s5322 + $0x58] sm:$0xff]
        %v5335 = vld [vmem:[%s5322 + $0x60] sm:$0xff]
        %v5336 = vld [vmem:[%s5322 + $0x68] sm:$0xff]
        %v5337 = vld [vmem:[%s5322 + $0x70] sm:$0xff]
        %v5338 = vld [vmem:[%s5322 + $0x78] sm:$0xff]
        %v5339 = vld [vmem:[%s5322 + $0x80] sm:$0xff]
        %v5340 = vld [vmem:[%s5322 + $0x88] sm:$0xff]
        %v5341 = vld [vmem:[%s5322 + $0x90] sm:$0xff]
        %v5342 = vld [vmem:[%s5322 + $0x98] sm:$0xff]
        %v5343 = vld [vmem:[%s5322 + $0xa0] sm:$0xff]
        %v5344 = vld [vmem:[%s5322 + $0xa8] sm:$0xff]
        %v5345 = vld [vmem:[%s5322 + $0xb0] sm:$0xff]
        %v5346 = vld [vmem:[%s5322 + $0xb8] sm:$0xff]
        %v5347 = vld [vmem:[%s5322 + $0xc0] sm:$0xff]
        %v5348 = vld [vmem:[%s5322 + $0xc8] sm:$0xff]
        %v5349 = vld [vmem:[%s5322 + $0xd0] sm:$0xff]
        %v5350 = vld [vmem:[%s5322 + $0xd8] sm:$0xff]
        %v5351 = vld [vmem:[%s5322 + $0xe0] sm:$0xff]
        %v5352 = vld [vmem:[%s5322 + $0xe8] sm:$0xff]
        %v5353 = vld [vmem:[%s5322 + $0xf0] sm:$0xff]
        %v5354 = vld [vmem:[%s5322 + $0xf8] sm:$0xff]
        %v5355 = vld [vmem:[%s5322 + $0x100] sm:$0xff]
        %v5356 = vld [vmem:[%s5322 + $0x108] sm:$0xff]
        %v5357 = vld [vmem:[%s5322 + $0x110] sm:$0xff]
        %v5358 = vld [vmem:[%s5322 + $0x118] sm:$0xff]
        %v5359 = vld [vmem:[%s5322 + $0x120] sm:$0xff]
        %v5360 = vld [vmem:[%s5322 + $0x128] sm:$0xff]
        %v5361 = vld [vmem:[%s5322 + $0x130] sm:$0xff]
        %v5362 = vld [vmem:[%s5322 + $0x138] sm:$0xff]
        %v5363 = vld [vmem:[%s5322 + $0x140] sm:$0xf]
        %v5364 = vrot.slane %v1077, 6
        %v5365 = vrot.slane %v1078, 6
        %v5366 = vrot.slane %v1079, 6
        %v5369 = vsel %vm1174, %v5366, 0
        %v5372 = vsel %vm1177, %v5363, 0
        %5374 = vmatprep.subr.mxu0 0.0
        %5375 = vmatpush1.msra.mxu0 %v5323
        %5376 = vmatprep.subr.mxu0 0.0
        %5377 = vmatpush1.msra.mxu0 %v5324
        %5378 = vmatprep.subr.mxu0 0.0
        %5379 = vmatpush1.msra.mxu0 %v5325
        %5380 = vmatprep.subr.mxu0 0.0
        %5381 = vmatpush1.msra.mxu0 %v5326
        %5382 = vmatprep.subr.mxu0 0.0
        %5383 = vmatpush1.msra.mxu0 %v5327
        %5384 = vmatprep.subr.mxu0 0.0
        %5385 = vmatpush1.msra.mxu0 %v5328
        %5386 = vmatprep.subr.mxu0 0.0
        %5387 = vmatpush1.msra.mxu0 %v5329
        %5388 = vmatprep.subr.mxu0 0.0
        %5389 = vmatpush1.msra.mxu0 %v5330
        %5390 = vmatprep.subr.mxu0 0.0
        %5391 = vmatpush1.msra.mxu0 %v5331
        %5392 = vmatprep.subr.mxu0 0.0
        %5393 = vmatpush1.msra.mxu0 %v5332
        %5394 = vmatprep.subr.mxu0 0.0
        %5395 = vmatpush1.msra.mxu0 %v5333
        %5396 = vmatprep.subr.mxu0 0.0
        %5397 = vmatpush1.msra.mxu0 %v5334
        %5398 = vmatprep.subr.mxu0 0.0
        %5399 = vmatpush1.msra.mxu0 %v5335
        %5400 = vmatprep.subr.mxu0 0.0
        %5401 = vmatpush1.msra.mxu0 %v5336
        %5402 = vmatprep.subr.mxu0 0.0
        %5403 = vmatpush1.msra.mxu0 %v5337
        %5404 = vmatprep.subr.mxu0 0.0
        %5405 = vmatpush1.msra.mxu0 %v5338
        %5406 = vmatprep.subr.mxu0 0.0
        %5407 = vmatpush1.msra.mxu0 %v5339
        %5408 = vmatprep.subr.mxu0 0.0
        %5409 = vmatpush1.msra.mxu0 %v5340
        %5410 = vmatprep.subr.mxu0 0.0
        %5411 = vmatpush1.msra.mxu0 %v5341
        %5412 = vmatprep.subr.mxu0 0.0
        %5413 = vmatpush1.msra.mxu0 %v5342
        %5414 = vmatprep.subr.mxu0 0.0
        %5415 = vmatpush1.msra.mxu0 %v5343
        %5416 = vmatprep.subr.mxu0 0.0
        %5417 = vmatpush1.msra.mxu0 %v5344
        %5418 = vmatprep.subr.mxu0 0.0
        %5419 = vmatpush1.msra.mxu0 %v5345
        %5420 = vmatprep.subr.mxu0 0.0
        %5421 = vmatpush1.msra.mxu0 %v5346
        %5422 = vmatprep.subr.mxu0 0.0
        %5423 = vmatpush1.msra.mxu0 %v5347
        %5424 = vmatprep.subr.mxu0 0.0
        %5425 = vmatpush1.msra.mxu0 %v5348
        %5426 = vmatprep.subr.mxu0 0.0
        %5427 = vmatpush1.msra.mxu0 %v5349
        %5428 = vmatprep.subr.mxu0 0.0
        %5429 = vmatpush1.msra.mxu0 %v5350
        %5430 = vmatprep.subr.mxu0 0.0
        %5431 = vmatpush1.msra.mxu0 %v5351
        %5432 = vmatprep.subr.mxu0 0.0
        %5433 = vmatpush1.msra.mxu0 %v5352
        %5434 = vmatprep.subr.mxu0 0.0
        %5435 = vmatpush1.msra.mxu0 %v5353
        %5436 = vmatprep.subr.mxu0 0.0
        %5437 = vmatpush1.msra.mxu0 %v5354
        %5438 = vmatprep.mubr.f32.mxu0 %v5365
        %5439 = vmatmul.mubr.f32.gmra.mrb[0].mxu0 %v5364
        %v5440 = vpop.f32.mrb[0].mxu0
        %v5441 = vadd.f32 0.0, %v5440
        %v5442 = vpop.f32.mrb[0].mxu0
        %5443 = vdwg.mxu0
        %5444 = vmatprep.subr.mxu0 0.0
        %5445 = vmatpush1.msra.mxu0 %v5355
        %5446 = vmatprep.subr.mxu0 0.0
        %5447 = vmatpush1.msra.mxu0 %v5356
        %5448 = vmatprep.subr.mxu0 0.0
        %5449 = vmatpush1.msra.mxu0 %v5357
        %5450 = vmatprep.subr.mxu0 0.0
        %5451 = vmatpush1.msra.mxu0 %v5358
        %5452 = vmatprep.subr.mxu0 0.0
        %5453 = vmatpush1.msra.mxu0 %v5359
        %5454 = vmatprep.subr.mxu0 0.0
        %5455 = vmatpush1.msra.mxu0 %v5360
        %5456 = vmatprep.subr.mxu0 0.0
        %5457 = vmatpush1.msra.mxu0 %v5361
        %5458 = vmatprep.subr.mxu0 0.0
        %5459 = vmatpush1.msra.mxu0 %v5362
        %5460 = vmatprep.subr.mxu0 0.0
        %5461 = vmatpush1.msra.mxu0 %v5372
        %5462 = vmatprep.subr.mxu0 0.0
        %5463 = vmatpush1.msra.mxu0 0.0
        %5464 = vmatprep.subr.mxu0 0.0
        %5465 = vmatpush1.msra.mxu0 0.0
        %5466 = vmatprep.subr.mxu0 0.0
        %5467 = vmatpush1.msra.mxu0 0.0
        %5468 = vmatprep.subr.mxu0 0.0
        %5469 = vmatpush1.msra.mxu0 0.0
        %5470 = vmatprep.subr.mxu0 0.0
        %5471 = vmatpush1.msra.mxu0 0.0
        %5472 = vmatprep.subr.mxu0 0.0
        %5473 = vmatpush1.msra.mxu0 0.0
        %5474 = vmatprep.subr.mxu0 0.0
        %5475 = vmatpush1.msra.mxu0 0.0
        %5476 = vmatprep.subr.mxu0 0.0
        %5477 = vmatpush1.msra.mxu0 0.0
        %5478 = vmatprep.subr.mxu0 0.0
        %5479 = vmatpush1.msra.mxu0 0.0
        %5480 = vmatprep.subr.mxu0 0.0
        %5481 = vmatpush1.msra.mxu0 0.0
        %5482 = vmatprep.subr.mxu0 0.0
        %5483 = vmatpush1.msra.mxu0 0.0
        %5484 = vmatprep.subr.mxu0 0.0
        %5485 = vmatpush1.msra.mxu0 0.0
        %5486 = vmatprep.subr.mxu0 0.0
        %5487 = vmatpush1.msra.mxu0 0.0
        %5488 = vmatprep.subr.mxu0 0.0
        %5489 = vmatpush1.msra.mxu0 0.0
        %5490 = vmatprep.subr.mxu0 0.0
        %5491 = vmatpush1.msra.mxu0 0.0
        %5492 = vmatprep.subr.mxu0 0.0
        %5493 = vmatpush1.msra.mxu0 0.0
        %5494 = vmatprep.subr.mxu0 0.0
        %5495 = vmatpush1.msra.mxu0 0.0
        %5496 = vmatprep.subr.mxu0 0.0
        %5497 = vmatpush1.msra.mxu0 0.0
        %5498 = vmatprep.subr.mxu0 0.0
        %5499 = vmatpush1.msra.mxu0 0.0
        %5500 = vmatprep.subr.mxu0 0.0
        %5501 = vmatpush1.msra.mxu0 0.0
        %5502 = vmatprep.subr.mxu0 0.0
        %5503 = vmatpush1.msra.mxu0 0.0
        %5504 = vmatprep.subr.mxu0 0.0
        %5505 = vmatpush1.msra.mxu0 0.0
        %5506 = vmatprep.subr.mxu0 0.0
        %5507 = vmatpush1.msra.mxu0 0.0
        %5508 = vmatprep.mubr.f32.mxu0 0.0
        %5509 = vmatmul.mubr.f32.gmra.mrb[0].mxu0 %v5369
        %v5510 = vpop.f32.mrb[0].mxu0
        %v5511 = vadd.f32 %v5441, %v5510
        %v5512 = vpop.f32.mrb[0].mxu0
        %5513 = vdwg.mxu0
        %v5514 = vadd.f32 %v5321, %v5511
        %s5515 = scalar_lea.vmem %s3, 7544
        %v5516 = vld [vmem:[%s5515] sm:$0xff]
        %v5517 = vld [vmem:[%s5515 + $0x8] sm:$0xff]
        %v5518 = vld [vmem:[%s5515 + $0x10] sm:$0xff]
        %v5519 = vld [vmem:[%s5515 + $0x18] sm:$0xff]
        %v5520 = vld [vmem:[%s5515 + $0x20] sm:$0xff]
        %v5521 = vld [vmem:[%s5515 + $0x28] sm:$0xff]
        %v5522 = vld [vmem:[%s5515 + $0x30] sm:$0xff]
        %v5523 = vld [vmem:[%s5515 + $0x38] sm:$0xff]
        %v5524 = vld [vmem:[%s5515 + $0x40] sm:$0xff]
        %v5525 = vld [vmem:[%s5515 + $0x48] sm:$0xff]
        %v5526 = vld [vmem:[%s5515 + $0x50] sm:$0xff]
        %v5527 = vld [vmem:[%s5515 + $0x58] sm:$0xff]
        %v5528 = vld [vmem:[%s5515 + $0x60] sm:$0xff]
        %v5529 = vld [vmem:[%s5515 + $0x68] sm:$0xff]
        %v5530 = vld [vmem:[%s5515 + $0x70] sm:$0xff]
        %v5531 = vld [vmem:[%s5515 + $0x78] sm:$0xff]
        %v5532 = vld [vmem:[%s5515 + $0x80] sm:$0xff]
        %v5533 = vld [vmem:[%s5515 + $0x88] sm:$0xff]
        %v5534 = vld [vmem:[%s5515 + $0x90] sm:$0xff]
        %v5535 = vld [vmem:[%s5515 + $0x98] sm:$0xff]
        %v5536 = vld [vmem:[%s5515 + $0xa0] sm:$0xff]
        %v5537 = vld [vmem:[%s5515 + $0xa8] sm:$0xff]
        %v5538 = vld [vmem:[%s5515 + $0xb0] sm:$0xff]
        %v5539 = vld [vmem:[%s5515 + $0xb8] sm:$0xff]
        %v5540 = vld [vmem:[%s5515 + $0xc0] sm:$0xff]
        %v5541 = vld [vmem:[%s5515 + $0xc8] sm:$0xff]
        %v5542 = vld [vmem:[%s5515 + $0xd0] sm:$0xff]
        %v5543 = vld [vmem:[%s5515 + $0xd8] sm:$0xff]
        %v5544 = vld [vmem:[%s5515 + $0xe0] sm:$0xff]
        %v5545 = vld [vmem:[%s5515 + $0xe8] sm:$0xff]
        %v5546 = vld [vmem:[%s5515 + $0xf0] sm:$0xff]
        %v5547 = vld [vmem:[%s5515 + $0xf8] sm:$0xff]
        %v5548 = vld [vmem:[%s5515 + $0x100] sm:$0xff]
        %v5549 = vld [vmem:[%s5515 + $0x108] sm:$0xff]
        %v5550 = vld [vmem:[%s5515 + $0x110] sm:$0xff]
        %v5551 = vld [vmem:[%s5515 + $0x118] sm:$0xff]
        %v5552 = vld [vmem:[%s5515 + $0x120] sm:$0xff]
        %v5553 = vld [vmem:[%s5515 + $0x128] sm:$0xff]
        %v5554 = vld [vmem:[%s5515 + $0x130] sm:$0xff]
        %v5555 = vld [vmem:[%s5515 + $0x138] sm:$0xff]
        %v5556 = vld [vmem:[%s5515 + $0x140] sm:$0xf]
        %v5557 = vrot.slane %v1077, 7
        %v5558 = vrot.slane %v1078, 7
        %v5559 = vrot.slane %v1079, 7
        %v5562 = vsel %vm1174, %v5559, 0
        %v5565 = vsel %vm1177, %v5556, 0
        %5567 = vmatprep.subr.mxu0 0.0
        %5568 = vmatpush1.msra.mxu0 %v5516
        %5569 = vmatprep.subr.mxu0 0.0
        %5570 = vmatpush1.msra.mxu0 %v5517
        %5571 = vmatprep.subr.mxu0 0.0
        %5572 = vmatpush1.msra.mxu0 %v5518
        %5573 = vmatprep.subr.mxu0 0.0
        %5574 = vmatpush1.msra.mxu0 %v5519
        %5575 = vmatprep.subr.mxu0 0.0
        %5576 = vmatpush1.msra.mxu0 %v5520
        %5577 = vmatprep.subr.mxu0 0.0
        %5578 = vmatpush1.msra.mxu0 %v5521
        %5579 = vmatprep.subr.mxu0 0.0
        %5580 = vmatpush1.msra.mxu0 %v5522
        %5581 = vmatprep.subr.mxu0 0.0
        %5582 = vmatpush1.msra.mxu0 %v5523
        %5583 = vmatprep.subr.mxu0 0.0
        %5584 = vmatpush1.msra.mxu0 %v5524
        %5585 = vmatprep.subr.mxu0 0.0
        %5586 = vmatpush1.msra.mxu0 %v5525
        %5587 = vmatprep.subr.mxu0 0.0
        %5588 = vmatpush1.msra.mxu0 %v5526
        %5589 = vmatprep.subr.mxu0 0.0
        %5590 = vmatpush1.msra.mxu0 %v5527
        %5591 = vmatprep.subr.mxu0 0.0
        %5592 = vmatpush1.msra.mxu0 %v5528
        %5593 = vmatprep.subr.mxu0 0.0
        %5594 = vmatpush1.msra.mxu0 %v5529
        %5595 = vmatprep.subr.mxu0 0.0
        %5596 = vmatpush1.msra.mxu0 %v5530
        %5597 = vmatprep.subr.mxu0 0.0
        %5598 = vmatpush1.msra.mxu0 %v5531
        %5599 = vmatprep.subr.mxu0 0.0
        %5600 = vmatpush1.msra.mxu0 %v5532
        %5601 = vmatprep.subr.mxu0 0.0
        %5602 = vmatpush1.msra.mxu0 %v5533
        %5603 = vmatprep.subr.mxu0 0.0
        %5604 = vmatpush1.msra.mxu0 %v5534
        %5605 = vmatprep.subr.mxu0 0.0
        %5606 = vmatpush1.msra.mxu0 %v5535
        %5607 = vmatprep.subr.mxu0 0.0
        %5608 = vmatpush1.msra.mxu0 %v5536
        %5609 = vmatprep.subr.mxu0 0.0
        %5610 = vmatpush1.msra.mxu0 %v5537
        %5611 = vmatprep.subr.mxu0 0.0
        %5612 = vmatpush1.msra.mxu0 %v5538
        %5613 = vmatprep.subr.mxu0 0.0
        %5614 = vmatpush1.msra.mxu0 %v5539
        %5615 = vmatprep.subr.mxu0 0.0
        %5616 = vmatpush1.msra.mxu0 %v5540
        %5617 = vmatprep.subr.mxu0 0.0
        %5618 = vmatpush1.msra.mxu0 %v5541
        %5619 = vmatprep.subr.mxu0 0.0
        %5620 = vmatpush1.msra.mxu0 %v5542
        %5621 = vmatprep.subr.mxu0 0.0
        %5622 = vmatpush1.msra.mxu0 %v5543
        %5623 = vmatprep.subr.mxu0 0.0
        %5624 = vmatpush1.msra.mxu0 %v5544
        %5625 = vmatprep.subr.mxu0 0.0
        %5626 = vmatpush1.msra.mxu0 %v5545
        %5627 = vmatprep.subr.mxu0 0.0
        %5628 = vmatpush1.msra.mxu0 %v5546
        %5629 = vmatprep.subr.mxu0 0.0
        %5630 = vmatpush1.msra.mxu0 %v5547
        %5631 = vmatprep.mubr.f32.mxu0 %v5558
        %5632 = vmatmul.mubr.f32.gmra.mrb[0].mxu0 %v5557
        %v5633 = vpop.f32.mrb[0].mxu0
        %v5634 = vadd.f32 0.0, %v5633
        %v5635 = vpop.f32.mrb[0].mxu0
        %5636 = vdwg.mxu0
        %5637 = vmatprep.subr.mxu0 0.0
        %5638 = vmatpush1.msra.mxu0 %v5548
        %5639 = vmatprep.subr.mxu0 0.0
        %5640 = vmatpush1.msra.mxu0 %v5549
        %5641 = vmatprep.subr.mxu0 0.0
        %5642 = vmatpush1.msra.mxu0 %v5550
        %5643 = vmatprep.subr.mxu0 0.0
        %5644 = vmatpush1.msra.mxu0 %v5551
        %5645 = vmatprep.subr.mxu0 0.0
        %5646 = vmatpush1.msra.mxu0 %v5552
        %5647 = vmatprep.subr.mxu0 0.0
        %5648 = vmatpush1.msra.mxu0 %v5553
        %5649 = vmatprep.subr.mxu0 0.0
        %5650 = vmatpush1.msra.mxu0 %v5554
        %5651 = vmatprep.subr.mxu0 0.0
        %5652 = vmatpush1.msra.mxu0 %v5555
        %5653 = vmatprep.subr.mxu0 0.0
        %5654 = vmatpush1.msra.mxu0 %v5565
        %5655 = vmatprep.subr.mxu0 0.0
        %5656 = vmatpush1.msra.mxu0 0.0
        %5657 = vmatprep.subr.mxu0 0.0
        %5658 = vmatpush1.msra.mxu0 0.0
        %5659 = vmatprep.subr.mxu0 0.0
        %5660 = vmatpush1.msra.mxu0 0.0
        %5661 = vmatprep.subr.mxu0 0.0
        %5662 = vmatpush1.msra.mxu0 0.0
        %5663 = vmatprep.subr.mxu0 0.0
        %5664 = vmatpush1.msra.mxu0 0.0
        %5665 = vmatprep.subr.mxu0 0.0
        %5666 = vmatpush1.msra.mxu0 0.0
        %5667 = vmatprep.subr.mxu0 0.0
        %5668 = vmatpush1.msra.mxu0 0.0
        %5669 = vmatprep.subr.mxu0 0.0
        %5670 = vmatpush1.msra.mxu0 0.0
        %5671 = vmatprep.subr.mxu0 0.0
        %5672 = vmatpush1.msra.mxu0 0.0
        %5673 = vmatprep.subr.mxu0 0.0
        %5674 = vmatpush1.msra.mxu0 0.0
        %5675 = vmatprep.subr.mxu0 0.0
        %5676 = vmatpush1.msra.mxu0 0.0
        %5677 = vmatprep.subr.mxu0 0.0
        %5678 = vmatpush1.msra.mxu0 0.0
        %5679 = vmatprep.subr.mxu0 0.0
        %5680 = vmatpush1.msra.mxu0 0.0
        %5681 = vmatprep.subr.mxu0 0.0
        %5682 = vmatpush1.msra.mxu0 0.0
        %5683 = vmatprep.subr.mxu0 0.0
        %5684 = vmatpush1.msra.mxu0 0.0
        %5685 = vmatprep.subr.mxu0 0.0
        %5686 = vmatpush1.msra.mxu0 0.0
        %5687 = vmatprep.subr.mxu0 0.0
        %5688 = vmatpush1.msra.mxu0 0.0
        %5689 = vmatprep.subr.mxu0 0.0
        %5690 = vmatpush1.msra.mxu0 0.0
        %5691 = vmatprep.subr.mxu0 0.0
        %5692 = vmatpush1.msra.mxu0 0.0
        %5693 = vmatprep.subr.mxu0 0.0
        %5694 = vmatpush1.msra.mxu0 0.0
        %5695 = vmatprep.subr.mxu0 0.0
        %5696 = vmatpush1.msra.mxu0 0.0
        %5697 = vmatprep.subr.mxu0 0.0
        %5698 = vmatpush1.msra.mxu0 0.0
        %5699 = vmatprep.subr.mxu0 0.0
        %5700 = vmatpush1.msra.mxu0 0.0
        %5701 = vmatprep.mubr.f32.mxu0 0.0
        %5702 = vmatmul.mubr.f32.gmra.mrb[0].mxu0 %v5562
        %v5703 = vpop.f32.mrb[0].mxu0
        %v5704 = vadd.f32 %v5634, %v5703
        %v5705 = vpop.f32.mrb[0].mxu0
        %5706 = vdwg.mxu0
        %v5707 = vadd.f32 %v5514, %v5704
        %s5708 = scalar_lea.vmem %s3, 7872
        %v5709 = vld [vmem:[%s5708] sm:$0xff]
        %v5710 = vld [vmem:[%s5708 + $0x8] sm:$0xff]
        %v5711 = vld [vmem:[%s5708 + $0x10] sm:$0xff]
        %v5712 = vld [vmem:[%s5708 + $0x18] sm:$0xff]
        %v5713 = vld [vmem:[%s5708 + $0x20] sm:$0xff]
        %v5714 = vld [vmem:[%s5708 + $0x28] sm:$0xff]
        %v5715 = vld [vmem:[%s5708 + $0x30] sm:$0xff]
        %v5716 = vld [vmem:[%s5708 + $0x38] sm:$0xff]
        %v5717 = vld [vmem:[%s5708 + $0x40] sm:$0xff]
        %v5718 = vld [vmem:[%s5708 + $0x48] sm:$0xff]
        %v5719 = vld [vmem:[%s5708 + $0x50] sm:$0xff]
        %v5720 = vld [vmem:[%s5708 + $0x58] sm:$0xff]
        %v5721 = vld [vmem:[%s5708 + $0x60] sm:$0xff]
        %v5722 = vld [vmem:[%s5708 + $0x68] sm:$0xff]
        %v5723 = vld [vmem:[%s5708 + $0x70] sm:$0xff]
        %v5724 = vld [vmem:[%s5708 + $0x78] sm:$0xff]
        %v5725 = vld [vmem:[%s5708 + $0x80] sm:$0xff]
        %v5726 = vld [vmem:[%s5708 + $0x88] sm:$0xff]
        %v5727 = vld [vmem:[%s5708 + $0x90] sm:$0xff]
        %v5728 = vld [vmem:[%s5708 + $0x98] sm:$0xff]
        %v5729 = vld [vmem:[%s5708 + $0xa0] sm:$0xff]
        %v5730 = vld [vmem:[%s5708 + $0xa8] sm:$0xff]
        %v5731 = vld [vmem:[%s5708 + $0xb0] sm:$0xff]
        %v5732 = vld [vmem:[%s5708 + $0xb8] sm:$0xff]
        %v5733 = vld [vmem:[%s5708 + $0xc0] sm:$0xff]
        %v5734 = vld [vmem:[%s5708 + $0xc8] sm:$0xff]
        %v5735 = vld [vmem:[%s5708 + $0xd0] sm:$0xff]
        %v5736 = vld [vmem:[%s5708 + $0xd8] sm:$0xff]
        %v5737 = vld [vmem:[%s5708 + $0xe0] sm:$0xff]
        %v5738 = vld [vmem:[%s5708 + $0xe8] sm:$0xff]
        %v5739 = vld [vmem:[%s5708 + $0xf0] sm:$0xff]
        %v5740 = vld [vmem:[%s5708 + $0xf8] sm:$0xff]
        %v5741 = vld [vmem:[%s5708 + $0x100] sm:$0xff]
        %v5742 = vld [vmem:[%s5708 + $0x108] sm:$0xff]
        %v5743 = vld [vmem:[%s5708 + $0x110] sm:$0xff]
        %v5744 = vld [vmem:[%s5708 + $0x118] sm:$0xff]
        %v5745 = vld [vmem:[%s5708 + $0x120] sm:$0xff]
        %v5746 = vld [vmem:[%s5708 + $0x128] sm:$0xff]
        %v5747 = vld [vmem:[%s5708 + $0x130] sm:$0xff]
        %v5748 = vld [vmem:[%s5708 + $0x138] sm:$0xff]
        %v5749 = vld [vmem:[%s5708 + $0x140] sm:$0xf]
        %v5751 = vsel %vm1174, %v1082, 0
        %v5754 = vsel %vm1177, %v5749, 0
        %5756 = vmatprep.subr.mxu0 0.0
        %5757 = vmatpush1.msra.mxu0 %v5709
        %5758 = vmatprep.subr.mxu0 0.0
        %5759 = vmatpush1.msra.mxu0 %v5710
        %5760 = vmatprep.subr.mxu0 0.0
        %5761 = vmatpush1.msra.mxu0 %v5711
        %5762 = vmatprep.subr.mxu0 0.0
        %5763 = vmatpush1.msra.mxu0 %v5712
        %5764 = vmatprep.subr.mxu0 0.0
        %5765 = vmatpush1.msra.mxu0 %v5713
        %5766 = vmatprep.subr.mxu0 0.0
        %5767 = vmatpush1.msra.mxu0 %v5714
        %5768 = vmatprep.subr.mxu0 0.0
        %5769 = vmatpush1.msra.mxu0 %v5715
        %5770 = vmatprep.subr.mxu0 0.0
        %5771 = vmatpush1.msra.mxu0 %v5716
        %5772 = vmatprep.subr.mxu0 0.0
        %5773 = vmatpush1.msra.mxu0 %v5717
        %5774 = vmatprep.subr.mxu0 0.0
        %5775 = vmatpush1.msra.mxu0 %v5718
        %5776 = vmatprep.subr.mxu0 0.0
        %5777 = vmatpush1.msra.mxu0 %v5719
        %5778 = vmatprep.subr.mxu0 0.0
        %5779 = vmatpush1.msra.mxu0 %v5720
        %5780 = vmatprep.subr.mxu0 0.0
        %5781 = vmatpush1.msra.mxu0 %v5721
        %5782 = vmatprep.subr.mxu0 0.0
        %5783 = vmatpush1.msra.mxu0 %v5722
        %5784 = vmatprep.subr.mxu0 0.0
        %5785 = vmatpush1.msra.mxu0 %v5723
        %5786 = vmatprep.subr.mxu0 0.0
        %5787 = vmatpush1.msra.mxu0 %v5724
        %5788 = vmatprep.subr.mxu0 0.0
        %5789 = vmatpush1.msra.mxu0 %v5725
        %5790 = vmatprep.subr.mxu0 0.0
        %5791 = vmatpush1.msra.mxu0 %v5726
        %5792 = vmatprep.subr.mxu0 0.0
        %5793 = vmatpush1.msra.mxu0 %v5727
        %5794 = vmatprep.subr.mxu0 0.0
        %5795 = vmatpush1.msra.mxu0 %v5728
        %5796 = vmatprep.subr.mxu0 0.0
        %5797 = vmatpush1.msra.mxu0 %v5729
        %5798 = vmatprep.subr.mxu0 0.0
        %5799 = vmatpush1.msra.mxu0 %v5730
        %5800 = vmatprep.subr.mxu0 0.0
        %5801 = vmatpush1.msra.mxu0 %v5731
        %5802 = vmatprep.subr.mxu0 0.0
        %5803 = vmatpush1.msra.mxu0 %v5732
        %5804 = vmatprep.subr.mxu0 0.0
        %5805 = vmatpush1.msra.mxu0 %v5733
        %5806 = vmatprep.subr.mxu0 0.0
        %5807 = vmatpush1.msra.mxu0 %v5734
        %5808 = vmatprep.subr.mxu0 0.0
        %5809 = vmatpush1.msra.mxu0 %v5735
        %5810 = vmatprep.subr.mxu0 0.0
        %5811 = vmatpush1.msra.mxu0 %v5736
        %5812 = vmatprep.subr.mxu0 0.0
        %5813 = vmatpush1.msra.mxu0 %v5737
        %5814 = vmatprep.subr.mxu0 0.0
        %5815 = vmatpush1.msra.mxu0 %v5738
        %5816 = vmatprep.subr.mxu0 0.0
        %5817 = vmatpush1.msra.mxu0 %v5739
        %5818 = vmatprep.subr.mxu0 0.0
        %5819 = vmatpush1.msra.mxu0 %v5740
        %5820 = vmatprep.mubr.f32.mxu0 %v1081
        %5821 = vmatmul.mubr.f32.gmra.mrb[0].mxu0 %v1080
        %v5822 = vpop.f32.mrb[0].mxu0
        %v5823 = vadd.f32 0.0, %v5822
        %v5824 = vpop.f32.mrb[0].mxu0
        %5825 = vdwg.mxu0
        %5826 = vmatprep.subr.mxu0 0.0
        %5827 = vmatpush1.msra.mxu0 %v5741
        %5828 = vmatprep.subr.mxu0 0.0
        %5829 = vmatpush1.msra.mxu0 %v5742
        %5830 = vmatprep.subr.mxu0 0.0
        %5831 = vmatpush1.msra.mxu0 %v5743
        %5832 = vmatprep.subr.mxu0 0.0
        %5833 = vmatpush1.msra.mxu0 %v5744
        %5834 = vmatprep.subr.mxu0 0.0
        %5835 = vmatpush1.msra.mxu0 %v5745
        %5836 = vmatprep.subr.mxu0 0.0
        %5837 = vmatpush1.msra.mxu0 %v5746
        %5838 = vmatprep.subr.mxu0 0.0
        %5839 = vmatpush1.msra.mxu0 %v5747
        %5840 = vmatprep.subr.mxu0 0.0
        %5841 = vmatpush1.msra.mxu0 %v5748
        %5842 = vmatprep.subr.mxu0 0.0
        %5843 = vmatpush1.msra.mxu0 %v5754
        %5844 = vmatprep.subr.mxu0 0.0
        %5845 = vmatpush1.msra.mxu0 0.0
        %5846 = vmatprep.subr.mxu0 0.0
        %5847 = vmatpush1.msra.mxu0 0.0
        %5848 = vmatprep.subr.mxu0 0.0
        %5849 = vmatpush1.msra.mxu0 0.0
        %5850 = vmatprep.subr.mxu0 0.0
        %5851 = vmatpush1.msra.mxu0 0.0
        %5852 = vmatprep.subr.mxu0 0.0
        %5853 = vmatpush1.msra.mxu0 0.0
        %5854 = vmatprep.subr.mxu0 0.0
        %5855 = vmatpush1.msra.mxu0 0.0
        %5856 = vmatprep.subr.mxu0 0.0
        %5857 = vmatpush1.msra.mxu0 0.0
        %5858 = vmatprep.subr.mxu0 0.0
        %5859 = vmatpush1.msra.mxu0 0.0
        %5860 = vmatprep.subr.mxu0 0.0
        %5861 = vmatpush1.msra.mxu0 0.0
        %5862 = vmatprep.subr.mxu0 0.0
        %5863 = vmatpush1.msra.mxu0 0.0
        %5864 = vmatprep.subr.mxu0 0.0
        %5865 = vmatpush1.msra.mxu0 0.0
        %5866 = vmatprep.subr.mxu0 0.0
        %5867 = vmatpush1.msra.mxu0 0.0
        %5868 = vmatprep.subr.mxu0 0.0
        %5869 = vmatpush1.msra.mxu0 0.0
        %5870 = vmatprep.subr.mxu0 0.0
        %5871 = vmatpush1.msra.mxu0 0.0
        %5872 = vmatprep.subr.mxu0 0.0
        %5873 = vmatpush1.msra.mxu0 0.0
        %5874 = vmatprep.subr.mxu0 0.0
        %5875 = vmatpush1.msra.mxu0 0.0
        %5876 = vmatprep.subr.mxu0 0.0
        %5877 = vmatpush1.msra.mxu0 0.0
        %5878 = vmatprep.subr.mxu0 0.0
        %5879 = vmatpush1.msra.mxu0 0.0
        %5880 = vmatprep.subr.mxu0 0.0
        %5881 = vmatpush1.msra.mxu0 0.0
        %5882 = vmatprep.subr.mxu0 0.0
        %5883 = vmatpush1.msra.mxu0 0.0
        %5884 = vmatprep.subr.mxu0 0.0
        %5885 = vmatpush1.msra.mxu0 0.0
        %5886 = vmatprep.subr.mxu0 0.0
        %5887 = vmatpush1.msra.mxu0 0.0
        %5888 = vmatprep.subr.mxu0 0.0
        %5889 = vmatpush1.msra.mxu0 0.0
        %5890 = vmatprep.mubr.f32.mxu0 0.0
        %5891 = vmatmul.mubr.f32.gmra.mrb[0].mxu0 %v5751
        %v5892 = vpop.f32.mrb[0].mxu0
        %v5893 = vadd.f32 %v5823, %v5892
        %v5894 = vpop.f32.mrb[0].mxu0
        %5895 = vdwg.mxu0
        %v5896 = vadd.f32 %v5707, %v5893
        %s5897 = scalar_lea.vmem %s3, 8200
        %v5898 = vld [vmem:[%s5897] sm:$0xff]
        %v5899 = vld [vmem:[%s5897 + $0x8] sm:$0xff]
        %v5900 = vld [vmem:[%s5897 + $0x10] sm:$0xff]
        %v5901 = vld [vmem:[%s5897 + $0x18] sm:$0xff]
        %v5902 = vld [vmem:[%s5897 + $0x20] sm:$0xff]
        %v5903 = vld [vmem:[%s5897 + $0x28] sm:$0xff]
        %v5904 = vld [vmem:[%s5897 + $0x30] sm:$0xff]
        %v5905 = vld [vmem:[%s5897 + $0x38] sm:$0xff]
        %v5906 = vld [vmem:[%s5897 + $0x40] sm:$0xff]
        %v5907 = vld [vmem:[%s5897 + $0x48] sm:$0xff]
        %v5908 = vld [vmem:[%s5897 + $0x50] sm:$0xff]
        %v5909 = vld [vmem:[%s5897 + $0x58] sm:$0xff]
        %v5910 = vld [vmem:[%s5897 + $0x60] sm:$0xff]
        %v5911 = vld [vmem:[%s5897 + $0x68] sm:$0xff]
        %v5912 = vld [vmem:[%s5897 + $0x70] sm:$0xff]
        %v5913 = vld [vmem:[%s5897 + $0x78] sm:$0xff]
        %v5914 = vld [vmem:[%s5897 + $0x80] sm:$0xff]
        %v5915 = vld [vmem:[%s5897 + $0x88] sm:$0xff]
        %v5916 = vld [vmem:[%s5897 + $0x90] sm:$0xff]
        %v5917 = vld [vmem:[%s5897 + $0x98] sm:$0xff]
        %v5918 = vld [vmem:[%s5897 + $0xa0] sm:$0xff]
        %v5919 = vld [vmem:[%s5897 + $0xa8] sm:$0xff]
        %v5920 = vld [vmem:[%s5897 + $0xb0] sm:$0xff]
        %v5921 = vld [vmem:[%s5897 + $0xb8] sm:$0xff]
        %v5922 = vld [vmem:[%s5897 + $0xc0] sm:$0xff]
        %v5923 = vld [vmem:[%s5897 + $0xc8] sm:$0xff]
        %v5924 = vld [vmem:[%s5897 + $0xd0] sm:$0xff]
        %v5925 = vld [vmem:[%s5897 + $0xd8] sm:$0xff]
        %v5926 = vld [vmem:[%s5897 + $0xe0] sm:$0xff]
        %v5927 = vld [vmem:[%s5897 + $0xe8] sm:$0xff]
        %v5928 = vld [vmem:[%s5897 + $0xf0] sm:$0xff]
        %v5929 = vld [vmem:[%s5897 + $0xf8] sm:$0xff]
        %v5930 = vld [vmem:[%s5897 + $0x100] sm:$0xff]
        %v5931 = vld [vmem:[%s5897 + $0x108] sm:$0xff]
        %v5932 = vld [vmem:[%s5897 + $0x110] sm:$0xff]
        %v5933 = vld [vmem:[%s5897 + $0x118] sm:$0xff]
        %v5934 = vld [vmem:[%s5897 + $0x120] sm:$0xff]
        %v5935 = vld [vmem:[%s5897 + $0x128] sm:$0xff]
        %v5936 = vld [vmem:[%s5897 + $0x130] sm:$0xff]
        %v5937 = vld [vmem:[%s5897 + $0x138] sm:$0xff]
        %v5938 = vld [vmem:[%s5897 + $0x140] sm:$0xf]
        %v5941 = vrot.slane %v1080, 1
        %v5942 = vrot.slane %v1081, 1
        %v5943 = vrot.slane %v1082, 1
        %v5946 = vsel %vm1174, %v5943, 0
        %v5949 = vsel %vm1177, %v5938, 0
        %5951 = vmatprep.subr.mxu0 0.0
        %5952 = vmatpush1.msra.mxu0 %v5898
        %5953 = vmatprep.subr.mxu0 0.0
        %5954 = vmatpush1.msra.mxu0 %v5899
        %5955 = vmatprep.subr.mxu0 0.0
        %5956 = vmatpush1.msra.mxu0 %v5900
        %5957 = vmatprep.subr.mxu0 0.0
        %5958 = vmatpush1.msra.mxu0 %v5901
        %5959 = vmatprep.subr.mxu0 0.0
        %5960 = vmatpush1.msra.mxu0 %v5902
        %5961 = vmatprep.subr.mxu0 0.0
        %5962 = vmatpush1.msra.mxu0 %v5903
        %5963 = vmatprep.subr.mxu0 0.0
        %5964 = vmatpush1.msra.mxu0 %v5904
        %5965 = vmatprep.subr.mxu0 0.0
        %5966 = vmatpush1.msra.mxu0 %v5905
        %5967 = vmatprep.subr.mxu0 0.0
        %5968 = vmatpush1.msra.mxu0 %v5906
        %5969 = vmatprep.subr.mxu0 0.0
        %5970 = vmatpush1.msra.mxu0 %v5907
        %5971 = vmatprep.subr.mxu0 0.0
        %5972 = vmatpush1.msra.mxu0 %v5908
        %5973 = vmatprep.subr.mxu0 0.0
        %5974 = vmatpush1.msra.mxu0 %v5909
        %5975 = vmatprep.subr.mxu0 0.0
        %5976 = vmatpush1.msra.mxu0 %v5910
        %5977 = vmatprep.subr.mxu0 0.0
        %5978 = vmatpush1.msra.mxu0 %v5911
        %5979 = vmatprep.subr.mxu0 0.0
        %5980 = vmatpush1.msra.mxu0 %v5912
        %5981 = vmatprep.subr.mxu0 0.0
        %5982 = vmatpush1.msra.mxu0 %v5913
        %5983 = vmatprep.subr.mxu0 0.0
        %5984 = vmatpush1.msra.mxu0 %v5914
        %5985 = vmatprep.subr.mxu0 0.0
        %5986 = vmatpush1.msra.mxu0 %v5915
        %5987 = vmatprep.subr.mxu0 0.0
        %5988 = vmatpush1.msra.mxu0 %v5916
        %5989 = vmatprep.subr.mxu0 0.0
        %5990 = vmatpush1.msra.mxu0 %v5917
        %5991 = vmatprep.subr.mxu0 0.0
        %5992 = vmatpush1.msra.mxu0 %v5918
        %5993 = vmatprep.subr.mxu0 0.0
        %5994 = vmatpush1.msra.mxu0 %v5919
        %5995 = vmatprep.subr.mxu0 0.0
        %5996 = vmatpush1.msra.mxu0 %v5920
        %5997 = vmatprep.subr.mxu0 0.0
        %5998 = vmatpush1.msra.mxu0 %v5921
        %5999 = vmatprep.subr.mxu0 0.0
        %6000 = vmatpush1.msra.mxu0 %v5922
        %6001 = vmatprep.subr.mxu0 0.0
        %6002 = vmatpush1.msra.mxu0 %v5923
        %6003 = vmatprep.subr.mxu0 0.0
        %6004 = vmatpush1.msra.mxu0 %v5924
        %6005 = vmatprep.subr.mxu0 0.0
        %6006 = vmatpush1.msra.mxu0 %v5925
        %6007 = vmatprep.subr.mxu0 0.0
        %6008 = vmatpush1.msra.mxu0 %v5926
        %6009 = vmatprep.subr.mxu0 0.0
        %6010 = vmatpush1.msra.mxu0 %v5927
        %6011 = vmatprep.subr.mxu0 0.0
        %6012 = vmatpush1.msra.mxu0 %v5928
        %6013 = vmatprep.subr.mxu0 0.0
        %6014 = vmatpush1.msra.mxu0 %v5929
        %6015 = vmatprep.mubr.f32.mxu0 %v5942
        %6016 = vmatmul.mubr.f32.gmra.mrb[0].mxu0 %v5941
        %v6017 = vpop.f32.mrb[0].mxu0
        %v6018 = vadd.f32 0.0, %v6017
        %v6019 = vpop.f32.mrb[0].mxu0
        %6020 = vdwg.mxu0
        %6021 = vmatprep.subr.mxu0 0.0
        %6022 = vmatpush1.msra.mxu0 %v5930
        %6023 = vmatprep.subr.mxu0 0.0
        %6024 = vmatpush1.msra.mxu0 %v5931
        %6025 = vmatprep.subr.mxu0 0.0
        %6026 = vmatpush1.msra.mxu0 %v5932
        %6027 = vmatprep.subr.mxu0 0.0
        %6028 = vmatpush1.msra.mxu0 %v5933
        %6029 = vmatprep.subr.mxu0 0.0
        %6030 = vmatpush1.msra.mxu0 %v5934
        %6031 = vmatprep.subr.mxu0 0.0
        %6032 = vmatpush1.msra.mxu0 %v5935
        %6033 = vmatprep.subr.mxu0 0.0
        %6034 = vmatpush1.msra.mxu0 %v5936
        %6035 = vmatprep.subr.mxu0 0.0
        %6036 = vmatpush1.msra.mxu0 %v5937
        %6037 = vmatprep.subr.mxu0 0.0
        %6038 = vmatpush1.msra.mxu0 %v5949
        %6039 = vmatprep.subr.mxu0 0.0
        %6040 = vmatpush1.msra.mxu0 0.0
        %6041 = vmatprep.subr.mxu0 0.0
        %6042 = vmatpush1.msra.mxu0 0.0
        %6043 = vmatprep.subr.mxu0 0.0
        %6044 = vmatpush1.msra.mxu0 0.0
        %6045 = vmatprep.subr.mxu0 0.0
        %6046 = vmatpush1.msra.mxu0 0.0
        %6047 = vmatprep.subr.mxu0 0.0
        %6048 = vmatpush1.msra.mxu0 0.0
        %6049 = vmatprep.subr.mxu0 0.0
        %6050 = vmatpush1.msra.mxu0 0.0
        %6051 = vmatprep.subr.mxu0 0.0
        %6052 = vmatpush1.msra.mxu0 0.0
        %6053 = vmatprep.subr.mxu0 0.0
        %6054 = vmatpush1.msra.mxu0 0.0
        %6055 = vmatprep.subr.mxu0 0.0
        %6056 = vmatpush1.msra.mxu0 0.0
        %6057 = vmatprep.subr.mxu0 0.0
        %6058 = vmatpush1.msra.mxu0 0.0
        %6059 = vmatprep.subr.mxu0 0.0
        %6060 = vmatpush1.msra.mxu0 0.0
        %6061 = vmatprep.subr.mxu0 0.0
        %6062 = vmatpush1.msra.mxu0 0.0
        %6063 = vmatprep.subr.mxu0 0.0
        %6064 = vmatpush1.msra.mxu0 0.0
        %6065 = vmatprep.subr.mxu0 0.0
        %6066 = vmatpush1.msra.mxu0 0.0
        %6067 = vmatprep.subr.mxu0 0.0
        %6068 = vmatpush1.msra.mxu0 0.0
        %6069 = vmatprep.subr.mxu0 0.0
        %6070 = vmatpush1.msra.mxu0 0.0
        %6071 = vmatprep.subr.mxu0 0.0
        %6072 = vmatpush1.msra.mxu0 0.0
        %6073 = vmatprep.subr.mxu0 0.0
        %6074 = vmatpush1.msra.mxu0 0.0
        %6075 = vmatprep.subr.mxu0 0.0
        %6076 = vmatpush1.msra.mxu0 0.0
        %6077 = vmatprep.subr.mxu0 0.0
        %6078 = vmatpush1.msra.mxu0 0.0
        %6079 = vmatprep.subr.mxu0 0.0
        %6080 = vmatpush1.msra.mxu0 0.0
        %6081 = vmatprep.subr.mxu0 0.0
        %6082 = vmatpush1.msra.mxu0 0.0
        %6083 = vmatprep.subr.mxu0 0.0
        %6084 = vmatpush1.msra.mxu0 0.0
        %6085 = vmatprep.mubr.f32.mxu0 0.0
        %6086 = vmatmul.mubr.f32.gmra.mrb[0].mxu0 %v5946
        %v6087 = vpop.f32.mrb[0].mxu0
        %v6088 = vadd.f32 %v6018, %v6087
        %v6089 = vpop.f32.mrb[0].mxu0
        %6090 = vdwg.mxu0
        %v6091 = vadd.f32 %v5896, %v6088
        %s6092 = scalar_lea.vmem %s3, 8528
        %v6093 = vld [vmem:[%s6092] sm:$0xff]
        %v6094 = vld [vmem:[%s6092 + $0x8] sm:$0xff]
        %v6095 = vld [vmem:[%s6092 + $0x10] sm:$0xff]
        %v6096 = vld [vmem:[%s6092 + $0x18] sm:$0xff]
        %v6097 = vld [vmem:[%s6092 + $0x20] sm:$0xff]
        %v6098 = vld [vmem:[%s6092 + $0x28] sm:$0xff]
        %v6099 = vld [vmem:[%s6092 + $0x30] sm:$0xff]
        %v6100 = vld [vmem:[%s6092 + $0x38] sm:$0xff]
        %v6101 = vld [vmem:[%s6092 + $0x40] sm:$0xff]
        %v6102 = vld [vmem:[%s6092 + $0x48] sm:$0xff]
        %v6103 = vld [vmem:[%s6092 + $0x50] sm:$0xff]
        %v6104 = vld [vmem:[%s6092 + $0x58] sm:$0xff]
        %v6105 = vld [vmem:[%s6092 + $0x60] sm:$0xff]
        %v6106 = vld [vmem:[%s6092 + $0x68] sm:$0xff]
        %v6107 = vld [vmem:[%s6092 + $0x70] sm:$0xff]
        %v6108 = vld [vmem:[%s6092 + $0x78] sm:$0xff]
        %v6109 = vld [vmem:[%s6092 + $0x80] sm:$0xff]
        %v6110 = vld [vmem:[%s6092 + $0x88] sm:$0xff]
        %v6111 = vld [vmem:[%s6092 + $0x90] sm:$0xff]
        %v6112 = vld [vmem:[%s6092 + $0x98] sm:$0xff]
        %v6113 = vld [vmem:[%s6092 + $0xa0] sm:$0xff]
        %v6114 = vld [vmem:[%s6092 + $0xa8] sm:$0xff]
        %v6115 = vld [vmem:[%s6092 + $0xb0] sm:$0xff]
        %v6116 = vld [vmem:[%s6092 + $0xb8] sm:$0xff]
        %v6117 = vld [vmem:[%s6092 + $0xc0] sm:$0xff]
        %v6118 = vld [vmem:[%s6092 + $0xc8] sm:$0xff]
        %v6119 = vld [vmem:[%s6092 + $0xd0] sm:$0xff]
        %v6120 = vld [vmem:[%s6092 + $0xd8] sm:$0xff]
        %v6121 = vld [vmem:[%s6092 + $0xe0] sm:$0xff]
        %v6122 = vld [vmem:[%s6092 + $0xe8] sm:$0xff]
        %v6123 = vld [vmem:[%s6092 + $0xf0] sm:$0xff]
        %v6124 = vld [vmem:[%s6092 + $0xf8] sm:$0xff]
        %v6125 = vld [vmem:[%s6092 + $0x100] sm:$0xff]
        %v6126 = vld [vmem:[%s6092 + $0x108] sm:$0xff]
        %v6127 = vld [vmem:[%s6092 + $0x110] sm:$0xff]
        %v6128 = vld [vmem:[%s6092 + $0x118] sm:$0xff]
        %v6129 = vld [vmem:[%s6092 + $0x120] sm:$0xff]
        %v6130 = vld [vmem:[%s6092 + $0x128] sm:$0xff]
        %v6131 = vld [vmem:[%s6092 + $0x130] sm:$0xff]
        %v6132 = vld [vmem:[%s6092 + $0x138] sm:$0xff]
        %v6133 = vld [vmem:[%s6092 + $0x140] sm:$0xf]
        %v6134 = vrot.slane %v1080, 2
        %v6135 = vrot.slane %v1081, 2
        %v6136 = vrot.slane %v1082, 2
        %v6139 = vsel %vm1174, %v6136, 0
        %v6142 = vsel %vm1177, %v6133, 0
        %6144 = vmatprep.subr.mxu0 0.0
        %6145 = vmatpush1.msra.mxu0 %v6093
        %6146 = vmatprep.subr.mxu0 0.0
        %6147 = vmatpush1.msra.mxu0 %v6094
        %6148 = vmatprep.subr.mxu0 0.0
        %6149 = vmatpush1.msra.mxu0 %v6095
        %6150 = vmatprep.subr.mxu0 0.0
        %6151 = vmatpush1.msra.mxu0 %v6096
        %6152 = vmatprep.subr.mxu0 0.0
        %6153 = vmatpush1.msra.mxu0 %v6097
        %6154 = vmatprep.subr.mxu0 0.0
        %6155 = vmatpush1.msra.mxu0 %v6098
        %6156 = vmatprep.subr.mxu0 0.0
        %6157 = vmatpush1.msra.mxu0 %v6099
        %6158 = vmatprep.subr.mxu0 0.0
        %6159 = vmatpush1.msra.mxu0 %v6100
        %6160 = vmatprep.subr.mxu0 0.0
        %6161 = vmatpush1.msra.mxu0 %v6101
        %6162 = vmatprep.subr.mxu0 0.0
        %6163 = vmatpush1.msra.mxu0 %v6102
        %6164 = vmatprep.subr.mxu0 0.0
        %6165 = vmatpush1.msra.mxu0 %v6103
        %6166 = vmatprep.subr.mxu0 0.0
        %6167 = vmatpush1.msra.mxu0 %v6104
        %6168 = vmatprep.subr.mxu0 0.0
        %6169 = vmatpush1.msra.mxu0 %v6105
        %6170 = vmatprep.subr.mxu0 0.0
        %6171 = vmatpush1.msra.mxu0 %v6106
        %6172 = vmatprep.subr.mxu0 0.0
        %6173 = vmatpush1.msra.mxu0 %v6107
        %6174 = vmatprep.subr.mxu0 0.0
        %6175 = vmatpush1.msra.mxu0 %v6108
        %6176 = vmatprep.subr.mxu0 0.0
        %6177 = vmatpush1.msra.mxu0 %v6109
        %6178 = vmatprep.subr.mxu0 0.0
        %6179 = vmatpush1.msra.mxu0 %v6110
        %6180 = vmatprep.subr.mxu0 0.0
        %6181 = vmatpush1.msra.mxu0 %v6111
        %6182 = vmatprep.subr.mxu0 0.0
        %6183 = vmatpush1.msra.mxu0 %v6112
        %6184 = vmatprep.subr.mxu0 0.0
        %6185 = vmatpush1.msra.mxu0 %v6113
        %6186 = vmatprep.subr.mxu0 0.0
        %6187 = vmatpush1.msra.mxu0 %v6114
        %6188 = vmatprep.subr.mxu0 0.0
        %6189 = vmatpush1.msra.mxu0 %v6115
        %6190 = vmatprep.subr.mxu0 0.0
        %6191 = vmatpush1.msra.mxu0 %v6116
        %6192 = vmatprep.subr.mxu0 0.0
        %6193 = vmatpush1.msra.mxu0 %v6117
        %6194 = vmatprep.subr.mxu0 0.0
        %6195 = vmatpush1.msra.mxu0 %v6118
        %6196 = vmatprep.subr.mxu0 0.0
        %6197 = vmatpush1.msra.mxu0 %v6119
        %6198 = vmatprep.subr.mxu0 0.0
        %6199 = vmatpush1.msra.mxu0 %v6120
        %6200 = vmatprep.subr.mxu0 0.0
        %6201 = vmatpush1.msra.mxu0 %v6121
        %6202 = vmatprep.subr.mxu0 0.0
        %6203 = vmatpush1.msra.mxu0 %v6122
        %6204 = vmatprep.subr.mxu0 0.0
        %6205 = vmatpush1.msra.mxu0 %v6123
        %6206 = vmatprep.subr.mxu0 0.0
        %6207 = vmatpush1.msra.mxu0 %v6124
        %6208 = vmatprep.mubr.f32.mxu0 %v6135
        %6209 = vmatmul.mubr.f32.gmra.mrb[0].mxu0 %v6134
        %v6210 = vpop.f32.mrb[0].mxu0
        %v6211 = vadd.f32 0.0, %v6210
        %v6212 = vpop.f32.mrb[0].mxu0
        %6213 = vdwg.mxu0
        %6214 = vmatprep.subr.mxu0 0.0
        %6215 = vmatpush1.msra.mxu0 %v6125
        %6216 = vmatprep.subr.mxu0 0.0
        %6217 = vmatpush1.msra.mxu0 %v6126
        %6218 = vmatprep.subr.mxu0 0.0
        %6219 = vmatpush1.msra.mxu0 %v6127
        %6220 = vmatprep.subr.mxu0 0.0
        %6221 = vmatpush1.msra.mxu0 %v6128
        %6222 = vmatprep.subr.mxu0 0.0
        %6223 = vmatpush1.msra.mxu0 %v6129
        %6224 = vmatprep.subr.mxu0 0.0
        %6225 = vmatpush1.msra.mxu0 %v6130
        %6226 = vmatprep.subr.mxu0 0.0
        %6227 = vmatpush1.msra.mxu0 %v6131
        %6228 = vmatprep.subr.mxu0 0.0
        %6229 = vmatpush1.msra.mxu0 %v6132
        %6230 = vmatprep.subr.mxu0 0.0
        %6231 = vmatpush1.msra.mxu0 %v6142
        %6232 = vmatprep.subr.mxu0 0.0
        %6233 = vmatpush1.msra.mxu0 0.0
        %6234 = vmatprep.subr.mxu0 0.0
        %6235 = vmatpush1.msra.mxu0 0.0
        %6236 = vmatprep.subr.mxu0 0.0
        %6237 = vmatpush1.msra.mxu0 0.0
        %6238 = vmatprep.subr.mxu0 0.0
        %6239 = vmatpush1.msra.mxu0 0.0
        %6240 = vmatprep.subr.mxu0 0.0
        %6241 = vmatpush1.msra.mxu0 0.0
        %6242 = vmatprep.subr.mxu0 0.0
        %6243 = vmatpush1.msra.mxu0 0.0
        %6244 = vmatprep.subr.mxu0 0.0
        %6245 = vmatpush1.msra.mxu0 0.0
        %6246 = vmatprep.subr.mxu0 0.0
        %6247 = vmatpush1.msra.mxu0 0.0
        %6248 = vmatprep.subr.mxu0 0.0
        %6249 = vmatpush1.msra.mxu0 0.0
        %6250 = vmatprep.subr.mxu0 0.0
        %6251 = vmatpush1.msra.mxu0 0.0
        %6252 = vmatprep.subr.mxu0 0.0
        %6253 = vmatpush1.msra.mxu0 0.0
        %6254 = vmatprep.subr.mxu0 0.0
        %6255 = vmatpush1.msra.mxu0 0.0
        %6256 = vmatprep.subr.mxu0 0.0
        %6257 = vmatpush1.msra.mxu0 0.0
        %6258 = vmatprep.subr.mxu0 0.0
        %6259 = vmatpush1.msra.mxu0 0.0
        %6260 = vmatprep.subr.mxu0 0.0
        %6261 = vmatpush1.msra.mxu0 0.0
        %6262 = vmatprep.subr.mxu0 0.0
        %6263 = vmatpush1.msra.mxu0 0.0
        %6264 = vmatprep.subr.mxu0 0.0
        %6265 = vmatpush1.msra.mxu0 0.0
        %6266 = vmatprep.subr.mxu0 0.0
        %6267 = vmatpush1.msra.mxu0 0.0
        %6268 = vmatprep.subr.mxu0 0.0
        %6269 = vmatpush1.msra.mxu0 0.0
        %6270 = vmatprep.subr.mxu0 0.0
        %6271 = vmatpush1.msra.mxu0 0.0
        %6272 = vmatprep.subr.mxu0 0.0
        %6273 = vmatpush1.msra.mxu0 0.0
        %6274 = vmatprep.subr.mxu0 0.0
        %6275 = vmatpush1.msra.mxu0 0.0
        %6276 = vmatprep.subr.mxu0 0.0
        %6277 = vmatpush1.msra.mxu0 0.0
        %6278 = vmatprep.mubr.f32.mxu0 0.0
        %6279 = vmatmul.mubr.f32.gmra.mrb[0].mxu0 %v6139
        %v6280 = vpop.f32.mrb[0].mxu0
        %v6281 = vadd.f32 %v6211, %v6280
        %v6282 = vpop.f32.mrb[0].mxu0
        %6283 = vdwg.mxu0
        %v6284 = vadd.f32 %v6091, %v6281
        %s6285 = scalar_lea.vmem %s3, 8856
        %v6286 = vld [vmem:[%s6285] sm:$0xff]
        %v6287 = vld [vmem:[%s6285 + $0x8] sm:$0xff]
        %v6288 = vld [vmem:[%s6285 + $0x10] sm:$0xff]
        %v6289 = vld [vmem:[%s6285 + $0x18] sm:$0xff]
        %v6290 = vld [vmem:[%s6285 + $0x20] sm:$0xff]
        %v6291 = vld [vmem:[%s6285 + $0x28] sm:$0xff]
        %v6292 = vld [vmem:[%s6285 + $0x30] sm:$0xff]
        %v6293 = vld [vmem:[%s6285 + $0x38] sm:$0xff]
        %v6294 = vld [vmem:[%s6285 + $0x40] sm:$0xff]
        %v6295 = vld [vmem:[%s6285 + $0x48] sm:$0xff]
        %v6296 = vld [vmem:[%s6285 + $0x50] sm:$0xff]
        %v6297 = vld [vmem:[%s6285 + $0x58] sm:$0xff]
        %v6298 = vld [vmem:[%s6285 + $0x60] sm:$0xff]
        %v6299 = vld [vmem:[%s6285 + $0x68] sm:$0xff]
        %v6300 = vld [vmem:[%s6285 + $0x70] sm:$0xff]
        %v6301 = vld [vmem:[%s6285 + $0x78] sm:$0xff]
        %v6302 = vld [vmem:[%s6285 + $0x80] sm:$0xff]
        %v6303 = vld [vmem:[%s6285 + $0x88] sm:$0xff]
        %v6304 = vld [vmem:[%s6285 + $0x90] sm:$0xff]
        %v6305 = vld [vmem:[%s6285 + $0x98] sm:$0xff]
        %v6306 = vld [vmem:[%s6285 + $0xa0] sm:$0xff]
        %v6307 = vld [vmem:[%s6285 + $0xa8] sm:$0xff]
        %v6308 = vld [vmem:[%s6285 + $0xb0] sm:$0xff]
        %v6309 = vld [vmem:[%s6285 + $0xb8] sm:$0xff]
        %v6310 = vld [vmem:[%s6285 + $0xc0] sm:$0xff]
        %v6311 = vld [vmem:[%s6285 + $0xc8] sm:$0xff]
        %v6312 = vld [vmem:[%s6285 + $0xd0] sm:$0xff]
        %v6313 = vld [vmem:[%s6285 + $0xd8] sm:$0xff]
        %v6314 = vld [vmem:[%s6285 + $0xe0] sm:$0xff]
        %v6315 = vld [vmem:[%s6285 + $0xe8] sm:$0xff]
        %v6316 = vld [vmem:[%s6285 + $0xf0] sm:$0xff]
        %v6317 = vld [vmem:[%s6285 + $0xf8] sm:$0xff]
        %v6318 = vld [vmem:[%s6285 + $0x100] sm:$0xff]
        %v6319 = vld [vmem:[%s6285 + $0x108] sm:$0xff]
        %v6320 = vld [vmem:[%s6285 + $0x110] sm:$0xff]
        %v6321 = vld [vmem:[%s6285 + $0x118] sm:$0xff]
        %v6322 = vld [vmem:[%s6285 + $0x120] sm:$0xff]
        %v6323 = vld [vmem:[%s6285 + $0x128] sm:$0xff]
        %v6324 = vld [vmem:[%s6285 + $0x130] sm:$0xff]
        %v6325 = vld [vmem:[%s6285 + $0x138] sm:$0xff]
        %v6326 = vld [vmem:[%s6285 + $0x140] sm:$0xf]
        %v6327 = vrot.slane %v1080, 3
        %v6328 = vrot.slane %v1081, 3
        %v6329 = vrot.slane %v1082, 3
        %v6332 = vsel %vm1174, %v6329, 0
        %v6335 = vsel %vm1177, %v6326, 0
        %6337 = vmatprep.subr.mxu0 0.0
        %6338 = vmatpush1.msra.mxu0 %v6286
        %6339 = vmatprep.subr.mxu0 0.0
        %6340 = vmatpush1.msra.mxu0 %v6287
        %6341 = vmatprep.subr.mxu0 0.0
        %6342 = vmatpush1.msra.mxu0 %v6288
        %6343 = vmatprep.subr.mxu0 0.0
        %6344 = vmatpush1.msra.mxu0 %v6289
        %6345 = vmatprep.subr.mxu0 0.0
        %6346 = vmatpush1.msra.mxu0 %v6290
        %6347 = vmatprep.subr.mxu0 0.0
        %6348 = vmatpush1.msra.mxu0 %v6291
        %6349 = vmatprep.subr.mxu0 0.0
        %6350 = vmatpush1.msra.mxu0 %v6292
        %6351 = vmatprep.subr.mxu0 0.0
        %6352 = vmatpush1.msra.mxu0 %v6293
        %6353 = vmatprep.subr.mxu0 0.0
        %6354 = vmatpush1.msra.mxu0 %v6294
        %6355 = vmatprep.subr.mxu0 0.0
        %6356 = vmatpush1.msra.mxu0 %v6295
        %6357 = vmatprep.subr.mxu0 0.0
        %6358 = vmatpush1.msra.mxu0 %v6296
        %6359 = vmatprep.subr.mxu0 0.0
        %6360 = vmatpush1.msra.mxu0 %v6297
        %6361 = vmatprep.subr.mxu0 0.0
        %6362 = vmatpush1.msra.mxu0 %v6298
        %6363 = vmatprep.subr.mxu0 0.0
        %6364 = vmatpush1.msra.mxu0 %v6299
        %6365 = vmatprep.subr.mxu0 0.0
        %6366 = vmatpush1.msra.mxu0 %v6300
        %6367 = vmatprep.subr.mxu0 0.0
        %6368 = vmatpush1.msra.mxu0 %v6301
        %6369 = vmatprep.subr.mxu0 0.0
        %6370 = vmatpush1.msra.mxu0 %v6302
        %6371 = vmatprep.subr.mxu0 0.0
        %6372 = vmatpush1.msra.mxu0 %v6303
        %6373 = vmatprep.subr.mxu0 0.0
        %6374 = vmatpush1.msra.mxu0 %v6304
        %6375 = vmatprep.subr.mxu0 0.0
        %6376 = vmatpush1.msra.mxu0 %v6305
        %6377 = vmatprep.subr.mxu0 0.0
        %6378 = vmatpush1.msra.mxu0 %v6306
        %6379 = vmatprep.subr.mxu0 0.0
        %6380 = vmatpush1.msra.mxu0 %v6307
        %6381 = vmatprep.subr.mxu0 0.0
        %6382 = vmatpush1.msra.mxu0 %v6308
        %6383 = vmatprep.subr.mxu0 0.0
        %6384 = vmatpush1.msra.mxu0 %v6309
        %6385 = vmatprep.subr.mxu0 0.0
        %6386 = vmatpush1.msra.mxu0 %v6310
        %6387 = vmatprep.subr.mxu0 0.0
        %6388 = vmatpush1.msra.mxu0 %v6311
        %6389 = vmatprep.subr.mxu0 0.0
        %6390 = vmatpush1.msra.mxu0 %v6312
        %6391 = vmatprep.subr.mxu0 0.0
        %6392 = vmatpush1.msra.mxu0 %v6313
        %6393 = vmatprep.subr.mxu0 0.0
        %6394 = vmatpush1.msra.mxu0 %v6314
        %6395 = vmatprep.subr.mxu0 0.0
        %6396 = vmatpush1.msra.mxu0 %v6315
        %6397 = vmatprep.subr.mxu0 0.0
        %6398 = vmatpush1.msra.mxu0 %v6316
        %6399 = vmatprep.subr.mxu0 0.0
        %6400 = vmatpush1.msra.mxu0 %v6317
        %6401 = vmatprep.mubr.f32.mxu0 %v6328
        %6402 = vmatmul.mubr.f32.gmra.mrb[0].mxu0 %v6327
        %v6403 = vpop.f32.mrb[0].mxu0
        %v6404 = vadd.f32 0.0, %v6403
        %v6405 = vpop.f32.mrb[0].mxu0
        %6406 = vdwg.mxu0
        %6407 = vmatprep.subr.mxu0 0.0
        %6408 = vmatpush1.msra.mxu0 %v6318
        %6409 = vmatprep.subr.mxu0 0.0
        %6410 = vmatpush1.msra.mxu0 %v6319
        %6411 = vmatprep.subr.mxu0 0.0
        %6412 = vmatpush1.msra.mxu0 %v6320
        %6413 = vmatprep.subr.mxu0 0.0
        %6414 = vmatpush1.msra.mxu0 %v6321
        %6415 = vmatprep.subr.mxu0 0.0
        %6416 = vmatpush1.msra.mxu0 %v6322
        %6417 = vmatprep.subr.mxu0 0.0
        %6418 = vmatpush1.msra.mxu0 %v6323
        %6419 = vmatprep.subr.mxu0 0.0
        %6420 = vmatpush1.msra.mxu0 %v6324
        %6421 = vmatprep.subr.mxu0 0.0
        %6422 = vmatpush1.msra.mxu0 %v6325
        %6423 = vmatprep.subr.mxu0 0.0
        %6424 = vmatpush1.msra.mxu0 %v6335
        %6425 = vmatprep.subr.mxu0 0.0
        %6426 = vmatpush1.msra.mxu0 0.0
        %6427 = vmatprep.subr.mxu0 0.0
        %6428 = vmatpush1.msra.mxu0 0.0
        %6429 = vmatprep.subr.mxu0 0.0
        %6430 = vmatpush1.msra.mxu0 0.0
        %6431 = vmatprep.subr.mxu0 0.0
        %6432 = vmatpush1.msra.mxu0 0.0
        %6433 = vmatprep.subr.mxu0 0.0
        %6434 = vmatpush1.msra.mxu0 0.0
        %6435 = vmatprep.subr.mxu0 0.0
        %6436 = vmatpush1.msra.mxu0 0.0
        %6437 = vmatprep.subr.mxu0 0.0
        %6438 = vmatpush1.msra.mxu0 0.0
        %6439 = vmatprep.subr.mxu0 0.0
        %6440 = vmatpush1.msra.mxu0 0.0
        %6441 = vmatprep.subr.mxu0 0.0
        %6442 = vmatpush1.msra.mxu0 0.0
        %6443 = vmatprep.subr.mxu0 0.0
        %6444 = vmatpush1.msra.mxu0 0.0
        %6445 = vmatprep.subr.mxu0 0.0
        %6446 = vmatpush1.msra.mxu0 0.0
        %6447 = vmatprep.subr.mxu0 0.0
        %6448 = vmatpush1.msra.mxu0 0.0
        %6449 = vmatprep.subr.mxu0 0.0
        %6450 = vmatpush1.msra.mxu0 0.0
        %6451 = vmatprep.subr.mxu0 0.0
        %6452 = vmatpush1.msra.mxu0 0.0
        %6453 = vmatprep.subr.mxu0 0.0
        %6454 = vmatpush1.msra.mxu0 0.0
        %6455 = vmatprep.subr.mxu0 0.0
        %6456 = vmatpush1.msra.mxu0 0.0
        %6457 = vmatprep.subr.mxu0 0.0
        %6458 = vmatpush1.msra.mxu0 0.0
        %6459 = vmatprep.subr.mxu0 0.0
        %6460 = vmatpush1.msra.mxu0 0.0
        %6461 = vmatprep.subr.mxu0 0.0
        %6462 = vmatpush1.msra.mxu0 0.0
        %6463 = vmatprep.subr.mxu0 0.0
        %6464 = vmatpush1.msra.mxu0 0.0
        %6465 = vmatprep.subr.mxu0 0.0
        %6466 = vmatpush1.msra.mxu0 0.0
        %6467 = vmatprep.subr.mxu0 0.0
        %6468 = vmatpush1.msra.mxu0 0.0
        %6469 = vmatprep.subr.mxu0 0.0
        %6470 = vmatpush1.msra.mxu0 0.0
        %6471 = vmatprep.mubr.f32.mxu0 0.0
        %6472 = vmatmul.mubr.f32.gmra.mrb[0].mxu0 %v6332
        %v6473 = vpop.f32.mrb[0].mxu0
        %v6474 = vadd.f32 %v6404, %v6473
        %v6475 = vpop.f32.mrb[0].mxu0
        %6476 = vdwg.mxu0
        %v6477 = vadd.f32 %v6284, %v6474
        %s6478 = scalar_lea.vmem %s3, 9184
        %v6479 = vld [vmem:[%s6478] sm:$0xff]
        %v6480 = vld [vmem:[%s6478 + $0x8] sm:$0xff]
        %v6481 = vld [vmem:[%s6478 + $0x10] sm:$0xff]
        %v6482 = vld [vmem:[%s6478 + $0x18] sm:$0xff]
        %v6483 = vld [vmem:[%s6478 + $0x20] sm:$0xff]
        %v6484 = vld [vmem:[%s6478 + $0x28] sm:$0xff]
        %v6485 = vld [vmem:[%s6478 + $0x30] sm:$0xff]
        %v6486 = vld [vmem:[%s6478 + $0x38] sm:$0xff]
        %v6487 = vld [vmem:[%s6478 + $0x40] sm:$0xff]
        %v6488 = vld [vmem:[%s6478 + $0x48] sm:$0xff]
        %v6489 = vld [vmem:[%s6478 + $0x50] sm:$0xff]
        %v6490 = vld [vmem:[%s6478 + $0x58] sm:$0xff]
        %v6491 = vld [vmem:[%s6478 + $0x60] sm:$0xff]
        %v6492 = vld [vmem:[%s6478 + $0x68] sm:$0xff]
        %v6493 = vld [vmem:[%s6478 + $0x70] sm:$0xff]
        %v6494 = vld [vmem:[%s6478 + $0x78] sm:$0xff]
        %v6495 = vld [vmem:[%s6478 + $0x80] sm:$0xff]
        %v6496 = vld [vmem:[%s6478 + $0x88] sm:$0xff]
        %v6497 = vld [vmem:[%s6478 + $0x90] sm:$0xff]
        %v6498 = vld [vmem:[%s6478 + $0x98] sm:$0xff]
        %v6499 = vld [vmem:[%s6478 + $0xa0] sm:$0xff]
        %v6500 = vld [vmem:[%s6478 + $0xa8] sm:$0xff]
        %v6501 = vld [vmem:[%s6478 + $0xb0] sm:$0xff]
        %v6502 = vld [vmem:[%s6478 + $0xb8] sm:$0xff]
        %v6503 = vld [vmem:[%s6478 + $0xc0] sm:$0xff]
        %v6504 = vld [vmem:[%s6478 + $0xc8] sm:$0xff]
        %v6505 = vld [vmem:[%s6478 + $0xd0] sm:$0xff]
        %v6506 = vld [vmem:[%s6478 + $0xd8] sm:$0xff]
        %v6507 = vld [vmem:[%s6478 + $0xe0] sm:$0xff]
        %v6508 = vld [vmem:[%s6478 + $0xe8] sm:$0xff]
        %v6509 = vld [vmem:[%s6478 + $0xf0] sm:$0xff]
        %v6510 = vld [vmem:[%s6478 + $0xf8] sm:$0xff]
        %v6511 = vld [vmem:[%s6478 + $0x100] sm:$0xff]
        %v6512 = vld [vmem:[%s6478 + $0x108] sm:$0xff]
        %v6513 = vld [vmem:[%s6478 + $0x110] sm:$0xff]
        %v6514 = vld [vmem:[%s6478 + $0x118] sm:$0xff]
        %v6515 = vld [vmem:[%s6478 + $0x120] sm:$0xff]
        %v6516 = vld [vmem:[%s6478 + $0x128] sm:$0xff]
        %v6517 = vld [vmem:[%s6478 + $0x130] sm:$0xff]
        %v6518 = vld [vmem:[%s6478 + $0x138] sm:$0xff]
        %v6519 = vld [vmem:[%s6478 + $0x140] sm:$0xf]
        %v6520 = vrot.slane %v1080, 4
        %v6521 = vrot.slane %v1081, 4
        %v6522 = vrot.slane %v1082, 4
        %v6525 = vsel %vm1174, %v6522, 0
        %v6528 = vsel %vm1177, %v6519, 0
        %6530 = vmatprep.subr.mxu0 0.0
        %6531 = vmatpush1.msra.mxu0 %v6479
        %6532 = vmatprep.subr.mxu0 0.0
        %6533 = vmatpush1.msra.mxu0 %v6480
        %6534 = vmatprep.subr.mxu0 0.0
        %6535 = vmatpush1.msra.mxu0 %v6481
        %6536 = vmatprep.subr.mxu0 0.0
        %6537 = vmatpush1.msra.mxu0 %v6482
        %6538 = vmatprep.subr.mxu0 0.0
        %6539 = vmatpush1.msra.mxu0 %v6483
        %6540 = vmatprep.subr.mxu0 0.0
        %6541 = vmatpush1.msra.mxu0 %v6484
        %6542 = vmatprep.subr.mxu0 0.0
        %6543 = vmatpush1.msra.mxu0 %v6485
        %6544 = vmatprep.subr.mxu0 0.0
        %6545 = vmatpush1.msra.mxu0 %v6486
        %6546 = vmatprep.subr.mxu0 0.0
        %6547 = vmatpush1.msra.mxu0 %v6487
        %6548 = vmatprep.subr.mxu0 0.0
        %6549 = vmatpush1.msra.mxu0 %v6488
        %6550 = vmatprep.subr.mxu0 0.0
        %6551 = vmatpush1.msra.mxu0 %v6489
        %6552 = vmatprep.subr.mxu0 0.0
        %6553 = vmatpush1.msra.mxu0 %v6490
        %6554 = vmatprep.subr.mxu0 0.0
        %6555 = vmatpush1.msra.mxu0 %v6491
        %6556 = vmatprep.subr.mxu0 0.0
        %6557 = vmatpush1.msra.mxu0 %v6492
        %6558 = vmatprep.subr.mxu0 0.0
        %6559 = vmatpush1.msra.mxu0 %v6493
        %6560 = vmatprep.subr.mxu0 0.0
        %6561 = vmatpush1.msra.mxu0 %v6494
        %6562 = vmatprep.subr.mxu0 0.0
        %6563 = vmatpush1.msra.mxu0 %v6495
        %6564 = vmatprep.subr.mxu0 0.0
        %6565 = vmatpush1.msra.mxu0 %v6496
        %6566 = vmatprep.subr.mxu0 0.0
        %6567 = vmatpush1.msra.mxu0 %v6497
        %6568 = vmatprep.subr.mxu0 0.0
        %6569 = vmatpush1.msra.mxu0 %v6498
        %6570 = vmatprep.subr.mxu0 0.0
        %6571 = vmatpush1.msra.mxu0 %v6499
        %6572 = vmatprep.subr.mxu0 0.0
        %6573 = vmatpush1.msra.mxu0 %v6500
        %6574 = vmatprep.subr.mxu0 0.0
        %6575 = vmatpush1.msra.mxu0 %v6501
        %6576 = vmatprep.subr.mxu0 0.0
        %6577 = vmatpush1.msra.mxu0 %v6502
        %6578 = vmatprep.subr.mxu0 0.0
        %6579 = vmatpush1.msra.mxu0 %v6503
        %6580 = vmatprep.subr.mxu0 0.0
        %6581 = vmatpush1.msra.mxu0 %v6504
        %6582 = vmatprep.subr.mxu0 0.0
        %6583 = vmatpush1.msra.mxu0 %v6505
        %6584 = vmatprep.subr.mxu0 0.0
        %6585 = vmatpush1.msra.mxu0 %v6506
        %6586 = vmatprep.subr.mxu0 0.0
        %6587 = vmatpush1.msra.mxu0 %v6507
        %6588 = vmatprep.subr.mxu0 0.0
        %6589 = vmatpush1.msra.mxu0 %v6508
        %6590 = vmatprep.subr.mxu0 0.0
        %6591 = vmatpush1.msra.mxu0 %v6509
        %6592 = vmatprep.subr.mxu0 0.0
        %6593 = vmatpush1.msra.mxu0 %v6510
        %6594 = vmatprep.mubr.f32.mxu0 %v6521
        %6595 = vmatmul.mubr.f32.gmra.mrb[0].mxu0 %v6520
        %v6596 = vpop.f32.mrb[0].mxu0
        %v6597 = vadd.f32 0.0, %v6596
        %v6598 = vpop.f32.mrb[0].mxu0
        %6599 = vdwg.mxu0
        %6600 = vmatprep.subr.mxu0 0.0
        %6601 = vmatpush1.msra.mxu0 %v6511
        %6602 = vmatprep.subr.mxu0 0.0
        %6603 = vmatpush1.msra.mxu0 %v6512
        %6604 = vmatprep.subr.mxu0 0.0
        %6605 = vmatpush1.msra.mxu0 %v6513
        %6606 = vmatprep.subr.mxu0 0.0
        %6607 = vmatpush1.msra.mxu0 %v6514
        %6608 = vmatprep.subr.mxu0 0.0
        %6609 = vmatpush1.msra.mxu0 %v6515
        %6610 = vmatprep.subr.mxu0 0.0
        %6611 = vmatpush1.msra.mxu0 %v6516
        %6612 = vmatprep.subr.mxu0 0.0
        %6613 = vmatpush1.msra.mxu0 %v6517
        %6614 = vmatprep.subr.mxu0 0.0
        %6615 = vmatpush1.msra.mxu0 %v6518
        %6616 = vmatprep.subr.mxu0 0.0
        %6617 = vmatpush1.msra.mxu0 %v6528
        %6618 = vmatprep.subr.mxu0 0.0
        %6619 = vmatpush1.msra.mxu0 0.0
        %6620 = vmatprep.subr.mxu0 0.0
        %6621 = vmatpush1.msra.mxu0 0.0
        %6622 = vmatprep.subr.mxu0 0.0
        %6623 = vmatpush1.msra.mxu0 0.0
        %6624 = vmatprep.subr.mxu0 0.0
        %6625 = vmatpush1.msra.mxu0 0.0
        %6626 = vmatprep.subr.mxu0 0.0
        %6627 = vmatpush1.msra.mxu0 0.0
        %6628 = vmatprep.subr.mxu0 0.0
        %6629 = vmatpush1.msra.mxu0 0.0
        %6630 = vmatprep.subr.mxu0 0.0
        %6631 = vmatpush1.msra.mxu0 0.0
        %6632 = vmatprep.subr.mxu0 0.0
        %6633 = vmatpush1.msra.mxu0 0.0
        %6634 = vmatprep.subr.mxu0 0.0
        %6635 = vmatpush1.msra.mxu0 0.0
        %6636 = vmatprep.subr.mxu0 0.0
        %6637 = vmatpush1.msra.mxu0 0.0
        %6638 = vmatprep.subr.mxu0 0.0
        %6639 = vmatpush1.msra.mxu0 0.0
        %6640 = vmatprep.subr.mxu0 0.0
        %6641 = vmatpush1.msra.mxu0 0.0
        %6642 = vmatprep.subr.mxu0 0.0
        %6643 = vmatpush1.msra.mxu0 0.0
        %6644 = vmatprep.subr.mxu0 0.0
        %6645 = vmatpush1.msra.mxu0 0.0
        %6646 = vmatprep.subr.mxu0 0.0
        %6647 = vmatpush1.msra.mxu0 0.0
        %6648 = vmatprep.subr.mxu0 0.0
        %6649 = vmatpush1.msra.mxu0 0.0
        %6650 = vmatprep.subr.mxu0 0.0
        %6651 = vmatpush1.msra.mxu0 0.0
        %6652 = vmatprep.subr.mxu0 0.0
        %6653 = vmatpush1.msra.mxu0 0.0
        %6654 = vmatprep.subr.mxu0 0.0
        %6655 = vmatpush1.msra.mxu0 0.0
        %6656 = vmatprep.subr.mxu0 0.0
        %6657 = vmatpush1.msra.mxu0 0.0
        %6658 = vmatprep.subr.mxu0 0.0
        %6659 = vmatpush1.msra.mxu0 0.0
        %6660 = vmatprep.subr.mxu0 0.0
        %6661 = vmatpush1.msra.mxu0 0.0
        %6662 = vmatprep.subr.mxu0 0.0
        %6663 = vmatpush1.msra.mxu0 0.0
        %6664 = vmatprep.mubr.f32.mxu0 0.0
        %6665 = vmatmul.mubr.f32.gmra.mrb[0].mxu0 %v6525
        %v6666 = vpop.f32.mrb[0].mxu0
        %v6667 = vadd.f32 %v6597, %v6666
        %v6668 = vpop.f32.mrb[0].mxu0
        %6669 = vdwg.mxu0
        %v6670 = vadd.f32 %v6477, %v6667
        %s6671 = scalar_lea.vmem %s3, 9512
        %v6672 = vld [vmem:[%s6671] sm:$0xff]
        %v6673 = vld [vmem:[%s6671 + $0x8] sm:$0xff]
        %v6674 = vld [vmem:[%s6671 + $0x10] sm:$0xff]
        %v6675 = vld [vmem:[%s6671 + $0x18] sm:$0xff]
        %v6676 = vld [vmem:[%s6671 + $0x20] sm:$0xff]
        %v6677 = vld [vmem:[%s6671 + $0x28] sm:$0xff]
        %v6678 = vld [vmem:[%s6671 + $0x30] sm:$0xff]
        %v6679 = vld [vmem:[%s6671 + $0x38] sm:$0xff]
        %v6680 = vld [vmem:[%s6671 + $0x40] sm:$0xff]
        %v6681 = vld [vmem:[%s6671 + $0x48] sm:$0xff]
        %v6682 = vld [vmem:[%s6671 + $0x50] sm:$0xff]
        %v6683 = vld [vmem:[%s6671 + $0x58] sm:$0xff]
        %v6684 = vld [vmem:[%s6671 + $0x60] sm:$0xff]
        %v6685 = vld [vmem:[%s6671 + $0x68] sm:$0xff]
        %v6686 = vld [vmem:[%s6671 + $0x70] sm:$0xff]
        %v6687 = vld [vmem:[%s6671 + $0x78] sm:$0xff]
        %v6688 = vld [vmem:[%s6671 + $0x80] sm:$0xff]
        %v6689 = vld [vmem:[%s6671 + $0x88] sm:$0xff]
        %v6690 = vld [vmem:[%s6671 + $0x90] sm:$0xff]
        %v6691 = vld [vmem:[%s6671 + $0x98] sm:$0xff]
        %v6692 = vld [vmem:[%s6671 + $0xa0] sm:$0xff]
        %v6693 = vld [vmem:[%s6671 + $0xa8] sm:$0xff]
        %v6694 = vld [vmem:[%s6671 + $0xb0] sm:$0xff]
        %v6695 = vld [vmem:[%s6671 + $0xb8] sm:$0xff]
        %v6696 = vld [vmem:[%s6671 + $0xc0] sm:$0xff]
        %v6697 = vld [vmem:[%s6671 + $0xc8] sm:$0xff]
        %v6698 = vld [vmem:[%s6671 + $0xd0] sm:$0xff]
        %v6699 = vld [vmem:[%s6671 + $0xd8] sm:$0xff]
        %v6700 = vld [vmem:[%s6671 + $0xe0] sm:$0xff]
        %v6701 = vld [vmem:[%s6671 + $0xe8] sm:$0xff]
        %v6702 = vld [vmem:[%s6671 + $0xf0] sm:$0xff]
        %v6703 = vld [vmem:[%s6671 + $0xf8] sm:$0xff]
        %v6704 = vld [vmem:[%s6671 + $0x100] sm:$0xff]
        %v6705 = vld [vmem:[%s6671 + $0x108] sm:$0xff]
        %v6706 = vld [vmem:[%s6671 + $0x110] sm:$0xff]
        %v6707 = vld [vmem:[%s6671 + $0x118] sm:$0xff]
        %v6708 = vld [vmem:[%s6671 + $0x120] sm:$0xff]
        %v6709 = vld [vmem:[%s6671 + $0x128] sm:$0xff]
        %v6710 = vld [vmem:[%s6671 + $0x130] sm:$0xff]
        %v6711 = vld [vmem:[%s6671 + $0x138] sm:$0xff]
        %v6712 = vld [vmem:[%s6671 + $0x140] sm:$0xf]
        %v6713 = vrot.slane %v1080, 5
        %v6714 = vrot.slane %v1081, 5
        %v6715 = vrot.slane %v1082, 5
        %v6718 = vsel %vm1174, %v6715, 0
        %v6721 = vsel %vm1177, %v6712, 0
        %6723 = vmatprep.subr.mxu0 0.0
        %6724 = vmatpush1.msra.mxu0 %v6672
        %6725 = vmatprep.subr.mxu0 0.0
        %6726 = vmatpush1.msra.mxu0 %v6673
        %6727 = vmatprep.subr.mxu0 0.0
        %6728 = vmatpush1.msra.mxu0 %v6674
        %6729 = vmatprep.subr.mxu0 0.0
        %6730 = vmatpush1.msra.mxu0 %v6675
        %6731 = vmatprep.subr.mxu0 0.0
        %6732 = vmatpush1.msra.mxu0 %v6676
        %6733 = vmatprep.subr.mxu0 0.0
        %6734 = vmatpush1.msra.mxu0 %v6677
        %6735 = vmatprep.subr.mxu0 0.0
        %6736 = vmatpush1.msra.mxu0 %v6678
        %6737 = vmatprep.subr.mxu0 0.0
        %6738 = vmatpush1.msra.mxu0 %v6679
        %6739 = vmatprep.subr.mxu0 0.0
        %6740 = vmatpush1.msra.mxu0 %v6680
        %6741 = vmatprep.subr.mxu0 0.0
        %6742 = vmatpush1.msra.mxu0 %v6681
        %6743 = vmatprep.subr.mxu0 0.0
        %6744 = vmatpush1.msra.mxu0 %v6682
        %6745 = vmatprep.subr.mxu0 0.0
        %6746 = vmatpush1.msra.mxu0 %v6683
        %6747 = vmatprep.subr.mxu0 0.0
        %6748 = vmatpush1.msra.mxu0 %v6684
        %6749 = vmatprep.subr.mxu0 0.0
        %6750 = vmatpush1.msra.mxu0 %v6685
        %6751 = vmatprep.subr.mxu0 0.0
        %6752 = vmatpush1.msra.mxu0 %v6686
        %6753 = vmatprep.subr.mxu0 0.0
        %6754 = vmatpush1.msra.mxu0 %v6687
        %6755 = vmatprep.subr.mxu0 0.0
        %6756 = vmatpush1.msra.mxu0 %v6688
        %6757 = vmatprep.subr.mxu0 0.0
        %6758 = vmatpush1.msra.mxu0 %v6689
        %6759 = vmatprep.subr.mxu0 0.0
        %6760 = vmatpush1.msra.mxu0 %v6690
        %6761 = vmatprep.subr.mxu0 0.0
        %6762 = vmatpush1.msra.mxu0 %v6691
        %6763 = vmatprep.subr.mxu0 0.0
        %6764 = vmatpush1.msra.mxu0 %v6692
        %6765 = vmatprep.subr.mxu0 0.0
        %6766 = vmatpush1.msra.mxu0 %v6693
        %6767 = vmatprep.subr.mxu0 0.0
        %6768 = vmatpush1.msra.mxu0 %v6694
        %6769 = vmatprep.subr.mxu0 0.0
        %6770 = vmatpush1.msra.mxu0 %v6695
        %6771 = vmatprep.subr.mxu0 0.0
        %6772 = vmatpush1.msra.mxu0 %v6696
        %6773 = vmatprep.subr.mxu0 0.0
        %6774 = vmatpush1.msra.mxu0 %v6697
        %6775 = vmatprep.subr.mxu0 0.0
        %6776 = vmatpush1.msra.mxu0 %v6698
        %6777 = vmatprep.subr.mxu0 0.0
        %6778 = vmatpush1.msra.mxu0 %v6699
        %6779 = vmatprep.subr.mxu0 0.0
        %6780 = vmatpush1.msra.mxu0 %v6700
        %6781 = vmatprep.subr.mxu0 0.0
        %6782 = vmatpush1.msra.mxu0 %v6701
        %6783 = vmatprep.subr.mxu0 0.0
        %6784 = vmatpush1.msra.mxu0 %v6702
        %6785 = vmatprep.subr.mxu0 0.0
        %6786 = vmatpush1.msra.mxu0 %v6703
        %6787 = vmatprep.mubr.f32.mxu0 %v6714
        %6788 = vmatmul.mubr.f32.gmra.mrb[0].mxu0 %v6713
        %v6789 = vpop.f32.mrb[0].mxu0
        %v6790 = vadd.f32 0.0, %v6789
        %v6791 = vpop.f32.mrb[0].mxu0
        %6792 = vdwg.mxu0
        %6793 = vmatprep.subr.mxu0 0.0
        %6794 = vmatpush1.msra.mxu0 %v6704
        %6795 = vmatprep.subr.mxu0 0.0
        %6796 = vmatpush1.msra.mxu0 %v6705
        %6797 = vmatprep.subr.mxu0 0.0
        %6798 = vmatpush1.msra.mxu0 %v6706
        %6799 = vmatprep.subr.mxu0 0.0
        %6800 = vmatpush1.msra.mxu0 %v6707
        %6801 = vmatprep.subr.mxu0 0.0
        %6802 = vmatpush1.msra.mxu0 %v6708
        %6803 = vmatprep.subr.mxu0 0.0
        %6804 = vmatpush1.msra.mxu0 %v6709
        %6805 = vmatprep.subr.mxu0 0.0
        %6806 = vmatpush1.msra.mxu0 %v6710
        %6807 = vmatprep.subr.mxu0 0.0
        %6808 = vmatpush1.msra.mxu0 %v6711
        %6809 = vmatprep.subr.mxu0 0.0
        %6810 = vmatpush1.msra.mxu0 %v6721
        %6811 = vmatprep.subr.mxu0 0.0
        %6812 = vmatpush1.msra.mxu0 0.0
        %6813 = vmatprep.subr.mxu0 0.0
        %6814 = vmatpush1.msra.mxu0 0.0
        %6815 = vmatprep.subr.mxu0 0.0
        %6816 = vmatpush1.msra.mxu0 0.0
        %6817 = vmatprep.subr.mxu0 0.0
        %6818 = vmatpush1.msra.mxu0 0.0
        %6819 = vmatprep.subr.mxu0 0.0
        %6820 = vmatpush1.msra.mxu0 0.0
        %6821 = vmatprep.subr.mxu0 0.0
        %6822 = vmatpush1.msra.mxu0 0.0
        %6823 = vmatprep.subr.mxu0 0.0
        %6824 = vmatpush1.msra.mxu0 0.0
        %6825 = vmatprep.subr.mxu0 0.0
        %6826 = vmatpush1.msra.mxu0 0.0
        %6827 = vmatprep.subr.mxu0 0.0
        %6828 = vmatpush1.msra.mxu0 0.0
        %6829 = vmatprep.subr.mxu0 0.0
        %6830 = vmatpush1.msra.mxu0 0.0
        %6831 = vmatprep.subr.mxu0 0.0
        %6832 = vmatpush1.msra.mxu0 0.0
        %6833 = vmatprep.subr.mxu0 0.0
        %6834 = vmatpush1.msra.mxu0 0.0
        %6835 = vmatprep.subr.mxu0 0.0
        %6836 = vmatpush1.msra.mxu0 0.0
        %6837 = vmatprep.subr.mxu0 0.0
        %6838 = vmatpush1.msra.mxu0 0.0
        %6839 = vmatprep.subr.mxu0 0.0
        %6840 = vmatpush1.msra.mxu0 0.0
        %6841 = vmatprep.subr.mxu0 0.0
        %6842 = vmatpush1.msra.mxu0 0.0
        %6843 = vmatprep.subr.mxu0 0.0
        %6844 = vmatpush1.msra.mxu0 0.0
        %6845 = vmatprep.subr.mxu0 0.0
        %6846 = vmatpush1.msra.mxu0 0.0
        %6847 = vmatprep.subr.mxu0 0.0
        %6848 = vmatpush1.msra.mxu0 0.0
        %6849 = vmatprep.subr.mxu0 0.0
        %6850 = vmatpush1.msra.mxu0 0.0
        %6851 = vmatprep.subr.mxu0 0.0
        %6852 = vmatpush1.msra.mxu0 0.0
        %6853 = vmatprep.subr.mxu0 0.0
        %6854 = vmatpush1.msra.mxu0 0.0
        %6855 = vmatprep.subr.mxu0 0.0
        %6856 = vmatpush1.msra.mxu0 0.0
        %6857 = vmatprep.mubr.f32.mxu0 0.0
        %6858 = vmatmul.mubr.f32.gmra.mrb[0].mxu0 %v6718
        %v6859 = vpop.f32.mrb[0].mxu0
        %v6860 = vadd.f32 %v6790, %v6859
        %v6861 = vpop.f32.mrb[0].mxu0
        %6862 = vdwg.mxu0
        %v6863 = vadd.f32 %v6670, %v6860
        %s6864 = scalar_lea.vmem %s3, 9840
        %v6865 = vld [vmem:[%s6864] sm:$0xff]
        %v6866 = vld [vmem:[%s6864 + $0x8] sm:$0xff]
        %v6867 = vld [vmem:[%s6864 + $0x10] sm:$0xff]
        %v6868 = vld [vmem:[%s6864 + $0x18] sm:$0xff]
        %v6869 = vld [vmem:[%s6864 + $0x20] sm:$0xff]
        %v6870 = vld [vmem:[%s6864 + $0x28] sm:$0xff]
        %v6871 = vld [vmem:[%s6864 + $0x30] sm:$0xff]
        %v6872 = vld [vmem:[%s6864 + $0x38] sm:$0xff]
        %v6873 = vld [vmem:[%s6864 + $0x40] sm:$0xff]
        %v6874 = vld [vmem:[%s6864 + $0x48] sm:$0xff]
        %v6875 = vld [vmem:[%s6864 + $0x50] sm:$0xff]
        %v6876 = vld [vmem:[%s6864 + $0x58] sm:$0xff]
        %v6877 = vld [vmem:[%s6864 + $0x60] sm:$0xff]
        %v6878 = vld [vmem:[%s6864 + $0x68] sm:$0xff]
        %v6879 = vld [vmem:[%s6864 + $0x70] sm:$0xff]
        %v6880 = vld [vmem:[%s6864 + $0x78] sm:$0xff]
        %v6881 = vld [vmem:[%s6864 + $0x80] sm:$0xff]
        %v6882 = vld [vmem:[%s6864 + $0x88] sm:$0xff]
        %v6883 = vld [vmem:[%s6864 + $0x90] sm:$0xff]
        %v6884 = vld [vmem:[%s6864 + $0x98] sm:$0xff]
        %v6885 = vld [vmem:[%s6864 + $0xa0] sm:$0xff]
        %v6886 = vld [vmem:[%s6864 + $0xa8] sm:$0xff]
        %v6887 = vld [vmem:[%s6864 + $0xb0] sm:$0xff]
        %v6888 = vld [vmem:[%s6864 + $0xb8] sm:$0xff]
        %v6889 = vld [vmem:[%s6864 + $0xc0] sm:$0xff]
        %v6890 = vld [vmem:[%s6864 + $0xc8] sm:$0xff]
        %v6891 = vld [vmem:[%s6864 + $0xd0] sm:$0xff]
        %v6892 = vld [vmem:[%s6864 + $0xd8] sm:$0xff]
        %v6893 = vld [vmem:[%s6864 + $0xe0] sm:$0xff]
        %v6894 = vld [vmem:[%s6864 + $0xe8] sm:$0xff]
        %v6895 = vld [vmem:[%s6864 + $0xf0] sm:$0xff]
        %v6896 = vld [vmem:[%s6864 + $0xf8] sm:$0xff]
        %v6897 = vld [vmem:[%s6864 + $0x100] sm:$0xff]
        %v6898 = vld [vmem:[%s6864 + $0x108] sm:$0xff]
        %v6899 = vld [vmem:[%s6864 + $0x110] sm:$0xff]
        %v6900 = vld [vmem:[%s6864 + $0x118] sm:$0xff]
        %v6901 = vld [vmem:[%s6864 + $0x120] sm:$0xff]
        %v6902 = vld [vmem:[%s6864 + $0x128] sm:$0xff]
        %v6903 = vld [vmem:[%s6864 + $0x130] sm:$0xff]
        %v6904 = vld [vmem:[%s6864 + $0x138] sm:$0xff]
        %v6905 = vld [vmem:[%s6864 + $0x140] sm:$0xf]
        %v6906 = vrot.slane %v1080, 6
        %v6907 = vrot.slane %v1081, 6
        %v6908 = vrot.slane %v1082, 6
        %v6911 = vsel %vm1174, %v6908, 0
        %v6914 = vsel %vm1177, %v6905, 0
        %6916 = vmatprep.subr.mxu0 0.0
        %6917 = vmatpush1.msra.mxu0 %v6865
        %6918 = vmatprep.subr.mxu0 0.0
        %6919 = vmatpush1.msra.mxu0 %v6866
        %6920 = vmatprep.subr.mxu0 0.0
        %6921 = vmatpush1.msra.mxu0 %v6867
        %6922 = vmatprep.subr.mxu0 0.0
        %6923 = vmatpush1.msra.mxu0 %v6868
        %6924 = vmatprep.subr.mxu0 0.0
        %6925 = vmatpush1.msra.mxu0 %v6869
        %6926 = vmatprep.subr.mxu0 0.0
        %6927 = vmatpush1.msra.mxu0 %v6870
        %6928 = vmatprep.subr.mxu0 0.0
        %6929 = vmatpush1.msra.mxu0 %v6871
        %6930 = vmatprep.subr.mxu0 0.0
        %6931 = vmatpush1.msra.mxu0 %v6872
        %6932 = vmatprep.subr.mxu0 0.0
        %6933 = vmatpush1.msra.mxu0 %v6873
        %6934 = vmatprep.subr.mxu0 0.0
        %6935 = vmatpush1.msra.mxu0 %v6874
        %6936 = vmatprep.subr.mxu0 0.0
        %6937 = vmatpush1.msra.mxu0 %v6875
        %6938 = vmatprep.subr.mxu0 0.0
        %6939 = vmatpush1.msra.mxu0 %v6876
        %6940 = vmatprep.subr.mxu0 0.0
        %6941 = vmatpush1.msra.mxu0 %v6877
        %6942 = vmatprep.subr.mxu0 0.0
        %6943 = vmatpush1.msra.mxu0 %v6878
        %6944 = vmatprep.subr.mxu0 0.0
        %6945 = vmatpush1.msra.mxu0 %v6879
        %6946 = vmatprep.subr.mxu0 0.0
        %6947 = vmatpush1.msra.mxu0 %v6880
        %6948 = vmatprep.subr.mxu0 0.0
        %6949 = vmatpush1.msra.mxu0 %v6881
        %6950 = vmatprep.subr.mxu0 0.0
        %6951 = vmatpush1.msra.mxu0 %v6882
        %6952 = vmatprep.subr.mxu0 0.0
        %6953 = vmatpush1.msra.mxu0 %v6883
        %6954 = vmatprep.subr.mxu0 0.0
        %6955 = vmatpush1.msra.mxu0 %v6884
        %6956 = vmatprep.subr.mxu0 0.0
        %6957 = vmatpush1.msra.mxu0 %v6885
        %6958 = vmatprep.subr.mxu0 0.0
        %6959 = vmatpush1.msra.mxu0 %v6886
        %6960 = vmatprep.subr.mxu0 0.0
        %6961 = vmatpush1.msra.mxu0 %v6887
        %6962 = vmatprep.subr.mxu0 0.0
        %6963 = vmatpush1.msra.mxu0 %v6888
        %6964 = vmatprep.subr.mxu0 0.0
        %6965 = vmatpush1.msra.mxu0 %v6889
        %6966 = vmatprep.subr.mxu0 0.0
        %6967 = vmatpush1.msra.mxu0 %v6890
        %6968 = vmatprep.subr.mxu0 0.0
        %6969 = vmatpush1.msra.mxu0 %v6891
        %6970 = vmatprep.subr.mxu0 0.0
        %6971 = vmatpush1.msra.mxu0 %v6892
        %6972 = vmatprep.subr.mxu0 0.0
        %6973 = vmatpush1.msra.mxu0 %v6893
        %6974 = vmatprep.subr.mxu0 0.0
        %6975 = vmatpush1.msra.mxu0 %v6894
        %6976 = vmatprep.subr.mxu0 0.0
        %6977 = vmatpush1.msra.mxu0 %v6895
        %6978 = vmatprep.subr.mxu0 0.0
        %6979 = vmatpush1.msra.mxu0 %v6896
        %6980 = vmatprep.mubr.f32.mxu0 %v6907
        %6981 = vmatmul.mubr.f32.gmra.mrb[0].mxu0 %v6906
        %v6982 = vpop.f32.mrb[0].mxu0
        %v6983 = vadd.f32 0.0, %v6982
        %v6984 = vpop.f32.mrb[0].mxu0
        %6985 = vdwg.mxu0
        %6986 = vmatprep.subr.mxu0 0.0
        %6987 = vmatpush1.msra.mxu0 %v6897
        %6988 = vmatprep.subr.mxu0 0.0
        %6989 = vmatpush1.msra.mxu0 %v6898
        %6990 = vmatprep.subr.mxu0 0.0
        %6991 = vmatpush1.msra.mxu0 %v6899
        %6992 = vmatprep.subr.mxu0 0.0
        %6993 = vmatpush1.msra.mxu0 %v6900
        %6994 = vmatprep.subr.mxu0 0.0
        %6995 = vmatpush1.msra.mxu0 %v6901
        %6996 = vmatprep.subr.mxu0 0.0
        %6997 = vmatpush1.msra.mxu0 %v6902
        %6998 = vmatprep.subr.mxu0 0.0
        %6999 = vmatpush1.msra.mxu0 %v6903
        %7000 = vmatprep.subr.mxu0 0.0
        %7001 = vmatpush1.msra.mxu0 %v6904
        %7002 = vmatprep.subr.mxu0 0.0
        %7003 = vmatpush1.msra.mxu0 %v6914
        %7004 = vmatprep.subr.mxu0 0.0
        %7005 = vmatpush1.msra.mxu0 0.0
        %7006 = vmatprep.subr.mxu0 0.0
        %7007 = vmatpush1.msra.mxu0 0.0
        %7008 = vmatprep.subr.mxu0 0.0
        %7009 = vmatpush1.msra.mxu0 0.0
        %7010 = vmatprep.subr.mxu0 0.0
        %7011 = vmatpush1.msra.mxu0 0.0
        %7012 = vmatprep.subr.mxu0 0.0
        %7013 = vmatpush1.msra.mxu0 0.0
        %7014 = vmatprep.subr.mxu0 0.0
        %7015 = vmatpush1.msra.mxu0 0.0
        %7016 = vmatprep.subr.mxu0 0.0
        %7017 = vmatpush1.msra.mxu0 0.0
        %7018 = vmatprep.subr.mxu0 0.0
        %7019 = vmatpush1.msra.mxu0 0.0
        %7020 = vmatprep.subr.mxu0 0.0
        %7021 = vmatpush1.msra.mxu0 0.0
        %7022 = vmatprep.subr.mxu0 0.0
        %7023 = vmatpush1.msra.mxu0 0.0
        %7024 = vmatprep.subr.mxu0 0.0
        %7025 = vmatpush1.msra.mxu0 0.0
        %7026 = vmatprep.subr.mxu0 0.0
        %7027 = vmatpush1.msra.mxu0 0.0
        %7028 = vmatprep.subr.mxu0 0.0
        %7029 = vmatpush1.msra.mxu0 0.0
        %7030 = vmatprep.subr.mxu0 0.0
        %7031 = vmatpush1.msra.mxu0 0.0
        %7032 = vmatprep.subr.mxu0 0.0
        %7033 = vmatpush1.msra.mxu0 0.0
        %7034 = vmatprep.subr.mxu0 0.0
        %7035 = vmatpush1.msra.mxu0 0.0
        %7036 = vmatprep.subr.mxu0 0.0
        %7037 = vmatpush1.msra.mxu0 0.0
        %7038 = vmatprep.subr.mxu0 0.0
        %7039 = vmatpush1.msra.mxu0 0.0
        %7040 = vmatprep.subr.mxu0 0.0
        %7041 = vmatpush1.msra.mxu0 0.0
        %7042 = vmatprep.subr.mxu0 0.0
        %7043 = vmatpush1.msra.mxu0 0.0
        %7044 = vmatprep.subr.mxu0 0.0
        %7045 = vmatpush1.msra.mxu0 0.0
        %7046 = vmatprep.subr.mxu0 0.0
        %7047 = vmatpush1.msra.mxu0 0.0
        %7048 = vmatprep.subr.mxu0 0.0
        %7049 = vmatpush1.msra.mxu0 0.0
        %7050 = vmatprep.mubr.f32.mxu0 0.0
        %7051 = vmatmul.mubr.f32.gmra.mrb[0].mxu0 %v6911
        %v7052 = vpop.f32.mrb[0].mxu0
        %v7053 = vadd.f32 %v6983, %v7052
        %v7054 = vpop.f32.mrb[0].mxu0
        %7055 = vdwg.mxu0
        %v7056 = vadd.f32 %v6863, %v7053
        %s7057 = scalar_lea.vmem %s3, 10168
        %v7058 = vld [vmem:[%s7057] sm:$0xff]
        %v7059 = vld [vmem:[%s7057 + $0x8] sm:$0xff]
        %v7060 = vld [vmem:[%s7057 + $0x10] sm:$0xff]
        %v7061 = vld [vmem:[%s7057 + $0x18] sm:$0xff]
        %v7062 = vld [vmem:[%s7057 + $0x20] sm:$0xff]
        %v7063 = vld [vmem:[%s7057 + $0x28] sm:$0xff]
        %v7064 = vld [vmem:[%s7057 + $0x30] sm:$0xff]
        %v7065 = vld [vmem:[%s7057 + $0x38] sm:$0xff]
        %v7066 = vld [vmem:[%s7057 + $0x40] sm:$0xff]
        %v7067 = vld [vmem:[%s7057 + $0x48] sm:$0xff]
        %v7068 = vld [vmem:[%s7057 + $0x50] sm:$0xff]
        %v7069 = vld [vmem:[%s7057 + $0x58] sm:$0xff]
        %v7070 = vld [vmem:[%s7057 + $0x60] sm:$0xff]
        %v7071 = vld [vmem:[%s7057 + $0x68] sm:$0xff]
        %v7072 = vld [vmem:[%s7057 + $0x70] sm:$0xff]
        %v7073 = vld [vmem:[%s7057 + $0x78] sm:$0xff]
        %v7074 = vld [vmem:[%s7057 + $0x80] sm:$0xff]
        %v7075 = vld [vmem:[%s7057 + $0x88] sm:$0xff]
        %v7076 = vld [vmem:[%s7057 + $0x90] sm:$0xff]
        %v7077 = vld [vmem:[%s7057 + $0x98] sm:$0xff]
        %v7078 = vld [vmem:[%s7057 + $0xa0] sm:$0xff]
        %v7079 = vld [vmem:[%s7057 + $0xa8] sm:$0xff]
        %v7080 = vld [vmem:[%s7057 + $0xb0] sm:$0xff]
        %v7081 = vld [vmem:[%s7057 + $0xb8] sm:$0xff]
        %v7082 = vld [vmem:[%s7057 + $0xc0] sm:$0xff]
        %v7083 = vld [vmem:[%s7057 + $0xc8] sm:$0xff]
        %v7084 = vld [vmem:[%s7057 + $0xd0] sm:$0xff]
        %v7085 = vld [vmem:[%s7057 + $0xd8] sm:$0xff]
        %v7086 = vld [vmem:[%s7057 + $0xe0] sm:$0xff]
        %v7087 = vld [vmem:[%s7057 + $0xe8] sm:$0xff]
        %v7088 = vld [vmem:[%s7057 + $0xf0] sm:$0xff]
        %v7089 = vld [vmem:[%s7057 + $0xf8] sm:$0xff]
        %v7090 = vld [vmem:[%s7057 + $0x100] sm:$0xff]
        %v7091 = vld [vmem:[%s7057 + $0x108] sm:$0xff]
        %v7092 = vld [vmem:[%s7057 + $0x110] sm:$0xff]
        %v7093 = vld [vmem:[%s7057 + $0x118] sm:$0xff]
        %v7094 = vld [vmem:[%s7057 + $0x120] sm:$0xff]
        %v7095 = vld [vmem:[%s7057 + $0x128] sm:$0xff]
        %v7096 = vld [vmem:[%s7057 + $0x130] sm:$0xff]
        %v7097 = vld [vmem:[%s7057 + $0x138] sm:$0xff]
        %v7098 = vld [vmem:[%s7057 + $0x140] sm:$0xf]
        %v7099 = vrot.slane %v1080, 7
        %v7100 = vrot.slane %v1081, 7
        %v7101 = vrot.slane %v1082, 7
        %v7104 = vsel %vm1174, %v7101, 0
        %v7107 = vsel %vm1177, %v7098, 0
        %7109 = vmatprep.subr.mxu0 0.0
        %7110 = vmatpush1.msra.mxu0 %v7058
        %7111 = vmatprep.subr.mxu0 0.0
        %7112 = vmatpush1.msra.mxu0 %v7059
        %7113 = vmatprep.subr.mxu0 0.0
        %7114 = vmatpush1.msra.mxu0 %v7060
        %7115 = vmatprep.subr.mxu0 0.0
        %7116 = vmatpush1.msra.mxu0 %v7061
        %7117 = vmatprep.subr.mxu0 0.0
        %7118 = vmatpush1.msra.mxu0 %v7062
        %7119 = vmatprep.subr.mxu0 0.0
        %7120 = vmatpush1.msra.mxu0 %v7063
        %7121 = vmatprep.subr.mxu0 0.0
        %7122 = vmatpush1.msra.mxu0 %v7064
        %7123 = vmatprep.subr.mxu0 0.0
        %7124 = vmatpush1.msra.mxu0 %v7065
        %7125 = vmatprep.subr.mxu0 0.0
        %7126 = vmatpush1.msra.mxu0 %v7066
        %7127 = vmatprep.subr.mxu0 0.0
        %7128 = vmatpush1.msra.mxu0 %v7067
        %7129 = vmatprep.subr.mxu0 0.0
        %7130 = vmatpush1.msra.mxu0 %v7068
        %7131 = vmatprep.subr.mxu0 0.0
        %7132 = vmatpush1.msra.mxu0 %v7069
        %7133 = vmatprep.subr.mxu0 0.0
        %7134 = vmatpush1.msra.mxu0 %v7070
        %7135 = vmatprep.subr.mxu0 0.0
        %7136 = vmatpush1.msra.mxu0 %v7071
        %7137 = vmatprep.subr.mxu0 0.0
        %7138 = vmatpush1.msra.mxu0 %v7072
        %7139 = vmatprep.subr.mxu0 0.0
        %7140 = vmatpush1.msra.mxu0 %v7073
        %7141 = vmatprep.subr.mxu0 0.0
        %7142 = vmatpush1.msra.mxu0 %v7074
        %7143 = vmatprep.subr.mxu0 0.0
        %7144 = vmatpush1.msra.mxu0 %v7075
        %7145 = vmatprep.subr.mxu0 0.0
        %7146 = vmatpush1.msra.mxu0 %v7076
        %7147 = vmatprep.subr.mxu0 0.0
        %7148 = vmatpush1.msra.mxu0 %v7077
        %7149 = vmatprep.subr.mxu0 0.0
        %7150 = vmatpush1.msra.mxu0 %v7078
        %7151 = vmatprep.subr.mxu0 0.0
        %7152 = vmatpush1.msra.mxu0 %v7079
        %7153 = vmatprep.subr.mxu0 0.0
        %7154 = vmatpush1.msra.mxu0 %v7080
        %7155 = vmatprep.subr.mxu0 0.0
        %7156 = vmatpush1.msra.mxu0 %v7081
        %7157 = vmatprep.subr.mxu0 0.0
        %7158 = vmatpush1.msra.mxu0 %v7082
        %7159 = vmatprep.subr.mxu0 0.0
        %7160 = vmatpush1.msra.mxu0 %v7083
        %7161 = vmatprep.subr.mxu0 0.0
        %7162 = vmatpush1.msra.mxu0 %v7084
        %7163 = vmatprep.subr.mxu0 0.0
        %7164 = vmatpush1.msra.mxu0 %v7085
        %7165 = vmatprep.subr.mxu0 0.0
        %7166 = vmatpush1.msra.mxu0 %v7086
        %7167 = vmatprep.subr.mxu0 0.0
        %7168 = vmatpush1.msra.mxu0 %v7087
        %7169 = vmatprep.subr.mxu0 0.0
        %7170 = vmatpush1.msra.mxu0 %v7088
        %7171 = vmatprep.subr.mxu0 0.0
        %7172 = vmatpush1.msra.mxu0 %v7089
        %7173 = vmatprep.mubr.f32.mxu0 %v7100
        %7174 = vmatmul.mubr.f32.gmra.mrb[0].mxu0 %v7099
        %v7175 = vpop.f32.mrb[0].mxu0
        %v7176 = vadd.f32 0.0, %v7175
        %v7177 = vpop.f32.mrb[0].mxu0
        %7178 = vdwg.mxu0
        %7179 = vmatprep.subr.mxu0 0.0
        %7180 = vmatpush1.msra.mxu0 %v7090
        %7181 = vmatprep.subr.mxu0 0.0
        %7182 = vmatpush1.msra.mxu0 %v7091
        %7183 = vmatprep.subr.mxu0 0.0
        %7184 = vmatpush1.msra.mxu0 %v7092
        %7185 = vmatprep.subr.mxu0 0.0
        %7186 = vmatpush1.msra.mxu0 %v7093
        %7187 = vmatprep.subr.mxu0 0.0
        %7188 = vmatpush1.msra.mxu0 %v7094
        %7189 = vmatprep.subr.mxu0 0.0
        %7190 = vmatpush1.msra.mxu0 %v7095
        %7191 = vmatprep.subr.mxu0 0.0
        %7192 = vmatpush1.msra.mxu0 %v7096
        %7193 = vmatprep.subr.mxu0 0.0
        %7194 = vmatpush1.msra.mxu0 %v7097
        %7195 = vmatprep.subr.mxu0 0.0
        %7196 = vmatpush1.msra.mxu0 %v7107
        %7197 = vmatprep.subr.mxu0 0.0
        %7198 = vmatpush1.msra.mxu0 0.0
        %7199 = vmatprep.subr.mxu0 0.0
        %7200 = vmatpush1.msra.mxu0 0.0
        %7201 = vmatprep.subr.mxu0 0.0
        %7202 = vmatpush1.msra.mxu0 0.0
        %7203 = vmatprep.subr.mxu0 0.0
        %7204 = vmatpush1.msra.mxu0 0.0
        %7205 = vmatprep.subr.mxu0 0.0
        %7206 = vmatpush1.msra.mxu0 0.0
        %7207 = vmatprep.subr.mxu0 0.0
        %7208 = vmatpush1.msra.mxu0 0.0
        %7209 = vmatprep.subr.mxu0 0.0
        %7210 = vmatpush1.msra.mxu0 0.0
        %7211 = vmatprep.subr.mxu0 0.0
        %7212 = vmatpush1.msra.mxu0 0.0
        %7213 = vmatprep.subr.mxu0 0.0
        %7214 = vmatpush1.msra.mxu0 0.0
        %7215 = vmatprep.subr.mxu0 0.0
        %7216 = vmatpush1.msra.mxu0 0.0
        %7217 = vmatprep.subr.mxu0 0.0
        %7218 = vmatpush1.msra.mxu0 0.0
        %7219 = vmatprep.subr.mxu0 0.0
        %7220 = vmatpush1.msra.mxu0 0.0
        %7221 = vmatprep.subr.mxu0 0.0
        %7222 = vmatpush1.msra.mxu0 0.0
        %7223 = vmatprep.subr.mxu0 0.0
        %7224 = vmatpush1.msra.mxu0 0.0
        %7225 = vmatprep.subr.mxu0 0.0
        %7226 = vmatpush1.msra.mxu0 0.0
        %7227 = vmatprep.subr.mxu0 0.0
        %7228 = vmatpush1.msra.mxu0 0.0
        %7229 = vmatprep.subr.mxu0 0.0
        %7230 = vmatpush1.msra.mxu0 0.0
        %7231 = vmatprep.subr.mxu0 0.0
        %7232 = vmatpush1.msra.mxu0 0.0
        %7233 = vmatprep.subr.mxu0 0.0
        %7234 = vmatpush1.msra.mxu0 0.0
        %7235 = vmatprep.subr.mxu0 0.0
        %7236 = vmatpush1.msra.mxu0 0.0
        %7237 = vmatprep.subr.mxu0 0.0
        %7238 = vmatpush1.msra.mxu0 0.0
        %7239 = vmatprep.subr.mxu0 0.0
        %7240 = vmatpush1.msra.mxu0 0.0
        %7241 = vmatprep.subr.mxu0 0.0
        %7242 = vmatpush1.msra.mxu0 0.0
        %7243 = vmatprep.mubr.f32.mxu0 0.0
        %7244 = vmatmul.mubr.f32.gmra.mrb[0].mxu0 %v7104
        %v7245 = vpop.f32.mrb[0].mxu0
        %v7246 = vadd.f32 %v7176, %v7245
        %v7247 = vpop.f32.mrb[0].mxu0
        %7248 = vdwg.mxu0
        %v7249 = vadd.f32 %v7056, %v7246
        %v7250 = vld [vmem:[%s4] sm:$0x1]
        %v7251 = vadd.f32 %v7249, %v7250
        %vm7252 = vcmask 155648
        %7253 = vst.msk [vmem:[%s216] sm:$0x1] %vm7252, %v7251
        %s7254 = sand.u32 %s137, 1
        %s7255 = scalar_lea.sflag [#allocation3], %s7254
        %s7256 = sand.u32 %s137, 1
        %s7257 = scalar_lea.vmem [#allocation2], %s7256
        // Predicated region
        $region41: #{tpu_custom_call.1} parent=39 // pred_check
          %p7258 = pneg %p147
        $region42: #{tpu_custom_call.1} parent=39 // pred_check_branch
          %7260 = sbr.rel (%p7258) target = $region44
        $region43: #{tpu_custom_call.1} parent=39 // pred_region
          %s7262 = ssub.s32 16, 16
          %7263 = vsyncadd %s7255, %s7262
          %s7264 = smul.addr %s19, 16
          %s7265 = scalar_lea.hbm %s5, %s7264
          %s7267 = sshll.u32 %s7257, 4
          %s7268 = int_to_ptr.vmem [resolvable:$true] %s7267
          %7270 = dma.vmem_to_hbm [thread:$0]  %s7268, 16, %s7265, %s7255
        $region44: #{tpu_custom_call.1} parent=39 // pred_fallthru
          _
      $region40: #{tpu_custom_call.1} parent=5 // pred_fallthru
        _
      %p7271 = scmp.le.s32.totalorder 2, %s14
      // Predicated region
      $region45: #{tpu_custom_call.1} parent=5 // pred_check
        %p7272 = pneg %p7271
      $region46: #{tpu_custom_call.1} parent=5 // pred_check_branch
        %7274 = sbr.rel (%p7272) target = $region48
      $region47: #{tpu_custom_call.1} parent=5 // pred_region
        %s7275 = ssub.s32 %s14, 2
        // Predicated region
        $region49: #{tpu_custom_call.1} parent=47 // pred_check
          %p7276 = pneg %p153
        $region50: #{tpu_custom_call.1} parent=47 // pred_check_branch
          %7278 = sbr.rel (%p7276) target = $region52
        $region51: #{tpu_custom_call.1} parent=47 // pred_region
          %s7279 = sand.u32 %s138, 1
          %s7280 = scalar_lea.sflag [#allocation3], %s7279
          %s7281 = sand.u32 %s138, 1
          %s7282 = scalar_lea.vmem [#allocation2], %s7281
          %7283 = dma.done %s7280, 16
        $region52: #{tpu_custom_call.1} parent=47 // pred_fallthru
          _
      $region48: #{tpu_custom_call.1} parent=5 // pred_fallthru
        _
    $region6: #{tpu_custom_call.1} parent=1 // loop_footer
      %s18 = sadd.s32 1, %s14
    $region7: #{tpu_custom_call.1} parent=1 // loop_footer_branch
      %13 = sbr.rel target = $region3
    $region8: #{tpu_custom_call.1} parent=1 // loop_exit
      _
    %7284 = vsyncpa [#allocation3], 1
    %s7285 = scalar_lea.sflag [#allocation3], 1
    %7286 = vsyncpa %s7285, 1

</llo_original>
